<compile_context>
chip_gen: v7x
topology: tpu7x:2x2x1
jax: 0.10.0
libtpu: 0.0.40
codegen_flags: <defaults>
</compile_context>

<pallas_src>
import functools
import jax
import jax.numpy as jnp
from jax.experimental import pallas as pl
from jax.experimental.pallas import tpu as pltpu

BG = 0.1          # GatingMechanism default bias constant
NEG_BIG = -1e30   # additive mask value (≈ -inf, but NaN-safe)


# ----------------------------------------------------------------------------- kernels

def _linear_kernel(x_ref, w_ref, b_ref, o_ref):
    o_ref[...] = (
        jnp.dot(x_ref[...], w_ref[...], preferred_element_type=jnp.float32)
        + b_ref[...]
    )


def _layer_kernel(
    x_ref, mem_ref, pos_ref, nmask_ref, sel_ref,
    ln1_g_ref, ln1_b_ref,
    w_qkv_ref, w_kvm_ref, w_p_ref,
    u_ref, v_ref, w_o_ref,
    g1_wy_ref, g1_ux_ref, g1_ug_ref, g1_b_ref,
    ln2_g_ref, ln2_b_ref,
    ff_w1_ref, ff_b1_ref, ff_w2_ref, ff_b2_ref,
    g2_wy_ref, g2_ux_ref, g2_ug_ref, g2_b_ref,
    o_ref,
    awv_ref,
    *, B, T, M, H, d, scale,
):
    """One full GTrXL encoder layer for all B batches, fully resident in VMEM."""
    f32 = jnp.float32
    D = x_ref.shape[-1]
    HD = H * d
    K = T + M

    def ln(v, g_ref, b_ref):
        mu = jnp.mean(v, axis=-1, keepdims=True)
        vc = v - mu
        var = jnp.mean(vc * vc, axis=-1, keepdims=True)
        return vc * jax.lax.rsqrt(var + 1e-5) * g_ref[...] + b_ref[...]

    x = x_ref[...]        # (B*T, D)   row = b*T + t
    mem = mem_ref[...]    # (B*M, D)   row = b*M + m

    # ---- pre-norm + fused projections ----
    x2 = ln(x, ln1_g_ref, ln1_b_ref)                                        # (B*T, D)
    qkv = jnp.dot(x2, w_qkv_ref[...], preferred_element_type=f32)           # (B*T, 3*HD) [q|k|v]
    kvm = jnp.dot(mem, w_kvm_ref[...], preferred_element_type=f32)          # (B*M, 2*HD) [k|v]
    p = jnp.dot(pos_ref[...], w_p_ref[...], preferred_element_type=f32)     # (K, HD)

    qu = qkv[:, :HD] + u_ref[...]                                           # (B*T, HD)
    qv = qkv[:, :HD] + v_ref[...]                                           # (B*T, HD)

    nmask = nmask_ref[...]   # (T, K)   additive (0 or NEG_BIG)
    sel = sel_ref[...]       # (T, K, K) one-hot rel-shift selection

    # ---- relative multi-head attention (per batch, per head; all tiny MXU matmuls) ----
    for b in range(B):
        q_u_b = qu[b * T:(b + 1) * T, :]                                    # (T, HD)
        q_v_b = qv[b * T:(b + 1) * T, :]
        k_b = jnp.concatenate(
            [kvm[b * M:(b + 1) * M, :HD], qkv[b * T:(b + 1) * T, HD:2 * HD]], axis=0)   # (K, HD)
        v_b = jnp.concatenate(
            [kvm[b * M:(b + 1) * M, HD:], qkv[b * T:(b + 1) * T, 2 * HD:]], axis=0)     # (K, HD)
        for h in range(H):
            cs = slice(h * d, (h + 1) * d)
            # content term: (q+u) . k^T
            ac = jax.lax.dot_general(q_u_b[:, cs], k_b[:, cs],
                                     (((1,), (1,)), ((), ())),
                                     preferred_element_type=f32)            # (T, K)
            # positional term: (q+v) . P^T, then rel-shift on the (T, K) scores
            f_raw = jax.lax.dot_general(q_v_b[:, cs], p[:, cs],
                                        (((1,), (1,)), ((), ())),
                                        preferred_element_type=f32)         # (T, K)
            bd = jnp.sum(f_raw[:, None, :] * sel, axis=-1)                  # (T, K)
            a = (ac + bd) * scale + nmask
            m = jnp.max(a, axis=-1, keepdims=True)
            e = jnp.exp(a - m)
            s = jnp.sum(e, axis=-1, keepdims=True)
            w = e * pl.reciprocal(s, approx=True)
            awv_ref[b * T:(b + 1) * T, cs] = jnp.dot(
                w, v_b[:, cs], preferred_element_type=f32)                  # (T, d)

    mha = jnp.dot(awv_ref[...], w_o_ref[...], preferred_element_type=f32)   # (B*T, D)

    # ---- GRU-style gating (fused wide matmuls) ----
    def gate(xg, yg, wy_ref, ux_ref, ug_ref, b3_ref):
        yw = jnp.dot(yg, wy_ref[...], preferred_element_type=f32)           # (R, 3D) [Wr|Wz|Wg](y)
        xu = jnp.dot(xg, ux_ref[...], preferred_element_type=f32)           # (R, 2D) [Ur|Uz](x)
        bb = b3_ref[...]                                                    # (1, 3D) [br|bz-bg|bh]
        r = jax.nn.sigmoid(yw[:, :D] + xu[:, :D] + bb[:, :D])
        z = jax.nn.sigmoid(yw[:, D:2 * D] + xu[:, D:2 * D] + bb[:, D:2 * D])
        hcand = jnp.tanh(yw[:, 2 * D:]
                         + jnp.dot(r * xg, ug_ref[...], preferred_element_type=f32)
                         + bb[:, 2 * D:])
        return (1.0 - z) * xg + z * hcand

    src = gate(x, mha, g1_wy_ref, g1_ux_ref, g1_ug_ref, g1_b_ref)

    # ---- FFN on LN2(src) ----
    x3 = ln(src, ln2_g_ref, ln2_b_ref)
    hf = jnp.maximum(
        jnp.dot(x3, ff_w1_ref[...], preferred_element_type=f32) + ff_b1_ref[...], 0.0)
    ffo = jnp.dot(hf, ff_w2_ref[...], preferred_element_type=f32) + ff_b2_ref[...]

    # ---- gate 2 ----
    o_ref[...] = gate(src, ffo, g2_wy_ref, g2_ux_ref, g2_ug_ref, g2_b_ref)


# ----------------------------------------------------------------------------- wrappers

def _full_spec(arr):
    zeros = (0,) * arr.ndim
    return pl.BlockSpec(arr.shape, lambda i, _z=zeros: _z)


def linear_full(x2d, w_t, b2):
    """y = x @ w_t + b2 on the whole slab in one grid step (w_t already (in, out))."""
    R, _ = x2d.shape
    Dout = w_t.shape[1]
    args = [x2d, w_t, b2]
    return pl.pallas_call(
        _linear_kernel,
        out_shape=jax.ShapeDtypeStruct((R, Dout), jnp.float32),
        grid=(1,),
        in_specs=[_full_spec(a) for a in args],
        out_specs=pl.BlockSpec((R, Dout), lambda i: (0, 0)),
        compiler_params=pltpu.CompilerParams(dimension_semantics=("arbitrary",)),
    )(*args)


def encoder_layer_fused(x2d, mem2d, pos, nmask, sel, lp, u_flat, v_flat, cfg, T, B, M):
    R, D = x2d.shape
    H, d = cfg['n_head'], cfg['d_head']
    scale = 1.0 / (d ** 0.5)
    kernel = functools.partial(_layer_kernel, B=B, T=T, M=M, H=H, d=d, scale=scale)

    args = [
        x2d, mem2d, pos, nmask, sel,
        lp['ln1_g'], lp['ln1_b'],
        lp['w_qkv'], lp['w_kvm'], lp['w_p'],
        u_flat, v_flat, lp['w_o'],
        lp['g1_wy'], lp['g1_ux'], lp['g1_ug'], lp['g1_b'],
        lp['ln2_g'], lp['ln2_b'],
        lp['ff_w1'], lp['ff_b1'], lp['ff_w2'], lp['ff_b2'],
        lp['g2_wy'], lp['g2_ux'], lp['g2_ug'], lp['g2_b'],
    ]
    return pl.pallas_call(
        kernel,
        out_shape=jax.ShapeDtypeStruct((R, D), jnp.float32),
        grid=(1,),
        in_specs=[_full_spec(a) for a in args],
        out_specs=pl.BlockSpec((R, D), lambda i: (0, 0)),
        scratch_shapes=[pltpu.VMEM((R, H * d), jnp.float32)],
        compiler_params=pltpu.CompilerParams(dimension_semantics=("arbitrary",)),
    )(*args)


# ----------------------------------------------------------------------------- model glue

def positional_embedding(K, D):
    pos = jnp.arange(K - 1, -1, -1, dtype=jnp.float32)                 # [K-1 .. 0]
    inv_freq = 1.0 / (10000.0 ** (jnp.arange(0, D, 2, dtype=jnp.float32) / D))
    sinus = pos[:, None] * inv_freq[None, :]
    pe = jnp.concatenate([jnp.sin(sinus), jnp.cos(sinus)], axis=-1)
    if D % 2 != 0:
        pe = pe[:, :-1]
    return pe                                                          # (K, D)


def build_mask(T, M, mem_len, same_length):
    K = T + M
    rows = jnp.arange(T)[:, None]
    cols = jnp.arange(K)[None, :]
    mask = cols >= rows + 1 + M          # triu(ones(T,K), diagonal=1+M)
    if same_length:
        mask_len = K - mem_len
        msl = T - mask_len if mask_len > 0 else T
        mask = mask | (cols <= rows - msl)
    return mask                          # (T, K) bool, True = masked


def rel_shift_selector(T, K):
    # rel-shift as a gather on the (T,K) score matrix: out[i,j] = raw[i, j+T-1-i].
    # Clipped (index > K-1) entries are exactly cols >= rows+1+M, i.e. the masked
    # region, so clipping never changes an unmasked score.
    gather_idx = jnp.clip(jnp.arange(K)[None, :] + (T - 1) - jnp.arange(T)[:, None], 0, K - 1)
    return jax.nn.one_hot(gather_idx, K, dtype=jnp.float32)            # (T, K, K)


def transformer_agg_forward(prep, act, obs, memory, cfg):
    T, B, _ = act.shape
    D = cfg['dim_out']
    M = memory[0].shape[0]
    K = T + M

    # process_inputs (batch-major flattened layout: row = b*T + t)
    ao = jnp.concatenate([act, obs], axis=-1)                          # (T, B, Din)
    ao_bm = jnp.transpose(ao, (1, 0, 2)).reshape(B * T, -1)            # (B*T, Din)
    if cfg['dim_out'] != cfg['dim_obs'] + cfg['dim_act']:
        f = linear_full(ao_bm, prep['fc_w'], prep['fc_b'])
    else:
        f = ao_bm

    mem_bm = [jnp.transpose(m, (1, 0, 2)).reshape(B * M, D) for m in memory]

    pos = positional_embedding(K, D)                                   # (K, D)
    mask = build_mask(T, M, cfg['mem_len'], cfg['same_length'])        # (T, K) bool
    nmask = jnp.where(mask, NEG_BIG, 0.0).astype(jnp.float32)          # additive mask
    sel = rel_shift_selector(T, K)                                     # (T, K, K)

    hidden = [f]
    h = f
    for l in range(cfg['n_layer']):
        h = encoder_layer_fused(h, mem_bm[l], pos, nmask, sel,
                                prep['layers'][l], prep['u'], prep['v'],
                                cfg, T=T, B=B, M=M)
        hidden.append(h)

    logits = jnp.transpose(h.reshape(B, T, D), (1, 0, 2))              # (T, B, D)

    # memory update (detach-equivalent slicing glue)
    end = M + T
    beg = max(0, end - cfg['mem_len'])
    new_memory = []
    for m_bm, hs in zip(mem_bm, hidden):
        cat = jnp.concatenate([m_bm.reshape(B, M, D), hs.reshape(B, T, D)], axis=1)
        new_memory.append(jnp.transpose(cat[:, beg:end], (1, 0, 2)))   # (mem_len, B, D)
    return {"logits": logits, "memory": new_memory}


# ----------------------------------------------------------------------------- params

def init_params(key, cfg):
    """Parameters in PyTorch (out, in) layout — mirrors the nn.Module."""
    D = cfg['dim_out']
    H, d, F = cfg['n_head'], cfg['d_head'], cfg['d_ff']
    Din = cfg['dim_obs'] + cfg['dim_act']
    keys = iter(jax.random.split(key, 256))

    def w(shape):
        s = 1.0 / (shape[-1] ** 0.5)
        return jax.random.uniform(next(keys), shape, jnp.float32, -s, s)

    params = {}
    if D != Din:
        params['fc_in_w'] = w((D, Din))
        params['fc_in_b'] = w((D,))

    def gate_params():
        gp = {}
        for n in ('wr', 'ur', 'wz', 'uz', 'wg', 'ug'):
            gp[n] = w((D, D))
            gp[n + '_b'] = w((D,))
        return gp

    layers = []
    for _ in range(cfg['n_layer']):
        layers.append({
            'ln1_g': jnp.ones((D,), jnp.float32), 'ln1_b': jnp.zeros((D,), jnp.float32),
            'ln2_g': jnp.ones((D,), jnp.float32), 'ln2_b': jnp.zeros((D,), jnp.float32),
            'w_kv': w((2 * H * d, D)),
            'w_q': w((H * d, D)),
            'w_p': w((H * d, D)),
            'w_o': w((D, H * d)),
            'gate1': gate_params(),
            'gate2': gate_params(),
            'ff_w1': w((F, D)), 'ff_b1': w((F,)),
            'ff_w2': w((D, F)), 'ff_b2': w((D,)),
        })
    params['layers'] = layers
    # reference zero-inits u, v; use small random values to exercise the kernel path
    params['u'] = 0.02 * jax.random.normal(next(keys), (H, d), jnp.float32)
    params['v'] = 0.02 * jax.random.normal(next(keys), (H, d), jnp.float32)
    return params


def prepare_params(params, cfg):
    """One-time weight prep: transposes, fused concats, pre-summed biases."""
    D = cfg['dim_out']
    H, d, F = cfg['n_head'], cfg['d_head'], cfg['d_ff']
    HD = H * d

    prep = {}
    if 'fc_in_w' in params:
        prep['fc_w'] = params['fc_in_w'].T                              # (Din, D)
        prep['fc_b'] = params['fc_in_b'].reshape(1, D)
    prep['u'] = params['u'].reshape(1, HD)
    prep['v'] = params['v'].reshape(1, HD)

    def gate_prep(gp):
        wy = jnp.concatenate([gp['wr'].T, gp['wz'].T, gp['wg'].T], axis=1)   # (D, 3D)
        ux = jnp.concatenate([gp['ur'].T, gp['uz'].T], axis=1)               # (D, 2D)
        ug = gp['ug'].T                                                      # (D, D)
        b3 = jnp.concatenate([gp['wr_b'] + gp['ur_b'],
                              gp['wz_b'] + gp['uz_b'] - BG,
                              gp['wg_b'] + gp['ug_b']]).reshape(1, 3 * D)
        return wy, ux, ug, b3

    layers = []
    for lp in params['layers']:
        g1_wy, g1_ux, g1_ug, g1_b = gate_prep(lp['gate1'])
        g2_wy, g2_ux, g2_ug, g2_b = gate_prep(lp['gate2'])
        layers.append({
            'ln1_g': lp['ln1_g'].reshape(1, D), 'ln1_b': lp['ln1_b'].reshape(1, D),
            'ln2_g': lp['ln2_g'].reshape(1, D), 'ln2_b': lp['ln2_b'].reshape(1, D),
            'w_qkv': jnp.concatenate([lp['w_q'].T, lp['w_kv'].T], axis=1),   # (D, 3HD) [q|k|v]
            'w_kvm': lp['w_kv'].T,                                           # (D, 2HD) [k|v]
            'w_p': lp['w_p'].T,                                              # (D, HD)
            'w_o': lp['w_o'].T,                                              # (HD, D)
            'g1_wy': g1_wy, 'g1_ux': g1_ux, 'g1_ug': g1_ug, 'g1_b': g1_b,
            'g2_wy': g2_wy, 'g2_ux': g2_ux, 'g2_ug': g2_ug, 'g2_b': g2_b,
            'ff_w1': lp['ff_w1'].T, 'ff_b1': lp['ff_b1'].reshape(1, F),
            'ff_w2': lp['ff_w2'].T, 'ff_b2': lp['ff_b2'].reshape(1, D),
        })
    prep['layers'] = layers
    return prep


# ----------------------------------------------------------------------------- main

if __name__ == "__main__":
    cfg = dict(dim_obs=12, dim_act=4, dim_out=32, n_layer=1, n_head=4, d_head=16,
               d_ff=64, p_drop=0.0, same_length=True, mem_len=8)
    T, B = 8, 2

    root = jax.random.PRNGKey(0)
    kp, ka, ko = jax.random.split(root, 3)
    params = init_params(kp, cfg)
    prep = prepare_params(params, cfg)

    act = jax.random.normal(ka, (T, B, cfg['dim_act']), jnp.float32)
    obs = jax.random.normal(ko, (T, B, cfg['dim_obs']), jnp.float32)
    memory = [jnp.zeros((cfg['mem_len'], B, cfg['dim_out']), jnp.float32)
              for _ in range(cfg['n_layer'] + 1)]

    fwd = jax.jit(functools.partial(transformer_agg_forward, cfg=cfg))
    out = fwd(prep, act, obs, memory)
    jax.block_until_ready(out['logits'])
    for m in out['memory']:
        jax.block_until_ready(m)

    assert out['logits'].shape == (T, B, cfg['dim_out'])
    assert len(out['memory']) == cfg['n_layer'] + 1
    assert all(m.shape == (cfg['mem_len'], B, cfg['dim_out']) for m in out['memory'])
    assert bool(jnp.all(jnp.isfinite(out['logits'])))
    print("KERNEL_OK")
</pallas_src>

<mosaic_0001>
module attributes {stable_mosaic.version = 11 : i64} {
  func.func @_linear_kernel(%arg0: i32, %arg1: memref<16x16xf32, #tpu.memory_space<vmem>>, %arg2: memref<16x32xf32, #tpu.memory_space<vmem>>, %arg3: memref<1x32xf32, #tpu.memory_space<vmem>>, %arg4: memref<16x32xf32, #tpu.memory_space<vmem>>) attributes {dimension_semantics = [#tpu.dimension_semantics<arbitrary>], iteration_bounds = array<i64: 1>, scalar_prefetch = 0 : i64, scratch_operands = 0 : i64, tpu.core_type = #tpu.core_type<tc>, window_params = [{pipeline_mode = #tpu.pipeline_mode<synchronous>, transform_indices = @transform_0, window_bounds = array<i64: 16, 16>}, {pipeline_mode = #tpu.pipeline_mode<synchronous>, transform_indices = @transform_1, window_bounds = array<i64: 16, 32>}, {pipeline_mode = #tpu.pipeline_mode<synchronous>, transform_indices = @transform_2, window_bounds = array<i64: 1, 32>}, {pipeline_mode = #tpu.pipeline_mode<synchronous>, transform_indices = @transform_3, window_bounds = array<i64: 16, 32>}]} {
    %c0 = arith.constant 0 : index
    %c0_0 = arith.constant 0 : index
    %0 = vector.load %arg1[%c0, %c0_0] : memref<16x16xf32, #tpu.memory_space<vmem>>, vector<16x16xf32>
    %c0_1 = arith.constant 0 : index
    %c0_2 = arith.constant 0 : index
    %1 = vector.load %arg2[%c0_1, %c0_2] : memref<16x32xf32, #tpu.memory_space<vmem>>, vector<16x32xf32>
    %cst = arith.constant dense<0.000000e+00> : vector<16x32xf32>
    %2 = tpu.matmul %0, %1, %cst {dimension_numbers = #tpu.dot_dimension_numbers<[1], [0], [0], [1], [0, 0, 1, 1], [], []>} : vector<16x16xf32>, vector<16x32xf32>, vector<16x32xf32> -> vector<16x32xf32>
    %c0_3 = arith.constant 0 : index
    %c0_4 = arith.constant 0 : index
    %3 = vector.load %arg3[%c0_3, %c0_4] : memref<1x32xf32, #tpu.memory_space<vmem>>, vector<1x32xf32>
    %4 = vector.broadcast %3 : vector<1x32xf32> to vector<16x32xf32>
    %5 = arith.addf %2, %4 : vector<16x32xf32>
    %c0_5 = arith.constant 0 : index
    %c0_6 = arith.constant 0 : index
    %6 = vector.load %arg4[%c0_5, %c0_6] : memref<16x32xf32, #tpu.memory_space<vmem>>, vector<16x32xf32>
    tpu.vector_store %arg4[%c0_5, %c0_6], %5 {strides = array<i32>} : memref<16x32xf32, #tpu.memory_space<vmem>>, vector<16x32xf32>,
    return
  }
  func.func @transform_0(%arg0: i32) -> (i32, i32) {
    %c0_i32 = arith.constant 0 : i32
    %c0_i32_0 = arith.constant 0 : i32
    %c0_i32_1 = arith.constant 0 : i32
    return %c0_i32, %c0_i32_0 : i32, i32
  }
  func.func @transform_1(%arg0: i32) -> (i32, i32) {
    %c0_i32 = arith.constant 0 : i32
    %c0_i32_0 = arith.constant 0 : i32
    %c0_i32_1 = arith.constant 0 : i32
    return %c0_i32, %c0_i32_0 : i32, i32
  }
  func.func @transform_2(%arg0: i32) -> (i32, i32) {
    %c0_i32 = arith.constant 0 : i32
    %c0_i32_0 = arith.constant 0 : i32
    %c0_i32_1 = arith.constant 0 : i32
    return %c0_i32, %c0_i32_0 : i32, i32
  }
  func.func @transform_3(%arg0: i32) -> (i32, i32) {
    %c0_i32 = arith.constant 0 : i32
    %c0_i32_0 = arith.constant 0 : i32
    %c0_i32_1 = arith.constant 0 : i32
    return %c0_i32, %c0_i32_0 : i32, i32
  }
}

module attributes {stable_mosaic.version = 11 : i64} {
  func.func @_layer_kernel(%arg0: i32, %arg1: memref<16x32xf32, #tpu.memory_space<vmem>>, %arg2: memref<16x32xf32, #tpu.memory_space<vmem>>, %arg3: memref<16x32xf32, #tpu.memory_space<vmem>>, %arg4: memref<8x16xf32, #tpu.memory_space<vmem>>, %arg5: memref<8x16x16xf32, #tpu.memory_space<vmem>>, %arg6: memref<1x32xf32, #tpu.memory_space<vmem>>, %arg7: memref<1x32xf32, #tpu.memory_space<vmem>>, %arg8: memref<32x192xf32, #tpu.memory_space<vmem>>, %arg9: memref<32x128xf32, #tpu.memory_space<vmem>>, %arg10: memref<32x64xf32, #tpu.memory_space<vmem>>, %arg11: memref<1x64xf32, #tpu.memory_space<vmem>>, %arg12: memref<1x64xf32, #tpu.memory_space<vmem>>, %arg13: memref<64x32xf32, #tpu.memory_space<vmem>>, %arg14: memref<32x96xf32, #tpu.memory_space<vmem>>, %arg15: memref<32x64xf32, #tpu.memory_space<vmem>>, %arg16: memref<32x32xf32, #tpu.memory_space<vmem>>, %arg17: memref<1x96xf32, #tpu.memory_space<vmem>>, %arg18: memref<1x32xf32, #tpu.memory_space<vmem>>, %arg19: memref<1x32xf32, #tpu.memory_space<vmem>>, %arg20: memref<32x64xf32, #tpu.memory_space<vmem>>, %arg21: memref<1x64xf32, #tpu.memory_space<vmem>>, %arg22: memref<64x32xf32, #tpu.memory_space<vmem>>, %arg23: memref<1x32xf32, #tpu.memory_space<vmem>>, %arg24: memref<32x96xf32, #tpu.memory_space<vmem>>, %arg25: memref<32x64xf32, #tpu.memory_space<vmem>>, %arg26: memref<32x32xf32, #tpu.memory_space<vmem>>, %arg27: memref<1x96xf32, #tpu.memory_space<vmem>>, %arg28: memref<16x32xf32, #tpu.memory_space<vmem>>, %arg29: memref<16x64xf32, #tpu.memory_space<vmem>>) attributes {dimension_semantics = [#tpu.dimension_semantics<arbitrary>], iteration_bounds = array<i64: 1>, scalar_prefetch = 0 : i64, scratch_operands = 1 : i64, tpu.core_type = #tpu.core_type<tc>, window_params = [{pipeline_mode = #tpu.pipeline_mode<synchronous>, transform_indices = @transform_0, window_bounds = array<i64: 16, 32>}, {pipeline_mode = #tpu.pipeline_mode<synchronous>, transform_indices = @transform_1, window_bounds = array<i64: 16, 32>}, {pipeline_mode = #tpu.pipeline_mode<synchronous>, transform_indices = @transform_2, window_bounds = array<i64: 16, 32>}, {pipeline_mode = #tpu.pipeline_mode<synchronous>, transform_indices = @transform_3, window_bounds = array<i64: 8, 16>}, {pipeline_mode = #tpu.pipeline_mode<synchronous>, transform_indices = @transform_4, window_bounds = array<i64: 8, 16, 16>}, {pipeline_mode = #tpu.pipeline_mode<synchronous>, transform_indices = @transform_5, window_bounds = array<i64: 1, 32>}, {pipeline_mode = #tpu.pipeline_mode<synchronous>, transform_indices = @transform_6, window_bounds = array<i64: 1, 32>}, {pipeline_mode = #tpu.pipeline_mode<synchronous>, transform_indices = @transform_7, window_bounds = array<i64: 32, 192>}, {pipeline_mode = #tpu.pipeline_mode<synchronous>, transform_indices = @transform_8, window_bounds = array<i64: 32, 128>}, {pipeline_mode = #tpu.pipeline_mode<synchronous>, transform_indices = @transform_9, window_bounds = array<i64: 32, 64>}, {pipeline_mode = #tpu.pipeline_mode<synchronous>, transform_indices = @transform_10, window_bounds = array<i64: 1, 64>}, {pipeline_mode = #tpu.pipeline_mode<synchronous>, transform_indices = @transform_11, window_bounds = array<i64: 1, 64>}, {pipeline_mode = #tpu.pipeline_mode<synchronous>, transform_indices = @transform_12, window_bounds = array<i64: 64, 32>}, {pipeline_mode = #tpu.pipeline_mode<synchronous>, transform_indices = @transform_13, window_bounds = array<i64: 32, 96>}, {pipeline_mode = #tpu.pipeline_mode<synchronous>, transform_indices = @transform_14, window_bounds = array<i64: 32, 64>}, {pipeline_mode = #tpu.pipeline_mode<synchronous>, transform_indices = @transform_15, window_bounds = array<i64: 32, 32>}, {pipeline_mode = #tpu.pipeline_mode<synchronous>, transform_indices = @transform_16, window_bounds = array<i64: 1, 96>}, {pipeline_mode = #tpu.pipeline_mode<synchronous>, transform_indices = @transform_17, window_bounds = array<i64: 1, 32>}, {pipeline_mode = #tpu.pipeline_mode<synchronous>, transform_indices = @transform_18, window_bounds = array<i64: 1, 32>}, {pipeline_mode = #tpu.pipeline_mode<synchronous>, transform_indices = @transform_19, window_bounds = array<i64: 32, 64>}, {pipeline_mode = #tpu.pipeline_mode<synchronous>, transform_indices = @transform_20, window_bounds = array<i64: 1, 64>}, {pipeline_mode = #tpu.pipeline_mode<synchronous>, transform_indices = @transform_21, window_bounds = array<i64: 64, 32>}, {pipeline_mode = #tpu.pipeline_mode<synchronous>, transform_indices = @transform_22, window_bounds = array<i64: 1, 32>}, {pipeline_mode = #tpu.pipeline_mode<synchronous>, transform_indices = @transform_23, window_bounds = array<i64: 32, 96>}, {pipeline_mode = #tpu.pipeline_mode<synchronous>, transform_indices = @transform_24, window_bounds = array<i64: 32, 64>}, {pipeline_mode = #tpu.pipeline_mode<synchronous>, transform_indices = @transform_25, window_bounds = array<i64: 32, 32>}, {pipeline_mode = #tpu.pipeline_mode<synchronous>, transform_indices = @transform_26, window_bounds = array<i64: 1, 96>}, {pipeline_mode = #tpu.pipeline_mode<synchronous>, transform_indices = @transform_27, window_bounds = array<i64: 16, 32>}]} {
    %c0 = arith.constant 0 : index
    %c0_0 = arith.constant 0 : index
    %0 = vector.load %arg1[%c0, %c0_0] : memref<16x32xf32, #tpu.memory_space<vmem>>, vector<16x32xf32>
    %c0_1 = arith.constant 0 : index
    %c0_2 = arith.constant 0 : index
    %1 = vector.load %arg2[%c0_1, %c0_2] : memref<16x32xf32, #tpu.memory_space<vmem>>, vector<16x32xf32>
    %cst = arith.constant dense<0.000000e+00> : vector<16xf32>
    %2 = vector.multi_reduction <add>, %0, %cst [1] : vector<16x32xf32> to vector<16xf32>
    %3 = vector.shape_cast %2 : vector<16xf32> to vector<16x1xf32>
    %cst_3 = arith.constant 3.200000e+01 : f32
    %4 = vector.broadcast %cst_3 : f32 to vector<16x1xf32>
    %5 = arith.divf %3, %4 : vector<16x1xf32>
    %6 = vector.broadcast %5 : vector<16x1xf32> to vector<16x32xf32>
    %7 = arith.subf %0, %6 : vector<16x32xf32>
    %8 = arith.mulf %7, %7 : vector<16x32xf32>
    %cst_4 = arith.constant dense<0.000000e+00> : vector<16xf32>
    %9 = vector.multi_reduction <add>, %8, %cst_4 [1] : vector<16x32xf32> to vector<16xf32>
    %10 = vector.shape_cast %9 : vector<16xf32> to vector<16x1xf32>
    %cst_5 = arith.constant 3.200000e+01 : f32
    %11 = vector.broadcast %cst_5 : f32 to vector<16x1xf32>
    %12 = arith.divf %10, %11 : vector<16x1xf32>
    %cst_6 = arith.constant 9.99999974E-6 : f32
    %13 = vector.broadcast %cst_6 : f32 to vector<16x1xf32>
    %14 = arith.addf %12, %13 : vector<16x1xf32>
    %15 = math.rsqrt %14 : vector<16x1xf32>
    %16 = vector.broadcast %15 : vector<16x1xf32> to vector<16x32xf32>
    %17 = arith.mulf %7, %16 : vector<16x32xf32>
    %c0_7 = arith.constant 0 : index
    %c0_8 = arith.constant 0 : index
    %18 = vector.load %arg6[%c0_7, %c0_8] : memref<1x32xf32, #tpu.memory_space<vmem>>, vector<1x32xf32>
    %19 = vector.broadcast %18 : vector<1x32xf32> to vector<16x32xf32>
    %20 = arith.mulf %17, %19 : vector<16x32xf32>
    %c0_9 = arith.constant 0 : index
    %c0_10 = arith.constant 0 : index
    %21 = vector.load %arg7[%c0_9, %c0_10] : memref<1x32xf32, #tpu.memory_space<vmem>>, vector<1x32xf32>
    %22 = vector.broadcast %21 : vector<1x32xf32> to vector<16x32xf32>
    %23 = arith.addf %20, %22 : vector<16x32xf32>
    %c0_11 = arith.constant 0 : index
    %c0_12 = arith.constant 0 : index
    %24 = vector.load %arg8[%c0_11, %c0_12] : memref<32x192xf32, #tpu.memory_space<vmem>>, vector<32x192xf32>
    %cst_13 = arith.constant dense<0.000000e+00> : vector<16x192xf32>
    %25 = tpu.matmul %23, %24, %cst_13 {dimension_numbers = #tpu.dot_dimension_numbers<[1], [0], [0], [1], [0, 0, 1, 1], [], []>} : vector<16x32xf32>, vector<32x192xf32>, vector<16x192xf32> -> vector<16x192xf32>
    %c0_14 = arith.constant 0 : index
    %c0_15 = arith.constant 0 : index
    %26 = vector.load %arg9[%c0_14, %c0_15] : memref<32x128xf32, #tpu.memory_space<vmem>>, vector<32x128xf32>
    %cst_16 = arith.constant dense<0.000000e+00> : vector<16x128xf32>
    %27 = tpu.matmul %1, %26, %cst_16 {dimension_numbers = #tpu.dot_dimension_numbers<[1], [0], [0], [1], [0, 0, 1, 1], [], []>} : vector<16x32xf32>, vector<32x128xf32>, vector<16x128xf32> -> vector<16x128xf32>
    %c0_17 = arith.constant 0 : index
    %c0_18 = arith.constant 0 : index
    %28 = vector.load %arg3[%c0_17, %c0_18] : memref<16x32xf32, #tpu.memory_space<vmem>>, vector<16x32xf32>
    %c0_19 = arith.constant 0 : index
    %c0_20 = arith.constant 0 : index
    %29 = vector.load %arg10[%c0_19, %c0_20] : memref<32x64xf32, #tpu.memory_space<vmem>>, vector<32x64xf32>
    %cst_21 = arith.constant dense<0.000000e+00> : vector<16x64xf32>
    %30 = tpu.matmul %28, %29, %cst_21 {dimension_numbers = #tpu.dot_dimension_numbers<[1], [0], [0], [1], [0, 0, 1, 1], [], []>} : vector<16x32xf32>, vector<32x64xf32>, vector<16x64xf32> -> vector<16x64xf32>
    %31 = vector.extract_strided_slice %25 {offsets = [0, 0], sizes = [16, 64], strides = [1, 1]} : vector<16x192xf32> to vector<16x64xf32>
    %c0_22 = arith.constant 0 : index
    %c0_23 = arith.constant 0 : index
    %32 = vector.load %arg11[%c0_22, %c0_23] : memref<1x64xf32, #tpu.memory_space<vmem>>, vector<1x64xf32>
    %33 = vector.broadcast %32 : vector<1x64xf32> to vector<16x64xf32>
    %34 = arith.addf %31, %33 : vector<16x64xf32>
    %35 = vector.extract_strided_slice %25 {offsets = [0, 0], sizes = [16, 64], strides = [1, 1]} : vector<16x192xf32> to vector<16x64xf32>
    %c0_24 = arith.constant 0 : index
    %c0_25 = arith.constant 0 : index
    %36 = vector.load %arg12[%c0_24, %c0_25] : memref<1x64xf32, #tpu.memory_space<vmem>>, vector<1x64xf32>
    %37 = vector.broadcast %36 : vector<1x64xf32> to vector<16x64xf32>
    %38 = arith.addf %35, %37 : vector<16x64xf32>
    %c0_26 = arith.constant 0 : index
    %c0_27 = arith.constant 0 : index
    %39 = vector.load %arg4[%c0_26, %c0_27] : memref<8x16xf32, #tpu.memory_space<vmem>>, vector<8x16xf32>
    %c0_28 = arith.constant 0 : index
    %c0_29 = arith.constant 0 : index
    %c0_30 = arith.constant 0 : index
    %40 = vector.load %arg5[%c0_28, %c0_29, %c0_30] : memref<8x16x16xf32, #tpu.memory_space<vmem>>, vector<8x16x16xf32>
    %41 = vector.extract_strided_slice %34 {offsets = [0, 0], sizes = [8, 64], strides = [1, 1]} : vector<16x64xf32> to vector<8x64xf32>
    %42 = vector.extract_strided_slice %38 {offsets = [0, 0], sizes = [8, 64], strides = [1, 1]} : vector<16x64xf32> to vector<8x64xf32>
    %43 = vector.extract_strided_slice %27 {offsets = [0, 0], sizes = [8, 64], strides = [1, 1]} : vector<16x128xf32> to vector<8x64xf32>
    %44 = vector.extract_strided_slice %25 {offsets = [0, 64], sizes = [8, 64], strides = [1, 1]} : vector<16x192xf32> to vector<8x64xf32>
    %45 = tpu.concatenate %43, %44 in 0 : vector<8x64xf32>, vector<8x64xf32> -> vector<16x64xf32>
    %46 = vector.extract_strided_slice %27 {offsets = [0, 64], sizes = [8, 64], strides = [1, 1]} : vector<16x128xf32> to vector<8x64xf32>
    %47 = vector.extract_strided_slice %25 {offsets = [0, 128], sizes = [8, 64], strides = [1, 1]} : vector<16x192xf32> to vector<8x64xf32>
    %48 = tpu.concatenate %46, %47 in 0 : vector<8x64xf32>, vector<8x64xf32> -> vector<16x64xf32>
    %49 = vector.extract_strided_slice %41 {offsets = [0, 0], sizes = [8, 16], strides = [1, 1]} : vector<8x64xf32> to vector<8x16xf32>
    %50 = vector.extract_strided_slice %45 {offsets = [0, 0], sizes = [16, 16], strides = [1, 1]} : vector<16x64xf32> to vector<16x16xf32>
    %cst_31 = arith.constant dense<0.000000e+00> : vector<8x16xf32>
    %51 = tpu.matmul %49, %50, %cst_31 {dimension_numbers = #tpu.dot_dimension_numbers<[1], [1], [0], [0], [0, 0, 1, 0], [], []>} : vector<8x16xf32>, vector<16x16xf32>, vector<8x16xf32> -> vector<8x16xf32>
    %52 = vector.extract_strided_slice %42 {offsets = [0, 0], sizes = [8, 16], strides = [1, 1]} : vector<8x64xf32> to vector<8x16xf32>
    %53 = vector.extract_strided_slice %30 {offsets = [0, 0], sizes = [16, 16], strides = [1, 1]} : vector<16x64xf32> to vector<16x16xf32>
    %cst_32 = arith.constant dense<0.000000e+00> : vector<8x16xf32>
    %54 = tpu.matmul %52, %53, %cst_32 {dimension_numbers = #tpu.dot_dimension_numbers<[1], [1], [0], [0], [0, 0, 1, 0], [], []>} : vector<8x16xf32>, vector<16x16xf32>, vector<8x16xf32> -> vector<8x16xf32>
    %55 = vector.shape_cast %54 : vector<8x16xf32> to vector<8x1x16xf32>
    %56 = vector.broadcast %55 : vector<8x1x16xf32> to vector<8x16x16xf32>
    %57 = arith.mulf %56, %40 : vector<8x16x16xf32>
    %cst_33 = arith.constant dense<0.000000e+00> : vector<8x16xf32>
    %58 = vector.multi_reduction <add>, %57, %cst_33 [2] : vector<8x16x16xf32> to vector<8x16xf32>
    %59 = arith.addf %51, %58 : vector<8x16xf32>
    %cst_34 = arith.constant 2.500000e-01 : f32
    %60 = vector.broadcast %cst_34 : f32 to vector<8x16xf32>
    %61 = arith.mulf %59, %60 : vector<8x16xf32>
    %62 = arith.addf %61, %39 : vector<8x16xf32>
    %cst_35 = arith.constant dense<0xFF800000> : vector<8xf32>
    %63 = vector.multi_reduction <maximumf>, %62, %cst_35 [1] : vector<8x16xf32> to vector<8xf32>
    %64 = vector.shape_cast %63 : vector<8xf32> to vector<8x1xf32>
    %65 = vector.broadcast %64 : vector<8x1xf32> to vector<8x16xf32>
    %66 = arith.subf %62, %65 : vector<8x16xf32>
    %67 = math.exp %66 : vector<8x16xf32>
    %cst_36 = arith.constant dense<0.000000e+00> : vector<8xf32>
    %68 = vector.multi_reduction <add>, %67, %cst_36 [1] : vector<8x16xf32> to vector<8xf32>
    %69 = vector.shape_cast %68 : vector<8xf32> to vector<8x1xf32>
    %70 = tpu.reciprocal %69 {approx = true} : vector<8x1xf32> -> vector<8x1xf32>
    %71 = vector.broadcast %70 : vector<8x1xf32> to vector<8x16xf32>
    %72 = arith.mulf %67, %71 : vector<8x16xf32>
    %73 = vector.extract_strided_slice %48 {offsets = [0, 0], sizes = [16, 16], strides = [1, 1]} : vector<16x64xf32> to vector<16x16xf32>
    %cst_37 = arith.constant dense<0.000000e+00> : vector<8x16xf32>
    %74 = tpu.matmul %72, %73, %cst_37 {dimension_numbers = #tpu.dot_dimension_numbers<[1], [0], [0], [1], [0, 0, 1, 1], [], []>} : vector<8x16xf32>, vector<16x16xf32>, vector<8x16xf32> -> vector<8x16xf32>
    %c0_38 = arith.constant 0 : index
    %c0_39 = arith.constant 0 : index
    %75 = vector.load %arg29[%c0_38, %c0_39] : memref<16x64xf32, #tpu.memory_space<vmem>>, vector<8x16xf32>
    tpu.vector_store %arg29[%c0_38, %c0_39], %74 {strides = array<i32>} : memref<16x64xf32, #tpu.memory_space<vmem>>, vector<8x16xf32>,
    %76 = vector.extract_strided_slice %41 {offsets = [0, 16], sizes = [8, 16], strides = [1, 1]} : vector<8x64xf32> to vector<8x16xf32>
    %77 = vector.extract_strided_slice %45 {offsets = [0, 16], sizes = [16, 16], strides = [1, 1]} : vector<16x64xf32> to vector<16x16xf32>
    %cst_40 = arith.constant dense<0.000000e+00> : vector<8x16xf32>
    %78 = tpu.matmul %76, %77, %cst_40 {dimension_numbers = #tpu.dot_dimension_numbers<[1], [1], [0], [0], [0, 0, 1, 0], [], []>} : vector<8x16xf32>, vector<16x16xf32>, vector<8x16xf32> -> vector<8x16xf32>
    %79 = vector.extract_strided_slice %42 {offsets = [0, 16], sizes = [8, 16], strides = [1, 1]} : vector<8x64xf32> to vector<8x16xf32>
    %80 = vector.extract_strided_slice %30 {offsets = [0, 16], sizes = [16, 16], strides = [1, 1]} : vector<16x64xf32> to vector<16x16xf32>
    %cst_41 = arith.constant dense<0.000000e+00> : vector<8x16xf32>
    %81 = tpu.matmul %79, %80, %cst_41 {dimension_numbers = #tpu.dot_dimension_numbers<[1], [1], [0], [0], [0, 0, 1, 0], [], []>} : vector<8x16xf32>, vector<16x16xf32>, vector<8x16xf32> -> vector<8x16xf32>
    %82 = vector.shape_cast %81 : vector<8x16xf32> to vector<8x1x16xf32>
    %83 = vector.broadcast %82 : vector<8x1x16xf32> to vector<8x16x16xf32>
    %84 = arith.mulf %83, %40 : vector<8x16x16xf32>
    %cst_42 = arith.constant dense<0.000000e+00> : vector<8x16xf32>
    %85 = vector.multi_reduction <add>, %84, %cst_42 [2] : vector<8x16x16xf32> to vector<8x16xf32>
    %86 = arith.addf %78, %85 : vector<8x16xf32>
    %cst_43 = arith.constant 2.500000e-01 : f32
    %87 = vector.broadcast %cst_43 : f32 to vector<8x16xf32>
    %88 = arith.mulf %86, %87 : vector<8x16xf32>
    %89 = arith.addf %88, %39 : vector<8x16xf32>
    %cst_44 = arith.constant dense<0xFF800000> : vector<8xf32>
    %90 = vector.multi_reduction <maximumf>, %89, %cst_44 [1] : vector<8x16xf32> to vector<8xf32>
    %91 = vector.shape_cast %90 : vector<8xf32> to vector<8x1xf32>
    %92 = vector.broadcast %91 : vector<8x1xf32> to vector<8x16xf32>
    %93 = arith.subf %89, %92 : vector<8x16xf32>
    %94 = math.exp %93 : vector<8x16xf32>
    %cst_45 = arith.constant dense<0.000000e+00> : vector<8xf32>
    %95 = vector.multi_reduction <add>, %94, %cst_45 [1] : vector<8x16xf32> to vector<8xf32>
    %96 = vector.shape_cast %95 : vector<8xf32> to vector<8x1xf32>
    %97 = tpu.reciprocal %96 {approx = true} : vector<8x1xf32> -> vector<8x1xf32>
    %98 = vector.broadcast %97 : vector<8x1xf32> to vector<8x16xf32>
    %99 = arith.mulf %94, %98 : vector<8x16xf32>
    %100 = vector.extract_strided_slice %48 {offsets = [0, 16], sizes = [16, 16], strides = [1, 1]} : vector<16x64xf32> to vector<16x16xf32>
    %cst_46 = arith.constant dense<0.000000e+00> : vector<8x16xf32>
    %101 = tpu.matmul %99, %100, %cst_46 {dimension_numbers = #tpu.dot_dimension_numbers<[1], [0], [0], [1], [0, 0, 1, 1], [], []>} : vector<8x16xf32>, vector<16x16xf32>, vector<8x16xf32> -> vector<8x16xf32>
    %c0_47 = arith.constant 0 : index
    %c16 = arith.constant 16 : index
    %102 = vector.load %arg29[%c0_47, %c16] : memref<16x64xf32, #tpu.memory_space<vmem>>, vector<8x16xf32>
    tpu.vector_store %arg29[%c0_47, %c16], %101 {strides = array<i32>} : memref<16x64xf32, #tpu.memory_space<vmem>>, vector<8x16xf32>,
    %103 = vector.extract_strided_slice %41 {offsets = [0, 32], sizes = [8, 16], strides = [1, 1]} : vector<8x64xf32> to vector<8x16xf32>
    %104 = vector.extract_strided_slice %45 {offsets = [0, 32], sizes = [16, 16], strides = [1, 1]} : vector<16x64xf32> to vector<16x16xf32>
    %cst_48 = arith.constant dense<0.000000e+00> : vector<8x16xf32>
    %105 = tpu.matmul %103, %104, %cst_48 {dimension_numbers = #tpu.dot_dimension_numbers<[1], [1], [0], [0], [0, 0, 1, 0], [], []>} : vector<8x16xf32>, vector<16x16xf32>, vector<8x16xf32> -> vector<8x16xf32>
    %106 = vector.extract_strided_slice %42 {offsets = [0, 32], sizes = [8, 16], strides = [1, 1]} : vector<8x64xf32> to vector<8x16xf32>
    %107 = vector.extract_strided_slice %30 {offsets = [0, 32], sizes = [16, 16], strides = [1, 1]} : vector<16x64xf32> to vector<16x16xf32>
    %cst_49 = arith.constant dense<0.000000e+00> : vector<8x16xf32>
    %108 = tpu.matmul %106, %107, %cst_49 {dimension_numbers = #tpu.dot_dimension_numbers<[1], [1], [0], [0], [0, 0, 1, 0], [], []>} : vector<8x16xf32>, vector<16x16xf32>, vector<8x16xf32> -> vector<8x16xf32>
    %109 = vector.shape_cast %108 : vector<8x16xf32> to vector<8x1x16xf32>
    %110 = vector.broadcast %109 : vector<8x1x16xf32> to vector<8x16x16xf32>
    %111 = arith.mulf %110, %40 : vector<8x16x16xf32>
    %cst_50 = arith.constant dense<0.000000e+00> : vector<8x16xf32>
    %112 = vector.multi_reduction <add>, %111, %cst_50 [2] : vector<8x16x16xf32> to vector<8x16xf32>
    %113 = arith.addf %105, %112 : vector<8x16xf32>
    %cst_51 = arith.constant 2.500000e-01 : f32
    %114 = vector.broadcast %cst_51 : f32 to vector<8x16xf32>
    %115 = arith.mulf %113, %114 : vector<8x16xf32>
    %116 = arith.addf %115, %39 : vector<8x16xf32>
    %cst_52 = arith.constant dense<0xFF800000> : vector<8xf32>
    %117 = vector.multi_reduction <maximumf>, %116, %cst_52 [1] : vector<8x16xf32> to vector<8xf32>
    %118 = vector.shape_cast %117 : vector<8xf32> to vector<8x1xf32>
    %119 = vector.broadcast %118 : vector<8x1xf32> to vector<8x16xf32>
    %120 = arith.subf %116, %119 : vector<8x16xf32>
    %121 = math.exp %120 : vector<8x16xf32>
    %cst_53 = arith.constant dense<0.000000e+00> : vector<8xf32>
    %122 = vector.multi_reduction <add>, %121, %cst_53 [1] : vector<8x16xf32> to vector<8xf32>
    %123 = vector.shape_cast %122 : vector<8xf32> to vector<8x1xf32>
    %124 = tpu.reciprocal %123 {approx = true} : vector<8x1xf32> -> vector<8x1xf32>
    %125 = vector.broadcast %124 : vector<8x1xf32> to vector<8x16xf32>
    %126 = arith.mulf %121, %125 : vector<8x16xf32>
    %127 = vector.extract_strided_slice %48 {offsets = [0, 32], sizes = [16, 16], strides = [1, 1]} : vector<16x64xf32> to vector<16x16xf32>
    %cst_54 = arith.constant dense<0.000000e+00> : vector<8x16xf32>
    %128 = tpu.matmul %126, %127, %cst_54 {dimension_numbers = #tpu.dot_dimension_numbers<[1], [0], [0], [1], [0, 0, 1, 1], [], []>} : vector<8x16xf32>, vector<16x16xf32>, vector<8x16xf32> -> vector<8x16xf32>
    %c0_55 = arith.constant 0 : index
    %c32 = arith.constant 32 : index
    %129 = vector.load %arg29[%c0_55, %c32] : memref<16x64xf32, #tpu.memory_space<vmem>>, vector<8x16xf32>
    tpu.vector_store %arg29[%c0_55, %c32], %128 {strides = array<i32>} : memref<16x64xf32, #tpu.memory_space<vmem>>, vector<8x16xf32>,
    %130 = vector.extract_strided_slice %41 {offsets = [0, 48], sizes = [8, 16], strides = [1, 1]} : vector<8x64xf32> to vector<8x16xf32>
    %131 = vector.extract_strided_slice %45 {offsets = [0, 48], sizes = [16, 16], strides = [1, 1]} : vector<16x64xf32> to vector<16x16xf32>
    %cst_56 = arith.constant dense<0.000000e+00> : vector<8x16xf32>
    %132 = tpu.matmul %130, %131, %cst_56 {dimension_numbers = #tpu.dot_dimension_numbers<[1], [1], [0], [0], [0, 0, 1, 0], [], []>} : vector<8x16xf32>, vector<16x16xf32>, vector<8x16xf32> -> vector<8x16xf32>
    %133 = vector.extract_strided_slice %42 {offsets = [0, 48], sizes = [8, 16], strides = [1, 1]} : vector<8x64xf32> to vector<8x16xf32>
    %134 = vector.extract_strided_slice %30 {offsets = [0, 48], sizes = [16, 16], strides = [1, 1]} : vector<16x64xf32> to vector<16x16xf32>
    %cst_57 = arith.constant dense<0.000000e+00> : vector<8x16xf32>
    %135 = tpu.matmul %133, %134, %cst_57 {dimension_numbers = #tpu.dot_dimension_numbers<[1], [1], [0], [0], [0, 0, 1, 0], [], []>} : vector<8x16xf32>, vector<16x16xf32>, vector<8x16xf32> -> vector<8x16xf32>
    %136 = vector.shape_cast %135 : vector<8x16xf32> to vector<8x1x16xf32>
    %137 = vector.broadcast %136 : vector<8x1x16xf32> to vector<8x16x16xf32>
    %138 = arith.mulf %137, %40 : vector<8x16x16xf32>
    %cst_58 = arith.constant dense<0.000000e+00> : vector<8x16xf32>
    %139 = vector.multi_reduction <add>, %138, %cst_58 [2] : vector<8x16x16xf32> to vector<8x16xf32>
    %140 = arith.addf %132, %139 : vector<8x16xf32>
    %cst_59 = arith.constant 2.500000e-01 : f32
    %141 = vector.broadcast %cst_59 : f32 to vector<8x16xf32>
    %142 = arith.mulf %140, %141 : vector<8x16xf32>
    %143 = arith.addf %142, %39 : vector<8x16xf32>
    %cst_60 = arith.constant dense<0xFF800000> : vector<8xf32>
    %144 = vector.multi_reduction <maximumf>, %143, %cst_60 [1] : vector<8x16xf32> to vector<8xf32>
    %145 = vector.shape_cast %144 : vector<8xf32> to vector<8x1xf32>
    %146 = vector.broadcast %145 : vector<8x1xf32> to vector<8x16xf32>
    %147 = arith.subf %143, %146 : vector<8x16xf32>
    %148 = math.exp %147 : vector<8x16xf32>
    %cst_61 = arith.constant dense<0.000000e+00> : vector<8xf32>
    %149 = vector.multi_reduction <add>, %148, %cst_61 [1] : vector<8x16xf32> to vector<8xf32>
    %150 = vector.shape_cast %149 : vector<8xf32> to vector<8x1xf32>
    %151 = tpu.reciprocal %150 {approx = true} : vector<8x1xf32> -> vector<8x1xf32>
    %152 = vector.broadcast %151 : vector<8x1xf32> to vector<8x16xf32>
    %153 = arith.mulf %148, %152 : vector<8x16xf32>
    %154 = vector.extract_strided_slice %48 {offsets = [0, 48], sizes = [16, 16], strides = [1, 1]} : vector<16x64xf32> to vector<16x16xf32>
    %cst_62 = arith.constant dense<0.000000e+00> : vector<8x16xf32>
    %155 = tpu.matmul %153, %154, %cst_62 {dimension_numbers = #tpu.dot_dimension_numbers<[1], [0], [0], [1], [0, 0, 1, 1], [], []>} : vector<8x16xf32>, vector<16x16xf32>, vector<8x16xf32> -> vector<8x16xf32>
    %c0_63 = arith.constant 0 : index
    %c48 = arith.constant 48 : index
    %156 = vector.load %arg29[%c0_63, %c48] : memref<16x64xf32, #tpu.memory_space<vmem>>, vector<8x16xf32>
    tpu.vector_store %arg29[%c0_63, %c48], %155 {strides = array<i32>} : memref<16x64xf32, #tpu.memory_space<vmem>>, vector<8x16xf32>,
    %157 = vector.extract_strided_slice %34 {offsets = [8, 0], sizes = [8, 64], strides = [1, 1]} : vector<16x64xf32> to vector<8x64xf32>
    %158 = vector.extract_strided_slice %38 {offsets = [8, 0], sizes = [8, 64], strides = [1, 1]} : vector<16x64xf32> to vector<8x64xf32>
    %159 = vector.extract_strided_slice %27 {offsets = [8, 0], sizes = [8, 64], strides = [1, 1]} : vector<16x128xf32> to vector<8x64xf32>
    %160 = vector.extract_strided_slice %25 {offsets = [8, 64], sizes = [8, 64], strides = [1, 1]} : vector<16x192xf32> to vector<8x64xf32>
    %161 = tpu.concatenate %159, %160 in 0 : vector<8x64xf32>, vector<8x64xf32> -> vector<16x64xf32>
    %162 = vector.extract_strided_slice %27 {offsets = [8, 64], sizes = [8, 64], strides = [1, 1]} : vector<16x128xf32> to vector<8x64xf32>
    %163 = vector.extract_strided_slice %25 {offsets = [8, 128], sizes = [8, 64], strides = [1, 1]} : vector<16x192xf32> to vector<8x64xf32>
    %164 = tpu.concatenate %162, %163 in 0 : vector<8x64xf32>, vector<8x64xf32> -> vector<16x64xf32>
    %165 = vector.extract_strided_slice %157 {offsets = [0, 0], sizes = [8, 16], strides = [1, 1]} : vector<8x64xf32> to vector<8x16xf32>
    %166 = vector.extract_strided_slice %161 {offsets = [0, 0], sizes = [16, 16], strides = [1, 1]} : vector<16x64xf32> to vector<16x16xf32>
    %cst_64 = arith.constant dense<0.000000e+00> : vector<8x16xf32>
    %167 = tpu.matmul %165, %166, %cst_64 {dimension_numbers = #tpu.dot_dimension_numbers<[1], [1], [0], [0], [0, 0, 1, 0], [], []>} : vector<8x16xf32>, vector<16x16xf32>, vector<8x16xf32> -> vector<8x16xf32>
    %168 = vector.extract_strided_slice %158 {offsets = [0, 0], sizes = [8, 16], strides = [1, 1]} : vector<8x64xf32> to vector<8x16xf32>
    %169 = vector.extract_strided_slice %30 {offsets = [0, 0], sizes = [16, 16], strides = [1, 1]} : vector<16x64xf32> to vector<16x16xf32>
    %cst_65 = arith.constant dense<0.000000e+00> : vector<8x16xf32>
    %170 = tpu.matmul %168, %169, %cst_65 {dimension_numbers = #tpu.dot_dimension_numbers<[1], [1], [0], [0], [0, 0, 1, 0], [], []>} : vector<8x16xf32>, vector<16x16xf32>, vector<8x16xf32> -> vector<8x16xf32>
    %171 = vector.shape_cast %170 : vector<8x16xf32> to vector<8x1x16xf32>
    %172 = vector.broadcast %171 : vector<8x1x16xf32> to vector<8x16x16xf32>
    %173 = arith.mulf %172, %40 : vector<8x16x16xf32>
    %cst_66 = arith.constant dense<0.000000e+00> : vector<8x16xf32>
    %174 = vector.multi_reduction <add>, %173, %cst_66 [2] : vector<8x16x16xf32> to vector<8x16xf32>
    %175 = arith.addf %167, %174 : vector<8x16xf32>
    %cst_67 = arith.constant 2.500000e-01 : f32
    %176 = vector.broadcast %cst_67 : f32 to vector<8x16xf32>
    %177 = arith.mulf %175, %176 : vector<8x16xf32>
    %178 = arith.addf %177, %39 : vector<8x16xf32>
    %cst_68 = arith.constant dense<0xFF800000> : vector<8xf32>
    %179 = vector.multi_reduction <maximumf>, %178, %cst_68 [1] : vector<8x16xf32> to vector<8xf32>
    %180 = vector.shape_cast %179 : vector<8xf32> to vector<8x1xf32>
    %181 = vector.broadcast %180 : vector<8x1xf32> to vector<8x16xf32>
    %182 = arith.subf %178, %181 : vector<8x16xf32>
    %183 = math.exp %182 : vector<8x16xf32>
    %cst_69 = arith.constant dense<0.000000e+00> : vector<8xf32>
    %184 = vector.multi_reduction <add>, %183, %cst_69 [1] : vector<8x16xf32> to vector<8xf32>
    %185 = vector.shape_cast %184 : vector<8xf32> to vector<8x1xf32>
    %186 = tpu.reciprocal %185 {approx = true} : vector<8x1xf32> -> vector<8x1xf32>
    %187 = vector.broadcast %186 : vector<8x1xf32> to vector<8x16xf32>
    %188 = arith.mulf %183, %187 : vector<8x16xf32>
    %189 = vector.extract_strided_slice %164 {offsets = [0, 0], sizes = [16, 16], strides = [1, 1]} : vector<16x64xf32> to vector<16x16xf32>
    %cst_70 = arith.constant dense<0.000000e+00> : vector<8x16xf32>
    %190 = tpu.matmul %188, %189, %cst_70 {dimension_numbers = #tpu.dot_dimension_numbers<[1], [0], [0], [1], [0, 0, 1, 1], [], []>} : vector<8x16xf32>, vector<16x16xf32>, vector<8x16xf32> -> vector<8x16xf32>
    %c8 = arith.constant 8 : index
    %c0_71 = arith.constant 0 : index
    %191 = vector.load %arg29[%c8, %c0_71] : memref<16x64xf32, #tpu.memory_space<vmem>>, vector<8x16xf32>
    tpu.vector_store %arg29[%c8, %c0_71], %190 {strides = array<i32>} : memref<16x64xf32, #tpu.memory_space<vmem>>, vector<8x16xf32>,
    %192 = vector.extract_strided_slice %157 {offsets = [0, 16], sizes = [8, 16], strides = [1, 1]} : vector<8x64xf32> to vector<8x16xf32>
    %193 = vector.extract_strided_slice %161 {offsets = [0, 16], sizes = [16, 16], strides = [1, 1]} : vector<16x64xf32> to vector<16x16xf32>
    %cst_72 = arith.constant dense<0.000000e+00> : vector<8x16xf32>
    %194 = tpu.matmul %192, %193, %cst_72 {dimension_numbers = #tpu.dot_dimension_numbers<[1], [1], [0], [0], [0, 0, 1, 0], [], []>} : vector<8x16xf32>, vector<16x16xf32>, vector<8x16xf32> -> vector<8x16xf32>
    %195 = vector.extract_strided_slice %158 {offsets = [0, 16], sizes = [8, 16], strides = [1, 1]} : vector<8x64xf32> to vector<8x16xf32>
    %196 = vector.extract_strided_slice %30 {offsets = [0, 16], sizes = [16, 16], strides = [1, 1]} : vector<16x64xf32> to vector<16x16xf32>
    %cst_73 = arith.constant dense<0.000000e+00> : vector<8x16xf32>
    %197 = tpu.matmul %195, %196, %cst_73 {dimension_numbers = #tpu.dot_dimension_numbers<[1], [1], [0], [0], [0, 0, 1, 0], [], []>} : vector<8x16xf32>, vector<16x16xf32>, vector<8x16xf32> -> vector<8x16xf32>
    %198 = vector.shape_cast %197 : vector<8x16xf32> to vector<8x1x16xf32>
    %199 = vector.broadcast %198 : vector<8x1x16xf32> to vector<8x16x16xf32>
    %200 = arith.mulf %199, %40 : vector<8x16x16xf32>
    %cst_74 = arith.constant dense<0.000000e+00> : vector<8x16xf32>
    %201 = vector.multi_reduction <add>, %200, %cst_74 [2] : vector<8x16x16xf32> to vector<8x16xf32>
    %202 = arith.addf %194, %201 : vector<8x16xf32>
    %cst_75 = arith.constant 2.500000e-01 : f32
    %203 = vector.broadcast %cst_75 : f32 to vector<8x16xf32>
    %204 = arith.mulf %202, %203 : vector<8x16xf32>
    %205 = arith.addf %204, %39 : vector<8x16xf32>
    %cst_76 = arith.constant dense<0xFF800000> : vector<8xf32>
    %206 = vector.multi_reduction <maximumf>, %205, %cst_76 [1] : vector<8x16xf32> to vector<8xf32>
    %207 = vector.shape_cast %206 : vector<8xf32> to vector<8x1xf32>
    %208 = vector.broadcast %207 : vector<8x1xf32> to vector<8x16xf32>
    %209 = arith.subf %205, %208 : vector<8x16xf32>
    %210 = math.exp %209 : vector<8x16xf32>
    %cst_77 = arith.constant dense<0.000000e+00> : vector<8xf32>
    %211 = vector.multi_reduction <add>, %210, %cst_77 [1] : vector<8x16xf32> to vector<8xf32>
    %212 = vector.shape_cast %211 : vector<8xf32> to vector<8x1xf32>
    %213 = tpu.reciprocal %212 {approx = true} : vector<8x1xf32> -> vector<8x1xf32>
    %214 = vector.broadcast %213 : vector<8x1xf32> to vector<8x16xf32>
    %215 = arith.mulf %210, %214 : vector<8x16xf32>
    %216 = vector.extract_strided_slice %164 {offsets = [0, 16], sizes = [16, 16], strides = [1, 1]} : vector<16x64xf32> to vector<16x16xf32>
    %cst_78 = arith.constant dense<0.000000e+00> : vector<8x16xf32>
    %217 = tpu.matmul %215, %216, %cst_78 {dimension_numbers = #tpu.dot_dimension_numbers<[1], [0], [0], [1], [0, 0, 1, 1], [], []>} : vector<8x16xf32>, vector<16x16xf32>, vector<8x16xf32> -> vector<8x16xf32>
    %c8_79 = arith.constant 8 : index
    %c16_80 = arith.constant 16 : index
    %218 = vector.load %arg29[%c8_79, %c16_80] : memref<16x64xf32, #tpu.memory_space<vmem>>, vector<8x16xf32>
    tpu.vector_store %arg29[%c8_79, %c16_80], %217 {strides = array<i32>} : memref<16x64xf32, #tpu.memory_space<vmem>>, vector<8x16xf32>,
    %219 = vector.extract_strided_slice %157 {offsets = [0, 32], sizes = [8, 16], strides = [1, 1]} : vector<8x64xf32> to vector<8x16xf32>
    %220 = vector.extract_strided_slice %161 {offsets = [0, 32], sizes = [16, 16], strides = [1, 1]} : vector<16x64xf32> to vector<16x16xf32>
    %cst_81 = arith.constant dense<0.000000e+00> : vector<8x16xf32>
    %221 = tpu.matmul %219, %220, %cst_81 {dimension_numbers = #tpu.dot_dimension_numbers<[1], [1], [0], [0], [0, 0, 1, 0], [], []>} : vector<8x16xf32>, vector<16x16xf32>, vector<8x16xf32> -> vector<8x16xf32>
    %222 = vector.extract_strided_slice %158 {offsets = [0, 32], sizes = [8, 16], strides = [1, 1]} : vector<8x64xf32> to vector<8x16xf32>
    %223 = vector.extract_strided_slice %30 {offsets = [0, 32], sizes = [16, 16], strides = [1, 1]} : vector<16x64xf32> to vector<16x16xf32>
    %cst_82 = arith.constant dense<0.000000e+00> : vector<8x16xf32>
    %224 = tpu.matmul %222, %223, %cst_82 {dimension_numbers = #tpu.dot_dimension_numbers<[1], [1], [0], [0], [0, 0, 1, 0], [], []>} : vector<8x16xf32>, vector<16x16xf32>, vector<8x16xf32> -> vector<8x16xf32>
    %225 = vector.shape_cast %224 : vector<8x16xf32> to vector<8x1x16xf32>
    %226 = vector.broadcast %225 : vector<8x1x16xf32> to vector<8x16x16xf32>
    %227 = arith.mulf %226, %40 : vector<8x16x16xf32>
    %cst_83 = arith.constant dense<0.000000e+00> : vector<8x16xf32>
    %228 = vector.multi_reduction <add>, %227, %cst_83 [2] : vector<8x16x16xf32> to vector<8x16xf32>
    %229 = arith.addf %221, %228 : vector<8x16xf32>
    %cst_84 = arith.constant 2.500000e-01 : f32
    %230 = vector.broadcast %cst_84 : f32 to vector<8x16xf32>
    %231 = arith.mulf %229, %230 : vector<8x16xf32>
    %232 = arith.addf %231, %39 : vector<8x16xf32>
    %cst_85 = arith.constant dense<0xFF800000> : vector<8xf32>
    %233 = vector.multi_reduction <maximumf>, %232, %cst_85 [1] : vector<8x16xf32> to vector<8xf32>
    %234 = vector.shape_cast %233 : vector<8xf32> to vector<8x1xf32>
    %235 = vector.broadcast %234 : vector<8x1xf32> to vector<8x16xf32>
    %236 = arith.subf %232, %235 : vector<8x16xf32>
    %237 = math.exp %236 : vector<8x16xf32>
    %cst_86 = arith.constant dense<0.000000e+00> : vector<8xf32>
    %238 = vector.multi_reduction <add>, %237, %cst_86 [1] : vector<8x16xf32> to vector<8xf32>
    %239 = vector.shape_cast %238 : vector<8xf32> to vector<8x1xf32>
    %240 = tpu.reciprocal %239 {approx = true} : vector<8x1xf32> -> vector<8x1xf32>
    %241 = vector.broadcast %240 : vector<8x1xf32> to vector<8x16xf32>
    %242 = arith.mulf %237, %241 : vector<8x16xf32>
    %243 = vector.extract_strided_slice %164 {offsets = [0, 32], sizes = [16, 16], strides = [1, 1]} : vector<16x64xf32> to vector<16x16xf32>
    %cst_87 = arith.constant dense<0.000000e+00> : vector<8x16xf32>
    %244 = tpu.matmul %242, %243, %cst_87 {dimension_numbers = #tpu.dot_dimension_numbers<[1], [0], [0], [1], [0, 0, 1, 1], [], []>} : vector<8x16xf32>, vector<16x16xf32>, vector<8x16xf32> -> vector<8x16xf32>
    %c8_88 = arith.constant 8 : index
    %c32_89 = arith.constant 32 : index
    %245 = vector.load %arg29[%c8_88, %c32_89] : memref<16x64xf32, #tpu.memory_space<vmem>>, vector<8x16xf32>
    tpu.vector_store %arg29[%c8_88, %c32_89], %244 {strides = array<i32>} : memref<16x64xf32, #tpu.memory_space<vmem>>, vector<8x16xf32>,
    %246 = vector.extract_strided_slice %157 {offsets = [0, 48], sizes = [8, 16], strides = [1, 1]} : vector<8x64xf32> to vector<8x16xf32>
    %247 = vector.extract_strided_slice %161 {offsets = [0, 48], sizes = [16, 16], strides = [1, 1]} : vector<16x64xf32> to vector<16x16xf32>
    %cst_90 = arith.constant dense<0.000000e+00> : vector<8x16xf32>
    %248 = tpu.matmul %246, %247, %cst_90 {dimension_numbers = #tpu.dot_dimension_numbers<[1], [1], [0], [0], [0, 0, 1, 0], [], []>} : vector<8x16xf32>, vector<16x16xf32>, vector<8x16xf32> -> vector<8x16xf32>
    %249 = vector.extract_strided_slice %158 {offsets = [0, 48], sizes = [8, 16], strides = [1, 1]} : vector<8x64xf32> to vector<8x16xf32>
    %250 = vector.extract_strided_slice %30 {offsets = [0, 48], sizes = [16, 16], strides = [1, 1]} : vector<16x64xf32> to vector<16x16xf32>
    %cst_91 = arith.constant dense<0.000000e+00> : vector<8x16xf32>
    %251 = tpu.matmul %249, %250, %cst_91 {dimension_numbers = #tpu.dot_dimension_numbers<[1], [1], [0], [0], [0, 0, 1, 0], [], []>} : vector<8x16xf32>, vector<16x16xf32>, vector<8x16xf32> -> vector<8x16xf32>
    %252 = vector.shape_cast %251 : vector<8x16xf32> to vector<8x1x16xf32>
    %253 = vector.broadcast %252 : vector<8x1x16xf32> to vector<8x16x16xf32>
    %254 = arith.mulf %253, %40 : vector<8x16x16xf32>
    %cst_92 = arith.constant dense<0.000000e+00> : vector<8x16xf32>
    %255 = vector.multi_reduction <add>, %254, %cst_92 [2] : vector<8x16x16xf32> to vector<8x16xf32>
    %256 = arith.addf %248, %255 : vector<8x16xf32>
    %cst_93 = arith.constant 2.500000e-01 : f32
    %257 = vector.broadcast %cst_93 : f32 to vector<8x16xf32>
    %258 = arith.mulf %256, %257 : vector<8x16xf32>
    %259 = arith.addf %258, %39 : vector<8x16xf32>
    %cst_94 = arith.constant dense<0xFF800000> : vector<8xf32>
    %260 = vector.multi_reduction <maximumf>, %259, %cst_94 [1] : vector<8x16xf32> to vector<8xf32>
    %261 = vector.shape_cast %260 : vector<8xf32> to vector<8x1xf32>
    %262 = vector.broadcast %261 : vector<8x1xf32> to vector<8x16xf32>
    %263 = arith.subf %259, %262 : vector<8x16xf32>
    %264 = math.exp %263 : vector<8x16xf32>
    %cst_95 = arith.constant dense<0.000000e+00> : vector<8xf32>
    %265 = vector.multi_reduction <add>, %264, %cst_95 [1] : vector<8x16xf32> to vector<8xf32>
    %266 = vector.shape_cast %265 : vector<8xf32> to vector<8x1xf32>
    %267 = tpu.reciprocal %266 {approx = true} : vector<8x1xf32> -> vector<8x1xf32>
    %268 = vector.broadcast %267 : vector<8x1xf32> to vector<8x16xf32>
    %269 = arith.mulf %264, %268 : vector<8x16xf32>
    %270 = vector.extract_strided_slice %164 {offsets = [0, 48], sizes = [16, 16], strides = [1, 1]} : vector<16x64xf32> to vector<16x16xf32>
    %cst_96 = arith.constant dense<0.000000e+00> : vector<8x16xf32>
    %271 = tpu.matmul %269, %270, %cst_96 {dimension_numbers = #tpu.dot_dimension_numbers<[1], [0], [0], [1], [0, 0, 1, 1], [], []>} : vector<8x16xf32>, vector<16x16xf32>, vector<8x16xf32> -> vector<8x16xf32>
    %c8_97 = arith.constant 8 : index
    %c48_98 = arith.constant 48 : index
    %272 = vector.load %arg29[%c8_97, %c48_98] : memref<16x64xf32, #tpu.memory_space<vmem>>, vector<8x16xf32>
    tpu.vector_store %arg29[%c8_97, %c48_98], %271 {strides = array<i32>} : memref<16x64xf32, #tpu.memory_space<vmem>>, vector<8x16xf32>,
    %c0_99 = arith.constant 0 : index
    %c0_100 = arith.constant 0 : index
    %273 = vector.load %arg29[%c0_99, %c0_100] : memref<16x64xf32, #tpu.memory_space<vmem>>, vector<16x64xf32>
    %c0_101 = arith.constant 0 : index
    %c0_102 = arith.constant 0 : index
    %274 = vector.load %arg13[%c0_101, %c0_102] : memref<64x32xf32, #tpu.memory_space<vmem>>, vector<64x32xf32>
    %cst_103 = arith.constant dense<0.000000e+00> : vector<16x32xf32>
    %275 = tpu.matmul %273, %274, %cst_103 {dimension_numbers = #tpu.dot_dimension_numbers<[1], [0], [0], [1], [0, 0, 1, 1], [], []>} : vector<16x64xf32>, vector<64x32xf32>, vector<16x32xf32> -> vector<16x32xf32>
    %c0_104 = arith.constant 0 : index
    %c0_105 = arith.constant 0 : index
    %276 = vector.load %arg14[%c0_104, %c0_105] : memref<32x96xf32, #tpu.memory_space<vmem>>, vector<32x96xf32>
    %cst_106 = arith.constant dense<0.000000e+00> : vector<16x96xf32>
    %277 = tpu.matmul %275, %276, %cst_106 {dimension_numbers = #tpu.dot_dimension_numbers<[1], [0], [0], [1], [0, 0, 1, 1], [], []>} : vector<16x32xf32>, vector<32x96xf32>, vector<16x96xf32> -> vector<16x96xf32>
    %c0_107 = arith.constant 0 : index
    %c0_108 = arith.constant 0 : index
    %278 = vector.load %arg15[%c0_107, %c0_108] : memref<32x64xf32, #tpu.memory_space<vmem>>, vector<32x64xf32>
    %cst_109 = arith.constant dense<0.000000e+00> : vector<16x64xf32>
    %279 = tpu.matmul %0, %278, %cst_109 {dimension_numbers = #tpu.dot_dimension_numbers<[1], [0], [0], [1], [0, 0, 1, 1], [], []>} : vector<16x32xf32>, vector<32x64xf32>, vector<16x64xf32> -> vector<16x64xf32>
    %c0_110 = arith.constant 0 : index
    %c0_111 = arith.constant 0 : index
    %280 = vector.load %arg17[%c0_110, %c0_111] : memref<1x96xf32, #tpu.memory_space<vmem>>, vector<1x96xf32>
    %281 = vector.extract_strided_slice %277 {offsets = [0, 0], sizes = [16, 32], strides = [1, 1]} : vector<16x96xf32> to vector<16x32xf32>
    %282 = vector.extract_strided_slice %279 {offsets = [0, 0], sizes = [16, 32], strides = [1, 1]} : vector<16x64xf32> to vector<16x32xf32>
    %283 = arith.addf %281, %282 : vector<16x32xf32>
    %284 = vector.extract_strided_slice %280 {offsets = [0, 0], sizes = [1, 32], strides = [1, 1]} : vector<1x96xf32> to vector<1x32xf32>
    %285 = vector.broadcast %284 : vector<1x32xf32> to vector<16x32xf32>
    %286 = arith.addf %283, %285 : vector<16x32xf32>
    %287 = arith.negf %286 : vector<16x32xf32>
    %288 = math.exp %287 : vector<16x32xf32>
    %cst_112 = arith.constant 1.000000e+00 : f32
    %289 = vector.broadcast %cst_112 : f32 to vector<16x32xf32>
    %290 = arith.addf %289, %288 : vector<16x32xf32>
    %291 = arith.divf %289, %290 : vector<16x32xf32>
    %292 = vector.extract_strided_slice %277 {offsets = [0, 32], sizes = [16, 32], strides = [1, 1]} : vector<16x96xf32> to vector<16x32xf32>
    %293 = vector.extract_strided_slice %279 {offsets = [0, 32], sizes = [16, 32], strides = [1, 1]} : vector<16x64xf32> to vector<16x32xf32>
    %294 = arith.addf %292, %293 : vector<16x32xf32>
    %295 = vector.extract_strided_slice %280 {offsets = [0, 32], sizes = [1, 32], strides = [1, 1]} : vector<1x96xf32> to vector<1x32xf32>
    %296 = vector.broadcast %295 : vector<1x32xf32> to vector<16x32xf32>
    %297 = arith.addf %294, %296 : vector<16x32xf32>
    %298 = arith.negf %297 : vector<16x32xf32>
    %299 = math.exp %298 : vector<16x32xf32>
    %cst_113 = arith.constant 1.000000e+00 : f32
    %300 = vector.broadcast %cst_113 : f32 to vector<16x32xf32>
    %301 = arith.addf %300, %299 : vector<16x32xf32>
    %302 = arith.divf %300, %301 : vector<16x32xf32>
    %303 = vector.extract_strided_slice %277 {offsets = [0, 64], sizes = [16, 32], strides = [1, 1]} : vector<16x96xf32> to vector<16x32xf32>
    %304 = arith.mulf %291, %0 : vector<16x32xf32>
    %c0_114 = arith.constant 0 : index
    %c0_115 = arith.constant 0 : index
    %305 = vector.load %arg16[%c0_114, %c0_115] : memref<32x32xf32, #tpu.memory_space<vmem>>, vector<32x32xf32>
    %cst_116 = arith.constant dense<0.000000e+00> : vector<16x32xf32>
    %306 = tpu.matmul %304, %305, %cst_116 {dimension_numbers = #tpu.dot_dimension_numbers<[1], [0], [0], [1], [0, 0, 1, 1], [], []>} : vector<16x32xf32>, vector<32x32xf32>, vector<16x32xf32> -> vector<16x32xf32>
    %307 = arith.addf %303, %306 : vector<16x32xf32>
    %308 = vector.extract_strided_slice %280 {offsets = [0, 64], sizes = [1, 32], strides = [1, 1]} : vector<1x96xf32> to vector<1x32xf32>
    %309 = vector.broadcast %308 : vector<1x32xf32> to vector<16x32xf32>
    %310 = arith.addf %307, %309 : vector<16x32xf32>
    %311 = math.tanh %310 : vector<16x32xf32>
    %cst_117 = arith.constant 1.000000e+00 : f32
    %312 = vector.broadcast %cst_117 : f32 to vector<16x32xf32>
    %313 = arith.subf %312, %302 : vector<16x32xf32>
    %314 = arith.mulf %313, %0 : vector<16x32xf32>
    %315 = arith.mulf %302, %311 : vector<16x32xf32>
    %316 = arith.addf %314, %315 : vector<16x32xf32>
    %cst_118 = arith.constant dense<0.000000e+00> : vector<16xf32>
    %317 = vector.multi_reduction <add>, %316, %cst_118 [1] : vector<16x32xf32> to vector<16xf32>
    %318 = vector.shape_cast %317 : vector<16xf32> to vector<16x1xf32>
    %cst_119 = arith.constant 3.200000e+01 : f32
    %319 = vector.broadcast %cst_119 : f32 to vector<16x1xf32>
    %320 = arith.divf %318, %319 : vector<16x1xf32>
    %321 = vector.broadcast %320 : vector<16x1xf32> to vector<16x32xf32>
    %322 = arith.subf %316, %321 : vector<16x32xf32>
    %323 = arith.mulf %322, %322 : vector<16x32xf32>
    %cst_120 = arith.constant dense<0.000000e+00> : vector<16xf32>
    %324 = vector.multi_reduction <add>, %323, %cst_120 [1] : vector<16x32xf32> to vector<16xf32>
    %325 = vector.shape_cast %324 : vector<16xf32> to vector<16x1xf32>
    %cst_121 = arith.constant 3.200000e+01 : f32
    %326 = vector.broadcast %cst_121 : f32 to vector<16x1xf32>
    %327 = arith.divf %325, %326 : vector<16x1xf32>
    %cst_122 = arith.constant 9.99999974E-6 : f32
    %328 = vector.broadcast %cst_122 : f32 to vector<16x1xf32>
    %329 = arith.addf %327, %328 : vector<16x1xf32>
    %330 = math.rsqrt %329 : vector<16x1xf32>
    %331 = vector.broadcast %330 : vector<16x1xf32> to vector<16x32xf32>
    %332 = arith.mulf %322, %331 : vector<16x32xf32>
    %c0_123 = arith.constant 0 : index
    %c0_124 = arith.constant 0 : index
    %333 = vector.load %arg18[%c0_123, %c0_124] : memref<1x32xf32, #tpu.memory_space<vmem>>, vector<1x32xf32>
    %334 = vector.broadcast %333 : vector<1x32xf32> to vector<16x32xf32>
    %335 = arith.mulf %332, %334 : vector<16x32xf32>
    %c0_125 = arith.constant 0 : index
    %c0_126 = arith.constant 0 : index
    %336 = vector.load %arg19[%c0_125, %c0_126] : memref<1x32xf32, #tpu.memory_space<vmem>>, vector<1x32xf32>
    %337 = vector.broadcast %336 : vector<1x32xf32> to vector<16x32xf32>
    %338 = arith.addf %335, %337 : vector<16x32xf32>
    %c0_127 = arith.constant 0 : index
    %c0_128 = arith.constant 0 : index
    %339 = vector.load %arg20[%c0_127, %c0_128] : memref<32x64xf32, #tpu.memory_space<vmem>>, vector<32x64xf32>
    %cst_129 = arith.constant dense<0.000000e+00> : vector<16x64xf32>
    %340 = tpu.matmul %338, %339, %cst_129 {dimension_numbers = #tpu.dot_dimension_numbers<[1], [0], [0], [1], [0, 0, 1, 1], [], []>} : vector<16x32xf32>, vector<32x64xf32>, vector<16x64xf32> -> vector<16x64xf32>
    %c0_130 = arith.constant 0 : index
    %c0_131 = arith.constant 0 : index
    %341 = vector.load %arg21[%c0_130, %c0_131] : memref<1x64xf32, #tpu.memory_space<vmem>>, vector<1x64xf32>
    %342 = vector.broadcast %341 : vector<1x64xf32> to vector<16x64xf32>
    %343 = arith.addf %340, %342 : vector<16x64xf32>
    %cst_132 = arith.constant 0.000000e+00 : f32
    %344 = vector.broadcast %cst_132 : f32 to vector<16x64xf32>
    %345 = arith.maximumf %343, %344 : vector<16x64xf32>
    %c0_133 = arith.constant 0 : index
    %c0_134 = arith.constant 0 : index
    %346 = vector.load %arg22[%c0_133, %c0_134] : memref<64x32xf32, #tpu.memory_space<vmem>>, vector<64x32xf32>
    %cst_135 = arith.constant dense<0.000000e+00> : vector<16x32xf32>
    %347 = tpu.matmul %345, %346, %cst_135 {dimension_numbers = #tpu.dot_dimension_numbers<[1], [0], [0], [1], [0, 0, 1, 1], [], []>} : vector<16x64xf32>, vector<64x32xf32>, vector<16x32xf32> -> vector<16x32xf32>
    %c0_136 = arith.constant 0 : index
    %c0_137 = arith.constant 0 : index
    %348 = vector.load %arg23[%c0_136, %c0_137] : memref<1x32xf32, #tpu.memory_space<vmem>>, vector<1x32xf32>
    %349 = vector.broadcast %348 : vector<1x32xf32> to vector<16x32xf32>
    %350 = arith.addf %347, %349 : vector<16x32xf32>
    %c0_138 = arith.constant 0 : index
    %c0_139 = arith.constant 0 : index
    %351 = vector.load %arg24[%c0_138, %c0_139] : memref<32x96xf32, #tpu.memory_space<vmem>>, vector<32x96xf32>
    %cst_140 = arith.constant dense<0.000000e+00> : vector<16x96xf32>
    %352 = tpu.matmul %350, %351, %cst_140 {dimension_numbers = #tpu.dot_dimension_numbers<[1], [0], [0], [1], [0, 0, 1, 1], [], []>} : vector<16x32xf32>, vector<32x96xf32>, vector<16x96xf32> -> vector<16x96xf32>
    %c0_141 = arith.constant 0 : index
    %c0_142 = arith.constant 0 : index
    %353 = vector.load %arg25[%c0_141, %c0_142] : memref<32x64xf32, #tpu.memory_space<vmem>>, vector<32x64xf32>
    %cst_143 = arith.constant dense<0.000000e+00> : vector<16x64xf32>
    %354 = tpu.matmul %316, %353, %cst_143 {dimension_numbers = #tpu.dot_dimension_numbers<[1], [0], [0], [1], [0, 0, 1, 1], [], []>} : vector<16x32xf32>, vector<32x64xf32>, vector<16x64xf32> -> vector<16x64xf32>
    %c0_144 = arith.constant 0 : index
    %c0_145 = arith.constant 0 : index
    %355 = vector.load %arg27[%c0_144, %c0_145] : memref<1x96xf32, #tpu.memory_space<vmem>>, vector<1x96xf32>
    %356 = vector.extract_strided_slice %352 {offsets = [0, 0], sizes = [16, 32], strides = [1, 1]} : vector<16x96xf32> to vector<16x32xf32>
    %357 = vector.extract_strided_slice %354 {offsets = [0, 0], sizes = [16, 32], strides = [1, 1]} : vector<16x64xf32> to vector<16x32xf32>
    %358 = arith.addf %356, %357 : vector<16x32xf32>
    %359 = vector.extract_strided_slice %355 {offsets = [0, 0], sizes = [1, 32], strides = [1, 1]} : vector<1x96xf32> to vector<1x32xf32>
    %360 = vector.broadcast %359 : vector<1x32xf32> to vector<16x32xf32>
    %361 = arith.addf %358, %360 : vector<16x32xf32>
    %362 = arith.negf %361 : vector<16x32xf32>
    %363 = math.exp %362 : vector<16x32xf32>
    %cst_146 = arith.constant 1.000000e+00 : f32
    %364 = vector.broadcast %cst_146 : f32 to vector<16x32xf32>
    %365 = arith.addf %364, %363 : vector<16x32xf32>
    %366 = arith.divf %364, %365 : vector<16x32xf32>
    %367 = vector.extract_strided_slice %352 {offsets = [0, 32], sizes = [16, 32], strides = [1, 1]} : vector<16x96xf32> to vector<16x32xf32>
    %368 = vector.extract_strided_slice %354 {offsets = [0, 32], sizes = [16, 32], strides = [1, 1]} : vector<16x64xf32> to vector<16x32xf32>
    %369 = arith.addf %367, %368 : vector<16x32xf32>
    %370 = vector.extract_strided_slice %355 {offsets = [0, 32], sizes = [1, 32], strides = [1, 1]} : vector<1x96xf32> to vector<1x32xf32>
    %371 = vector.broadcast %370 : vector<1x32xf32> to vector<16x32xf32>
    %372 = arith.addf %369, %371 : vector<16x32xf32>
    %373 = arith.negf %372 : vector<16x32xf32>
    %374 = math.exp %373 : vector<16x32xf32>
    %cst_147 = arith.constant 1.000000e+00 : f32
    %375 = vector.broadcast %cst_147 : f32 to vector<16x32xf32>
    %376 = arith.addf %375, %374 : vector<16x32xf32>
    %377 = arith.divf %375, %376 : vector<16x32xf32>
    %378 = vector.extract_strided_slice %352 {offsets = [0, 64], sizes = [16, 32], strides = [1, 1]} : vector<16x96xf32> to vector<16x32xf32>
    %379 = arith.mulf %366, %316 : vector<16x32xf32>
    %c0_148 = arith.constant 0 : index
    %c0_149 = arith.constant 0 : index
    %380 = vector.load %arg26[%c0_148, %c0_149] : memref<32x32xf32, #tpu.memory_space<vmem>>, vector<32x32xf32>
    %cst_150 = arith.constant dense<0.000000e+00> : vector<16x32xf32>
    %381 = tpu.matmul %379, %380, %cst_150 {dimension_numbers = #tpu.dot_dimension_numbers<[1], [0], [0], [1], [0, 0, 1, 1], [], []>} : vector<16x32xf32>, vector<32x32xf32>, vector<16x32xf32> -> vector<16x32xf32>
    %382 = arith.addf %378, %381 : vector<16x32xf32>
    %383 = vector.extract_strided_slice %355 {offsets = [0, 64], sizes = [1, 32], strides = [1, 1]} : vector<1x96xf32> to vector<1x32xf32>
    %384 = vector.broadcast %383 : vector<1x32xf32> to vector<16x32xf32>
    %385 = arith.addf %382, %384 : vector<16x32xf32>
    %386 = math.tanh %385 : vector<16x32xf32>
    %cst_151 = arith.constant 1.000000e+00 : f32
    %387 = vector.broadcast %cst_151 : f32 to vector<16x32xf32>
    %388 = arith.subf %387, %377 : vector<16x32xf32>
    %389 = arith.mulf %388, %316 : vector<16x32xf32>
    %390 = arith.mulf %377, %386 : vector<16x32xf32>
    %391 = arith.addf %389, %390 : vector<16x32xf32>
    %c0_152 = arith.constant 0 : index
    %c0_153 = arith.constant 0 : index
    %392 = vector.load %arg28[%c0_152, %c0_153] : memref<16x32xf32, #tpu.memory_space<vmem>>, vector<16x32xf32>
    tpu.vector_store %arg28[%c0_152, %c0_153], %391 {strides = array<i32>} : memref<16x32xf32, #tpu.memory_space<vmem>>, vector<16x32xf32>,
    return
  }
  func.func @transform_0(%arg0: i32) -> (i32, i32) {
    %c0_i32 = arith.constant 0 : i32
    %c0_i32_0 = arith.constant 0 : i32
    %c0_i32_1 = arith.constant 0 : i32
    return %c0_i32, %c0_i32_0 : i32, i32
  }
  func.func @transform_1(%arg0: i32) -> (i32, i32) {
    %c0_i32 = arith.constant 0 : i32
    %c0_i32_0 = arith.constant 0 : i32
    %c0_i32_1 = arith.constant 0 : i32
    return %c0_i32, %c0_i32_0 : i32, i32
  }
  func.func @transform_2(%arg0: i32) -> (i32, i32) {
    %c0_i32 = arith.constant 0 : i32
    %c0_i32_0 = arith.constant 0 : i32
    %c0_i32_1 = arith.constant 0 : i32
    return %c0_i32, %c0_i32_0 : i32, i32
  }
  func.func @transform_3(%arg0: i32) -> (i32, i32) {
    %c0_i32 = arith.constant 0 : i32
    %c0_i32_0 = arith.constant 0 : i32
    %c0_i32_1 = arith.constant 0 : i32
    return %c0_i32, %c0_i32_0 : i32, i32
  }
  func.func @transform_4(%arg0: i32) -> (i32, i32, i32) {
    %c0_i32 = arith.constant 0 : i32
    %c0_i32_0 = arith.constant 0 : i32
    %c0_i32_1 = arith.constant 0 : i32
    %c0_i32_2 = arith.constant 0 : i32
    return %c0_i32, %c0_i32_0, %c0_i32_1 : i32, i32, i32
  }
  func.func @transform_5(%arg0: i32) -> (i32, i32) {
    %c0_i32 = arith.constant 0 : i32
    %c0_i32_0 = arith.constant 0 : i32
    %c0_i32_1 = arith.constant 0 : i32
    return %c0_i32, %c0_i32_0 : i32, i32
  }
  func.func @transform_6(%arg0: i32) -> (i32, i32) {
    %c0_i32 = arith.constant 0 : i32
    %c0_i32_0 = arith.constant 0 : i32
    %c0_i32_1 = arith.constant 0 : i32
    return %c0_i32, %c0_i32_0 : i32, i32
  }
  func.func @transform_7(%arg0: i32) -> (i32, i32) {
    %c0_i32 = arith.constant 0 : i32
    %c0_i32_0 = arith.constant 0 : i32
    %c0_i32_1 = arith.constant 0 : i32
    return %c0_i32, %c0_i32_0 : i32, i32
  }
  func.func @transform_8(%arg0: i32) -> (i32, i32) {
    %c0_i32 = arith.constant 0 : i32
    %c0_i32_0 = arith.constant 0 : i32
    %c0_i32_1 = arith.constant 0 : i32
    return %c0_i32, %c0_i32_0 : i32, i32
  }
  func.func @transform_9(%arg0: i32) -> (i32, i32) {
    %c0_i32 = arith.constant 0 : i32
    %c0_i32_0 = arith.constant 0 : i32
    %c0_i32_1 = arith.constant 0 : i32
    return %c0_i32, %c0_i32_0 : i32, i32
  }
  func.func @transform_10(%arg0: i32) -> (i32, i32) {
    %c0_i32 = arith.constant 0 : i32
    %c0_i32_0 = arith.constant 0 : i32
    %c0_i32_1 = arith.constant 0 : i32
    return %c0_i32, %c0_i32_0 : i32, i32
  }
  func.func @transform_11(%arg0: i32) -> (i32, i32) {
    %c0_i32 = arith.constant 0 : i32
    %c0_i32_0 = arith.constant 0 : i32
    %c0_i32_1 = arith.constant 0 : i32
    return %c0_i32, %c0_i32_0 : i32, i32
  }
  func.func @transform_12(%arg0: i32) -> (i32, i32) {
    %c0_i32 = arith.constant 0 : i32
    %c0_i32_0 = arith.constant 0 : i32
    %c0_i32_1 = arith.constant 0 : i32
    return %c0_i32, %c0_i32_0 : i32, i32
  }
  func.func @transform_13(%arg0: i32) -> (i32, i32) {
    %c0_i32 = arith.constant 0 : i32
    %c0_i32_0 = arith.constant 0 : i32
    %c0_i32_1 = arith.constant 0 : i32
    return %c0_i32, %c0_i32_0 : i32, i32
  }
  func.func @transform_14(%arg0: i32) -> (i32, i32) {
    %c0_i32 = arith.constant 0 : i32
    %c0_i32_0 = arith.constant 0 : i32
    %c0_i32_1 = arith.constant 0 : i32
    return %c0_i32, %c0_i32_0 : i32, i32
  }
  func.func @transform_15(%arg0: i32) -> (i32, i32) {
    %c0_i32 = arith.constant 0 : i32
    %c0_i32_0 = arith.constant 0 : i32
    %c0_i32_1 = arith.constant 0 : i32
    return %c0_i32, %c0_i32_0 : i32, i32
  }
  func.func @transform_16(%arg0: i32) -> (i32, i32) {
    %c0_i32 = arith.constant 0 : i32
    %c0_i32_0 = arith.constant 0 : i32
    %c0_i32_1 = arith.constant 0 : i32
    return %c0_i32, %c0_i32_0 : i32, i32
  }
  func.func @transform_17(%arg0: i32) -> (i32, i32) {
    %c0_i32 = arith.constant 0 : i32
    %c0_i32_0 = arith.constant 0 : i32
    %c0_i32_1 = arith.constant 0 : i32
    return %c0_i32, %c0_i32_0 : i32, i32
  }
  func.func @transform_18(%arg0: i32) -> (i32, i32) {
    %c0_i32 = arith.constant 0 : i32
    %c0_i32_0 = arith.constant 0 : i32
    %c0_i32_1 = arith.constant 0 : i32
    return %c0_i32, %c0_i32_0 : i32, i32
  }
  func.func @transform_19(%arg0: i32) -> (i32, i32) {
    %c0_i32 = arith.constant 0 : i32
    %c0_i32_0 = arith.constant 0 : i32
    %c0_i32_1 = arith.constant 0 : i32
    return %c0_i32, %c0_i32_0 : i32, i32
  }
  func.func @transform_20(%arg0: i32) -> (i32, i32) {
    %c0_i32 = arith.constant 0 : i32
    %c0_i32_0 = arith.constant 0 : i32
    %c0_i32_1 = arith.constant 0 : i32
    return %c0_i32, %c0_i32_0 : i32, i32
  }
  func.func @transform_21(%arg0: i32) -> (i32, i32) {
    %c0_i32 = arith.constant 0 : i32
    %c0_i32_0 = arith.constant 0 : i32
    %c0_i32_1 = arith.constant 0 : i32
    return %c0_i32, %c0_i32_0 : i32, i32
  }
  func.func @transform_22(%arg0: i32) -> (i32, i32) {
    %c0_i32 = arith.constant 0 : i32
    %c0_i32_0 = arith.constant 0 : i32
    %c0_i32_1 = arith.constant 0 : i32
    return %c0_i32, %c0_i32_0 : i32, i32
  }
  func.func @transform_23(%arg0: i32) -> (i32, i32) {
    %c0_i32 = arith.constant 0 : i32
    %c0_i32_0 = arith.constant 0 : i32
    %c0_i32_1 = arith.constant 0 : i32
    return %c0_i32, %c0_i32_0 : i32, i32
  }
  func.func @transform_24(%arg0: i32) -> (i32, i32) {
    %c0_i32 = arith.constant 0 : i32
    %c0_i32_0 = arith.constant 0 : i32
    %c0_i32_1 = arith.constant 0 : i32
    return %c0_i32, %c0_i32_0 : i32, i32
  }
  func.func @transform_25(%arg0: i32) -> (i32, i32) {
    %c0_i32 = arith.constant 0 : i32
    %c0_i32_0 = arith.constant 0 : i32
    %c0_i32_1 = arith.constant 0 : i32
    return %c0_i32, %c0_i32_0 : i32, i32
  }
  func.func @transform_26(%arg0: i32) -> (i32, i32) {
    %c0_i32 = arith.constant 0 : i32
    %c0_i32_0 = arith.constant 0 : i32
    %c0_i32_1 = arith.constant 0 : i32
    return %c0_i32, %c0_i32_0 : i32, i32
  }
  func.func @transform_27(%arg0: i32) -> (i32, i32) {
    %c0_i32 = arith.constant 0 : i32
    %c0_i32_0 = arith.constant 0 : i32
    %c0_i32_1 = arith.constant 0 : i32
    return %c0_i32, %c0_i32_0 : i32, i32
  }
}

</mosaic_0001>

<llo_original>
// kernel: transformer_agg_forward.2
$region0: #{transformer_agg_forward.2}
  #allocation0 [shape = 'u32[]', space=smem, size = 0x4, offset = 0x4, fixed_abs, tag = 'smem constant byte address 0x4 - core index']
  #allocation1 [shape = 'u32[144,128]{1,0:T(1,128)}', space=vmem, size = 0x12000, scoped, tag = 'internal scratch']
  %s0 = inlined_call_operand.vmem [shape: f32[16,16], index: 0, kind: input, shape index: {}]
  %s1 = inlined_call_operand.vmem [shape: f32[16,32], index: 1, kind: input, shape index: {}]
  %s2 = inlined_call_operand.vmem [shape: f32[1,32], index: 2, kind: input, shape index: {}]
  %s3 = inlined_call_operand.vmem [shape: f32[16,32], index: 3, kind: output, shape index: {}]
  %s4 = sld [smem:[#allocation0]]
  $region22: #{transformer_agg_forward.2} parent=0
    _
  %s6 = ssub.s32 1, %s4
  %s7 = scalar_select 0, %s6, %s4
  // Predicated region
  $region2: #{transformer_agg_forward.2} parent=0 // pred_check
    _
  $region3: #{transformer_agg_forward.2} parent=0 // pred_check_branch
    %9 = sbr.rel (0) target = $region5
  $region4: #{transformer_agg_forward.2} parent=0 // pred_region
    _
  $region5: #{transformer_agg_forward.2} parent=0 // pred_fallthru
    _
  // Predicated region
  $region6: #{transformer_agg_forward.2} parent=0 // pred_check
    _
  $region7: #{transformer_agg_forward.2} parent=0 // pred_check_branch
    %11 = sbr.rel (0) target = $region9
  $region8: #{transformer_agg_forward.2} parent=0 // pred_region
    _
  $region9: #{transformer_agg_forward.2} parent=0 // pred_fallthru
    _
  // Predicated region
  $region10: #{transformer_agg_forward.2} parent=0 // pred_check
    _
  $region11: #{transformer_agg_forward.2} parent=0 // pred_check_branch
    %13 = sbr.rel (0) target = $region13
  $region12: #{transformer_agg_forward.2} parent=0 // pred_region
    _
  $region13: #{transformer_agg_forward.2} parent=0 // pred_fallthru
    _
  %v14 = vld [vmem:[%s0] sm:$0xff]
  %v15 = vld [vmem:[%s0 + $0x8] sm:$0xff]
  %v16 = vld [vmem:[%s1] sm:$0xff]
  %v17 = vld [vmem:[%s1 + $0x8] sm:$0xff]
  %v18 = vld [vmem:[%s2] sm:$0x1]
  %v20 = vlaneseq
  %v21 = vshrl.u32 %v20, 7
  %v22 = vsub.s32 0, %v21
  %v23 = vrot.slane %v18, %v22
  %vm25 = vcmask 130048
  %v27 = vsel %vm25, %v14, 0
  %v30 = vsel %vm25, %v15, 0
  %32 = vmatprep.subr.mxu0 0.0
  %33 = vmatpush1.msra.mxu0 %v16
  %34 = vmatprep.subr.mxu0 0.0
  %35 = vmatpush1.msra.mxu0 %v17
  %36 = vmatprep.subr.mxu0 0.0
  %37 = vmatpush1.msra.mxu0 0.0
  %38 = vmatprep.subr.mxu0 0.0
  %39 = vmatpush1.msra.mxu0 0.0
  %40 = vmatprep.subr.mxu0 0.0
  %41 = vmatpush1.msra.mxu0 0.0
  %42 = vmatprep.subr.mxu0 0.0
  %43 = vmatpush1.msra.mxu0 0.0
  %44 = vmatprep.subr.mxu0 0.0
  %45 = vmatpush1.msra.mxu0 0.0
  %46 = vmatprep.subr.mxu0 0.0
  %47 = vmatpush1.msra.mxu0 0.0
  %48 = vmatprep.subr.mxu0 0.0
  %49 = vmatpush1.msra.mxu0 0.0
  %50 = vmatprep.subr.mxu0 0.0
  %51 = vmatpush1.msra.mxu0 0.0
  %52 = vmatprep.subr.mxu0 0.0
  %53 = vmatpush1.msra.mxu0 0.0
  %54 = vmatprep.subr.mxu0 0.0
  %55 = vmatpush1.msra.mxu0 0.0
  %56 = vmatprep.subr.mxu0 0.0
  %57 = vmatpush1.msra.mxu0 0.0
  %58 = vmatprep.subr.mxu0 0.0
  %59 = vmatpush1.msra.mxu0 0.0
  %60 = vmatprep.subr.mxu0 0.0
  %61 = vmatpush1.msra.mxu0 0.0
  %62 = vmatprep.subr.mxu0 0.0
  %63 = vmatpush1.msra.mxu0 0.0
  %64 = vmatprep.subr.mxu0 0.0
  %65 = vmatpush1.msra.mxu0 0.0
  %66 = vmatprep.subr.mxu0 0.0
  %67 = vmatpush1.msra.mxu0 0.0
  %68 = vmatprep.subr.mxu0 0.0
  %69 = vmatpush1.msra.mxu0 0.0
  %70 = vmatprep.subr.mxu0 0.0
  %71 = vmatpush1.msra.mxu0 0.0
  %72 = vmatprep.subr.mxu0 0.0
  %73 = vmatpush1.msra.mxu0 0.0
  %74 = vmatprep.subr.mxu0 0.0
  %75 = vmatpush1.msra.mxu0 0.0
  %76 = vmatprep.subr.mxu0 0.0
  %77 = vmatpush1.msra.mxu0 0.0
  %78 = vmatprep.subr.mxu0 0.0
  %79 = vmatpush1.msra.mxu0 0.0
  %80 = vmatprep.subr.mxu0 0.0
  %81 = vmatpush1.msra.mxu0 0.0
  %82 = vmatprep.subr.mxu0 0.0
  %83 = vmatpush1.msra.mxu0 0.0
  %84 = vmatprep.subr.mxu0 0.0
  %85 = vmatpush1.msra.mxu0 0.0
  %86 = vmatprep.subr.mxu0 0.0
  %87 = vmatpush1.msra.mxu0 0.0
  %88 = vmatprep.subr.mxu0 0.0
  %89 = vmatpush1.msra.mxu0 0.0
  %90 = vmatprep.subr.mxu0 0.0
  %91 = vmatpush1.msra.mxu0 0.0
  %92 = vmatprep.subr.mxu0 0.0
  %93 = vmatpush1.msra.mxu0 0.0
  %94 = vmatprep.subr.mxu0 0.0
  %95 = vmatpush1.msra.mxu0 0.0
  %96 = vmatprep.mubr.f32.mxu0 0.0
  %97 = vmatmul.mubr.f32.gmra.mrb[0].mxu0 %v27
  %v98 = vpop.f32.mrb[0].mxu0
  %v99 = vadd.f32 %v23, %v98
  %v100 = vpop.f32.mrb[0].mxu0
  %101 = vmatprep.mubr.f32.mxu0 0.0
  %102 = vmatmul.mubr.f32.gmra.mrb[0].mxu0 %v30
  %v103 = vpop.f32.mrb[0].mxu0
  %v104 = vadd.f32 %v23, %v103
  %v105 = vpop.f32.mrb[0].mxu0
  %106 = vdwg.mxu0
  %vm107 = vcmask 261120
  %108 = vst.msk [vmem:[%s3] sm:$0xff] %vm107, %v99
  %109 = vst.msk [vmem:[%s3 + $0x8] sm:$0xff] %vm107, %v104
  // Predicated region
  $region14: #{transformer_agg_forward.2} parent=0 // pred_check
    _
  $region15: #{transformer_agg_forward.2} parent=0 // pred_check_branch
    %111 = sbr.rel (0) target = $region17
  $region16: #{transformer_agg_forward.2} parent=0 // pred_region
    _
  $region17: #{transformer_agg_forward.2} parent=0 // pred_fallthru
    _
  // Predicated region
  $region18: #{transformer_agg_forward.2} parent=0 // pred_check
    _
  $region19: #{transformer_agg_forward.2} parent=0 // pred_check_branch
    %113 = sbr.rel (0) target = $region21
  $region20: #{transformer_agg_forward.2} parent=0 // pred_region
    _
  $region21: #{transformer_agg_forward.2} parent=0 // pred_fallthru
    _

// kernel: transformer_agg_forward.3
$region0: #{transformer_agg_forward.3}
  #allocation0 [shape = 'u32[]', space=smem, size = 0x4, offset = 0x4, fixed_abs, tag = 'smem constant byte address 0x4 - core index']
  #allocation1 [shape = 'u32[144,128]{1,0:T(1,128)}', space=vmem, size = 0x12000, scoped, tag = 'internal scratch']
  #allocation2 [shape = 'f32[16,64]{1,0:T(8,128)}', space=vmem, size = 0x2000, scoped, tag = 'scratch operand']
  %s0 = inlined_call_operand.vmem [shape: f32[16,32], index: 0, kind: input, shape index: {}]
  %s1 = inlined_call_operand.vmem [shape: f32[16,32], index: 1, kind: input, shape index: {}]
  %s2 = inlined_call_operand.vmem [shape: f32[16,32], index: 2, kind: input, shape index: {}]
  %s3 = inlined_call_operand.vmem [shape: f32[8,16], index: 3, kind: input, shape index: {}]
  %s4 = inlined_call_operand.vmem [shape: f32[8,16,16], index: 4, kind: input, shape index: {}]
  %s5 = inlined_call_operand.vmem [shape: f32[1,32], index: 5, kind: input, shape index: {}]
  %s6 = inlined_call_operand.vmem [shape: f32[1,32], index: 6, kind: input, shape index: {}]
  %s7 = inlined_call_operand.vmem [shape: f32[32,192], index: 7, kind: input, shape index: {}]
  %s8 = inlined_call_operand.vmem [shape: f32[32,128], index: 8, kind: input, shape index: {}]
  %s9 = inlined_call_operand.vmem [shape: f32[32,64], index: 9, kind: input, shape index: {}]
  %s10 = inlined_call_operand.vmem [shape: f32[1,64], index: 10, kind: input, shape index: {}]
  %s11 = inlined_call_operand.vmem [shape: f32[1,64], index: 11, kind: input, shape index: {}]
  %s12 = inlined_call_operand.vmem [shape: f32[64,32], index: 12, kind: input, shape index: {}]
  %s13 = inlined_call_operand.vmem [shape: f32[32,96], index: 13, kind: input, shape index: {}]
  %s14 = inlined_call_operand.vmem [shape: f32[32,64], index: 14, kind: input, shape index: {}]
  %s15 = inlined_call_operand.vmem [shape: f32[32,32], index: 15, kind: input, shape index: {}]
  %s16 = inlined_call_operand.vmem [shape: f32[1,96], index: 16, kind: input, shape index: {}]
  %s17 = inlined_call_operand.vmem [shape: f32[1,32], index: 17, kind: input, shape index: {}]
  %s18 = inlined_call_operand.vmem [shape: f32[1,32], index: 18, kind: input, shape index: {}]
  %s19 = inlined_call_operand.vmem [shape: f32[32,64], index: 19, kind: input, shape index: {}]
  %s20 = inlined_call_operand.vmem [shape: f32[1,64], index: 20, kind: input, shape index: {}]
  %s21 = inlined_call_operand.vmem [shape: f32[64,32], index: 21, kind: input, shape index: {}]
  %s22 = inlined_call_operand.vmem [shape: f32[1,32], index: 22, kind: input, shape index: {}]
  %s23 = inlined_call_operand.vmem [shape: f32[32,96], index: 23, kind: input, shape index: {}]
  %s24 = inlined_call_operand.vmem [shape: f32[32,64], index: 24, kind: input, shape index: {}]
  %s25 = inlined_call_operand.vmem [shape: f32[32,32], index: 25, kind: input, shape index: {}]
  %s26 = inlined_call_operand.vmem [shape: f32[1,96], index: 26, kind: input, shape index: {}]
  %s27 = inlined_call_operand.vmem [shape: f32[16,32], index: 27, kind: output, shape index: {}]
  %s28 = sld [smem:[#allocation0]]
  $region118: #{transformer_agg_forward.3} parent=0
    _
  %s30 = ssub.s32 1, %s28
  %s31 = scalar_select 0, %s30, %s28
  // Predicated region
  $region2: #{transformer_agg_forward.3} parent=0 // pred_check
    _
  $region3: #{transformer_agg_forward.3} parent=0 // pred_check_branch
    %33 = sbr.rel (0) target = $region5
  $region4: #{transformer_agg_forward.3} parent=0 // pred_region
    _
  $region5: #{transformer_agg_forward.3} parent=0 // pred_fallthru
    _
  // Predicated region
  $region6: #{transformer_agg_forward.3} parent=0 // pred_check
    _
  $region7: #{transformer_agg_forward.3} parent=0 // pred_check_branch
    %35 = sbr.rel (0) target = $region9
  $region8: #{transformer_agg_forward.3} parent=0 // pred_region
    _
  $region9: #{transformer_agg_forward.3} parent=0 // pred_fallthru
    _
  // Predicated region
  $region10: #{transformer_agg_forward.3} parent=0 // pred_check
    _
  $region11: #{transformer_agg_forward.3} parent=0 // pred_check_branch
    %37 = sbr.rel (0) target = $region13
  $region12: #{transformer_agg_forward.3} parent=0 // pred_region
    _
  $region13: #{transformer_agg_forward.3} parent=0 // pred_fallthru
    _
  // Predicated region
  $region14: #{transformer_agg_forward.3} parent=0 // pred_check
    _
  $region15: #{transformer_agg_forward.3} parent=0 // pred_check_branch
    %39 = sbr.rel (0) target = $region17
  $region16: #{transformer_agg_forward.3} parent=0 // pred_region
    _
  $region17: #{transformer_agg_forward.3} parent=0 // pred_fallthru
    _
  // Predicated region
  $region18: #{transformer_agg_forward.3} parent=0 // pred_check
    _
  $region19: #{transformer_agg_forward.3} parent=0 // pred_check_branch
    %41 = sbr.rel (0) target = $region21
  $region20: #{transformer_agg_forward.3} parent=0 // pred_region
    _
  $region21: #{transformer_agg_forward.3} parent=0 // pred_fallthru
    _
  // Predicated region
  $region22: #{transformer_agg_forward.3} parent=0 // pred_check
    _
  $region23: #{transformer_agg_forward.3} parent=0 // pred_check_branch
    %43 = sbr.rel (0) target = $region25
  $region24: #{transformer_agg_forward.3} parent=0 // pred_region
    _
  $region25: #{transformer_agg_forward.3} parent=0 // pred_fallthru
    _
  // Predicated region
  $region26: #{transformer_agg_forward.3} parent=0 // pred_check
    _
  $region27: #{transformer_agg_forward.3} parent=0 // pred_check_branch
    %45 = sbr.rel (0) target = $region29
  $region28: #{transformer_agg_forward.3} parent=0 // pred_region
    _
  $region29: #{transformer_agg_forward.3} parent=0 // pred_fallthru
    _
  // Predicated region
  $region30: #{transformer_agg_forward.3} parent=0 // pred_check
    _
  $region31: #{transformer_agg_forward.3} parent=0 // pred_check_branch
    %47 = sbr.rel (0) target = $region33
  $region32: #{transformer_agg_forward.3} parent=0 // pred_region
    _
  $region33: #{transformer_agg_forward.3} parent=0 // pred_fallthru
    _
  // Predicated region
  $region34: #{transformer_agg_forward.3} parent=0 // pred_check
    _
  $region35: #{transformer_agg_forward.3} parent=0 // pred_check_branch
    %49 = sbr.rel (0) target = $region37
  $region36: #{transformer_agg_forward.3} parent=0 // pred_region
    _
  $region37: #{transformer_agg_forward.3} parent=0 // pred_fallthru
    _
  // Predicated region
  $region38: #{transformer_agg_forward.3} parent=0 // pred_check
    _
  $region39: #{transformer_agg_forward.3} parent=0 // pred_check_branch
    %51 = sbr.rel (0) target = $region41
  $region40: #{transformer_agg_forward.3} parent=0 // pred_region
    _
  $region41: #{transformer_agg_forward.3} parent=0 // pred_fallthru
    _
  // Predicated region
  $region42: #{transformer_agg_forward.3} parent=0 // pred_check
    _
  $region43: #{transformer_agg_forward.3} parent=0 // pred_check_branch
    %53 = sbr.rel (0) target = $region45
  $region44: #{transformer_agg_forward.3} parent=0 // pred_region
    _
  $region45: #{transformer_agg_forward.3} parent=0 // pred_fallthru
    _
  // Predicated region
  $region46: #{transformer_agg_forward.3} parent=0 // pred_check
    _
  $region47: #{transformer_agg_forward.3} parent=0 // pred_check_branch
    %55 = sbr.rel (0) target = $region49
  $region48: #{transformer_agg_forward.3} parent=0 // pred_region
    _
  $region49: #{transformer_agg_forward.3} parent=0 // pred_fallthru
    _
  // Predicated region
  $region50: #{transformer_agg_forward.3} parent=0 // pred_check
    _
  $region51: #{transformer_agg_forward.3} parent=0 // pred_check_branch
    %57 = sbr.rel (0) target = $region53
  $region52: #{transformer_agg_forward.3} parent=0 // pred_region
    _
  $region53: #{transformer_agg_forward.3} parent=0 // pred_fallthru
    _
  // Predicated region
  $region54: #{transformer_agg_forward.3} parent=0 // pred_check
    _
  $region55: #{transformer_agg_forward.3} parent=0 // pred_check_branch
    %59 = sbr.rel (0) target = $region57
  $region56: #{transformer_agg_forward.3} parent=0 // pred_region
    _
  $region57: #{transformer_agg_forward.3} parent=0 // pred_fallthru
    _
  // Predicated region
  $region58: #{transformer_agg_forward.3} parent=0 // pred_check
    _
  $region59: #{transformer_agg_forward.3} parent=0 // pred_check_branch
    %61 = sbr.rel (0) target = $region61
  $region60: #{transformer_agg_forward.3} parent=0 // pred_region
    _
  $region61: #{transformer_agg_forward.3} parent=0 // pred_fallthru
    _
  // Predicated region
  $region62: #{transformer_agg_forward.3} parent=0 // pred_check
    _
  $region63: #{transformer_agg_forward.3} parent=0 // pred_check_branch
    %63 = sbr.rel (0) target = $region65
  $region64: #{transformer_agg_forward.3} parent=0 // pred_region
    _
  $region65: #{transformer_agg_forward.3} parent=0 // pred_fallthru
    _
  // Predicated region
  $region66: #{transformer_agg_forward.3} parent=0 // pred_check
    _
  $region67: #{transformer_agg_forward.3} parent=0 // pred_check_branch
    %65 = sbr.rel (0) target = $region69
  $region68: #{transformer_agg_forward.3} parent=0 // pred_region
    _
  $region69: #{transformer_agg_forward.3} parent=0 // pred_fallthru
    _
  // Predicated region
  $region70: #{transformer_agg_forward.3} parent=0 // pred_check
    _
  $region71: #{transformer_agg_forward.3} parent=0 // pred_check_branch
    %67 = sbr.rel (0) target = $region73
  $region72: #{transformer_agg_forward.3} parent=0 // pred_region
    _
  $region73: #{transformer_agg_forward.3} parent=0 // pred_fallthru
    _
  // Predicated region
  $region74: #{transformer_agg_forward.3} parent=0 // pred_check
    _
  $region75: #{transformer_agg_forward.3} parent=0 // pred_check_branch
    %69 = sbr.rel (0) target = $region77
  $region76: #{transformer_agg_forward.3} parent=0 // pred_region
    _
  $region77: #{transformer_agg_forward.3} parent=0 // pred_fallthru
    _
  // Predicated region
  $region78: #{transformer_agg_forward.3} parent=0 // pred_check
    _
  $region79: #{transformer_agg_forward.3} parent=0 // pred_check_branch
    %71 = sbr.rel (0) target = $region81
  $region80: #{transformer_agg_forward.3} parent=0 // pred_region
    _
  $region81: #{transformer_agg_forward.3} parent=0 // pred_fallthru
    _
  // Predicated region
  $region82: #{transformer_agg_forward.3} parent=0 // pred_check
    _
  $region83: #{transformer_agg_forward.3} parent=0 // pred_check_branch
    %73 = sbr.rel (0) target = $region85
  $region84: #{transformer_agg_forward.3} parent=0 // pred_region
    _
  $region85: #{transformer_agg_forward.3} parent=0 // pred_fallthru
    _
  // Predicated region
  $region86: #{transformer_agg_forward.3} parent=0 // pred_check
    _
  $region87: #{transformer_agg_forward.3} parent=0 // pred_check_branch
    %75 = sbr.rel (0) target = $region89
  $region88: #{transformer_agg_forward.3} parent=0 // pred_region
    _
  $region89: #{transformer_agg_forward.3} parent=0 // pred_fallthru
    _
  // Predicated region
  $region90: #{transformer_agg_forward.3} parent=0 // pred_check
    _
  $region91: #{transformer_agg_forward.3} parent=0 // pred_check_branch
    %77 = sbr.rel (0) target = $region93
  $region92: #{transformer_agg_forward.3} parent=0 // pred_region
    _
  $region93: #{transformer_agg_forward.3} parent=0 // pred_fallthru
    _
  // Predicated region
  $region94: #{transformer_agg_forward.3} parent=0 // pred_check
    _
  $region95: #{transformer_agg_forward.3} parent=0 // pred_check_branch
    %79 = sbr.rel (0) target = $region97
  $region96: #{transformer_agg_forward.3} parent=0 // pred_region
    _
  $region97: #{transformer_agg_forward.3} parent=0 // pred_fallthru
    _
  // Predicated region
  $region98: #{transformer_agg_forward.3} parent=0 // pred_check
    _
  $region99: #{transformer_agg_forward.3} parent=0 // pred_check_branch
    %81 = sbr.rel (0) target = $region101
  $region100: #{transformer_agg_forward.3} parent=0 // pred_region
    _
  $region101: #{transformer_agg_forward.3} parent=0 // pred_fallthru
    _
  // Predicated region
  $region102: #{transformer_agg_forward.3} parent=0 // pred_check
    _
  $region103: #{transformer_agg_forward.3} parent=0 // pred_check_branch
    %83 = sbr.rel (0) target = $region105
  $region104: #{transformer_agg_forward.3} parent=0 // pred_region
    _
  $region105: #{transformer_agg_forward.3} parent=0 // pred_fallthru
    _
  // Predicated region
  $region106: #{transformer_agg_forward.3} parent=0 // pred_check
    _
  $region107: #{transformer_agg_forward.3} parent=0 // pred_check_branch
    %85 = sbr.rel (0) target = $region109
  $region108: #{transformer_agg_forward.3} parent=0 // pred_region
    _
  $region109: #{transformer_agg_forward.3} parent=0 // pred_fallthru
    _
  %v86 = vld [vmem:[%s0] sm:$0xff]
  %v87 = vld [vmem:[%s0 + $0x8] sm:$0xff]
  %v88 = vld [vmem:[%s1] sm:$0xff]
  %v89 = vld [vmem:[%s1 + $0x8] sm:$0xff]
  %vm90 = vcmask 261120
  %v91 = vsel %vm90, %v86, 0.0
  %92 = vadd.xlane.f32.xlu0 %v91
  %v93 = vpop.xlane.xlu0 %92
  %v94 = vsel %vm90, %v87, 0.0
  %95 = vadd.xlane.f32.xlu0 %v94
  %v96 = vpop.xlane.xlu0 %95
  %v97 = vrcp.pop 32.0
  %v98 = vmul.f32 %v93, %v97
  %v99 = vmul.f32 %v96, %v97
  %v100 = vsub.f32 %v86, %v98
  %v101 = vsub.f32 %v87, %v99
  %v102 = vmul.f32 %v100, %v100
  %v103 = vmul.f32 %v101, %v101
  %v104 = vsel %vm90, %v102, 0.0
  %105 = vadd.xlane.f32.xlu0 %v104
  %v106 = vpop.xlane.xlu0 %105
  %v107 = vsel %vm90, %v103, 0.0
  %108 = vadd.xlane.f32.xlu0 %v107
  %v109 = vpop.xlane.xlu0 %108
  %v110 = vmul.f32 %v106, %v97
  %v111 = vmul.f32 %v109, %v97
  %v112 = vadd.f32 %v110, 1e-05
  %v113 = vadd.f32 %v111, 1e-05
  %v114 = vrsqrt.pop %v112
  %v115 = vrsqrt.pop %v113
  %v116 = vmul.f32 %v100, %v114
  %v117 = vmul.f32 %v101, %v115
  %v118 = vld [vmem:[%s5] sm:$0x1]
  %v120 = vlaneseq
  %v121 = vshrl.u32 %v120, 7
  %v122 = vsub.s32 0, %v121
  %v123 = vrot.slane %v118, %v122
  %v125 = vmul.f32 %v116, %v123
  %v126 = vmul.f32 %v117, %v123
  %v127 = vld [vmem:[%s6] sm:$0x1]
  %v129 = vlaneseq
  %v130 = vshrl.u32 %v129, 7
  %v131 = vsub.s32 0, %v130
  %v132 = vrot.slane %v127, %v131
  %v134 = vadd.f32 %v125, %v132
  %v135 = vadd.f32 %v126, %v132
  %v136 = vld [vmem:[%s7] sm:$0xff]
  %v137 = vld [vmem:[%s7 + $0x8] sm:$0xff]
  %v138 = vld [vmem:[%s7 + $0x10] sm:$0xff]
  %v139 = vld [vmem:[%s7 + $0x18] sm:$0xff]
  %v140 = vld [vmem:[%s7 + $0x20] sm:$0xff]
  %v141 = vld [vmem:[%s7 + $0x28] sm:$0xff]
  %v142 = vld [vmem:[%s7 + $0x30] sm:$0xff]
  %v143 = vld [vmem:[%s7 + $0x38] sm:$0xff]
  %v145 = vsel %vm90, %v134, 0
  %v148 = vsel %vm90, %v135, 0
  %150 = vmatprep.subr.mxu0 %v137
  %151 = vmatpush1.msra.mxu0 %v136
  %152 = vmatprep.subr.mxu0 %v139
  %153 = vmatpush1.msra.mxu0 %v138
  %154 = vmatprep.subr.mxu0 %v141
  %155 = vmatpush1.msra.mxu0 %v140
  %156 = vmatprep.subr.mxu0 %v143
  %157 = vmatpush1.msra.mxu0 %v142
  %158 = vmatprep.subr.mxu0 0.0
  %159 = vmatpush1.msra.mxu0 0.0
  %160 = vmatprep.subr.mxu0 0.0
  %161 = vmatpush1.msra.mxu0 0.0
  %162 = vmatprep.subr.mxu0 0.0
  %163 = vmatpush1.msra.mxu0 0.0
  %164 = vmatprep.subr.mxu0 0.0
  %165 = vmatpush1.msra.mxu0 0.0
  %166 = vmatprep.subr.mxu0 0.0
  %167 = vmatpush1.msra.mxu0 0.0
  %168 = vmatprep.subr.mxu0 0.0
  %169 = vmatpush1.msra.mxu0 0.0
  %170 = vmatprep.subr.mxu0 0.0
  %171 = vmatpush1.msra.mxu0 0.0
  %172 = vmatprep.subr.mxu0 0.0
  %173 = vmatpush1.msra.mxu0 0.0
  %174 = vmatprep.subr.mxu0 0.0
  %175 = vmatpush1.msra.mxu0 0.0
  %176 = vmatprep.subr.mxu0 0.0
  %177 = vmatpush1.msra.mxu0 0.0
  %178 = vmatprep.subr.mxu0 0.0
  %179 = vmatpush1.msra.mxu0 0.0
  %180 = vmatprep.subr.mxu0 0.0
  %181 = vmatpush1.msra.mxu0 0.0
  %182 = vmatprep.subr.mxu0 0.0
  %183 = vmatpush1.msra.mxu0 0.0
  %184 = vmatprep.subr.mxu0 0.0
  %185 = vmatpush1.msra.mxu0 0.0
  %186 = vmatprep.subr.mxu0 0.0
  %187 = vmatpush1.msra.mxu0 0.0
  %188 = vmatprep.subr.mxu0 0.0
  %189 = vmatpush1.msra.mxu0 0.0
  %190 = vmatprep.subr.mxu0 0.0
  %191 = vmatpush1.msra.mxu0 0.0
  %192 = vmatprep.subr.mxu0 0.0
  %193 = vmatpush1.msra.mxu0 0.0
  %194 = vmatprep.subr.mxu0 0.0
  %195 = vmatpush1.msra.mxu0 0.0
  %196 = vmatprep.subr.mxu0 0.0
  %197 = vmatpush1.msra.mxu0 0.0
  %198 = vmatprep.subr.mxu0 0.0
  %199 = vmatpush1.msra.mxu0 0.0
  %200 = vmatprep.subr.mxu0 0.0
  %201 = vmatpush1.msra.mxu0 0.0
  %202 = vmatprep.subr.mxu0 0.0
  %203 = vmatpush1.msra.mxu0 0.0
  %204 = vmatprep.subr.mxu0 0.0
  %205 = vmatpush1.msra.mxu0 0.0
  %206 = vmatprep.subr.mxu0 0.0
  %207 = vmatpush1.msra.mxu0 0.0
  %208 = vmatprep.subr.mxu0 0.0
  %209 = vmatpush1.msra.mxu0 0.0
  %210 = vmatprep.subr.mxu0 0.0
  %211 = vmatpush1.msra.mxu0 0.0
  %212 = vmatprep.subr.mxu0 0.0
  %213 = vmatpush1.msra.mxu0 0.0
  %214 = vmatprep.mubr.f32.mxu0 0.0
  %215 = vmatmul.mubr.f32.gmra.mrb[0].mxu0 %v145
  %v216 = vpop.f32.mrb[0].mxu0
  %v217 = vadd.f32 0.0, %v216
  %v218 = vpop.f32.mrb[0].mxu0
  %v219 = vadd.f32 0.0, %v218
  %220 = vmatprep.mubr.f32.mxu0 0.0
  %221 = vmatmul.mubr.f32.gmra.mrb[0].mxu0 %v148
  %v222 = vpop.f32.mrb[0].mxu0
  %v223 = vadd.f32 0.0, %v222
  %v224 = vpop.f32.mrb[0].mxu0
  %v225 = vadd.f32 0.0, %v224
  %226 = vdwg.mxu0
  %v227 = vld [vmem:[%s8] sm:$0xff]
  %v228 = vld [vmem:[%s8 + $0x8] sm:$0xff]
  %v229 = vld [vmem:[%s8 + $0x10] sm:$0xff]
  %v230 = vld [vmem:[%s8 + $0x18] sm:$0xff]
  %v232 = vsel %vm90, %v88, 0
  %v235 = vsel %vm90, %v89, 0
  %237 = vmatprep.subr.mxu0 0.0
  %238 = vmatpush1.msra.mxu0 %v227
  %239 = vmatprep.subr.mxu0 0.0
  %240 = vmatpush1.msra.mxu0 %v228
  %241 = vmatprep.subr.mxu0 0.0
  %242 = vmatpush1.msra.mxu0 %v229
  %243 = vmatprep.subr.mxu0 0.0
  %244 = vmatpush1.msra.mxu0 %v230
  %245 = vmatprep.subr.mxu0 0.0
  %246 = vmatpush1.msra.mxu0 0.0
  %247 = vmatprep.subr.mxu0 0.0
  %248 = vmatpush1.msra.mxu0 0.0
  %249 = vmatprep.subr.mxu0 0.0
  %250 = vmatpush1.msra.mxu0 0.0
  %251 = vmatprep.subr.mxu0 0.0
  %252 = vmatpush1.msra.mxu0 0.0
  %253 = vmatprep.subr.mxu0 0.0
  %254 = vmatpush1.msra.mxu0 0.0
  %255 = vmatprep.subr.mxu0 0.0
  %256 = vmatpush1.msra.mxu0 0.0
  %257 = vmatprep.subr.mxu0 0.0
  %258 = vmatpush1.msra.mxu0 0.0
  %259 = vmatprep.subr.mxu0 0.0
  %260 = vmatpush1.msra.mxu0 0.0
  %261 = vmatprep.subr.mxu0 0.0
  %262 = vmatpush1.msra.mxu0 0.0
  %263 = vmatprep.subr.mxu0 0.0
  %264 = vmatpush1.msra.mxu0 0.0
  %265 = vmatprep.subr.mxu0 0.0
  %266 = vmatpush1.msra.mxu0 0.0
  %267 = vmatprep.subr.mxu0 0.0
  %268 = vmatpush1.msra.mxu0 0.0
  %269 = vmatprep.subr.mxu0 0.0
  %270 = vmatpush1.msra.mxu0 0.0
  %271 = vmatprep.subr.mxu0 0.0
  %272 = vmatpush1.msra.mxu0 0.0
  %273 = vmatprep.subr.mxu0 0.0
  %274 = vmatpush1.msra.mxu0 0.0
  %275 = vmatprep.subr.mxu0 0.0
  %276 = vmatpush1.msra.mxu0 0.0
  %277 = vmatprep.subr.mxu0 0.0
  %278 = vmatpush1.msra.mxu0 0.0
  %279 = vmatprep.subr.mxu0 0.0
  %280 = vmatpush1.msra.mxu0 0.0
  %281 = vmatprep.subr.mxu0 0.0
  %282 = vmatpush1.msra.mxu0 0.0
  %283 = vmatprep.subr.mxu0 0.0
  %284 = vmatpush1.msra.mxu0 0.0
  %285 = vmatprep.subr.mxu0 0.0
  %286 = vmatpush1.msra.mxu0 0.0
  %287 = vmatprep.subr.mxu0 0.0
  %288 = vmatpush1.msra.mxu0 0.0
  %289 = vmatprep.subr.mxu0 0.0
  %290 = vmatpush1.msra.mxu0 0.0
  %291 = vmatprep.subr.mxu0 0.0
  %292 = vmatpush1.msra.mxu0 0.0
  %293 = vmatprep.subr.mxu0 0.0
  %294 = vmatpush1.msra.mxu0 0.0
  %295 = vmatprep.subr.mxu0 0.0
  %296 = vmatpush1.msra.mxu0 0.0
  %297 = vmatprep.subr.mxu0 0.0
  %298 = vmatpush1.msra.mxu0 0.0
  %299 = vmatprep.subr.mxu0 0.0
  %300 = vmatpush1.msra.mxu0 0.0
  %301 = vmatprep.mubr.f32.mxu0 0.0
  %302 = vmatmul.mubr.f32.gmra.mrb[0].mxu0 %v232
  %v303 = vpop.f32.mrb[0].mxu0
  %v304 = vadd.f32 0.0, %v303
  %v305 = vpop.f32.mrb[0].mxu0
  %306 = vmatprep.mubr.f32.mxu0 0.0
  %307 = vmatmul.mubr.f32.gmra.mrb[0].mxu0 %v235
  %v308 = vpop.f32.mrb[0].mxu0
  %v309 = vadd.f32 0.0, %v308
  %v310 = vpop.f32.mrb[0].mxu0
  %311 = vdwg.mxu0
  %v312 = vld [vmem:[%s2] sm:$0xff]
  %v313 = vld [vmem:[%s2 + $0x8] sm:$0xff]
  %v314 = vld [vmem:[%s9] sm:$0xff]
  %v315 = vld [vmem:[%s9 + $0x8] sm:$0xff]
  %v316 = vld [vmem:[%s9 + $0x10] sm:$0xff]
  %v317 = vld [vmem:[%s9 + $0x18] sm:$0xff]
  %v319 = vsel %vm90, %v312, 0
  %v322 = vsel %vm90, %v313, 0
  %324 = vmatprep.subr.mxu0 0.0
  %325 = vmatpush1.msra.mxu0 %v314
  %326 = vmatprep.subr.mxu0 0.0
  %327 = vmatpush1.msra.mxu0 %v315
  %328 = vmatprep.subr.mxu0 0.0
  %329 = vmatpush1.msra.mxu0 %v316
  %330 = vmatprep.subr.mxu0 0.0
  %331 = vmatpush1.msra.mxu0 %v317
  %332 = vmatprep.subr.mxu0 0.0
  %333 = vmatpush1.msra.mxu0 0.0
  %334 = vmatprep.subr.mxu0 0.0
  %335 = vmatpush1.msra.mxu0 0.0
  %336 = vmatprep.subr.mxu0 0.0
  %337 = vmatpush1.msra.mxu0 0.0
  %338 = vmatprep.subr.mxu0 0.0
  %339 = vmatpush1.msra.mxu0 0.0
  %340 = vmatprep.subr.mxu0 0.0
  %341 = vmatpush1.msra.mxu0 0.0
  %342 = vmatprep.subr.mxu0 0.0
  %343 = vmatpush1.msra.mxu0 0.0
  %344 = vmatprep.subr.mxu0 0.0
  %345 = vmatpush1.msra.mxu0 0.0
  %346 = vmatprep.subr.mxu0 0.0
  %347 = vmatpush1.msra.mxu0 0.0
  %348 = vmatprep.subr.mxu0 0.0
  %349 = vmatpush1.msra.mxu0 0.0
  %350 = vmatprep.subr.mxu0 0.0
  %351 = vmatpush1.msra.mxu0 0.0
  %352 = vmatprep.subr.mxu0 0.0
  %353 = vmatpush1.msra.mxu0 0.0
  %354 = vmatprep.subr.mxu0 0.0
  %355 = vmatpush1.msra.mxu0 0.0
  %356 = vmatprep.subr.mxu0 0.0
  %357 = vmatpush1.msra.mxu0 0.0
  %358 = vmatprep.subr.mxu0 0.0
  %359 = vmatpush1.msra.mxu0 0.0
  %360 = vmatprep.subr.mxu0 0.0
  %361 = vmatpush1.msra.mxu0 0.0
  %362 = vmatprep.subr.mxu0 0.0
  %363 = vmatpush1.msra.mxu0 0.0
  %364 = vmatprep.subr.mxu0 0.0
  %365 = vmatpush1.msra.mxu0 0.0
  %366 = vmatprep.subr.mxu0 0.0
  %367 = vmatpush1.msra.mxu0 0.0
  %368 = vmatprep.subr.mxu0 0.0
  %369 = vmatpush1.msra.mxu0 0.0
  %370 = vmatprep.subr.mxu0 0.0
  %371 = vmatpush1.msra.mxu0 0.0
  %372 = vmatprep.subr.mxu0 0.0
  %373 = vmatpush1.msra.mxu0 0.0
  %374 = vmatprep.subr.mxu0 0.0
  %375 = vmatpush1.msra.mxu0 0.0
  %376 = vmatprep.subr.mxu0 0.0
  %377 = vmatpush1.msra.mxu0 0.0
  %378 = vmatprep.subr.mxu0 0.0
  %379 = vmatpush1.msra.mxu0 0.0
  %380 = vmatprep.subr.mxu0 0.0
  %381 = vmatpush1.msra.mxu0 0.0
  %382 = vmatprep.subr.mxu0 0.0
  %383 = vmatpush1.msra.mxu0 0.0
  %384 = vmatprep.subr.mxu0 0.0
  %385 = vmatpush1.msra.mxu0 0.0
  %386 = vmatprep.subr.mxu0 0.0
  %387 = vmatpush1.msra.mxu0 0.0
  %388 = vmatprep.mubr.f32.mxu0 0.0
  %389 = vmatmul.mubr.f32.gmra.mrb[0].mxu0 %v319
  %v390 = vpop.f32.mrb[0].mxu0
  %v391 = vadd.f32 0.0, %v390
  %v392 = vpop.f32.mrb[0].mxu0
  %393 = vmatprep.mubr.f32.mxu0 0.0
  %394 = vmatmul.mubr.f32.gmra.mrb[0].mxu0 %v322
  %v395 = vpop.f32.mrb[0].mxu0
  %v396 = vadd.f32 0.0, %v395
  %v397 = vpop.f32.mrb[0].mxu0
  %398 = vdwg.mxu0
  %v399 = vld [vmem:[%s10] sm:$0x1]
  %v401 = vlaneseq
  %v402 = vshrl.u32 %v401, 7
  %v403 = vsub.s32 0, %v402
  %v404 = vrot.slane %v399, %v403
  %v406 = vadd.f32 %v217, %v404
  %v407 = vadd.f32 %v223, %v404
  %v408 = vld [vmem:[%s11] sm:$0x1]
  %v410 = vlaneseq
  %v411 = vshrl.u32 %v410, 7
  %v412 = vsub.s32 0, %v411
  %v413 = vrot.slane %v408, %v412
  %v415 = vadd.f32 %v217, %v413
  %v416 = vadd.f32 %v223, %v413
  %v417 = vld [vmem:[%s3] sm:$0xff]
  %v418 = vld [vmem:[%s4] sm:$0xff]
  %v419 = vld [vmem:[%s4 + $0x8] sm:$0xff]
  %v420 = vld [vmem:[%s4 + $0x10] sm:$0xff]
  %v421 = vld [vmem:[%s4 + $0x18] sm:$0xff]
  %v422 = vld [vmem:[%s4 + $0x20] sm:$0xff]
  %v423 = vld [vmem:[%s4 + $0x28] sm:$0xff]
  %v424 = vld [vmem:[%s4 + $0x30] sm:$0xff]
  %v425 = vld [vmem:[%s4 + $0x38] sm:$0xff]
  %v426 = vld [vmem:[%s4 + $0x40] sm:$0xff]
  %v427 = vld [vmem:[%s4 + $0x48] sm:$0xff]
  %v428 = vld [vmem:[%s4 + $0x50] sm:$0xff]
  %v429 = vld [vmem:[%s4 + $0x58] sm:$0xff]
  %v430 = vld [vmem:[%s4 + $0x60] sm:$0xff]
  %v431 = vld [vmem:[%s4 + $0x68] sm:$0xff]
  %v432 = vld [vmem:[%s4 + $0x70] sm:$0xff]
  %v433 = vld [vmem:[%s4 + $0x78] sm:$0xff]
  %435 = vrot.lane.b32.xlu0 %v217, 64
  %v436 = vpop.permute.xlu0 %435
  %438 = vrot.lane.b32.xlu0 %v219, 64
  %v439 = vpop.permute.xlu0 %438
  %vm440 = vcmask 130048
  %v442 = vsel %vm440, %v415, 0
  %v445 = vsel %vm440, %v391, 0
  %v448 = vsel %vm440, %v396, 0
  %450 = vmatprep.subr.mxu0 0.0
  %451 = vmatpush1.xpose.msra.mxu0 %v445
  %452 = vmatprep.subr.mxu0 0.0
  %453 = vmatpush1.xpose.msra.mxu0 %v448
  %454 = vmatprep.subr.mxu0 0.0
  %455 = vmatpush1.xpose.msra.mxu0 0.0
  %456 = vmatprep.subr.mxu0 0.0
  %457 = vmatpush1.xpose.msra.mxu0 0.0
  %458 = vmatprep.subr.mxu0 0.0
  %459 = vmatpush1.xpose.msra.mxu0 0.0
  %460 = vmatprep.subr.mxu0 0.0
  %461 = vmatpush1.xpose.msra.mxu0 0.0
  %462 = vmatprep.subr.mxu0 0.0
  %463 = vmatpush1.xpose.msra.mxu0 0.0
  %464 = vmatprep.subr.mxu0 0.0
  %465 = vmatpush1.xpose.msra.mxu0 0.0
  %466 = vmatprep.subr.mxu0 0.0
  %467 = vmatpush1.xpose.msra.mxu0 0.0
  %468 = vmatprep.subr.mxu0 0.0
  %469 = vmatpush1.xpose.msra.mxu0 0.0
  %470 = vmatprep.subr.mxu0 0.0
  %471 = vmatpush1.xpose.msra.mxu0 0.0
  %472 = vmatprep.subr.mxu0 0.0
  %473 = vmatpush1.xpose.msra.mxu0 0.0
  %474 = vmatprep.subr.mxu0 0.0
  %475 = vmatpush1.xpose.msra.mxu0 0.0
  %476 = vmatprep.subr.mxu0 0.0
  %477 = vmatpush1.xpose.msra.mxu0 0.0
  %478 = vmatprep.subr.mxu0 0.0
  %479 = vmatpush1.xpose.msra.mxu0 0.0
  %480 = vmatprep.subr.mxu0 0.0
  %481 = vmatpush1.xpose.msra.mxu0 0.0
  %482 = vmatprep.subr.mxu0 0.0
  %483 = vmatpush1.xpose.msra.mxu0 0.0
  %484 = vmatprep.subr.mxu0 0.0
  %485 = vmatpush1.xpose.msra.mxu0 0.0
  %486 = vmatprep.subr.mxu0 0.0
  %487 = vmatpush1.xpose.msra.mxu0 0.0
  %488 = vmatprep.subr.mxu0 0.0
  %489 = vmatpush1.xpose.msra.mxu0 0.0
  %490 = vmatprep.subr.mxu0 0.0
  %491 = vmatpush1.xpose.msra.mxu0 0.0
  %492 = vmatprep.subr.mxu0 0.0
  %493 = vmatpush1.xpose.msra.mxu0 0.0
  %494 = vmatprep.subr.mxu0 0.0
  %495 = vmatpush1.xpose.msra.mxu0 0.0
  %496 = vmatprep.subr.mxu0 0.0
  %497 = vmatpush1.xpose.msra.mxu0 0.0
  %498 = vmatprep.subr.mxu0 0.0
  %499 = vmatpush1.xpose.msra.mxu0 0.0
  %500 = vmatprep.subr.mxu0 0.0
  %501 = vmatpush1.xpose.msra.mxu0 0.0
  %502 = vmatprep.subr.mxu0 0.0
  %503 = vmatpush1.xpose.msra.mxu0 0.0
  %504 = vmatprep.subr.mxu0 0.0
  %505 = vmatpush1.xpose.msra.mxu0 0.0
  %506 = vmatprep.subr.mxu0 0.0
  %507 = vmatpush1.xpose.msra.mxu0 0.0
  %508 = vmatprep.subr.mxu0 0.0
  %509 = vmatpush1.xpose.msra.mxu0 0.0
  %510 = vmatprep.subr.mxu0 0.0
  %511 = vmatpush1.xpose.msra.mxu0 0.0
  %512 = vmatprep.subr.mxu0 0.0
  %513 = vmatpush1.xpose.msra.mxu0 0.0
  %514 = vmatprep.mubr.f32.mxu0 0.0
  %515 = vmatmul.mubr.f32.gmra.mrb[0].mxu0 %v442
  %v516 = vpop.f32.mrb[0].mxu0
  %v517 = vadd.f32 0.0, %v516
  %v518 = vpop.f32.mrb[0].mxu0
  %519 = vdwg.mxu0
  %v521 = vcombine.high %v517, %v517
  %v523 = vunpack.c.l.s4 1966171168
  %v524 = vunpack.c.0.s8 %v523
  %v525 = vlaneseq
  %v526 = vshrl.u32 %v525, 7
  %v527 = vsub.s32 %v524, %v526
  %v528 = vrot.slane %v517, %v527
  %v530 = vunpack.c.l.s4 1966171168
  %v531 = vunpack.c.0.s8 %v530
  %v532 = vlaneseq
  %v533 = vshrl.u32 %v532, 7
  %v534 = vsub.s32 %v531, %v533
  %v535 = vrot.slane %v521, %v534
  %v536 = vcombine.high %v528, %v528
  %v537 = vcombine.high %v535, %v535
  %v539 = vunpack.c.l.s4 1966171168
  %v540 = vunpack.c.0.s8 %v539
  %v541 = vlaneseq
  %v542 = vshrl.u32 %v541, 7
  %v543 = vsub.s32 %v540, %v542
  %v544 = vrot.slane %v528, %v543
  %v546 = vunpack.c.l.s4 1966171168
  %v547 = vunpack.c.0.s8 %v546
  %v548 = vlaneseq
  %v549 = vshrl.u32 %v548, 7
  %v550 = vsub.s32 %v547, %v549
  %v551 = vrot.slane %v535, %v550
  %v553 = vunpack.c.l.s4 1966171168
  %v554 = vunpack.c.0.s8 %v553
  %v555 = vlaneseq
  %v556 = vshrl.u32 %v555, 7
  %v557 = vsub.s32 %v554, %v556
  %v558 = vrot.slane %v536, %v557
  %v560 = vunpack.c.l.s4 1966171168
  %v561 = vunpack.c.0.s8 %v560
  %v562 = vlaneseq
  %v563 = vshrl.u32 %v562, 7
  %v564 = vsub.s32 %v561, %v563
  %v565 = vrot.slane %v537, %v564
  %v566 = vcombine.high %v544, %v544
  %v567 = vcombine.high %v551, %v551
  %v568 = vcombine.high %v558, %v558
  %v569 = vcombine.high %v565, %v565
  %v570 = vlaneseq
  %v571 = vshrl.u32 %v570, 7
  %v572 = vsub.s32 0, %v571
  %v573 = vrot.slane %v544, %v572
  %v574 = vlaneseq
  %v575 = vshrl.u32 %v574, 7
  %v576 = vsub.s32 0, %v575
  %v577 = vrot.slane %v558, %v576
  %v578 = vlaneseq
  %v579 = vshrl.u32 %v578, 7
  %v580 = vsub.s32 0, %v579
  %v581 = vrot.slane %v566, %v580
  %v582 = vlaneseq
  %v583 = vshrl.u32 %v582, 7
  %v584 = vsub.s32 0, %v583
  %v585 = vrot.slane %v568, %v584
  %v586 = vlaneseq
  %v587 = vshrl.u32 %v586, 7
  %v588 = vsub.s32 0, %v587
  %v589 = vrot.slane %v551, %v588
  %v590 = vlaneseq
  %v591 = vshrl.u32 %v590, 7
  %v592 = vsub.s32 0, %v591
  %v593 = vrot.slane %v565, %v592
  %v594 = vlaneseq
  %v595 = vshrl.u32 %v594, 7
  %v596 = vsub.s32 0, %v595
  %v597 = vrot.slane %v567, %v596
  %v598 = vlaneseq
  %v599 = vshrl.u32 %v598, 7
  %v600 = vsub.s32 0, %v599
  %v601 = vrot.slane %v569, %v600
  %v610 = vmul.f32 %v573, %v418
  %v611 = vmul.f32 %v573, %v419
  %v612 = vmul.f32 %v577, %v420
  %v613 = vmul.f32 %v577, %v421
  %v614 = vmul.f32 %v581, %v422
  %v615 = vmul.f32 %v581, %v423
  %v616 = vmul.f32 %v585, %v424
  %v617 = vmul.f32 %v585, %v425
  %v618 = vmul.f32 %v589, %v426
  %v619 = vmul.f32 %v589, %v427
  %v620 = vmul.f32 %v593, %v428
  %v621 = vmul.f32 %v593, %v429
  %v622 = vmul.f32 %v597, %v430
  %v623 = vmul.f32 %v597, %v431
  %v624 = vmul.f32 %v601, %v432
  %v625 = vmul.f32 %v601, %v433
  %v626 = vsel %vm440, %v610, 0.0
  %627 = vadd.xlane.f32.xlu0 %v626
  %v628 = vpop.xlane.xlu0 %627
  %v629 = vsel %vm440, %v611, 0.0
  %630 = vadd.xlane.f32.xlu0 %v629
  %v631 = vpop.xlane.xlu0 %630
  %v632 = vsel %vm440, %v612, 0.0
  %633 = vadd.xlane.f32.xlu0 %v632
  %v634 = vpop.xlane.xlu0 %633
  %v635 = vsel %vm440, %v613, 0.0
  %636 = vadd.xlane.f32.xlu0 %v635
  %v637 = vpop.xlane.xlu0 %636
  %v638 = vsel %vm440, %v614, 0.0
  %639 = vadd.xlane.f32.xlu0 %v638
  %v640 = vpop.xlane.xlu0 %639
  %v641 = vsel %vm440, %v615, 0.0
  %642 = vadd.xlane.f32.xlu0 %v641
  %v643 = vpop.xlane.xlu0 %642
  %v644 = vsel %vm440, %v616, 0.0
  %645 = vadd.xlane.f32.xlu0 %v644
  %v646 = vpop.xlane.xlu0 %645
  %v647 = vsel %vm440, %v617, 0.0
  %648 = vadd.xlane.f32.xlu0 %v647
  %v649 = vpop.xlane.xlu0 %648
  %v650 = vsel %vm440, %v618, 0.0
  %651 = vadd.xlane.f32.xlu0 %v650
  %v652 = vpop.xlane.xlu0 %651
  %v653 = vsel %vm440, %v619, 0.0
  %654 = vadd.xlane.f32.xlu0 %v653
  %v655 = vpop.xlane.xlu0 %654
  %v656 = vsel %vm440, %v620, 0.0
  %657 = vadd.xlane.f32.xlu0 %v656
  %v658 = vpop.xlane.xlu0 %657
  %v659 = vsel %vm440, %v621, 0.0
  %660 = vadd.xlane.f32.xlu0 %v659
  %v661 = vpop.xlane.xlu0 %660
  %v662 = vsel %vm440, %v622, 0.0
  %663 = vadd.xlane.f32.xlu0 %v662
  %v664 = vpop.xlane.xlu0 %663
  %v665 = vsel %vm440, %v623, 0.0
  %666 = vadd.xlane.f32.xlu0 %v665
  %v667 = vpop.xlane.xlu0 %666
  %v668 = vsel %vm440, %v624, 0.0
  %669 = vadd.xlane.f32.xlu0 %v668
  %v670 = vpop.xlane.xlu0 %669
  %v671 = vsel %vm440, %v625, 0.0
  %672 = vadd.xlane.f32.xlu0 %v671
  %v673 = vpop.xlane.xlu0 %672
  %v690 = vlaneseq
  %v691 = vand.u32 %v690, 127
  %v692 = vlaneseq
  %v693 = vshrl.u32 %v692, 7
  %v694 = vsub.s32 %v691, %v693
  %v695 = vrot.slane %v628, %v694
  %v696 = vadd.s32 %v691, 4294967288
  %v697 = vlaneseq
  %v698 = vshrl.u32 %v697, 7
  %v699 = vsub.s32 %v696, %v698
  %v700 = vrot.slane %v631, %v699
  %vm701 = vcmask 130112
  %v702 = vsel %vm701, %v700, %v695
  %v703 = vlaneseq
  %v704 = vshrl.u32 %v703, 7
  %v705 = vsub.s32 %v691, %v704
  %v706 = vrot.slane %v634, %v705
  %v707 = vlaneseq
  %v708 = vshrl.u32 %v707, 7
  %v709 = vsub.s32 %v696, %v708
  %v710 = vrot.slane %v637, %v709
  %v711 = vsel %vm701, %v710, %v706
  %v712 = vlaneseq
  %v713 = vshrl.u32 %v712, 7
  %v714 = vsub.s32 %v691, %v713
  %v715 = vrot.slane %v640, %v714
  %v716 = vlaneseq
  %v717 = vshrl.u32 %v716, 7
  %v718 = vsub.s32 %v696, %v717
  %v719 = vrot.slane %v643, %v718
  %v720 = vsel %vm701, %v719, %v715
  %v721 = vlaneseq
  %v722 = vshrl.u32 %v721, 7
  %v723 = vsub.s32 %v691, %v722
  %v724 = vrot.slane %v646, %v723
  %v725 = vlaneseq
  %v726 = vshrl.u32 %v725, 7
  %v727 = vsub.s32 %v696, %v726
  %v728 = vrot.slane %v649, %v727
  %v729 = vsel %vm701, %v728, %v724
  %v730 = vlaneseq
  %v731 = vshrl.u32 %v730, 7
  %v732 = vsub.s32 %v691, %v731
  %v733 = vrot.slane %v652, %v732
  %v734 = vlaneseq
  %v735 = vshrl.u32 %v734, 7
  %v736 = vsub.s32 %v696, %v735
  %v737 = vrot.slane %v655, %v736
  %v738 = vsel %vm701, %v737, %v733
  %v739 = vlaneseq
  %v740 = vshrl.u32 %v739, 7
  %v741 = vsub.s32 %v691, %v740
  %v742 = vrot.slane %v658, %v741
  %v743 = vlaneseq
  %v744 = vshrl.u32 %v743, 7
  %v745 = vsub.s32 %v696, %v744
  %v746 = vrot.slane %v661, %v745
  %v747 = vsel %vm701, %v746, %v742
  %v748 = vlaneseq
  %v749 = vshrl.u32 %v748, 7
  %v750 = vsub.s32 %v691, %v749
  %v751 = vrot.slane %v664, %v750
  %v752 = vlaneseq
  %v753 = vshrl.u32 %v752, 7
  %v754 = vsub.s32 %v696, %v753
  %v755 = vrot.slane %v667, %v754
  %v756 = vsel %vm701, %v755, %v751
  %v757 = vlaneseq
  %v758 = vshrl.u32 %v757, 7
  %v759 = vsub.s32 %v691, %v758
  %v760 = vrot.slane %v670, %v759
  %v761 = vlaneseq
  %v762 = vshrl.u32 %v761, 7
  %v763 = vsub.s32 %v696, %v762
  %v764 = vrot.slane %v673, %v763
  %v765 = vsel %vm701, %v764, %v760
  %vm766 = vcmask 1041409
  %v767 = vsel %vm766, %v711, %v702
  %vm768 = vcmask 1042434
  %v769 = vsel %vm768, %v720, %v767
  %vm770 = vcmask 1043459
  %v771 = vsel %vm770, %v729, %v769
  %vm772 = vcmask 1044484
  %v773 = vsel %vm772, %v738, %v771
  %vm774 = vcmask 1045509
  %v775 = vsel %vm774, %v747, %v773
  %vm776 = vcmask 1046534
  %v777 = vsel %vm776, %v756, %v775
  %vm778 = vcmask 1047559
  %v779 = vsel %vm778, %v765, %v777
  %v782 = vsel %vm440, %v406, 0
  %v785 = vsel %vm440, %v304, 0
  %v787 = vsel %vm440, %v436, 0
  %789 = vmatprep.subr.mxu0 0.0
  %790 = vmatpush1.xpose.msra.mxu0 %v785
  %791 = vmatprep.subr.mxu0 0.0
  %792 = vmatpush1.xpose.msra.mxu0 %v787
  %793 = vmatprep.subr.mxu0 0.0
  %794 = vmatpush1.xpose.msra.mxu0 0.0
  %795 = vmatprep.subr.mxu0 0.0
  %796 = vmatpush1.xpose.msra.mxu0 0.0
  %797 = vmatprep.subr.mxu0 0.0
  %798 = vmatpush1.xpose.msra.mxu0 0.0
  %799 = vmatprep.subr.mxu0 0.0
  %800 = vmatpush1.xpose.msra.mxu0 0.0
  %801 = vmatprep.subr.mxu0 0.0
  %802 = vmatpush1.xpose.msra.mxu0 0.0
  %803 = vmatprep.subr.mxu0 0.0
  %804 = vmatpush1.xpose.msra.mxu0 0.0
  %805 = vmatprep.subr.mxu0 0.0
  %806 = vmatpush1.xpose.msra.mxu0 0.0
  %807 = vmatprep.subr.mxu0 0.0
  %808 = vmatpush1.xpose.msra.mxu0 0.0
  %809 = vmatprep.subr.mxu0 0.0
  %810 = vmatpush1.xpose.msra.mxu0 0.0
  %811 = vmatprep.subr.mxu0 0.0
  %812 = vmatpush1.xpose.msra.mxu0 0.0
  %813 = vmatprep.subr.mxu0 0.0
  %814 = vmatpush1.xpose.msra.mxu0 0.0
  %815 = vmatprep.subr.mxu0 0.0
  %816 = vmatpush1.xpose.msra.mxu0 0.0
  %817 = vmatprep.subr.mxu0 0.0
  %818 = vmatpush1.xpose.msra.mxu0 0.0
  %819 = vmatprep.subr.mxu0 0.0
  %820 = vmatpush1.xpose.msra.mxu0 0.0
  %821 = vmatprep.subr.mxu0 0.0
  %822 = vmatpush1.xpose.msra.mxu0 0.0
  %823 = vmatprep.subr.mxu0 0.0
  %824 = vmatpush1.xpose.msra.mxu0 0.0
  %825 = vmatprep.subr.mxu0 0.0
  %826 = vmatpush1.xpose.msra.mxu0 0.0
  %827 = vmatprep.subr.mxu0 0.0
  %828 = vmatpush1.xpose.msra.mxu0 0.0
  %829 = vmatprep.subr.mxu0 0.0
  %830 = vmatpush1.xpose.msra.mxu0 0.0
  %831 = vmatprep.subr.mxu0 0.0
  %832 = vmatpush1.xpose.msra.mxu0 0.0
  %833 = vmatprep.subr.mxu0 0.0
  %834 = vmatpush1.xpose.msra.mxu0 0.0
  %835 = vmatprep.subr.mxu0 0.0
  %836 = vmatpush1.xpose.msra.mxu0 0.0
  %837 = vmatprep.subr.mxu0 0.0
  %838 = vmatpush1.xpose.msra.mxu0 0.0
  %839 = vmatprep.subr.mxu0 0.0
  %840 = vmatpush1.xpose.msra.mxu0 0.0
  %841 = vmatprep.subr.mxu0 0.0
  %842 = vmatpush1.xpose.msra.mxu0 0.0
  %843 = vmatprep.subr.mxu0 0.0
  %844 = vmatpush1.xpose.msra.mxu0 0.0
  %845 = vmatprep.subr.mxu0 0.0
  %846 = vmatpush1.xpose.msra.mxu0 0.0
  %847 = vmatprep.subr.mxu0 0.0
  %848 = vmatpush1.xpose.msra.mxu0 0.0
  %849 = vmatprep.subr.mxu0 0.0
  %850 = vmatpush1.xpose.msra.mxu0 0.0
  %851 = vmatprep.subr.mxu0 0.0
  %852 = vmatpush1.xpose.msra.mxu0 0.0
  %853 = vmatprep.mubr.f32.mxu0 0.0
  %854 = vmatmul.mubr.f32.gmra.mrb[0].mxu0 %v782
  %v855 = vpop.f32.mrb[0].mxu0
  %v856 = vadd.f32 %v779, %v855
  %v857 = vpop.f32.mrb[0].mxu0
  %858 = vdwg.mxu0
  %v859 = vmul.f32 %v856, 0.25
  %v860 = vadd.f32 %v859, %v417
  %v861 = vsel %vm440, %v860, -inf
  %862 = vmax.xlane.f32.xlu0 %v861
  %v863 = vpop.xlane.xlu0 %862
  %v864 = vsub.f32 %v860, %v863
  %v865 = vmul.f32 %v864, 1.442695
  %v866 = vpow.pop %v865
  %v867 = vsel %vm440, %v866, 0.0
  %868 = vadd.xlane.f32.xlu0 %v867
  %v869 = vpop.xlane.xlu0 %868
  %v870 = vrcp.pop %v869
  %v871 = vmul.f32 %v866, %v870
  %872 = vrot.lane.b32.xlu0 %v304, 64
  %v873 = vpop.permute.xlu0 %872
  %874 = vrot.lane.b32.xlu0 %v439, 64
  %v875 = vpop.permute.xlu0 %874
  %v879 = vsel %vm440, %v871, 0
  %881 = vmatprep.subr.mxu0 0.0
  %882 = vmatpush1.msra.mxu0 %v873
  %883 = vmatprep.subr.mxu0 0.0
  %884 = vmatpush1.msra.mxu0 %v875
  %885 = vmatprep.subr.mxu0 0.0
  %886 = vmatpush1.msra.mxu0 0.0
  %887 = vmatprep.subr.mxu0 0.0
  %888 = vmatpush1.msra.mxu0 0.0
  %889 = vmatprep.subr.mxu0 0.0
  %890 = vmatpush1.msra.mxu0 0.0
  %891 = vmatprep.subr.mxu0 0.0
  %892 = vmatpush1.msra.mxu0 0.0
  %893 = vmatprep.subr.mxu0 0.0
  %894 = vmatpush1.msra.mxu0 0.0
  %895 = vmatprep.subr.mxu0 0.0
  %896 = vmatpush1.msra.mxu0 0.0
  %897 = vmatprep.subr.mxu0 0.0
  %898 = vmatpush1.msra.mxu0 0.0
  %899 = vmatprep.subr.mxu0 0.0
  %900 = vmatpush1.msra.mxu0 0.0
  %901 = vmatprep.subr.mxu0 0.0
  %902 = vmatpush1.msra.mxu0 0.0
  %903 = vmatprep.subr.mxu0 0.0
  %904 = vmatpush1.msra.mxu0 0.0
  %905 = vmatprep.subr.mxu0 0.0
  %906 = vmatpush1.msra.mxu0 0.0
  %907 = vmatprep.subr.mxu0 0.0
  %908 = vmatpush1.msra.mxu0 0.0
  %909 = vmatprep.subr.mxu0 0.0
  %910 = vmatpush1.msra.mxu0 0.0
  %911 = vmatprep.subr.mxu0 0.0
  %912 = vmatpush1.msra.mxu0 0.0
  %913 = vmatprep.subr.mxu0 0.0
  %914 = vmatpush1.msra.mxu0 0.0
  %915 = vmatprep.subr.mxu0 0.0
  %916 = vmatpush1.msra.mxu0 0.0
  %917 = vmatprep.subr.mxu0 0.0
  %918 = vmatpush1.msra.mxu0 0.0
  %919 = vmatprep.subr.mxu0 0.0
  %920 = vmatpush1.msra.mxu0 0.0
  %921 = vmatprep.subr.mxu0 0.0
  %922 = vmatpush1.msra.mxu0 0.0
  %923 = vmatprep.subr.mxu0 0.0
  %924 = vmatpush1.msra.mxu0 0.0
  %925 = vmatprep.subr.mxu0 0.0
  %926 = vmatpush1.msra.mxu0 0.0
  %927 = vmatprep.subr.mxu0 0.0
  %928 = vmatpush1.msra.mxu0 0.0
  %929 = vmatprep.subr.mxu0 0.0
  %930 = vmatpush1.msra.mxu0 0.0
  %931 = vmatprep.subr.mxu0 0.0
  %932 = vmatpush1.msra.mxu0 0.0
  %933 = vmatprep.subr.mxu0 0.0
  %934 = vmatpush1.msra.mxu0 0.0
  %935 = vmatprep.subr.mxu0 0.0
  %936 = vmatpush1.msra.mxu0 0.0
  %937 = vmatprep.subr.mxu0 0.0
  %938 = vmatpush1.msra.mxu0 0.0
  %939 = vmatprep.subr.mxu0 0.0
  %940 = vmatpush1.msra.mxu0 0.0
  %941 = vmatprep.subr.mxu0 0.0
  %942 = vmatpush1.msra.mxu0 0.0
  %943 = vmatprep.subr.mxu0 0.0
  %944 = vmatpush1.msra.mxu0 0.0
  %945 = vmatprep.mubr.f32.mxu0 0.0
  %946 = vmatmul.mubr.f32.gmra.mrb[0].mxu0 %v879
  %v947 = vpop.f32.mrb[0].mxu0
  %v948 = vadd.f32 0.0, %v947
  %v949 = vpop.f32.mrb[0].mxu0
  %950 = vdwg.mxu0
  %951 = vst.msk [vmem:[#allocation2] sm:$0xff] %vm440, %v948
  %952 = vrot.lane.b32.xlu0 %v415, 112
  %v953 = vpop.permute.xlu0 %952
  %954 = vrot.lane.b32.xlu0 %v391, 112
  %v955 = vpop.permute.xlu0 %954
  %956 = vrot.lane.b32.xlu0 %v396, 112
  %v957 = vpop.permute.xlu0 %956
  %v958 = vsel %vm440, %v953, 0
  %v960 = vsel %vm440, %v955, 0
  %v962 = vsel %vm440, %v957, 0
  %964 = vmatprep.subr.mxu0 0.0
  %965 = vmatpush1.xpose.msra.mxu0 %v960
  %966 = vmatprep.subr.mxu0 0.0
  %967 = vmatpush1.xpose.msra.mxu0 %v962
  %968 = vmatprep.subr.mxu0 0.0
  %969 = vmatpush1.xpose.msra.mxu0 0.0
  %970 = vmatprep.subr.mxu0 0.0
  %971 = vmatpush1.xpose.msra.mxu0 0.0
  %972 = vmatprep.subr.mxu0 0.0
  %973 = vmatpush1.xpose.msra.mxu0 0.0
  %974 = vmatprep.subr.mxu0 0.0
  %975 = vmatpush1.xpose.msra.mxu0 0.0
  %976 = vmatprep.subr.mxu0 0.0
  %977 = vmatpush1.xpose.msra.mxu0 0.0
  %978 = vmatprep.subr.mxu0 0.0
  %979 = vmatpush1.xpose.msra.mxu0 0.0
  %980 = vmatprep.subr.mxu0 0.0
  %981 = vmatpush1.xpose.msra.mxu0 0.0
  %982 = vmatprep.subr.mxu0 0.0
  %983 = vmatpush1.xpose.msra.mxu0 0.0
  %984 = vmatprep.subr.mxu0 0.0
  %985 = vmatpush1.xpose.msra.mxu0 0.0
  %986 = vmatprep.subr.mxu0 0.0
  %987 = vmatpush1.xpose.msra.mxu0 0.0
  %988 = vmatprep.subr.mxu0 0.0
  %989 = vmatpush1.xpose.msra.mxu0 0.0
  %990 = vmatprep.subr.mxu0 0.0
  %991 = vmatpush1.xpose.msra.mxu0 0.0
  %992 = vmatprep.subr.mxu0 0.0
  %993 = vmatpush1.xpose.msra.mxu0 0.0
  %994 = vmatprep.subr.mxu0 0.0
  %995 = vmatpush1.xpose.msra.mxu0 0.0
  %996 = vmatprep.subr.mxu0 0.0
  %997 = vmatpush1.xpose.msra.mxu0 0.0
  %998 = vmatprep.subr.mxu0 0.0
  %999 = vmatpush1.xpose.msra.mxu0 0.0
  %1000 = vmatprep.subr.mxu0 0.0
  %1001 = vmatpush1.xpose.msra.mxu0 0.0
  %1002 = vmatprep.subr.mxu0 0.0
  %1003 = vmatpush1.xpose.msra.mxu0 0.0
  %1004 = vmatprep.subr.mxu0 0.0
  %1005 = vmatpush1.xpose.msra.mxu0 0.0
  %1006 = vmatprep.subr.mxu0 0.0
  %1007 = vmatpush1.xpose.msra.mxu0 0.0
  %1008 = vmatprep.subr.mxu0 0.0
  %1009 = vmatpush1.xpose.msra.mxu0 0.0
  %1010 = vmatprep.subr.mxu0 0.0
  %1011 = vmatpush1.xpose.msra.mxu0 0.0
  %1012 = vmatprep.subr.mxu0 0.0
  %1013 = vmatpush1.xpose.msra.mxu0 0.0
  %1014 = vmatprep.subr.mxu0 0.0
  %1015 = vmatpush1.xpose.msra.mxu0 0.0
  %1016 = vmatprep.subr.mxu0 0.0
  %1017 = vmatpush1.xpose.msra.mxu0 0.0
  %1018 = vmatprep.subr.mxu0 0.0
  %1019 = vmatpush1.xpose.msra.mxu0 0.0
  %1020 = vmatprep.subr.mxu0 0.0
  %1021 = vmatpush1.xpose.msra.mxu0 0.0
  %1022 = vmatprep.subr.mxu0 0.0
  %1023 = vmatpush1.xpose.msra.mxu0 0.0
  %1024 = vmatprep.subr.mxu0 0.0
  %1025 = vmatpush1.xpose.msra.mxu0 0.0
  %1026 = vmatprep.subr.mxu0 0.0
  %1027 = vmatpush1.xpose.msra.mxu0 0.0
  %1028 = vmatprep.mubr.f32.mxu0 0.0
  %1029 = vmatmul.mubr.f32.gmra.mrb[0].mxu0 %v958
  %v1030 = vpop.f32.mrb[0].mxu0
  %v1031 = vadd.f32 0.0, %v1030
  %v1032 = vpop.f32.mrb[0].mxu0
  %1033 = vdwg.mxu0
  %v1035 = vcombine.high %v1031, %v1031
  %v1037 = vunpack.c.l.s4 1966171168
  %v1038 = vunpack.c.0.s8 %v1037
  %v1039 = vlaneseq
  %v1040 = vshrl.u32 %v1039, 7
  %v1041 = vsub.s32 %v1038, %v1040
  %v1042 = vrot.slane %v1031, %v1041
  %v1044 = vunpack.c.l.s4 1966171168
  %v1045 = vunpack.c.0.s8 %v1044
  %v1046 = vlaneseq
  %v1047 = vshrl.u32 %v1046, 7
  %v1048 = vsub.s32 %v1045, %v1047
  %v1049 = vrot.slane %v1035, %v1048
  %v1050 = vcombine.high %v1042, %v1042
  %v1051 = vcombine.high %v1049, %v1049
  %v1053 = vunpack.c.l.s4 1966171168
  %v1054 = vunpack.c.0.s8 %v1053
  %v1055 = vlaneseq
  %v1056 = vshrl.u32 %v1055, 7
  %v1057 = vsub.s32 %v1054, %v1056
  %v1058 = vrot.slane %v1042, %v1057
  %v1060 = vunpack.c.l.s4 1966171168
  %v1061 = vunpack.c.0.s8 %v1060
  %v1062 = vlaneseq
  %v1063 = vshrl.u32 %v1062, 7
  %v1064 = vsub.s32 %v1061, %v1063
  %v1065 = vrot.slane %v1049, %v1064
  %v1067 = vunpack.c.l.s4 1966171168
  %v1068 = vunpack.c.0.s8 %v1067
  %v1069 = vlaneseq
  %v1070 = vshrl.u32 %v1069, 7
  %v1071 = vsub.s32 %v1068, %v1070
  %v1072 = vrot.slane %v1050, %v1071
  %v1074 = vunpack.c.l.s4 1966171168
  %v1075 = vunpack.c.0.s8 %v1074
  %v1076 = vlaneseq
  %v1077 = vshrl.u32 %v1076, 7
  %v1078 = vsub.s32 %v1075, %v1077
  %v1079 = vrot.slane %v1051, %v1078
  %v1080 = vcombine.high %v1058, %v1058
  %v1081 = vcombine.high %v1065, %v1065
  %v1082 = vcombine.high %v1072, %v1072
  %v1083 = vcombine.high %v1079, %v1079
  %v1084 = vlaneseq
  %v1085 = vshrl.u32 %v1084, 7
  %v1086 = vsub.s32 0, %v1085
  %v1087 = vrot.slane %v1058, %v1086
  %v1088 = vlaneseq
  %v1089 = vshrl.u32 %v1088, 7
  %v1090 = vsub.s32 0, %v1089
  %v1091 = vrot.slane %v1072, %v1090
  %v1092 = vlaneseq
  %v1093 = vshrl.u32 %v1092, 7
  %v1094 = vsub.s32 0, %v1093
  %v1095 = vrot.slane %v1080, %v1094
  %v1096 = vlaneseq
  %v1097 = vshrl.u32 %v1096, 7
  %v1098 = vsub.s32 0, %v1097
  %v1099 = vrot.slane %v1082, %v1098
  %v1100 = vlaneseq
  %v1101 = vshrl.u32 %v1100, 7
  %v1102 = vsub.s32 0, %v1101
  %v1103 = vrot.slane %v1065, %v1102
  %v1104 = vlaneseq
  %v1105 = vshrl.u32 %v1104, 7
  %v1106 = vsub.s32 0, %v1105
  %v1107 = vrot.slane %v1079, %v1106
  %v1108 = vlaneseq
  %v1109 = vshrl.u32 %v1108, 7
  %v1110 = vsub.s32 0, %v1109
  %v1111 = vrot.slane %v1081, %v1110
  %v1112 = vlaneseq
  %v1113 = vshrl.u32 %v1112, 7
  %v1114 = vsub.s32 0, %v1113
  %v1115 = vrot.slane %v1083, %v1114
  %v1124 = vmul.f32 %v1087, %v418
  %v1125 = vmul.f32 %v1087, %v419
  %v1126 = vmul.f32 %v1091, %v420
  %v1127 = vmul.f32 %v1091, %v421
  %v1128 = vmul.f32 %v1095, %v422
  %v1129 = vmul.f32 %v1095, %v423
  %v1130 = vmul.f32 %v1099, %v424
  %v1131 = vmul.f32 %v1099, %v425
  %v1132 = vmul.f32 %v1103, %v426
  %v1133 = vmul.f32 %v1103, %v427
  %v1134 = vmul.f32 %v1107, %v428
  %v1135 = vmul.f32 %v1107, %v429
  %v1136 = vmul.f32 %v1111, %v430
  %v1137 = vmul.f32 %v1111, %v431
  %v1138 = vmul.f32 %v1115, %v432
  %v1139 = vmul.f32 %v1115, %v433
  %v1140 = vsel %vm440, %v1124, 0.0
  %1141 = vadd.xlane.f32.xlu0 %v1140
  %v1142 = vpop.xlane.xlu0 %1141
  %v1143 = vsel %vm440, %v1125, 0.0
  %1144 = vadd.xlane.f32.xlu0 %v1143
  %v1145 = vpop.xlane.xlu0 %1144
  %v1146 = vsel %vm440, %v1126, 0.0
  %1147 = vadd.xlane.f32.xlu0 %v1146
  %v1148 = vpop.xlane.xlu0 %1147
  %v1149 = vsel %vm440, %v1127, 0.0
  %1150 = vadd.xlane.f32.xlu0 %v1149
  %v1151 = vpop.xlane.xlu0 %1150
  %v1152 = vsel %vm440, %v1128, 0.0
  %1153 = vadd.xlane.f32.xlu0 %v1152
  %v1154 = vpop.xlane.xlu0 %1153
  %v1155 = vsel %vm440, %v1129, 0.0
  %1156 = vadd.xlane.f32.xlu0 %v1155
  %v1157 = vpop.xlane.xlu0 %1156
  %v1158 = vsel %vm440, %v1130, 0.0
  %1159 = vadd.xlane.f32.xlu0 %v1158
  %v1160 = vpop.xlane.xlu0 %1159
  %v1161 = vsel %vm440, %v1131, 0.0
  %1162 = vadd.xlane.f32.xlu0 %v1161
  %v1163 = vpop.xlane.xlu0 %1162
  %v1164 = vsel %vm440, %v1132, 0.0
  %1165 = vadd.xlane.f32.xlu0 %v1164
  %v1166 = vpop.xlane.xlu0 %1165
  %v1167 = vsel %vm440, %v1133, 0.0
  %1168 = vadd.xlane.f32.xlu0 %v1167
  %v1169 = vpop.xlane.xlu0 %1168
  %v1170 = vsel %vm440, %v1134, 0.0
  %1171 = vadd.xlane.f32.xlu0 %v1170
  %v1172 = vpop.xlane.xlu0 %1171
  %v1173 = vsel %vm440, %v1135, 0.0
  %1174 = vadd.xlane.f32.xlu0 %v1173
  %v1175 = vpop.xlane.xlu0 %1174
  %v1176 = vsel %vm440, %v1136, 0.0
  %1177 = vadd.xlane.f32.xlu0 %v1176
  %v1178 = vpop.xlane.xlu0 %1177
  %v1179 = vsel %vm440, %v1137, 0.0
  %1180 = vadd.xlane.f32.xlu0 %v1179
  %v1181 = vpop.xlane.xlu0 %1180
  %v1182 = vsel %vm440, %v1138, 0.0
  %1183 = vadd.xlane.f32.xlu0 %v1182
  %v1184 = vpop.xlane.xlu0 %1183
  %v1185 = vsel %vm440, %v1139, 0.0
  %1186 = vadd.xlane.f32.xlu0 %v1185
  %v1187 = vpop.xlane.xlu0 %1186
  %1188 = vrot.lane.b32.xlu0 %v406, 112
  %v1189 = vpop.permute.xlu0 %1188
  %1190 = vrot.lane.b32.xlu0 %v304, 112
  %v1191 = vpop.permute.xlu0 %1190
  %1192 = vrot.lane.b32.xlu0 %v436, 112
  %v1193 = vpop.permute.xlu0 %1192
  %v1210 = vlaneseq
  %v1211 = vshrl.u32 %v1210, 7
  %v1212 = vsub.s32 %v691, %v1211
  %v1213 = vrot.slane %v1142, %v1212
  %v1214 = vlaneseq
  %v1215 = vshrl.u32 %v1214, 7
  %v1216 = vsub.s32 %v696, %v1215
  %v1217 = vrot.slane %v1145, %v1216
  %v1218 = vsel %vm701, %v1217, %v1213
  %v1219 = vlaneseq
  %v1220 = vshrl.u32 %v1219, 7
  %v1221 = vsub.s32 %v691, %v1220
  %v1222 = vrot.slane %v1148, %v1221
  %v1223 = vlaneseq
  %v1224 = vshrl.u32 %v1223, 7
  %v1225 = vsub.s32 %v696, %v1224
  %v1226 = vrot.slane %v1151, %v1225
  %v1227 = vsel %vm701, %v1226, %v1222
  %v1228 = vlaneseq
  %v1229 = vshrl.u32 %v1228, 7
  %v1230 = vsub.s32 %v691, %v1229
  %v1231 = vrot.slane %v1154, %v1230
  %v1232 = vlaneseq
  %v1233 = vshrl.u32 %v1232, 7
  %v1234 = vsub.s32 %v696, %v1233
  %v1235 = vrot.slane %v1157, %v1234
  %v1236 = vsel %vm701, %v1235, %v1231
  %v1237 = vlaneseq
  %v1238 = vshrl.u32 %v1237, 7
  %v1239 = vsub.s32 %v691, %v1238
  %v1240 = vrot.slane %v1160, %v1239
  %v1241 = vlaneseq
  %v1242 = vshrl.u32 %v1241, 7
  %v1243 = vsub.s32 %v696, %v1242
  %v1244 = vrot.slane %v1163, %v1243
  %v1245 = vsel %vm701, %v1244, %v1240
  %v1246 = vlaneseq
  %v1247 = vshrl.u32 %v1246, 7
  %v1248 = vsub.s32 %v691, %v1247
  %v1249 = vrot.slane %v1166, %v1248
  %v1250 = vlaneseq
  %v1251 = vshrl.u32 %v1250, 7
  %v1252 = vsub.s32 %v696, %v1251
  %v1253 = vrot.slane %v1169, %v1252
  %v1254 = vsel %vm701, %v1253, %v1249
  %v1255 = vlaneseq
  %v1256 = vshrl.u32 %v1255, 7
  %v1257 = vsub.s32 %v691, %v1256
  %v1258 = vrot.slane %v1172, %v1257
  %v1259 = vlaneseq
  %v1260 = vshrl.u32 %v1259, 7
  %v1261 = vsub.s32 %v696, %v1260
  %v1262 = vrot.slane %v1175, %v1261
  %v1263 = vsel %vm701, %v1262, %v1258
  %v1264 = vlaneseq
  %v1265 = vshrl.u32 %v1264, 7
  %v1266 = vsub.s32 %v691, %v1265
  %v1267 = vrot.slane %v1178, %v1266
  %v1268 = vlaneseq
  %v1269 = vshrl.u32 %v1268, 7
  %v1270 = vsub.s32 %v696, %v1269
  %v1271 = vrot.slane %v1181, %v1270
  %v1272 = vsel %vm701, %v1271, %v1267
  %v1273 = vlaneseq
  %v1274 = vshrl.u32 %v1273, 7
  %v1275 = vsub.s32 %v691, %v1274
  %v1276 = vrot.slane %v1184, %v1275
  %v1277 = vlaneseq
  %v1278 = vshrl.u32 %v1277, 7
  %v1279 = vsub.s32 %v696, %v1278
  %v1280 = vrot.slane %v1187, %v1279
  %v1281 = vsel %vm701, %v1280, %v1276
  %v1282 = vsel %vm766, %v1227, %v1218
  %v1283 = vsel %vm768, %v1236, %v1282
  %v1284 = vsel %vm770, %v1245, %v1283
  %v1285 = vsel %vm772, %v1254, %v1284
  %v1286 = vsel %vm774, %v1263, %v1285
  %v1287 = vsel %vm776, %v1272, %v1286
  %v1288 = vsel %vm778, %v1281, %v1287
  %v1290 = vsel %vm440, %v1189, 0
  %v1292 = vsel %vm440, %v1191, 0
  %v1294 = vsel %vm440, %v1193, 0
  %1296 = vmatprep.subr.mxu0 0.0
  %1297 = vmatpush1.xpose.msra.mxu0 %v1292
  %1298 = vmatprep.subr.mxu0 0.0
  %1299 = vmatpush1.xpose.msra.mxu0 %v1294
  %1300 = vmatprep.subr.mxu0 0.0
  %1301 = vmatpush1.xpose.msra.mxu0 0.0
  %1302 = vmatprep.subr.mxu0 0.0
  %1303 = vmatpush1.xpose.msra.mxu0 0.0
  %1304 = vmatprep.subr.mxu0 0.0
  %1305 = vmatpush1.xpose.msra.mxu0 0.0
  %1306 = vmatprep.subr.mxu0 0.0
  %1307 = vmatpush1.xpose.msra.mxu0 0.0
  %1308 = vmatprep.subr.mxu0 0.0
  %1309 = vmatpush1.xpose.msra.mxu0 0.0
  %1310 = vmatprep.subr.mxu0 0.0
  %1311 = vmatpush1.xpose.msra.mxu0 0.0
  %1312 = vmatprep.subr.mxu0 0.0
  %1313 = vmatpush1.xpose.msra.mxu0 0.0
  %1314 = vmatprep.subr.mxu0 0.0
  %1315 = vmatpush1.xpose.msra.mxu0 0.0
  %1316 = vmatprep.subr.mxu0 0.0
  %1317 = vmatpush1.xpose.msra.mxu0 0.0
  %1318 = vmatprep.subr.mxu0 0.0
  %1319 = vmatpush1.xpose.msra.mxu0 0.0
  %1320 = vmatprep.subr.mxu0 0.0
  %1321 = vmatpush1.xpose.msra.mxu0 0.0
  %1322 = vmatprep.subr.mxu0 0.0
  %1323 = vmatpush1.xpose.msra.mxu0 0.0
  %1324 = vmatprep.subr.mxu0 0.0
  %1325 = vmatpush1.xpose.msra.mxu0 0.0
  %1326 = vmatprep.subr.mxu0 0.0
  %1327 = vmatpush1.xpose.msra.mxu0 0.0
  %1328 = vmatprep.subr.mxu0 0.0
  %1329 = vmatpush1.xpose.msra.mxu0 0.0
  %1330 = vmatprep.subr.mxu0 0.0
  %1331 = vmatpush1.xpose.msra.mxu0 0.0
  %1332 = vmatprep.subr.mxu0 0.0
  %1333 = vmatpush1.xpose.msra.mxu0 0.0
  %1334 = vmatprep.subr.mxu0 0.0
  %1335 = vmatpush1.xpose.msra.mxu0 0.0
  %1336 = vmatprep.subr.mxu0 0.0
  %1337 = vmatpush1.xpose.msra.mxu0 0.0
  %1338 = vmatprep.subr.mxu0 0.0
  %1339 = vmatpush1.xpose.msra.mxu0 0.0
  %1340 = vmatprep.subr.mxu0 0.0
  %1341 = vmatpush1.xpose.msra.mxu0 0.0
  %1342 = vmatprep.subr.mxu0 0.0
  %1343 = vmatpush1.xpose.msra.mxu0 0.0
  %1344 = vmatprep.subr.mxu0 0.0
  %1345 = vmatpush1.xpose.msra.mxu0 0.0
  %1346 = vmatprep.subr.mxu0 0.0
  %1347 = vmatpush1.xpose.msra.mxu0 0.0
  %1348 = vmatprep.subr.mxu0 0.0
  %1349 = vmatpush1.xpose.msra.mxu0 0.0
  %1350 = vmatprep.subr.mxu0 0.0
  %1351 = vmatpush1.xpose.msra.mxu0 0.0
  %1352 = vmatprep.subr.mxu0 0.0
  %1353 = vmatpush1.xpose.msra.mxu0 0.0
  %1354 = vmatprep.subr.mxu0 0.0
  %1355 = vmatpush1.xpose.msra.mxu0 0.0
  %1356 = vmatprep.subr.mxu0 0.0
  %1357 = vmatpush1.xpose.msra.mxu0 0.0
  %1358 = vmatprep.subr.mxu0 0.0
  %1359 = vmatpush1.xpose.msra.mxu0 0.0
  %1360 = vmatprep.mubr.f32.mxu0 0.0
  %1361 = vmatmul.mubr.f32.gmra.mrb[0].mxu0 %v1290
  %v1362 = vpop.f32.mrb[0].mxu0
  %v1363 = vadd.f32 %v1288, %v1362
  %v1364 = vpop.f32.mrb[0].mxu0
  %1365 = vdwg.mxu0
  %v1366 = vmul.f32 %v1363, 0.25
  %v1367 = vadd.f32 %v1366, %v417
  %v1368 = vsel %vm440, %v1367, -inf
  %1369 = vmax.xlane.f32.xlu0 %v1368
  %v1370 = vpop.xlane.xlu0 %1369
  %v1371 = vsub.f32 %v1367, %v1370
  %v1372 = vmul.f32 %v1371, 1.442695
  %v1373 = vpow.pop %v1372
  %v1374 = vsel %vm440, %v1373, 0.0
  %1375 = vadd.xlane.f32.xlu0 %v1374
  %v1376 = vpop.xlane.xlu0 %1375
  %v1377 = vrcp.pop %v1376
  %v1378 = vmul.f32 %v1373, %v1377
  %1379 = vrot.lane.b32.xlu0 %v304, 48
  %v1380 = vpop.permute.xlu0 %1379
  %1381 = vrot.lane.b32.xlu0 %v439, 48
  %v1382 = vpop.permute.xlu0 %1381
  %v1386 = vsel %vm440, %v1378, 0
  %1388 = vmatprep.subr.mxu0 0.0
  %1389 = vmatpush1.msra.mxu0 %v1380
  %1390 = vmatprep.subr.mxu0 0.0
  %1391 = vmatpush1.msra.mxu0 %v1382
  %1392 = vmatprep.subr.mxu0 0.0
  %1393 = vmatpush1.msra.mxu0 0.0
  %1394 = vmatprep.subr.mxu0 0.0
  %1395 = vmatpush1.msra.mxu0 0.0
  %1396 = vmatprep.subr.mxu0 0.0
  %1397 = vmatpush1.msra.mxu0 0.0
  %1398 = vmatprep.subr.mxu0 0.0
  %1399 = vmatpush1.msra.mxu0 0.0
  %1400 = vmatprep.subr.mxu0 0.0
  %1401 = vmatpush1.msra.mxu0 0.0
  %1402 = vmatprep.subr.mxu0 0.0
  %1403 = vmatpush1.msra.mxu0 0.0
  %1404 = vmatprep.subr.mxu0 0.0
  %1405 = vmatpush1.msra.mxu0 0.0
  %1406 = vmatprep.subr.mxu0 0.0
  %1407 = vmatpush1.msra.mxu0 0.0
  %1408 = vmatprep.subr.mxu0 0.0
  %1409 = vmatpush1.msra.mxu0 0.0
  %1410 = vmatprep.subr.mxu0 0.0
  %1411 = vmatpush1.msra.mxu0 0.0
  %1412 = vmatprep.subr.mxu0 0.0
  %1413 = vmatpush1.msra.mxu0 0.0
  %1414 = vmatprep.subr.mxu0 0.0
  %1415 = vmatpush1.msra.mxu0 0.0
  %1416 = vmatprep.subr.mxu0 0.0
  %1417 = vmatpush1.msra.mxu0 0.0
  %1418 = vmatprep.subr.mxu0 0.0
  %1419 = vmatpush1.msra.mxu0 0.0
  %1420 = vmatprep.subr.mxu0 0.0
  %1421 = vmatpush1.msra.mxu0 0.0
  %1422 = vmatprep.subr.mxu0 0.0
  %1423 = vmatpush1.msra.mxu0 0.0
  %1424 = vmatprep.subr.mxu0 0.0
  %1425 = vmatpush1.msra.mxu0 0.0
  %1426 = vmatprep.subr.mxu0 0.0
  %1427 = vmatpush1.msra.mxu0 0.0
  %1428 = vmatprep.subr.mxu0 0.0
  %1429 = vmatpush1.msra.mxu0 0.0
  %1430 = vmatprep.subr.mxu0 0.0
  %1431 = vmatpush1.msra.mxu0 0.0
  %1432 = vmatprep.subr.mxu0 0.0
  %1433 = vmatpush1.msra.mxu0 0.0
  %1434 = vmatprep.subr.mxu0 0.0
  %1435 = vmatpush1.msra.mxu0 0.0
  %1436 = vmatprep.subr.mxu0 0.0
  %1437 = vmatpush1.msra.mxu0 0.0
  %1438 = vmatprep.subr.mxu0 0.0
  %1439 = vmatpush1.msra.mxu0 0.0
  %1440 = vmatprep.subr.mxu0 0.0
  %1441 = vmatpush1.msra.mxu0 0.0
  %1442 = vmatprep.subr.mxu0 0.0
  %1443 = vmatpush1.msra.mxu0 0.0
  %1444 = vmatprep.subr.mxu0 0.0
  %1445 = vmatpush1.msra.mxu0 0.0
  %1446 = vmatprep.subr.mxu0 0.0
  %1447 = vmatpush1.msra.mxu0 0.0
  %1448 = vmatprep.subr.mxu0 0.0
  %1449 = vmatpush1.msra.mxu0 0.0
  %1450 = vmatprep.subr.mxu0 0.0
  %1451 = vmatpush1.msra.mxu0 0.0
  %1452 = vmatprep.mubr.f32.mxu0 0.0
  %1453 = vmatmul.mubr.f32.gmra.mrb[0].mxu0 %v1386
  %v1454 = vpop.f32.mrb[0].mxu0
  %v1455 = vadd.f32 0.0, %v1454
  %v1456 = vpop.f32.mrb[0].mxu0
  %1457 = vdwg.mxu0
  %1459 = vrot.lane.b32.xlu0 %v1455, 16
  %v1460 = vpop.permute.xlu0 %1459
  %vm1462 = vcmask 261248
  %1463 = vst.msk [vmem:[#allocation2] sm:$0xff] %vm1462, %v1460
  %1464 = vrot.lane.b32.xlu0 %v415, 96
  %v1465 = vpop.permute.xlu0 %1464
  %1466 = vrot.lane.b32.xlu0 %v391, 96
  %v1467 = vpop.permute.xlu0 %1466
  %1468 = vrot.lane.b32.xlu0 %v396, 96
  %v1469 = vpop.permute.xlu0 %1468
  %v1470 = vsel %vm440, %v1465, 0
  %v1472 = vsel %vm440, %v1467, 0
  %v1474 = vsel %vm440, %v1469, 0
  %1476 = vmatprep.subr.mxu0 0.0
  %1477 = vmatpush1.xpose.msra.mxu0 %v1472
  %1478 = vmatprep.subr.mxu0 0.0
  %1479 = vmatpush1.xpose.msra.mxu0 %v1474
  %1480 = vmatprep.subr.mxu0 0.0
  %1481 = vmatpush1.xpose.msra.mxu0 0.0
  %1482 = vmatprep.subr.mxu0 0.0
  %1483 = vmatpush1.xpose.msra.mxu0 0.0
  %1484 = vmatprep.subr.mxu0 0.0
  %1485 = vmatpush1.xpose.msra.mxu0 0.0
  %1486 = vmatprep.subr.mxu0 0.0
  %1487 = vmatpush1.xpose.msra.mxu0 0.0
  %1488 = vmatprep.subr.mxu0 0.0
  %1489 = vmatpush1.xpose.msra.mxu0 0.0
  %1490 = vmatprep.subr.mxu0 0.0
  %1491 = vmatpush1.xpose.msra.mxu0 0.0
  %1492 = vmatprep.subr.mxu0 0.0
  %1493 = vmatpush1.xpose.msra.mxu0 0.0
  %1494 = vmatprep.subr.mxu0 0.0
  %1495 = vmatpush1.xpose.msra.mxu0 0.0
  %1496 = vmatprep.subr.mxu0 0.0
  %1497 = vmatpush1.xpose.msra.mxu0 0.0
  %1498 = vmatprep.subr.mxu0 0.0
  %1499 = vmatpush1.xpose.msra.mxu0 0.0
  %1500 = vmatprep.subr.mxu0 0.0
  %1501 = vmatpush1.xpose.msra.mxu0 0.0
  %1502 = vmatprep.subr.mxu0 0.0
  %1503 = vmatpush1.xpose.msra.mxu0 0.0
  %1504 = vmatprep.subr.mxu0 0.0
  %1505 = vmatpush1.xpose.msra.mxu0 0.0
  %1506 = vmatprep.subr.mxu0 0.0
  %1507 = vmatpush1.xpose.msra.mxu0 0.0
  %1508 = vmatprep.subr.mxu0 0.0
  %1509 = vmatpush1.xpose.msra.mxu0 0.0
  %1510 = vmatprep.subr.mxu0 0.0
  %1511 = vmatpush1.xpose.msra.mxu0 0.0
  %1512 = vmatprep.subr.mxu0 0.0
  %1513 = vmatpush1.xpose.msra.mxu0 0.0
  %1514 = vmatprep.subr.mxu0 0.0
  %1515 = vmatpush1.xpose.msra.mxu0 0.0
  %1516 = vmatprep.subr.mxu0 0.0
  %1517 = vmatpush1.xpose.msra.mxu0 0.0
  %1518 = vmatprep.subr.mxu0 0.0
  %1519 = vmatpush1.xpose.msra.mxu0 0.0
  %1520 = vmatprep.subr.mxu0 0.0
  %1521 = vmatpush1.xpose.msra.mxu0 0.0
  %1522 = vmatprep.subr.mxu0 0.0
  %1523 = vmatpush1.xpose.msra.mxu0 0.0
  %1524 = vmatprep.subr.mxu0 0.0
  %1525 = vmatpush1.xpose.msra.mxu0 0.0
  %1526 = vmatprep.subr.mxu0 0.0
  %1527 = vmatpush1.xpose.msra.mxu0 0.0
  %1528 = vmatprep.subr.mxu0 0.0
  %1529 = vmatpush1.xpose.msra.mxu0 0.0
  %1530 = vmatprep.subr.mxu0 0.0
  %1531 = vmatpush1.xpose.msra.mxu0 0.0
  %1532 = vmatprep.subr.mxu0 0.0
  %1533 = vmatpush1.xpose.msra.mxu0 0.0
  %1534 = vmatprep.subr.mxu0 0.0
  %1535 = vmatpush1.xpose.msra.mxu0 0.0
  %1536 = vmatprep.subr.mxu0 0.0
  %1537 = vmatpush1.xpose.msra.mxu0 0.0
  %1538 = vmatprep.subr.mxu0 0.0
  %1539 = vmatpush1.xpose.msra.mxu0 0.0
  %1540 = vmatprep.mubr.f32.mxu0 0.0
  %1541 = vmatmul.mubr.f32.gmra.mrb[0].mxu0 %v1470
  %v1542 = vpop.f32.mrb[0].mxu0
  %v1543 = vadd.f32 0.0, %v1542
  %v1544 = vpop.f32.mrb[0].mxu0
  %1545 = vdwg.mxu0
  %v1547 = vcombine.high %v1543, %v1543
  %v1549 = vunpack.c.l.s4 1966171168
  %v1550 = vunpack.c.0.s8 %v1549
  %v1551 = vlaneseq
  %v1552 = vshrl.u32 %v1551, 7
  %v1553 = vsub.s32 %v1550, %v1552
  %v1554 = vrot.slane %v1543, %v1553
  %v1556 = vunpack.c.l.s4 1966171168
  %v1557 = vunpack.c.0.s8 %v1556
  %v1558 = vlaneseq
  %v1559 = vshrl.u32 %v1558, 7
  %v1560 = vsub.s32 %v1557, %v1559
  %v1561 = vrot.slane %v1547, %v1560
  %v1562 = vcombine.high %v1554, %v1554
  %v1563 = vcombine.high %v1561, %v1561
  %v1565 = vunpack.c.l.s4 1966171168
  %v1566 = vunpack.c.0.s8 %v1565
  %v1567 = vlaneseq
  %v1568 = vshrl.u32 %v1567, 7
  %v1569 = vsub.s32 %v1566, %v1568
  %v1570 = vrot.slane %v1554, %v1569
  %v1572 = vunpack.c.l.s4 1966171168
  %v1573 = vunpack.c.0.s8 %v1572
  %v1574 = vlaneseq
  %v1575 = vshrl.u32 %v1574, 7
  %v1576 = vsub.s32 %v1573, %v1575
  %v1577 = vrot.slane %v1561, %v1576
  %v1579 = vunpack.c.l.s4 1966171168
  %v1580 = vunpack.c.0.s8 %v1579
  %v1581 = vlaneseq
  %v1582 = vshrl.u32 %v1581, 7
  %v1583 = vsub.s32 %v1580, %v1582
  %v1584 = vrot.slane %v1562, %v1583
  %v1586 = vunpack.c.l.s4 1966171168
  %v1587 = vunpack.c.0.s8 %v1586
  %v1588 = vlaneseq
  %v1589 = vshrl.u32 %v1588, 7
  %v1590 = vsub.s32 %v1587, %v1589
  %v1591 = vrot.slane %v1563, %v1590
  %v1592 = vcombine.high %v1570, %v1570
  %v1593 = vcombine.high %v1577, %v1577
  %v1594 = vcombine.high %v1584, %v1584
  %v1595 = vcombine.high %v1591, %v1591
  %v1596 = vlaneseq
  %v1597 = vshrl.u32 %v1596, 7
  %v1598 = vsub.s32 0, %v1597
  %v1599 = vrot.slane %v1570, %v1598
  %v1600 = vlaneseq
  %v1601 = vshrl.u32 %v1600, 7
  %v1602 = vsub.s32 0, %v1601
  %v1603 = vrot.slane %v1584, %v1602
  %v1604 = vlaneseq
  %v1605 = vshrl.u32 %v1604, 7
  %v1606 = vsub.s32 0, %v1605
  %v1607 = vrot.slane %v1592, %v1606
  %v1608 = vlaneseq
  %v1609 = vshrl.u32 %v1608, 7
  %v1610 = vsub.s32 0, %v1609
  %v1611 = vrot.slane %v1594, %v1610
  %v1612 = vlaneseq
  %v1613 = vshrl.u32 %v1612, 7
  %v1614 = vsub.s32 0, %v1613
  %v1615 = vrot.slane %v1577, %v1614
  %v1616 = vlaneseq
  %v1617 = vshrl.u32 %v1616, 7
  %v1618 = vsub.s32 0, %v1617
  %v1619 = vrot.slane %v1591, %v1618
  %v1620 = vlaneseq
  %v1621 = vshrl.u32 %v1620, 7
  %v1622 = vsub.s32 0, %v1621
  %v1623 = vrot.slane %v1593, %v1622
  %v1624 = vlaneseq
  %v1625 = vshrl.u32 %v1624, 7
  %v1626 = vsub.s32 0, %v1625
  %v1627 = vrot.slane %v1595, %v1626
  %v1636 = vmul.f32 %v1599, %v418
  %v1637 = vmul.f32 %v1599, %v419
  %v1638 = vmul.f32 %v1603, %v420
  %v1639 = vmul.f32 %v1603, %v421
  %v1640 = vmul.f32 %v1607, %v422
  %v1641 = vmul.f32 %v1607, %v423
  %v1642 = vmul.f32 %v1611, %v424
  %v1643 = vmul.f32 %v1611, %v425
  %v1644 = vmul.f32 %v1615, %v426
  %v1645 = vmul.f32 %v1615, %v427
  %v1646 = vmul.f32 %v1619, %v428
  %v1647 = vmul.f32 %v1619, %v429
  %v1648 = vmul.f32 %v1623, %v430
  %v1649 = vmul.f32 %v1623, %v431
  %v1650 = vmul.f32 %v1627, %v432
  %v1651 = vmul.f32 %v1627, %v433
  %v1652 = vsel %vm440, %v1636, 0.0
  %1653 = vadd.xlane.f32.xlu0 %v1652
  %v1654 = vpop.xlane.xlu0 %1653
  %v1655 = vsel %vm440, %v1637, 0.0
  %1656 = vadd.xlane.f32.xlu0 %v1655
  %v1657 = vpop.xlane.xlu0 %1656
  %v1658 = vsel %vm440, %v1638, 0.0
  %1659 = vadd.xlane.f32.xlu0 %v1658
  %v1660 = vpop.xlane.xlu0 %1659
  %v1661 = vsel %vm440, %v1639, 0.0
  %1662 = vadd.xlane.f32.xlu0 %v1661
  %v1663 = vpop.xlane.xlu0 %1662
  %v1664 = vsel %vm440, %v1640, 0.0
  %1665 = vadd.xlane.f32.xlu0 %v1664
  %v1666 = vpop.xlane.xlu0 %1665
  %v1667 = vsel %vm440, %v1641, 0.0
  %1668 = vadd.xlane.f32.xlu0 %v1667
  %v1669 = vpop.xlane.xlu0 %1668
  %v1670 = vsel %vm440, %v1642, 0.0
  %1671 = vadd.xlane.f32.xlu0 %v1670
  %v1672 = vpop.xlane.xlu0 %1671
  %v1673 = vsel %vm440, %v1643, 0.0
  %1674 = vadd.xlane.f32.xlu0 %v1673
  %v1675 = vpop.xlane.xlu0 %1674
  %v1676 = vsel %vm440, %v1644, 0.0
  %1677 = vadd.xlane.f32.xlu0 %v1676
  %v1678 = vpop.xlane.xlu0 %1677
  %v1679 = vsel %vm440, %v1645, 0.0
  %1680 = vadd.xlane.f32.xlu0 %v1679
  %v1681 = vpop.xlane.xlu0 %1680
  %v1682 = vsel %vm440, %v1646, 0.0
  %1683 = vadd.xlane.f32.xlu0 %v1682
  %v1684 = vpop.xlane.xlu0 %1683
  %v1685 = vsel %vm440, %v1647, 0.0
  %1686 = vadd.xlane.f32.xlu0 %v1685
  %v1687 = vpop.xlane.xlu0 %1686
  %v1688 = vsel %vm440, %v1648, 0.0
  %1689 = vadd.xlane.f32.xlu0 %v1688
  %v1690 = vpop.xlane.xlu0 %1689
  %v1691 = vsel %vm440, %v1649, 0.0
  %1692 = vadd.xlane.f32.xlu0 %v1691
  %v1693 = vpop.xlane.xlu0 %1692
  %v1694 = vsel %vm440, %v1650, 0.0
  %1695 = vadd.xlane.f32.xlu0 %v1694
  %v1696 = vpop.xlane.xlu0 %1695
  %v1697 = vsel %vm440, %v1651, 0.0
  %1698 = vadd.xlane.f32.xlu0 %v1697
  %v1699 = vpop.xlane.xlu0 %1698
  %1700 = vrot.lane.b32.xlu0 %v406, 96
  %v1701 = vpop.permute.xlu0 %1700
  %1702 = vrot.lane.b32.xlu0 %v304, 96
  %v1703 = vpop.permute.xlu0 %1702
  %1704 = vrot.lane.b32.xlu0 %v436, 96
  %v1705 = vpop.permute.xlu0 %1704
  %v1722 = vlaneseq
  %v1723 = vshrl.u32 %v1722, 7
  %v1724 = vsub.s32 %v691, %v1723
  %v1725 = vrot.slane %v1654, %v1724
  %v1726 = vlaneseq
  %v1727 = vshrl.u32 %v1726, 7
  %v1728 = vsub.s32 %v696, %v1727
  %v1729 = vrot.slane %v1657, %v1728
  %v1730 = vsel %vm701, %v1729, %v1725
  %v1731 = vlaneseq
  %v1732 = vshrl.u32 %v1731, 7
  %v1733 = vsub.s32 %v691, %v1732
  %v1734 = vrot.slane %v1660, %v1733
  %v1735 = vlaneseq
  %v1736 = vshrl.u32 %v1735, 7
  %v1737 = vsub.s32 %v696, %v1736
  %v1738 = vrot.slane %v1663, %v1737
  %v1739 = vsel %vm701, %v1738, %v1734
  %v1740 = vlaneseq
  %v1741 = vshrl.u32 %v1740, 7
  %v1742 = vsub.s32 %v691, %v1741
  %v1743 = vrot.slane %v1666, %v1742
  %v1744 = vlaneseq
  %v1745 = vshrl.u32 %v1744, 7
  %v1746 = vsub.s32 %v696, %v1745
  %v1747 = vrot.slane %v1669, %v1746
  %v1748 = vsel %vm701, %v1747, %v1743
  %v1749 = vlaneseq
  %v1750 = vshrl.u32 %v1749, 7
  %v1751 = vsub.s32 %v691, %v1750
  %v1752 = vrot.slane %v1672, %v1751
  %v1753 = vlaneseq
  %v1754 = vshrl.u32 %v1753, 7
  %v1755 = vsub.s32 %v696, %v1754
  %v1756 = vrot.slane %v1675, %v1755
  %v1757 = vsel %vm701, %v1756, %v1752
  %v1758 = vlaneseq
  %v1759 = vshrl.u32 %v1758, 7
  %v1760 = vsub.s32 %v691, %v1759
  %v1761 = vrot.slane %v1678, %v1760
  %v1762 = vlaneseq
  %v1763 = vshrl.u32 %v1762, 7
  %v1764 = vsub.s32 %v696, %v1763
  %v1765 = vrot.slane %v1681, %v1764
  %v1766 = vsel %vm701, %v1765, %v1761
  %v1767 = vlaneseq
  %v1768 = vshrl.u32 %v1767, 7
  %v1769 = vsub.s32 %v691, %v1768
  %v1770 = vrot.slane %v1684, %v1769
  %v1771 = vlaneseq
  %v1772 = vshrl.u32 %v1771, 7
  %v1773 = vsub.s32 %v696, %v1772
  %v1774 = vrot.slane %v1687, %v1773
  %v1775 = vsel %vm701, %v1774, %v1770
  %v1776 = vlaneseq
  %v1777 = vshrl.u32 %v1776, 7
  %v1778 = vsub.s32 %v691, %v1777
  %v1779 = vrot.slane %v1690, %v1778
  %v1780 = vlaneseq
  %v1781 = vshrl.u32 %v1780, 7
  %v1782 = vsub.s32 %v696, %v1781
  %v1783 = vrot.slane %v1693, %v1782
  %v1784 = vsel %vm701, %v1783, %v1779
  %v1785 = vlaneseq
  %v1786 = vshrl.u32 %v1785, 7
  %v1787 = vsub.s32 %v691, %v1786
  %v1788 = vrot.slane %v1696, %v1787
  %v1789 = vlaneseq
  %v1790 = vshrl.u32 %v1789, 7
  %v1791 = vsub.s32 %v696, %v1790
  %v1792 = vrot.slane %v1699, %v1791
  %v1793 = vsel %vm701, %v1792, %v1788
  %v1794 = vsel %vm766, %v1739, %v1730
  %v1795 = vsel %vm768, %v1748, %v1794
  %v1796 = vsel %vm770, %v1757, %v1795
  %v1797 = vsel %vm772, %v1766, %v1796
  %v1798 = vsel %vm774, %v1775, %v1797
  %v1799 = vsel %vm776, %v1784, %v1798
  %v1800 = vsel %vm778, %v1793, %v1799
  %v1802 = vsel %vm440, %v1701, 0
  %v1804 = vsel %vm440, %v1703, 0
  %v1806 = vsel %vm440, %v1705, 0
  %1808 = vmatprep.subr.mxu0 0.0
  %1809 = vmatpush1.xpose.msra.mxu0 %v1804
  %1810 = vmatprep.subr.mxu0 0.0
  %1811 = vmatpush1.xpose.msra.mxu0 %v1806
  %1812 = vmatprep.subr.mxu0 0.0
  %1813 = vmatpush1.xpose.msra.mxu0 0.0
  %1814 = vmatprep.subr.mxu0 0.0
  %1815 = vmatpush1.xpose.msra.mxu0 0.0
  %1816 = vmatprep.subr.mxu0 0.0
  %1817 = vmatpush1.xpose.msra.mxu0 0.0
  %1818 = vmatprep.subr.mxu0 0.0
  %1819 = vmatpush1.xpose.msra.mxu0 0.0
  %1820 = vmatprep.subr.mxu0 0.0
  %1821 = vmatpush1.xpose.msra.mxu0 0.0
  %1822 = vmatprep.subr.mxu0 0.0
  %1823 = vmatpush1.xpose.msra.mxu0 0.0
  %1824 = vmatprep.subr.mxu0 0.0
  %1825 = vmatpush1.xpose.msra.mxu0 0.0
  %1826 = vmatprep.subr.mxu0 0.0
  %1827 = vmatpush1.xpose.msra.mxu0 0.0
  %1828 = vmatprep.subr.mxu0 0.0
  %1829 = vmatpush1.xpose.msra.mxu0 0.0
  %1830 = vmatprep.subr.mxu0 0.0
  %1831 = vmatpush1.xpose.msra.mxu0 0.0
  %1832 = vmatprep.subr.mxu0 0.0
  %1833 = vmatpush1.xpose.msra.mxu0 0.0
  %1834 = vmatprep.subr.mxu0 0.0
  %1835 = vmatpush1.xpose.msra.mxu0 0.0
  %1836 = vmatprep.subr.mxu0 0.0
  %1837 = vmatpush1.xpose.msra.mxu0 0.0
  %1838 = vmatprep.subr.mxu0 0.0
  %1839 = vmatpush1.xpose.msra.mxu0 0.0
  %1840 = vmatprep.subr.mxu0 0.0
  %1841 = vmatpush1.xpose.msra.mxu0 0.0
  %1842 = vmatprep.subr.mxu0 0.0
  %1843 = vmatpush1.xpose.msra.mxu0 0.0
  %1844 = vmatprep.subr.mxu0 0.0
  %1845 = vmatpush1.xpose.msra.mxu0 0.0
  %1846 = vmatprep.subr.mxu0 0.0
  %1847 = vmatpush1.xpose.msra.mxu0 0.0
  %1848 = vmatprep.subr.mxu0 0.0
  %1849 = vmatpush1.xpose.msra.mxu0 0.0
  %1850 = vmatprep.subr.mxu0 0.0
  %1851 = vmatpush1.xpose.msra.mxu0 0.0
  %1852 = vmatprep.subr.mxu0 0.0
  %1853 = vmatpush1.xpose.msra.mxu0 0.0
  %1854 = vmatprep.subr.mxu0 0.0
  %1855 = vmatpush1.xpose.msra.mxu0 0.0
  %1856 = vmatprep.subr.mxu0 0.0
  %1857 = vmatpush1.xpose.msra.mxu0 0.0
  %1858 = vmatprep.subr.mxu0 0.0
  %1859 = vmatpush1.xpose.msra.mxu0 0.0
  %1860 = vmatprep.subr.mxu0 0.0
  %1861 = vmatpush1.xpose.msra.mxu0 0.0
  %1862 = vmatprep.subr.mxu0 0.0
  %1863 = vmatpush1.xpose.msra.mxu0 0.0
  %1864 = vmatprep.subr.mxu0 0.0
  %1865 = vmatpush1.xpose.msra.mxu0 0.0
  %1866 = vmatprep.subr.mxu0 0.0
  %1867 = vmatpush1.xpose.msra.mxu0 0.0
  %1868 = vmatprep.subr.mxu0 0.0
  %1869 = vmatpush1.xpose.msra.mxu0 0.0
  %1870 = vmatprep.subr.mxu0 0.0
  %1871 = vmatpush1.xpose.msra.mxu0 0.0
  %1872 = vmatprep.mubr.f32.mxu0 0.0
  %1873 = vmatmul.mubr.f32.gmra.mrb[0].mxu0 %v1802
  %v1874 = vpop.f32.mrb[0].mxu0
  %v1875 = vadd.f32 %v1800, %v1874
  %v1876 = vpop.f32.mrb[0].mxu0
  %1877 = vdwg.mxu0
  %v1878 = vmul.f32 %v1875, 0.25
  %v1879 = vadd.f32 %v1878, %v417
  %v1880 = vsel %vm440, %v1879, -inf
  %1881 = vmax.xlane.f32.xlu0 %v1880
  %v1882 = vpop.xlane.xlu0 %1881
  %v1883 = vsub.f32 %v1879, %v1882
  %v1884 = vmul.f32 %v1883, 1.442695
  %v1885 = vpow.pop %v1884
  %v1886 = vsel %vm440, %v1885, 0.0
  %1887 = vadd.xlane.f32.xlu0 %v1886
  %v1888 = vpop.xlane.xlu0 %1887
  %v1889 = vrcp.pop %v1888
  %v1890 = vmul.f32 %v1885, %v1889
  %1891 = vrot.lane.b32.xlu0 %v304, 32
  %v1892 = vpop.permute.xlu0 %1891
  %1893 = vrot.lane.b32.xlu0 %v439, 32
  %v1894 = vpop.permute.xlu0 %1893
  %v1898 = vsel %vm440, %v1890, 0
  %1900 = vmatprep.subr.mxu0 0.0
  %1901 = vmatpush1.msra.mxu0 %v1892
  %1902 = vmatprep.subr.mxu0 0.0
  %1903 = vmatpush1.msra.mxu0 %v1894
  %1904 = vmatprep.subr.mxu0 0.0
  %1905 = vmatpush1.msra.mxu0 0.0
  %1906 = vmatprep.subr.mxu0 0.0
  %1907 = vmatpush1.msra.mxu0 0.0
  %1908 = vmatprep.subr.mxu0 0.0
  %1909 = vmatpush1.msra.mxu0 0.0
  %1910 = vmatprep.subr.mxu0 0.0
  %1911 = vmatpush1.msra.mxu0 0.0
  %1912 = vmatprep.subr.mxu0 0.0
  %1913 = vmatpush1.msra.mxu0 0.0
  %1914 = vmatprep.subr.mxu0 0.0
  %1915 = vmatpush1.msra.mxu0 0.0
  %1916 = vmatprep.subr.mxu0 0.0
  %1917 = vmatpush1.msra.mxu0 0.0
  %1918 = vmatprep.subr.mxu0 0.0
  %1919 = vmatpush1.msra.mxu0 0.0
  %1920 = vmatprep.subr.mxu0 0.0
  %1921 = vmatpush1.msra.mxu0 0.0
  %1922 = vmatprep.subr.mxu0 0.0
  %1923 = vmatpush1.msra.mxu0 0.0
  %1924 = vmatprep.subr.mxu0 0.0
  %1925 = vmatpush1.msra.mxu0 0.0
  %1926 = vmatprep.subr.mxu0 0.0
  %1927 = vmatpush1.msra.mxu0 0.0
  %1928 = vmatprep.subr.mxu0 0.0
  %1929 = vmatpush1.msra.mxu0 0.0
  %1930 = vmatprep.subr.mxu0 0.0
  %1931 = vmatpush1.msra.mxu0 0.0
  %1932 = vmatprep.subr.mxu0 0.0
  %1933 = vmatpush1.msra.mxu0 0.0
  %1934 = vmatprep.subr.mxu0 0.0
  %1935 = vmatpush1.msra.mxu0 0.0
  %1936 = vmatprep.subr.mxu0 0.0
  %1937 = vmatpush1.msra.mxu0 0.0
  %1938 = vmatprep.subr.mxu0 0.0
  %1939 = vmatpush1.msra.mxu0 0.0
  %1940 = vmatprep.subr.mxu0 0.0
  %1941 = vmatpush1.msra.mxu0 0.0
  %1942 = vmatprep.subr.mxu0 0.0
  %1943 = vmatpush1.msra.mxu0 0.0
  %1944 = vmatprep.subr.mxu0 0.0
  %1945 = vmatpush1.msra.mxu0 0.0
  %1946 = vmatprep.subr.mxu0 0.0
  %1947 = vmatpush1.msra.mxu0 0.0
  %1948 = vmatprep.subr.mxu0 0.0
  %1949 = vmatpush1.msra.mxu0 0.0
  %1950 = vmatprep.subr.mxu0 0.0
  %1951 = vmatpush1.msra.mxu0 0.0
  %1952 = vmatprep.subr.mxu0 0.0
  %1953 = vmatpush1.msra.mxu0 0.0
  %1954 = vmatprep.subr.mxu0 0.0
  %1955 = vmatpush1.msra.mxu0 0.0
  %1956 = vmatprep.subr.mxu0 0.0
  %1957 = vmatpush1.msra.mxu0 0.0
  %1958 = vmatprep.subr.mxu0 0.0
  %1959 = vmatpush1.msra.mxu0 0.0
  %1960 = vmatprep.subr.mxu0 0.0
  %1961 = vmatpush1.msra.mxu0 0.0
  %1962 = vmatprep.subr.mxu0 0.0
  %1963 = vmatpush1.msra.mxu0 0.0
  %1964 = vmatprep.mubr.f32.mxu0 0.0
  %1965 = vmatmul.mubr.f32.gmra.mrb[0].mxu0 %v1898
  %v1966 = vpop.f32.mrb[0].mxu0
  %v1967 = vadd.f32 0.0, %v1966
  %v1968 = vpop.f32.mrb[0].mxu0
  %1969 = vdwg.mxu0
  %1971 = vrot.lane.b32.xlu0 %v1967, 32
  %v1972 = vpop.permute.xlu0 %1971
  %vm1974 = vcmask 392448
  %1975 = vst.msk [vmem:[#allocation2] sm:$0xff] %vm1974, %v1972
  %1976 = vrot.lane.b32.xlu0 %v415, 80
  %v1977 = vpop.permute.xlu0 %1976
  %1978 = vrot.lane.b32.xlu0 %v391, 80
  %v1979 = vpop.permute.xlu0 %1978
  %1980 = vrot.lane.b32.xlu0 %v396, 80
  %v1981 = vpop.permute.xlu0 %1980
  %v1982 = vsel %vm440, %v1977, 0
  %v1984 = vsel %vm440, %v1979, 0
  %v1986 = vsel %vm440, %v1981, 0
  %1988 = vmatprep.subr.mxu0 0.0
  %1989 = vmatpush1.xpose.msra.mxu0 %v1984
  %1990 = vmatprep.subr.mxu0 0.0
  %1991 = vmatpush1.xpose.msra.mxu0 %v1986
  %1992 = vmatprep.subr.mxu0 0.0
  %1993 = vmatpush1.xpose.msra.mxu0 0.0
  %1994 = vmatprep.subr.mxu0 0.0
  %1995 = vmatpush1.xpose.msra.mxu0 0.0
  %1996 = vmatprep.subr.mxu0 0.0
  %1997 = vmatpush1.xpose.msra.mxu0 0.0
  %1998 = vmatprep.subr.mxu0 0.0
  %1999 = vmatpush1.xpose.msra.mxu0 0.0
  %2000 = vmatprep.subr.mxu0 0.0
  %2001 = vmatpush1.xpose.msra.mxu0 0.0
  %2002 = vmatprep.subr.mxu0 0.0
  %2003 = vmatpush1.xpose.msra.mxu0 0.0
  %2004 = vmatprep.subr.mxu0 0.0
  %2005 = vmatpush1.xpose.msra.mxu0 0.0
  %2006 = vmatprep.subr.mxu0 0.0
  %2007 = vmatpush1.xpose.msra.mxu0 0.0
  %2008 = vmatprep.subr.mxu0 0.0
  %2009 = vmatpush1.xpose.msra.mxu0 0.0
  %2010 = vmatprep.subr.mxu0 0.0
  %2011 = vmatpush1.xpose.msra.mxu0 0.0
  %2012 = vmatprep.subr.mxu0 0.0
  %2013 = vmatpush1.xpose.msra.mxu0 0.0
  %2014 = vmatprep.subr.mxu0 0.0
  %2015 = vmatpush1.xpose.msra.mxu0 0.0
  %2016 = vmatprep.subr.mxu0 0.0
  %2017 = vmatpush1.xpose.msra.mxu0 0.0
  %2018 = vmatprep.subr.mxu0 0.0
  %2019 = vmatpush1.xpose.msra.mxu0 0.0
  %2020 = vmatprep.subr.mxu0 0.0
  %2021 = vmatpush1.xpose.msra.mxu0 0.0
  %2022 = vmatprep.subr.mxu0 0.0
  %2023 = vmatpush1.xpose.msra.mxu0 0.0
  %2024 = vmatprep.subr.mxu0 0.0
  %2025 = vmatpush1.xpose.msra.mxu0 0.0
  %2026 = vmatprep.subr.mxu0 0.0
  %2027 = vmatpush1.xpose.msra.mxu0 0.0
  %2028 = vmatprep.subr.mxu0 0.0
  %2029 = vmatpush1.xpose.msra.mxu0 0.0
  %2030 = vmatprep.subr.mxu0 0.0
  %2031 = vmatpush1.xpose.msra.mxu0 0.0
  %2032 = vmatprep.subr.mxu0 0.0
  %2033 = vmatpush1.xpose.msra.mxu0 0.0
  %2034 = vmatprep.subr.mxu0 0.0
  %2035 = vmatpush1.xpose.msra.mxu0 0.0
  %2036 = vmatprep.subr.mxu0 0.0
  %2037 = vmatpush1.xpose.msra.mxu0 0.0
  %2038 = vmatprep.subr.mxu0 0.0
  %2039 = vmatpush1.xpose.msra.mxu0 0.0
  %2040 = vmatprep.subr.mxu0 0.0
  %2041 = vmatpush1.xpose.msra.mxu0 0.0
  %2042 = vmatprep.subr.mxu0 0.0
  %2043 = vmatpush1.xpose.msra.mxu0 0.0
  %2044 = vmatprep.subr.mxu0 0.0
  %2045 = vmatpush1.xpose.msra.mxu0 0.0
  %2046 = vmatprep.subr.mxu0 0.0
  %2047 = vmatpush1.xpose.msra.mxu0 0.0
  %2048 = vmatprep.subr.mxu0 0.0
  %2049 = vmatpush1.xpose.msra.mxu0 0.0
  %2050 = vmatprep.subr.mxu0 0.0
  %2051 = vmatpush1.xpose.msra.mxu0 0.0
  %2052 = vmatprep.mubr.f32.mxu0 0.0
  %2053 = vmatmul.mubr.f32.gmra.mrb[0].mxu0 %v1982
  %v2054 = vpop.f32.mrb[0].mxu0
  %v2055 = vadd.f32 0.0, %v2054
  %v2056 = vpop.f32.mrb[0].mxu0
  %2057 = vdwg.mxu0
  %v2059 = vcombine.high %v2055, %v2055
  %v2061 = vunpack.c.l.s4 1966171168
  %v2062 = vunpack.c.0.s8 %v2061
  %v2063 = vlaneseq
  %v2064 = vshrl.u32 %v2063, 7
  %v2065 = vsub.s32 %v2062, %v2064
  %v2066 = vrot.slane %v2055, %v2065
  %v2068 = vunpack.c.l.s4 1966171168
  %v2069 = vunpack.c.0.s8 %v2068
  %v2070 = vlaneseq
  %v2071 = vshrl.u32 %v2070, 7
  %v2072 = vsub.s32 %v2069, %v2071
  %v2073 = vrot.slane %v2059, %v2072
  %v2074 = vcombine.high %v2066, %v2066
  %v2075 = vcombine.high %v2073, %v2073
  %v2077 = vunpack.c.l.s4 1966171168
  %v2078 = vunpack.c.0.s8 %v2077
  %v2079 = vlaneseq
  %v2080 = vshrl.u32 %v2079, 7
  %v2081 = vsub.s32 %v2078, %v2080
  %v2082 = vrot.slane %v2066, %v2081
  %v2084 = vunpack.c.l.s4 1966171168
  %v2085 = vunpack.c.0.s8 %v2084
  %v2086 = vlaneseq
  %v2087 = vshrl.u32 %v2086, 7
  %v2088 = vsub.s32 %v2085, %v2087
  %v2089 = vrot.slane %v2073, %v2088
  %v2091 = vunpack.c.l.s4 1966171168
  %v2092 = vunpack.c.0.s8 %v2091
  %v2093 = vlaneseq
  %v2094 = vshrl.u32 %v2093, 7
  %v2095 = vsub.s32 %v2092, %v2094
  %v2096 = vrot.slane %v2074, %v2095
  %v2098 = vunpack.c.l.s4 1966171168
  %v2099 = vunpack.c.0.s8 %v2098
  %v2100 = vlaneseq
  %v2101 = vshrl.u32 %v2100, 7
  %v2102 = vsub.s32 %v2099, %v2101
  %v2103 = vrot.slane %v2075, %v2102
  %v2104 = vcombine.high %v2082, %v2082
  %v2105 = vcombine.high %v2089, %v2089
  %v2106 = vcombine.high %v2096, %v2096
  %v2107 = vcombine.high %v2103, %v2103
  %v2108 = vlaneseq
  %v2109 = vshrl.u32 %v2108, 7
  %v2110 = vsub.s32 0, %v2109
  %v2111 = vrot.slane %v2082, %v2110
  %v2112 = vlaneseq
  %v2113 = vshrl.u32 %v2112, 7
  %v2114 = vsub.s32 0, %v2113
  %v2115 = vrot.slane %v2096, %v2114
  %v2116 = vlaneseq
  %v2117 = vshrl.u32 %v2116, 7
  %v2118 = vsub.s32 0, %v2117
  %v2119 = vrot.slane %v2104, %v2118
  %v2120 = vlaneseq
  %v2121 = vshrl.u32 %v2120, 7
  %v2122 = vsub.s32 0, %v2121
  %v2123 = vrot.slane %v2106, %v2122
  %v2124 = vlaneseq
  %v2125 = vshrl.u32 %v2124, 7
  %v2126 = vsub.s32 0, %v2125
  %v2127 = vrot.slane %v2089, %v2126
  %v2128 = vlaneseq
  %v2129 = vshrl.u32 %v2128, 7
  %v2130 = vsub.s32 0, %v2129
  %v2131 = vrot.slane %v2103, %v2130
  %v2132 = vlaneseq
  %v2133 = vshrl.u32 %v2132, 7
  %v2134 = vsub.s32 0, %v2133
  %v2135 = vrot.slane %v2105, %v2134
  %v2136 = vlaneseq
  %v2137 = vshrl.u32 %v2136, 7
  %v2138 = vsub.s32 0, %v2137
  %v2139 = vrot.slane %v2107, %v2138
  %v2148 = vmul.f32 %v2111, %v418
  %v2149 = vmul.f32 %v2111, %v419
  %v2150 = vmul.f32 %v2115, %v420
  %v2151 = vmul.f32 %v2115, %v421
  %v2152 = vmul.f32 %v2119, %v422
  %v2153 = vmul.f32 %v2119, %v423
  %v2154 = vmul.f32 %v2123, %v424
  %v2155 = vmul.f32 %v2123, %v425
  %v2156 = vmul.f32 %v2127, %v426
  %v2157 = vmul.f32 %v2127, %v427
  %v2158 = vmul.f32 %v2131, %v428
  %v2159 = vmul.f32 %v2131, %v429
  %v2160 = vmul.f32 %v2135, %v430
  %v2161 = vmul.f32 %v2135, %v431
  %v2162 = vmul.f32 %v2139, %v432
  %v2163 = vmul.f32 %v2139, %v433
  %v2164 = vsel %vm440, %v2148, 0.0
  %2165 = vadd.xlane.f32.xlu0 %v2164
  %v2166 = vpop.xlane.xlu0 %2165
  %v2167 = vsel %vm440, %v2149, 0.0
  %2168 = vadd.xlane.f32.xlu0 %v2167
  %v2169 = vpop.xlane.xlu0 %2168
  %v2170 = vsel %vm440, %v2150, 0.0
  %2171 = vadd.xlane.f32.xlu0 %v2170
  %v2172 = vpop.xlane.xlu0 %2171
  %v2173 = vsel %vm440, %v2151, 0.0
  %2174 = vadd.xlane.f32.xlu0 %v2173
  %v2175 = vpop.xlane.xlu0 %2174
  %v2176 = vsel %vm440, %v2152, 0.0
  %2177 = vadd.xlane.f32.xlu0 %v2176
  %v2178 = vpop.xlane.xlu0 %2177
  %v2179 = vsel %vm440, %v2153, 0.0
  %2180 = vadd.xlane.f32.xlu0 %v2179
  %v2181 = vpop.xlane.xlu0 %2180
  %v2182 = vsel %vm440, %v2154, 0.0
  %2183 = vadd.xlane.f32.xlu0 %v2182
  %v2184 = vpop.xlane.xlu0 %2183
  %v2185 = vsel %vm440, %v2155, 0.0
  %2186 = vadd.xlane.f32.xlu0 %v2185
  %v2187 = vpop.xlane.xlu0 %2186
  %v2188 = vsel %vm440, %v2156, 0.0
  %2189 = vadd.xlane.f32.xlu0 %v2188
  %v2190 = vpop.xlane.xlu0 %2189
  %v2191 = vsel %vm440, %v2157, 0.0
  %2192 = vadd.xlane.f32.xlu0 %v2191
  %v2193 = vpop.xlane.xlu0 %2192
  %v2194 = vsel %vm440, %v2158, 0.0
  %2195 = vadd.xlane.f32.xlu0 %v2194
  %v2196 = vpop.xlane.xlu0 %2195
  %v2197 = vsel %vm440, %v2159, 0.0
  %2198 = vadd.xlane.f32.xlu0 %v2197
  %v2199 = vpop.xlane.xlu0 %2198
  %v2200 = vsel %vm440, %v2160, 0.0
  %2201 = vadd.xlane.f32.xlu0 %v2200
  %v2202 = vpop.xlane.xlu0 %2201
  %v2203 = vsel %vm440, %v2161, 0.0
  %2204 = vadd.xlane.f32.xlu0 %v2203
  %v2205 = vpop.xlane.xlu0 %2204
  %v2206 = vsel %vm440, %v2162, 0.0
  %2207 = vadd.xlane.f32.xlu0 %v2206
  %v2208 = vpop.xlane.xlu0 %2207
  %v2209 = vsel %vm440, %v2163, 0.0
  %2210 = vadd.xlane.f32.xlu0 %v2209
  %v2211 = vpop.xlane.xlu0 %2210
  %2212 = vrot.lane.b32.xlu0 %v406, 80
  %v2213 = vpop.permute.xlu0 %2212
  %2214 = vrot.lane.b32.xlu0 %v304, 80
  %v2215 = vpop.permute.xlu0 %2214
  %2216 = vrot.lane.b32.xlu0 %v436, 80
  %v2217 = vpop.permute.xlu0 %2216
  %v2234 = vlaneseq
  %v2235 = vshrl.u32 %v2234, 7
  %v2236 = vsub.s32 %v691, %v2235
  %v2237 = vrot.slane %v2166, %v2236
  %v2238 = vlaneseq
  %v2239 = vshrl.u32 %v2238, 7
  %v2240 = vsub.s32 %v696, %v2239
  %v2241 = vrot.slane %v2169, %v2240
  %v2242 = vsel %vm701, %v2241, %v2237
  %v2243 = vlaneseq
  %v2244 = vshrl.u32 %v2243, 7
  %v2245 = vsub.s32 %v691, %v2244
  %v2246 = vrot.slane %v2172, %v2245
  %v2247 = vlaneseq
  %v2248 = vshrl.u32 %v2247, 7
  %v2249 = vsub.s32 %v696, %v2248
  %v2250 = vrot.slane %v2175, %v2249
  %v2251 = vsel %vm701, %v2250, %v2246
  %v2252 = vlaneseq
  %v2253 = vshrl.u32 %v2252, 7
  %v2254 = vsub.s32 %v691, %v2253
  %v2255 = vrot.slane %v2178, %v2254
  %v2256 = vlaneseq
  %v2257 = vshrl.u32 %v2256, 7
  %v2258 = vsub.s32 %v696, %v2257
  %v2259 = vrot.slane %v2181, %v2258
  %v2260 = vsel %vm701, %v2259, %v2255
  %v2261 = vlaneseq
  %v2262 = vshrl.u32 %v2261, 7
  %v2263 = vsub.s32 %v691, %v2262
  %v2264 = vrot.slane %v2184, %v2263
  %v2265 = vlaneseq
  %v2266 = vshrl.u32 %v2265, 7
  %v2267 = vsub.s32 %v696, %v2266
  %v2268 = vrot.slane %v2187, %v2267
  %v2269 = vsel %vm701, %v2268, %v2264
  %v2270 = vlaneseq
  %v2271 = vshrl.u32 %v2270, 7
  %v2272 = vsub.s32 %v691, %v2271
  %v2273 = vrot.slane %v2190, %v2272
  %v2274 = vlaneseq
  %v2275 = vshrl.u32 %v2274, 7
  %v2276 = vsub.s32 %v696, %v2275
  %v2277 = vrot.slane %v2193, %v2276
  %v2278 = vsel %vm701, %v2277, %v2273
  %v2279 = vlaneseq
  %v2280 = vshrl.u32 %v2279, 7
  %v2281 = vsub.s32 %v691, %v2280
  %v2282 = vrot.slane %v2196, %v2281
  %v2283 = vlaneseq
  %v2284 = vshrl.u32 %v2283, 7
  %v2285 = vsub.s32 %v696, %v2284
  %v2286 = vrot.slane %v2199, %v2285
  %v2287 = vsel %vm701, %v2286, %v2282
  %v2288 = vlaneseq
  %v2289 = vshrl.u32 %v2288, 7
  %v2290 = vsub.s32 %v691, %v2289
  %v2291 = vrot.slane %v2202, %v2290
  %v2292 = vlaneseq
  %v2293 = vshrl.u32 %v2292, 7
  %v2294 = vsub.s32 %v696, %v2293
  %v2295 = vrot.slane %v2205, %v2294
  %v2296 = vsel %vm701, %v2295, %v2291
  %v2297 = vlaneseq
  %v2298 = vshrl.u32 %v2297, 7
  %v2299 = vsub.s32 %v691, %v2298
  %v2300 = vrot.slane %v2208, %v2299
  %v2301 = vlaneseq
  %v2302 = vshrl.u32 %v2301, 7
  %v2303 = vsub.s32 %v696, %v2302
  %v2304 = vrot.slane %v2211, %v2303
  %v2305 = vsel %vm701, %v2304, %v2300
  %v2306 = vsel %vm766, %v2251, %v2242
  %v2307 = vsel %vm768, %v2260, %v2306
  %v2308 = vsel %vm770, %v2269, %v2307
  %v2309 = vsel %vm772, %v2278, %v2308
  %v2310 = vsel %vm774, %v2287, %v2309
  %v2311 = vsel %vm776, %v2296, %v2310
  %v2312 = vsel %vm778, %v2305, %v2311
  %v2314 = vsel %vm440, %v2213, 0
  %v2316 = vsel %vm440, %v2215, 0
  %v2318 = vsel %vm440, %v2217, 0
  %2320 = vmatprep.subr.mxu0 0.0
  %2321 = vmatpush1.xpose.msra.mxu0 %v2316
  %2322 = vmatprep.subr.mxu0 0.0
  %2323 = vmatpush1.xpose.msra.mxu0 %v2318
  %2324 = vmatprep.subr.mxu0 0.0
  %2325 = vmatpush1.xpose.msra.mxu0 0.0
  %2326 = vmatprep.subr.mxu0 0.0
  %2327 = vmatpush1.xpose.msra.mxu0 0.0
  %2328 = vmatprep.subr.mxu0 0.0
  %2329 = vmatpush1.xpose.msra.mxu0 0.0
  %2330 = vmatprep.subr.mxu0 0.0
  %2331 = vmatpush1.xpose.msra.mxu0 0.0
  %2332 = vmatprep.subr.mxu0 0.0
  %2333 = vmatpush1.xpose.msra.mxu0 0.0
  %2334 = vmatprep.subr.mxu0 0.0
  %2335 = vmatpush1.xpose.msra.mxu0 0.0
  %2336 = vmatprep.subr.mxu0 0.0
  %2337 = vmatpush1.xpose.msra.mxu0 0.0
  %2338 = vmatprep.subr.mxu0 0.0
  %2339 = vmatpush1.xpose.msra.mxu0 0.0
  %2340 = vmatprep.subr.mxu0 0.0
  %2341 = vmatpush1.xpose.msra.mxu0 0.0
  %2342 = vmatprep.subr.mxu0 0.0
  %2343 = vmatpush1.xpose.msra.mxu0 0.0
  %2344 = vmatprep.subr.mxu0 0.0
  %2345 = vmatpush1.xpose.msra.mxu0 0.0
  %2346 = vmatprep.subr.mxu0 0.0
  %2347 = vmatpush1.xpose.msra.mxu0 0.0
  %2348 = vmatprep.subr.mxu0 0.0
  %2349 = vmatpush1.xpose.msra.mxu0 0.0
  %2350 = vmatprep.subr.mxu0 0.0
  %2351 = vmatpush1.xpose.msra.mxu0 0.0
  %2352 = vmatprep.subr.mxu0 0.0
  %2353 = vmatpush1.xpose.msra.mxu0 0.0
  %2354 = vmatprep.subr.mxu0 0.0
  %2355 = vmatpush1.xpose.msra.mxu0 0.0
  %2356 = vmatprep.subr.mxu0 0.0
  %2357 = vmatpush1.xpose.msra.mxu0 0.0
  %2358 = vmatprep.subr.mxu0 0.0
  %2359 = vmatpush1.xpose.msra.mxu0 0.0
  %2360 = vmatprep.subr.mxu0 0.0
  %2361 = vmatpush1.xpose.msra.mxu0 0.0
  %2362 = vmatprep.subr.mxu0 0.0
  %2363 = vmatpush1.xpose.msra.mxu0 0.0
  %2364 = vmatprep.subr.mxu0 0.0
  %2365 = vmatpush1.xpose.msra.mxu0 0.0
  %2366 = vmatprep.subr.mxu0 0.0
  %2367 = vmatpush1.xpose.msra.mxu0 0.0
  %2368 = vmatprep.subr.mxu0 0.0
  %2369 = vmatpush1.xpose.msra.mxu0 0.0
  %2370 = vmatprep.subr.mxu0 0.0
  %2371 = vmatpush1.xpose.msra.mxu0 0.0
  %2372 = vmatprep.subr.mxu0 0.0
  %2373 = vmatpush1.xpose.msra.mxu0 0.0
  %2374 = vmatprep.subr.mxu0 0.0
  %2375 = vmatpush1.xpose.msra.mxu0 0.0
  %2376 = vmatprep.subr.mxu0 0.0
  %2377 = vmatpush1.xpose.msra.mxu0 0.0
  %2378 = vmatprep.subr.mxu0 0.0
  %2379 = vmatpush1.xpose.msra.mxu0 0.0
  %2380 = vmatprep.subr.mxu0 0.0
  %2381 = vmatpush1.xpose.msra.mxu0 0.0
  %2382 = vmatprep.subr.mxu0 0.0
  %2383 = vmatpush1.xpose.msra.mxu0 0.0
  %2384 = vmatprep.mubr.f32.mxu0 0.0
  %2385 = vmatmul.mubr.f32.gmra.mrb[0].mxu0 %v2314
  %v2386 = vpop.f32.mrb[0].mxu0
  %v2387 = vadd.f32 %v2312, %v2386
  %v2388 = vpop.f32.mrb[0].mxu0
  %2389 = vdwg.mxu0
  %v2390 = vmul.f32 %v2387, 0.25
  %v2391 = vadd.f32 %v2390, %v417
  %v2392 = vsel %vm440, %v2391, -inf
  %2393 = vmax.xlane.f32.xlu0 %v2392
  %v2394 = vpop.xlane.xlu0 %2393
  %v2395 = vsub.f32 %v2391, %v2394
  %v2396 = vmul.f32 %v2395, 1.442695
  %v2397 = vpow.pop %v2396
  %v2398 = vsel %vm440, %v2397, 0.0
  %2399 = vadd.xlane.f32.xlu0 %v2398
  %v2400 = vpop.xlane.xlu0 %2399
  %v2401 = vrcp.pop %v2400
  %v2402 = vmul.f32 %v2397, %v2401
  %2403 = vrot.lane.b32.xlu0 %v304, 16
  %v2404 = vpop.permute.xlu0 %2403
  %2405 = vrot.lane.b32.xlu0 %v439, 16
  %v2406 = vpop.permute.xlu0 %2405
  %v2410 = vsel %vm440, %v2402, 0
  %2412 = vmatprep.subr.mxu0 0.0
  %2413 = vmatpush1.msra.mxu0 %v2404
  %2414 = vmatprep.subr.mxu0 0.0
  %2415 = vmatpush1.msra.mxu0 %v2406
  %2416 = vmatprep.subr.mxu0 0.0
  %2417 = vmatpush1.msra.mxu0 0.0
  %2418 = vmatprep.subr.mxu0 0.0
  %2419 = vmatpush1.msra.mxu0 0.0
  %2420 = vmatprep.subr.mxu0 0.0
  %2421 = vmatpush1.msra.mxu0 0.0
  %2422 = vmatprep.subr.mxu0 0.0
  %2423 = vmatpush1.msra.mxu0 0.0
  %2424 = vmatprep.subr.mxu0 0.0
  %2425 = vmatpush1.msra.mxu0 0.0
  %2426 = vmatprep.subr.mxu0 0.0
  %2427 = vmatpush1.msra.mxu0 0.0
  %2428 = vmatprep.subr.mxu0 0.0
  %2429 = vmatpush1.msra.mxu0 0.0
  %2430 = vmatprep.subr.mxu0 0.0
  %2431 = vmatpush1.msra.mxu0 0.0
  %2432 = vmatprep.subr.mxu0 0.0
  %2433 = vmatpush1.msra.mxu0 0.0
  %2434 = vmatprep.subr.mxu0 0.0
  %2435 = vmatpush1.msra.mxu0 0.0
  %2436 = vmatprep.subr.mxu0 0.0
  %2437 = vmatpush1.msra.mxu0 0.0
  %2438 = vmatprep.subr.mxu0 0.0
  %2439 = vmatpush1.msra.mxu0 0.0
  %2440 = vmatprep.subr.mxu0 0.0
  %2441 = vmatpush1.msra.mxu0 0.0
  %2442 = vmatprep.subr.mxu0 0.0
  %2443 = vmatpush1.msra.mxu0 0.0
  %2444 = vmatprep.subr.mxu0 0.0
  %2445 = vmatpush1.msra.mxu0 0.0
  %2446 = vmatprep.subr.mxu0 0.0
  %2447 = vmatpush1.msra.mxu0 0.0
  %2448 = vmatprep.subr.mxu0 0.0
  %2449 = vmatpush1.msra.mxu0 0.0
  %2450 = vmatprep.subr.mxu0 0.0
  %2451 = vmatpush1.msra.mxu0 0.0
  %2452 = vmatprep.subr.mxu0 0.0
  %2453 = vmatpush1.msra.mxu0 0.0
  %2454 = vmatprep.subr.mxu0 0.0
  %2455 = vmatpush1.msra.mxu0 0.0
  %2456 = vmatprep.subr.mxu0 0.0
  %2457 = vmatpush1.msra.mxu0 0.0
  %2458 = vmatprep.subr.mxu0 0.0
  %2459 = vmatpush1.msra.mxu0 0.0
  %2460 = vmatprep.subr.mxu0 0.0
  %2461 = vmatpush1.msra.mxu0 0.0
  %2462 = vmatprep.subr.mxu0 0.0
  %2463 = vmatpush1.msra.mxu0 0.0
  %2464 = vmatprep.subr.mxu0 0.0
  %2465 = vmatpush1.msra.mxu0 0.0
  %2466 = vmatprep.subr.mxu0 0.0
  %2467 = vmatpush1.msra.mxu0 0.0
  %2468 = vmatprep.subr.mxu0 0.0
  %2469 = vmatpush1.msra.mxu0 0.0
  %2470 = vmatprep.subr.mxu0 0.0
  %2471 = vmatpush1.msra.mxu0 0.0
  %2472 = vmatprep.subr.mxu0 0.0
  %2473 = vmatpush1.msra.mxu0 0.0
  %2474 = vmatprep.subr.mxu0 0.0
  %2475 = vmatpush1.msra.mxu0 0.0
  %2476 = vmatprep.mubr.f32.mxu0 0.0
  %2477 = vmatmul.mubr.f32.gmra.mrb[0].mxu0 %v2410
  %v2478 = vpop.f32.mrb[0].mxu0
  %v2479 = vadd.f32 0.0, %v2478
  %v2480 = vpop.f32.mrb[0].mxu0
  %2481 = vdwg.mxu0
  %2483 = vrot.lane.b32.xlu0 %v2479, 48
  %v2484 = vpop.permute.xlu0 %2483
  %vm2486 = vcmask 523648
  %2487 = vst.msk [vmem:[#allocation2] sm:$0xff] %vm2486, %v2484
  %2489 = vrot.lane.b32.xlu0 %v223, 64
  %v2490 = vpop.permute.xlu0 %2489
  %2492 = vrot.lane.b32.xlu0 %v225, 64
  %v2493 = vpop.permute.xlu0 %2492
  %v2495 = vsel %vm440, %v416, 0
  %2497 = vmatprep.subr.mxu0 0.0
  %2498 = vmatpush1.xpose.msra.mxu0 %v445
  %2499 = vmatprep.subr.mxu0 0.0
  %2500 = vmatpush1.xpose.msra.mxu0 %v448
  %2501 = vmatprep.subr.mxu0 0.0
  %2502 = vmatpush1.xpose.msra.mxu0 0.0
  %2503 = vmatprep.subr.mxu0 0.0
  %2504 = vmatpush1.xpose.msra.mxu0 0.0
  %2505 = vmatprep.subr.mxu0 0.0
  %2506 = vmatpush1.xpose.msra.mxu0 0.0
  %2507 = vmatprep.subr.mxu0 0.0
  %2508 = vmatpush1.xpose.msra.mxu0 0.0
  %2509 = vmatprep.subr.mxu0 0.0
  %2510 = vmatpush1.xpose.msra.mxu0 0.0
  %2511 = vmatprep.subr.mxu0 0.0
  %2512 = vmatpush1.xpose.msra.mxu0 0.0
  %2513 = vmatprep.subr.mxu0 0.0
  %2514 = vmatpush1.xpose.msra.mxu0 0.0
  %2515 = vmatprep.subr.mxu0 0.0
  %2516 = vmatpush1.xpose.msra.mxu0 0.0
  %2517 = vmatprep.subr.mxu0 0.0
  %2518 = vmatpush1.xpose.msra.mxu0 0.0
  %2519 = vmatprep.subr.mxu0 0.0
  %2520 = vmatpush1.xpose.msra.mxu0 0.0
  %2521 = vmatprep.subr.mxu0 0.0
  %2522 = vmatpush1.xpose.msra.mxu0 0.0
  %2523 = vmatprep.subr.mxu0 0.0
  %2524 = vmatpush1.xpose.msra.mxu0 0.0
  %2525 = vmatprep.subr.mxu0 0.0
  %2526 = vmatpush1.xpose.msra.mxu0 0.0
  %2527 = vmatprep.subr.mxu0 0.0
  %2528 = vmatpush1.xpose.msra.mxu0 0.0
  %2529 = vmatprep.subr.mxu0 0.0
  %2530 = vmatpush1.xpose.msra.mxu0 0.0
  %2531 = vmatprep.subr.mxu0 0.0
  %2532 = vmatpush1.xpose.msra.mxu0 0.0
  %2533 = vmatprep.subr.mxu0 0.0
  %2534 = vmatpush1.xpose.msra.mxu0 0.0
  %2535 = vmatprep.subr.mxu0 0.0
  %2536 = vmatpush1.xpose.msra.mxu0 0.0
  %2537 = vmatprep.subr.mxu0 0.0
  %2538 = vmatpush1.xpose.msra.mxu0 0.0
  %2539 = vmatprep.subr.mxu0 0.0
  %2540 = vmatpush1.xpose.msra.mxu0 0.0
  %2541 = vmatprep.subr.mxu0 0.0
  %2542 = vmatpush1.xpose.msra.mxu0 0.0
  %2543 = vmatprep.subr.mxu0 0.0
  %2544 = vmatpush1.xpose.msra.mxu0 0.0
  %2545 = vmatprep.subr.mxu0 0.0
  %2546 = vmatpush1.xpose.msra.mxu0 0.0
  %2547 = vmatprep.subr.mxu0 0.0
  %2548 = vmatpush1.xpose.msra.mxu0 0.0
  %2549 = vmatprep.subr.mxu0 0.0
  %2550 = vmatpush1.xpose.msra.mxu0 0.0
  %2551 = vmatprep.subr.mxu0 0.0
  %2552 = vmatpush1.xpose.msra.mxu0 0.0
  %2553 = vmatprep.subr.mxu0 0.0
  %2554 = vmatpush1.xpose.msra.mxu0 0.0
  %2555 = vmatprep.subr.mxu0 0.0
  %2556 = vmatpush1.xpose.msra.mxu0 0.0
  %2557 = vmatprep.subr.mxu0 0.0
  %2558 = vmatpush1.xpose.msra.mxu0 0.0
  %2559 = vmatprep.subr.mxu0 0.0
  %2560 = vmatpush1.xpose.msra.mxu0 0.0
  %2561 = vmatprep.mubr.f32.mxu0 0.0
  %2562 = vmatmul.mubr.f32.gmra.mrb[0].mxu0 %v2495
  %v2563 = vpop.f32.mrb[0].mxu0
  %v2564 = vadd.f32 0.0, %v2563
  %v2565 = vpop.f32.mrb[0].mxu0
  %2566 = vdwg.mxu0
  %v2568 = vcombine.high %v2564, %v2564
  %v2570 = vunpack.c.l.s4 1966171168
  %v2571 = vunpack.c.0.s8 %v2570
  %v2572 = vlaneseq
  %v2573 = vshrl.u32 %v2572, 7
  %v2574 = vsub.s32 %v2571, %v2573
  %v2575 = vrot.slane %v2564, %v2574
  %v2577 = vunpack.c.l.s4 1966171168
  %v2578 = vunpack.c.0.s8 %v2577
  %v2579 = vlaneseq
  %v2580 = vshrl.u32 %v2579, 7
  %v2581 = vsub.s32 %v2578, %v2580
  %v2582 = vrot.slane %v2568, %v2581
  %v2583 = vcombine.high %v2575, %v2575
  %v2584 = vcombine.high %v2582, %v2582
  %v2586 = vunpack.c.l.s4 1966171168
  %v2587 = vunpack.c.0.s8 %v2586
  %v2588 = vlaneseq
  %v2589 = vshrl.u32 %v2588, 7
  %v2590 = vsub.s32 %v2587, %v2589
  %v2591 = vrot.slane %v2575, %v2590
  %v2593 = vunpack.c.l.s4 1966171168
  %v2594 = vunpack.c.0.s8 %v2593
  %v2595 = vlaneseq
  %v2596 = vshrl.u32 %v2595, 7
  %v2597 = vsub.s32 %v2594, %v2596
  %v2598 = vrot.slane %v2582, %v2597
  %v2600 = vunpack.c.l.s4 1966171168
  %v2601 = vunpack.c.0.s8 %v2600
  %v2602 = vlaneseq
  %v2603 = vshrl.u32 %v2602, 7
  %v2604 = vsub.s32 %v2601, %v2603
  %v2605 = vrot.slane %v2583, %v2604
  %v2607 = vunpack.c.l.s4 1966171168
  %v2608 = vunpack.c.0.s8 %v2607
  %v2609 = vlaneseq
  %v2610 = vshrl.u32 %v2609, 7
  %v2611 = vsub.s32 %v2608, %v2610
  %v2612 = vrot.slane %v2584, %v2611
  %v2613 = vcombine.high %v2591, %v2591
  %v2614 = vcombine.high %v2598, %v2598
  %v2615 = vcombine.high %v2605, %v2605
  %v2616 = vcombine.high %v2612, %v2612
  %v2617 = vlaneseq
  %v2618 = vshrl.u32 %v2617, 7
  %v2619 = vsub.s32 0, %v2618
  %v2620 = vrot.slane %v2591, %v2619
  %v2621 = vlaneseq
  %v2622 = vshrl.u32 %v2621, 7
  %v2623 = vsub.s32 0, %v2622
  %v2624 = vrot.slane %v2605, %v2623
  %v2625 = vlaneseq
  %v2626 = vshrl.u32 %v2625, 7
  %v2627 = vsub.s32 0, %v2626
  %v2628 = vrot.slane %v2613, %v2627
  %v2629 = vlaneseq
  %v2630 = vshrl.u32 %v2629, 7
  %v2631 = vsub.s32 0, %v2630
  %v2632 = vrot.slane %v2615, %v2631
  %v2633 = vlaneseq
  %v2634 = vshrl.u32 %v2633, 7
  %v2635 = vsub.s32 0, %v2634
  %v2636 = vrot.slane %v2598, %v2635
  %v2637 = vlaneseq
  %v2638 = vshrl.u32 %v2637, 7
  %v2639 = vsub.s32 0, %v2638
  %v2640 = vrot.slane %v2612, %v2639
  %v2641 = vlaneseq
  %v2642 = vshrl.u32 %v2641, 7
  %v2643 = vsub.s32 0, %v2642
  %v2644 = vrot.slane %v2614, %v2643
  %v2645 = vlaneseq
  %v2646 = vshrl.u32 %v2645, 7
  %v2647 = vsub.s32 0, %v2646
  %v2648 = vrot.slane %v2616, %v2647
  %v2657 = vmul.f32 %v2620, %v418
  %v2658 = vmul.f32 %v2620, %v419
  %v2659 = vmul.f32 %v2624, %v420
  %v2660 = vmul.f32 %v2624, %v421
  %v2661 = vmul.f32 %v2628, %v422
  %v2662 = vmul.f32 %v2628, %v423
  %v2663 = vmul.f32 %v2632, %v424
  %v2664 = vmul.f32 %v2632, %v425
  %v2665 = vmul.f32 %v2636, %v426
  %v2666 = vmul.f32 %v2636, %v427
  %v2667 = vmul.f32 %v2640, %v428
  %v2668 = vmul.f32 %v2640, %v429
  %v2669 = vmul.f32 %v2644, %v430
  %v2670 = vmul.f32 %v2644, %v431
  %v2671 = vmul.f32 %v2648, %v432
  %v2672 = vmul.f32 %v2648, %v433
  %v2673 = vsel %vm440, %v2657, 0.0
  %2674 = vadd.xlane.f32.xlu0 %v2673
  %v2675 = vpop.xlane.xlu0 %2674
  %v2676 = vsel %vm440, %v2658, 0.0
  %2677 = vadd.xlane.f32.xlu0 %v2676
  %v2678 = vpop.xlane.xlu0 %2677
  %v2679 = vsel %vm440, %v2659, 0.0
  %2680 = vadd.xlane.f32.xlu0 %v2679
  %v2681 = vpop.xlane.xlu0 %2680
  %v2682 = vsel %vm440, %v2660, 0.0
  %2683 = vadd.xlane.f32.xlu0 %v2682
  %v2684 = vpop.xlane.xlu0 %2683
  %v2685 = vsel %vm440, %v2661, 0.0
  %2686 = vadd.xlane.f32.xlu0 %v2685
  %v2687 = vpop.xlane.xlu0 %2686
  %v2688 = vsel %vm440, %v2662, 0.0
  %2689 = vadd.xlane.f32.xlu0 %v2688
  %v2690 = vpop.xlane.xlu0 %2689
  %v2691 = vsel %vm440, %v2663, 0.0
  %2692 = vadd.xlane.f32.xlu0 %v2691
  %v2693 = vpop.xlane.xlu0 %2692
  %v2694 = vsel %vm440, %v2664, 0.0
  %2695 = vadd.xlane.f32.xlu0 %v2694
  %v2696 = vpop.xlane.xlu0 %2695
  %v2697 = vsel %vm440, %v2665, 0.0
  %2698 = vadd.xlane.f32.xlu0 %v2697
  %v2699 = vpop.xlane.xlu0 %2698
  %v2700 = vsel %vm440, %v2666, 0.0
  %2701 = vadd.xlane.f32.xlu0 %v2700
  %v2702 = vpop.xlane.xlu0 %2701
  %v2703 = vsel %vm440, %v2667, 0.0
  %2704 = vadd.xlane.f32.xlu0 %v2703
  %v2705 = vpop.xlane.xlu0 %2704
  %v2706 = vsel %vm440, %v2668, 0.0
  %2707 = vadd.xlane.f32.xlu0 %v2706
  %v2708 = vpop.xlane.xlu0 %2707
  %v2709 = vsel %vm440, %v2669, 0.0
  %2710 = vadd.xlane.f32.xlu0 %v2709
  %v2711 = vpop.xlane.xlu0 %2710
  %v2712 = vsel %vm440, %v2670, 0.0
  %2713 = vadd.xlane.f32.xlu0 %v2712
  %v2714 = vpop.xlane.xlu0 %2713
  %v2715 = vsel %vm440, %v2671, 0.0
  %2716 = vadd.xlane.f32.xlu0 %v2715
  %v2717 = vpop.xlane.xlu0 %2716
  %v2718 = vsel %vm440, %v2672, 0.0
  %2719 = vadd.xlane.f32.xlu0 %v2718
  %v2720 = vpop.xlane.xlu0 %2719
  %v2737 = vlaneseq
  %v2738 = vshrl.u32 %v2737, 7
  %v2739 = vsub.s32 %v691, %v2738
  %v2740 = vrot.slane %v2675, %v2739
  %v2741 = vlaneseq
  %v2742 = vshrl.u32 %v2741, 7
  %v2743 = vsub.s32 %v696, %v2742
  %v2744 = vrot.slane %v2678, %v2743
  %v2745 = vsel %vm701, %v2744, %v2740
  %v2746 = vlaneseq
  %v2747 = vshrl.u32 %v2746, 7
  %v2748 = vsub.s32 %v691, %v2747
  %v2749 = vrot.slane %v2681, %v2748
  %v2750 = vlaneseq
  %v2751 = vshrl.u32 %v2750, 7
  %v2752 = vsub.s32 %v696, %v2751
  %v2753 = vrot.slane %v2684, %v2752
  %v2754 = vsel %vm701, %v2753, %v2749
  %v2755 = vlaneseq
  %v2756 = vshrl.u32 %v2755, 7
  %v2757 = vsub.s32 %v691, %v2756
  %v2758 = vrot.slane %v2687, %v2757
  %v2759 = vlaneseq
  %v2760 = vshrl.u32 %v2759, 7
  %v2761 = vsub.s32 %v696, %v2760
  %v2762 = vrot.slane %v2690, %v2761
  %v2763 = vsel %vm701, %v2762, %v2758
  %v2764 = vlaneseq
  %v2765 = vshrl.u32 %v2764, 7
  %v2766 = vsub.s32 %v691, %v2765
  %v2767 = vrot.slane %v2693, %v2766
  %v2768 = vlaneseq
  %v2769 = vshrl.u32 %v2768, 7
  %v2770 = vsub.s32 %v696, %v2769
  %v2771 = vrot.slane %v2696, %v2770
  %v2772 = vsel %vm701, %v2771, %v2767
  %v2773 = vlaneseq
  %v2774 = vshrl.u32 %v2773, 7
  %v2775 = vsub.s32 %v691, %v2774
  %v2776 = vrot.slane %v2699, %v2775
  %v2777 = vlaneseq
  %v2778 = vshrl.u32 %v2777, 7
  %v2779 = vsub.s32 %v696, %v2778
  %v2780 = vrot.slane %v2702, %v2779
  %v2781 = vsel %vm701, %v2780, %v2776
  %v2782 = vlaneseq
  %v2783 = vshrl.u32 %v2782, 7
  %v2784 = vsub.s32 %v691, %v2783
  %v2785 = vrot.slane %v2705, %v2784
  %v2786 = vlaneseq
  %v2787 = vshrl.u32 %v2786, 7
  %v2788 = vsub.s32 %v696, %v2787
  %v2789 = vrot.slane %v2708, %v2788
  %v2790 = vsel %vm701, %v2789, %v2785
  %v2791 = vlaneseq
  %v2792 = vshrl.u32 %v2791, 7
  %v2793 = vsub.s32 %v691, %v2792
  %v2794 = vrot.slane %v2711, %v2793
  %v2795 = vlaneseq
  %v2796 = vshrl.u32 %v2795, 7
  %v2797 = vsub.s32 %v696, %v2796
  %v2798 = vrot.slane %v2714, %v2797
  %v2799 = vsel %vm701, %v2798, %v2794
  %v2800 = vlaneseq
  %v2801 = vshrl.u32 %v2800, 7
  %v2802 = vsub.s32 %v691, %v2801
  %v2803 = vrot.slane %v2717, %v2802
  %v2804 = vlaneseq
  %v2805 = vshrl.u32 %v2804, 7
  %v2806 = vsub.s32 %v696, %v2805
  %v2807 = vrot.slane %v2720, %v2806
  %v2808 = vsel %vm701, %v2807, %v2803
  %v2809 = vsel %vm766, %v2754, %v2745
  %v2810 = vsel %vm768, %v2763, %v2809
  %v2811 = vsel %vm770, %v2772, %v2810
  %v2812 = vsel %vm772, %v2781, %v2811
  %v2813 = vsel %vm774, %v2790, %v2812
  %v2814 = vsel %vm776, %v2799, %v2813
  %v2815 = vsel %vm778, %v2808, %v2814
  %v2818 = vsel %vm440, %v407, 0
  %v2821 = vsel %vm440, %v309, 0
  %v2823 = vsel %vm440, %v2490, 0
  %2825 = vmatprep.subr.mxu0 0.0
  %2826 = vmatpush1.xpose.msra.mxu0 %v2821
  %2827 = vmatprep.subr.mxu0 0.0
  %2828 = vmatpush1.xpose.msra.mxu0 %v2823
  %2829 = vmatprep.subr.mxu0 0.0
  %2830 = vmatpush1.xpose.msra.mxu0 0.0
  %2831 = vmatprep.subr.mxu0 0.0
  %2832 = vmatpush1.xpose.msra.mxu0 0.0
  %2833 = vmatprep.subr.mxu0 0.0
  %2834 = vmatpush1.xpose.msra.mxu0 0.0
  %2835 = vmatprep.subr.mxu0 0.0
  %2836 = vmatpush1.xpose.msra.mxu0 0.0
  %2837 = vmatprep.subr.mxu0 0.0
  %2838 = vmatpush1.xpose.msra.mxu0 0.0
  %2839 = vmatprep.subr.mxu0 0.0
  %2840 = vmatpush1.xpose.msra.mxu0 0.0
  %2841 = vmatprep.subr.mxu0 0.0
  %2842 = vmatpush1.xpose.msra.mxu0 0.0
  %2843 = vmatprep.subr.mxu0 0.0
  %2844 = vmatpush1.xpose.msra.mxu0 0.0
  %2845 = vmatprep.subr.mxu0 0.0
  %2846 = vmatpush1.xpose.msra.mxu0 0.0
  %2847 = vmatprep.subr.mxu0 0.0
  %2848 = vmatpush1.xpose.msra.mxu0 0.0
  %2849 = vmatprep.subr.mxu0 0.0
  %2850 = vmatpush1.xpose.msra.mxu0 0.0
  %2851 = vmatprep.subr.mxu0 0.0
  %2852 = vmatpush1.xpose.msra.mxu0 0.0
  %2853 = vmatprep.subr.mxu0 0.0
  %2854 = vmatpush1.xpose.msra.mxu0 0.0
  %2855 = vmatprep.subr.mxu0 0.0
  %2856 = vmatpush1.xpose.msra.mxu0 0.0
  %2857 = vmatprep.subr.mxu0 0.0
  %2858 = vmatpush1.xpose.msra.mxu0 0.0
  %2859 = vmatprep.subr.mxu0 0.0
  %2860 = vmatpush1.xpose.msra.mxu0 0.0
  %2861 = vmatprep.subr.mxu0 0.0
  %2862 = vmatpush1.xpose.msra.mxu0 0.0
  %2863 = vmatprep.subr.mxu0 0.0
  %2864 = vmatpush1.xpose.msra.mxu0 0.0
  %2865 = vmatprep.subr.mxu0 0.0
  %2866 = vmatpush1.xpose.msra.mxu0 0.0
  %2867 = vmatprep.subr.mxu0 0.0
  %2868 = vmatpush1.xpose.msra.mxu0 0.0
  %2869 = vmatprep.subr.mxu0 0.0
  %2870 = vmatpush1.xpose.msra.mxu0 0.0
  %2871 = vmatprep.subr.mxu0 0.0
  %2872 = vmatpush1.xpose.msra.mxu0 0.0
  %2873 = vmatprep.subr.mxu0 0.0
  %2874 = vmatpush1.xpose.msra.mxu0 0.0
  %2875 = vmatprep.subr.mxu0 0.0
  %2876 = vmatpush1.xpose.msra.mxu0 0.0
  %2877 = vmatprep.subr.mxu0 0.0
  %2878 = vmatpush1.xpose.msra.mxu0 0.0
  %2879 = vmatprep.subr.mxu0 0.0
  %2880 = vmatpush1.xpose.msra.mxu0 0.0
  %2881 = vmatprep.subr.mxu0 0.0
  %2882 = vmatpush1.xpose.msra.mxu0 0.0
  %2883 = vmatprep.subr.mxu0 0.0
  %2884 = vmatpush1.xpose.msra.mxu0 0.0
  %2885 = vmatprep.subr.mxu0 0.0
  %2886 = vmatpush1.xpose.msra.mxu0 0.0
  %2887 = vmatprep.subr.mxu0 0.0
  %2888 = vmatpush1.xpose.msra.mxu0 0.0
  %2889 = vmatprep.mubr.f32.mxu0 0.0
  %2890 = vmatmul.mubr.f32.gmra.mrb[0].mxu0 %v2818
  %v2891 = vpop.f32.mrb[0].mxu0
  %v2892 = vadd.f32 %v2815, %v2891
  %v2893 = vpop.f32.mrb[0].mxu0
  %2894 = vdwg.mxu0
  %v2895 = vmul.f32 %v2892, 0.25
  %v2896 = vadd.f32 %v2895, %v417
  %v2897 = vsel %vm440, %v2896, -inf
  %2898 = vmax.xlane.f32.xlu0 %v2897
  %v2899 = vpop.xlane.xlu0 %2898
  %v2900 = vsub.f32 %v2896, %v2899
  %v2901 = vmul.f32 %v2900, 1.442695
  %v2902 = vpow.pop %v2901
  %v2903 = vsel %vm440, %v2902, 0.0
  %2904 = vadd.xlane.f32.xlu0 %v2903
  %v2905 = vpop.xlane.xlu0 %2904
  %v2906 = vrcp.pop %v2905
  %v2907 = vmul.f32 %v2902, %v2906
  %2908 = vrot.lane.b32.xlu0 %v309, 64
  %v2909 = vpop.permute.xlu0 %2908
  %2910 = vrot.lane.b32.xlu0 %v2493, 64
  %v2911 = vpop.permute.xlu0 %2910
  %v2915 = vsel %vm440, %v2907, 0
  %2917 = vmatprep.subr.mxu0 0.0
  %2918 = vmatpush1.msra.mxu0 %v2909
  %2919 = vmatprep.subr.mxu0 0.0
  %2920 = vmatpush1.msra.mxu0 %v2911
  %2921 = vmatprep.subr.mxu0 0.0
  %2922 = vmatpush1.msra.mxu0 0.0
  %2923 = vmatprep.subr.mxu0 0.0
  %2924 = vmatpush1.msra.mxu0 0.0
  %2925 = vmatprep.subr.mxu0 0.0
  %2926 = vmatpush1.msra.mxu0 0.0
  %2927 = vmatprep.subr.mxu0 0.0
  %2928 = vmatpush1.msra.mxu0 0.0
  %2929 = vmatprep.subr.mxu0 0.0
  %2930 = vmatpush1.msra.mxu0 0.0
  %2931 = vmatprep.subr.mxu0 0.0
  %2932 = vmatpush1.msra.mxu0 0.0
  %2933 = vmatprep.subr.mxu0 0.0
  %2934 = vmatpush1.msra.mxu0 0.0
  %2935 = vmatprep.subr.mxu0 0.0
  %2936 = vmatpush1.msra.mxu0 0.0
  %2937 = vmatprep.subr.mxu0 0.0
  %2938 = vmatpush1.msra.mxu0 0.0
  %2939 = vmatprep.subr.mxu0 0.0
  %2940 = vmatpush1.msra.mxu0 0.0
  %2941 = vmatprep.subr.mxu0 0.0
  %2942 = vmatpush1.msra.mxu0 0.0
  %2943 = vmatprep.subr.mxu0 0.0
  %2944 = vmatpush1.msra.mxu0 0.0
  %2945 = vmatprep.subr.mxu0 0.0
  %2946 = vmatpush1.msra.mxu0 0.0
  %2947 = vmatprep.subr.mxu0 0.0
  %2948 = vmatpush1.msra.mxu0 0.0
  %2949 = vmatprep.subr.mxu0 0.0
  %2950 = vmatpush1.msra.mxu0 0.0
  %2951 = vmatprep.subr.mxu0 0.0
  %2952 = vmatpush1.msra.mxu0 0.0
  %2953 = vmatprep.subr.mxu0 0.0
  %2954 = vmatpush1.msra.mxu0 0.0
  %2955 = vmatprep.subr.mxu0 0.0
  %2956 = vmatpush1.msra.mxu0 0.0
  %2957 = vmatprep.subr.mxu0 0.0
  %2958 = vmatpush1.msra.mxu0 0.0
  %2959 = vmatprep.subr.mxu0 0.0
  %2960 = vmatpush1.msra.mxu0 0.0
  %2961 = vmatprep.subr.mxu0 0.0
  %2962 = vmatpush1.msra.mxu0 0.0
  %2963 = vmatprep.subr.mxu0 0.0
  %2964 = vmatpush1.msra.mxu0 0.0
  %2965 = vmatprep.subr.mxu0 0.0
  %2966 = vmatpush1.msra.mxu0 0.0
  %2967 = vmatprep.subr.mxu0 0.0
  %2968 = vmatpush1.msra.mxu0 0.0
  %2969 = vmatprep.subr.mxu0 0.0
  %2970 = vmatpush1.msra.mxu0 0.0
  %2971 = vmatprep.subr.mxu0 0.0
  %2972 = vmatpush1.msra.mxu0 0.0
  %2973 = vmatprep.subr.mxu0 0.0
  %2974 = vmatpush1.msra.mxu0 0.0
  %2975 = vmatprep.subr.mxu0 0.0
  %2976 = vmatpush1.msra.mxu0 0.0
  %2977 = vmatprep.subr.mxu0 0.0
  %2978 = vmatpush1.msra.mxu0 0.0
  %2979 = vmatprep.subr.mxu0 0.0
  %2980 = vmatpush1.msra.mxu0 0.0
  %2981 = vmatprep.mubr.f32.mxu0 0.0
  %2982 = vmatmul.mubr.f32.gmra.mrb[0].mxu0 %v2915
  %v2983 = vpop.f32.mrb[0].mxu0
  %v2984 = vadd.f32 0.0, %v2983
  %v2985 = vpop.f32.mrb[0].mxu0
  %2986 = vdwg.mxu0
  %2987 = vst.msk [vmem:[#allocation2 + $0x8] sm:$0xff] %vm440, %v2984
  %2988 = vrot.lane.b32.xlu0 %v416, 112
  %v2989 = vpop.permute.xlu0 %2988
  %v2990 = vsel %vm440, %v2989, 0
  %2992 = vmatprep.subr.mxu0 0.0
  %2993 = vmatpush1.xpose.msra.mxu0 %v960
  %2994 = vmatprep.subr.mxu0 0.0
  %2995 = vmatpush1.xpose.msra.mxu0 %v962
  %2996 = vmatprep.subr.mxu0 0.0
  %2997 = vmatpush1.xpose.msra.mxu0 0.0
  %2998 = vmatprep.subr.mxu0 0.0
  %2999 = vmatpush1.xpose.msra.mxu0 0.0
  %3000 = vmatprep.subr.mxu0 0.0
  %3001 = vmatpush1.xpose.msra.mxu0 0.0
  %3002 = vmatprep.subr.mxu0 0.0
  %3003 = vmatpush1.xpose.msra.mxu0 0.0
  %3004 = vmatprep.subr.mxu0 0.0
  %3005 = vmatpush1.xpose.msra.mxu0 0.0
  %3006 = vmatprep.subr.mxu0 0.0
  %3007 = vmatpush1.xpose.msra.mxu0 0.0
  %3008 = vmatprep.subr.mxu0 0.0
  %3009 = vmatpush1.xpose.msra.mxu0 0.0
  %3010 = vmatprep.subr.mxu0 0.0
  %3011 = vmatpush1.xpose.msra.mxu0 0.0
  %3012 = vmatprep.subr.mxu0 0.0
  %3013 = vmatpush1.xpose.msra.mxu0 0.0
  %3014 = vmatprep.subr.mxu0 0.0
  %3015 = vmatpush1.xpose.msra.mxu0 0.0
  %3016 = vmatprep.subr.mxu0 0.0
  %3017 = vmatpush1.xpose.msra.mxu0 0.0
  %3018 = vmatprep.subr.mxu0 0.0
  %3019 = vmatpush1.xpose.msra.mxu0 0.0
  %3020 = vmatprep.subr.mxu0 0.0
  %3021 = vmatpush1.xpose.msra.mxu0 0.0
  %3022 = vmatprep.subr.mxu0 0.0
  %3023 = vmatpush1.xpose.msra.mxu0 0.0
  %3024 = vmatprep.subr.mxu0 0.0
  %3025 = vmatpush1.xpose.msra.mxu0 0.0
  %3026 = vmatprep.subr.mxu0 0.0
  %3027 = vmatpush1.xpose.msra.mxu0 0.0
  %3028 = vmatprep.subr.mxu0 0.0
  %3029 = vmatpush1.xpose.msra.mxu0 0.0
  %3030 = vmatprep.subr.mxu0 0.0
  %3031 = vmatpush1.xpose.msra.mxu0 0.0
  %3032 = vmatprep.subr.mxu0 0.0
  %3033 = vmatpush1.xpose.msra.mxu0 0.0
  %3034 = vmatprep.subr.mxu0 0.0
  %3035 = vmatpush1.xpose.msra.mxu0 0.0
  %3036 = vmatprep.subr.mxu0 0.0
  %3037 = vmatpush1.xpose.msra.mxu0 0.0
  %3038 = vmatprep.subr.mxu0 0.0
  %3039 = vmatpush1.xpose.msra.mxu0 0.0
  %3040 = vmatprep.subr.mxu0 0.0
  %3041 = vmatpush1.xpose.msra.mxu0 0.0
  %3042 = vmatprep.subr.mxu0 0.0
  %3043 = vmatpush1.xpose.msra.mxu0 0.0
  %3044 = vmatprep.subr.mxu0 0.0
  %3045 = vmatpush1.xpose.msra.mxu0 0.0
  %3046 = vmatprep.subr.mxu0 0.0
  %3047 = vmatpush1.xpose.msra.mxu0 0.0
  %3048 = vmatprep.subr.mxu0 0.0
  %3049 = vmatpush1.xpose.msra.mxu0 0.0
  %3050 = vmatprep.subr.mxu0 0.0
  %3051 = vmatpush1.xpose.msra.mxu0 0.0
  %3052 = vmatprep.subr.mxu0 0.0
  %3053 = vmatpush1.xpose.msra.mxu0 0.0
  %3054 = vmatprep.subr.mxu0 0.0
  %3055 = vmatpush1.xpose.msra.mxu0 0.0
  %3056 = vmatprep.mubr.f32.mxu0 0.0
  %3057 = vmatmul.mubr.f32.gmra.mrb[0].mxu0 %v2990
  %v3058 = vpop.f32.mrb[0].mxu0
  %v3059 = vadd.f32 0.0, %v3058
  %v3060 = vpop.f32.mrb[0].mxu0
  %3061 = vdwg.mxu0
  %v3063 = vcombine.high %v3059, %v3059
  %v3065 = vunpack.c.l.s4 1966171168
  %v3066 = vunpack.c.0.s8 %v3065
  %v3067 = vlaneseq
  %v3068 = vshrl.u32 %v3067, 7
  %v3069 = vsub.s32 %v3066, %v3068
  %v3070 = vrot.slane %v3059, %v3069
  %v3072 = vunpack.c.l.s4 1966171168
  %v3073 = vunpack.c.0.s8 %v3072
  %v3074 = vlaneseq
  %v3075 = vshrl.u32 %v3074, 7
  %v3076 = vsub.s32 %v3073, %v3075
  %v3077 = vrot.slane %v3063, %v3076
  %v3078 = vcombine.high %v3070, %v3070
  %v3079 = vcombine.high %v3077, %v3077
  %v3081 = vunpack.c.l.s4 1966171168
  %v3082 = vunpack.c.0.s8 %v3081
  %v3083 = vlaneseq
  %v3084 = vshrl.u32 %v3083, 7
  %v3085 = vsub.s32 %v3082, %v3084
  %v3086 = vrot.slane %v3070, %v3085
  %v3088 = vunpack.c.l.s4 1966171168
  %v3089 = vunpack.c.0.s8 %v3088
  %v3090 = vlaneseq
  %v3091 = vshrl.u32 %v3090, 7
  %v3092 = vsub.s32 %v3089, %v3091
  %v3093 = vrot.slane %v3077, %v3092
  %v3095 = vunpack.c.l.s4 1966171168
  %v3096 = vunpack.c.0.s8 %v3095
  %v3097 = vlaneseq
  %v3098 = vshrl.u32 %v3097, 7
  %v3099 = vsub.s32 %v3096, %v3098
  %v3100 = vrot.slane %v3078, %v3099
  %v3102 = vunpack.c.l.s4 1966171168
  %v3103 = vunpack.c.0.s8 %v3102
  %v3104 = vlaneseq
  %v3105 = vshrl.u32 %v3104, 7
  %v3106 = vsub.s32 %v3103, %v3105
  %v3107 = vrot.slane %v3079, %v3106
  %v3108 = vcombine.high %v3086, %v3086
  %v3109 = vcombine.high %v3093, %v3093
  %v3110 = vcombine.high %v3100, %v3100
  %v3111 = vcombine.high %v3107, %v3107
  %v3112 = vlaneseq
  %v3113 = vshrl.u32 %v3112, 7
  %v3114 = vsub.s32 0, %v3113
  %v3115 = vrot.slane %v3086, %v3114
  %v3116 = vlaneseq
  %v3117 = vshrl.u32 %v3116, 7
  %v3118 = vsub.s32 0, %v3117
  %v3119 = vrot.slane %v3100, %v3118
  %v3120 = vlaneseq
  %v3121 = vshrl.u32 %v3120, 7
  %v3122 = vsub.s32 0, %v3121
  %v3123 = vrot.slane %v3108, %v3122
  %v3124 = vlaneseq
  %v3125 = vshrl.u32 %v3124, 7
  %v3126 = vsub.s32 0, %v3125
  %v3127 = vrot.slane %v3110, %v3126
  %v3128 = vlaneseq
  %v3129 = vshrl.u32 %v3128, 7
  %v3130 = vsub.s32 0, %v3129
  %v3131 = vrot.slane %v3093, %v3130
  %v3132 = vlaneseq
  %v3133 = vshrl.u32 %v3132, 7
  %v3134 = vsub.s32 0, %v3133
  %v3135 = vrot.slane %v3107, %v3134
  %v3136 = vlaneseq
  %v3137 = vshrl.u32 %v3136, 7
  %v3138 = vsub.s32 0, %v3137
  %v3139 = vrot.slane %v3109, %v3138
  %v3140 = vlaneseq
  %v3141 = vshrl.u32 %v3140, 7
  %v3142 = vsub.s32 0, %v3141
  %v3143 = vrot.slane %v3111, %v3142
  %v3152 = vmul.f32 %v3115, %v418
  %v3153 = vmul.f32 %v3115, %v419
  %v3154 = vmul.f32 %v3119, %v420
  %v3155 = vmul.f32 %v3119, %v421
  %v3156 = vmul.f32 %v3123, %v422
  %v3157 = vmul.f32 %v3123, %v423
  %v3158 = vmul.f32 %v3127, %v424
  %v3159 = vmul.f32 %v3127, %v425
  %v3160 = vmul.f32 %v3131, %v426
  %v3161 = vmul.f32 %v3131, %v427
  %v3162 = vmul.f32 %v3135, %v428
  %v3163 = vmul.f32 %v3135, %v429
  %v3164 = vmul.f32 %v3139, %v430
  %v3165 = vmul.f32 %v3139, %v431
  %v3166 = vmul.f32 %v3143, %v432
  %v3167 = vmul.f32 %v3143, %v433
  %v3168 = vsel %vm440, %v3152, 0.0
  %3169 = vadd.xlane.f32.xlu0 %v3168
  %v3170 = vpop.xlane.xlu0 %3169
  %v3171 = vsel %vm440, %v3153, 0.0
  %3172 = vadd.xlane.f32.xlu0 %v3171
  %v3173 = vpop.xlane.xlu0 %3172
  %v3174 = vsel %vm440, %v3154, 0.0
  %3175 = vadd.xlane.f32.xlu0 %v3174
  %v3176 = vpop.xlane.xlu0 %3175
  %v3177 = vsel %vm440, %v3155, 0.0
  %3178 = vadd.xlane.f32.xlu0 %v3177
  %v3179 = vpop.xlane.xlu0 %3178
  %v3180 = vsel %vm440, %v3156, 0.0
  %3181 = vadd.xlane.f32.xlu0 %v3180
  %v3182 = vpop.xlane.xlu0 %3181
  %v3183 = vsel %vm440, %v3157, 0.0
  %3184 = vadd.xlane.f32.xlu0 %v3183
  %v3185 = vpop.xlane.xlu0 %3184
  %v3186 = vsel %vm440, %v3158, 0.0
  %3187 = vadd.xlane.f32.xlu0 %v3186
  %v3188 = vpop.xlane.xlu0 %3187
  %v3189 = vsel %vm440, %v3159, 0.0
  %3190 = vadd.xlane.f32.xlu0 %v3189
  %v3191 = vpop.xlane.xlu0 %3190
  %v3192 = vsel %vm440, %v3160, 0.0
  %3193 = vadd.xlane.f32.xlu0 %v3192
  %v3194 = vpop.xlane.xlu0 %3193
  %v3195 = vsel %vm440, %v3161, 0.0
  %3196 = vadd.xlane.f32.xlu0 %v3195
  %v3197 = vpop.xlane.xlu0 %3196
  %v3198 = vsel %vm440, %v3162, 0.0
  %3199 = vadd.xlane.f32.xlu0 %v3198
  %v3200 = vpop.xlane.xlu0 %3199
  %v3201 = vsel %vm440, %v3163, 0.0
  %3202 = vadd.xlane.f32.xlu0 %v3201
  %v3203 = vpop.xlane.xlu0 %3202
  %v3204 = vsel %vm440, %v3164, 0.0
  %3205 = vadd.xlane.f32.xlu0 %v3204
  %v3206 = vpop.xlane.xlu0 %3205
  %v3207 = vsel %vm440, %v3165, 0.0
  %3208 = vadd.xlane.f32.xlu0 %v3207
  %v3209 = vpop.xlane.xlu0 %3208
  %v3210 = vsel %vm440, %v3166, 0.0
  %3211 = vadd.xlane.f32.xlu0 %v3210
  %v3212 = vpop.xlane.xlu0 %3211
  %v3213 = vsel %vm440, %v3167, 0.0
  %3214 = vadd.xlane.f32.xlu0 %v3213
  %v3215 = vpop.xlane.xlu0 %3214
  %3216 = vrot.lane.b32.xlu0 %v407, 112
  %v3217 = vpop.permute.xlu0 %3216
  %3218 = vrot.lane.b32.xlu0 %v309, 112
  %v3219 = vpop.permute.xlu0 %3218
  %3220 = vrot.lane.b32.xlu0 %v2490, 112
  %v3221 = vpop.permute.xlu0 %3220
  %v3238 = vlaneseq
  %v3239 = vshrl.u32 %v3238, 7
  %v3240 = vsub.s32 %v691, %v3239
  %v3241 = vrot.slane %v3170, %v3240
  %v3242 = vlaneseq
  %v3243 = vshrl.u32 %v3242, 7
  %v3244 = vsub.s32 %v696, %v3243
  %v3245 = vrot.slane %v3173, %v3244
  %v3246 = vsel %vm701, %v3245, %v3241
  %v3247 = vlaneseq
  %v3248 = vshrl.u32 %v3247, 7
  %v3249 = vsub.s32 %v691, %v3248
  %v3250 = vrot.slane %v3176, %v3249
  %v3251 = vlaneseq
  %v3252 = vshrl.u32 %v3251, 7
  %v3253 = vsub.s32 %v696, %v3252
  %v3254 = vrot.slane %v3179, %v3253
  %v3255 = vsel %vm701, %v3254, %v3250
  %v3256 = vlaneseq
  %v3257 = vshrl.u32 %v3256, 7
  %v3258 = vsub.s32 %v691, %v3257
  %v3259 = vrot.slane %v3182, %v3258
  %v3260 = vlaneseq
  %v3261 = vshrl.u32 %v3260, 7
  %v3262 = vsub.s32 %v696, %v3261
  %v3263 = vrot.slane %v3185, %v3262
  %v3264 = vsel %vm701, %v3263, %v3259
  %v3265 = vlaneseq
  %v3266 = vshrl.u32 %v3265, 7
  %v3267 = vsub.s32 %v691, %v3266
  %v3268 = vrot.slane %v3188, %v3267
  %v3269 = vlaneseq
  %v3270 = vshrl.u32 %v3269, 7
  %v3271 = vsub.s32 %v696, %v3270
  %v3272 = vrot.slane %v3191, %v3271
  %v3273 = vsel %vm701, %v3272, %v3268
  %v3274 = vlaneseq
  %v3275 = vshrl.u32 %v3274, 7
  %v3276 = vsub.s32 %v691, %v3275
  %v3277 = vrot.slane %v3194, %v3276
  %v3278 = vlaneseq
  %v3279 = vshrl.u32 %v3278, 7
  %v3280 = vsub.s32 %v696, %v3279
  %v3281 = vrot.slane %v3197, %v3280
  %v3282 = vsel %vm701, %v3281, %v3277
  %v3283 = vlaneseq
  %v3284 = vshrl.u32 %v3283, 7
  %v3285 = vsub.s32 %v691, %v3284
  %v3286 = vrot.slane %v3200, %v3285
  %v3287 = vlaneseq
  %v3288 = vshrl.u32 %v3287, 7
  %v3289 = vsub.s32 %v696, %v3288
  %v3290 = vrot.slane %v3203, %v3289
  %v3291 = vsel %vm701, %v3290, %v3286
  %v3292 = vlaneseq
  %v3293 = vshrl.u32 %v3292, 7
  %v3294 = vsub.s32 %v691, %v3293
  %v3295 = vrot.slane %v3206, %v3294
  %v3296 = vlaneseq
  %v3297 = vshrl.u32 %v3296, 7
  %v3298 = vsub.s32 %v696, %v3297
  %v3299 = vrot.slane %v3209, %v3298
  %v3300 = vsel %vm701, %v3299, %v3295
  %v3301 = vlaneseq
  %v3302 = vshrl.u32 %v3301, 7
  %v3303 = vsub.s32 %v691, %v3302
  %v3304 = vrot.slane %v3212, %v3303
  %v3305 = vlaneseq
  %v3306 = vshrl.u32 %v3305, 7
  %v3307 = vsub.s32 %v696, %v3306
  %v3308 = vrot.slane %v3215, %v3307
  %v3309 = vsel %vm701, %v3308, %v3304
  %v3310 = vsel %vm766, %v3255, %v3246
  %v3311 = vsel %vm768, %v3264, %v3310
  %v3312 = vsel %vm770, %v3273, %v3311
  %v3313 = vsel %vm772, %v3282, %v3312
  %v3314 = vsel %vm774, %v3291, %v3313
  %v3315 = vsel %vm776, %v3300, %v3314
  %v3316 = vsel %vm778, %v3309, %v3315
  %v3318 = vsel %vm440, %v3217, 0
  %v3320 = vsel %vm440, %v3219, 0
  %v3322 = vsel %vm440, %v3221, 0
  %3324 = vmatprep.subr.mxu0 0.0
  %3325 = vmatpush1.xpose.msra.mxu0 %v3320
  %3326 = vmatprep.subr.mxu0 0.0
  %3327 = vmatpush1.xpose.msra.mxu0 %v3322
  %3328 = vmatprep.subr.mxu0 0.0
  %3329 = vmatpush1.xpose.msra.mxu0 0.0
  %3330 = vmatprep.subr.mxu0 0.0
  %3331 = vmatpush1.xpose.msra.mxu0 0.0
  %3332 = vmatprep.subr.mxu0 0.0
  %3333 = vmatpush1.xpose.msra.mxu0 0.0
  %3334 = vmatprep.subr.mxu0 0.0
  %3335 = vmatpush1.xpose.msra.mxu0 0.0
  %3336 = vmatprep.subr.mxu0 0.0
  %3337 = vmatpush1.xpose.msra.mxu0 0.0
  %3338 = vmatprep.subr.mxu0 0.0
  %3339 = vmatpush1.xpose.msra.mxu0 0.0
  %3340 = vmatprep.subr.mxu0 0.0
  %3341 = vmatpush1.xpose.msra.mxu0 0.0
  %3342 = vmatprep.subr.mxu0 0.0
  %3343 = vmatpush1.xpose.msra.mxu0 0.0
  %3344 = vmatprep.subr.mxu0 0.0
  %3345 = vmatpush1.xpose.msra.mxu0 0.0
  %3346 = vmatprep.subr.mxu0 0.0
  %3347 = vmatpush1.xpose.msra.mxu0 0.0
  %3348 = vmatprep.subr.mxu0 0.0
  %3349 = vmatpush1.xpose.msra.mxu0 0.0
  %3350 = vmatprep.subr.mxu0 0.0
  %3351 = vmatpush1.xpose.msra.mxu0 0.0
  %3352 = vmatprep.subr.mxu0 0.0
  %3353 = vmatpush1.xpose.msra.mxu0 0.0
  %3354 = vmatprep.subr.mxu0 0.0
  %3355 = vmatpush1.xpose.msra.mxu0 0.0
  %3356 = vmatprep.subr.mxu0 0.0
  %3357 = vmatpush1.xpose.msra.mxu0 0.0
  %3358 = vmatprep.subr.mxu0 0.0
  %3359 = vmatpush1.xpose.msra.mxu0 0.0
  %3360 = vmatprep.subr.mxu0 0.0
  %3361 = vmatpush1.xpose.msra.mxu0 0.0
  %3362 = vmatprep.subr.mxu0 0.0
  %3363 = vmatpush1.xpose.msra.mxu0 0.0
  %3364 = vmatprep.subr.mxu0 0.0
  %3365 = vmatpush1.xpose.msra.mxu0 0.0
  %3366 = vmatprep.subr.mxu0 0.0
  %3367 = vmatpush1.xpose.msra.mxu0 0.0
  %3368 = vmatprep.subr.mxu0 0.0
  %3369 = vmatpush1.xpose.msra.mxu0 0.0
  %3370 = vmatprep.subr.mxu0 0.0
  %3371 = vmatpush1.xpose.msra.mxu0 0.0
  %3372 = vmatprep.subr.mxu0 0.0
  %3373 = vmatpush1.xpose.msra.mxu0 0.0
  %3374 = vmatprep.subr.mxu0 0.0
  %3375 = vmatpush1.xpose.msra.mxu0 0.0
  %3376 = vmatprep.subr.mxu0 0.0
  %3377 = vmatpush1.xpose.msra.mxu0 0.0
  %3378 = vmatprep.subr.mxu0 0.0
  %3379 = vmatpush1.xpose.msra.mxu0 0.0
  %3380 = vmatprep.subr.mxu0 0.0
  %3381 = vmatpush1.xpose.msra.mxu0 0.0
  %3382 = vmatprep.subr.mxu0 0.0
  %3383 = vmatpush1.xpose.msra.mxu0 0.0
  %3384 = vmatprep.subr.mxu0 0.0
  %3385 = vmatpush1.xpose.msra.mxu0 0.0
  %3386 = vmatprep.subr.mxu0 0.0
  %3387 = vmatpush1.xpose.msra.mxu0 0.0
  %3388 = vmatprep.mubr.f32.mxu0 0.0
  %3389 = vmatmul.mubr.f32.gmra.mrb[0].mxu0 %v3318
  %v3390 = vpop.f32.mrb[0].mxu0
  %v3391 = vadd.f32 %v3316, %v3390
  %v3392 = vpop.f32.mrb[0].mxu0
  %3393 = vdwg.mxu0
  %v3394 = vmul.f32 %v3391, 0.25
  %v3395 = vadd.f32 %v3394, %v417
  %v3396 = vsel %vm440, %v3395, -inf
  %3397 = vmax.xlane.f32.xlu0 %v3396
  %v3398 = vpop.xlane.xlu0 %3397
  %v3399 = vsub.f32 %v3395, %v3398
  %v3400 = vmul.f32 %v3399, 1.442695
  %v3401 = vpow.pop %v3400
  %v3402 = vsel %vm440, %v3401, 0.0
  %3403 = vadd.xlane.f32.xlu0 %v3402
  %v3404 = vpop.xlane.xlu0 %3403
  %v3405 = vrcp.pop %v3404
  %v3406 = vmul.f32 %v3401, %v3405
  %3407 = vrot.lane.b32.xlu0 %v309, 48
  %v3408 = vpop.permute.xlu0 %3407
  %3409 = vrot.lane.b32.xlu0 %v2493, 48
  %v3410 = vpop.permute.xlu0 %3409
  %v3414 = vsel %vm440, %v3406, 0
  %3416 = vmatprep.subr.mxu0 0.0
  %3417 = vmatpush1.msra.mxu0 %v3408
  %3418 = vmatprep.subr.mxu0 0.0
  %3419 = vmatpush1.msra.mxu0 %v3410
  %3420 = vmatprep.subr.mxu0 0.0
  %3421 = vmatpush1.msra.mxu0 0.0
  %3422 = vmatprep.subr.mxu0 0.0
  %3423 = vmatpush1.msra.mxu0 0.0
  %3424 = vmatprep.subr.mxu0 0.0
  %3425 = vmatpush1.msra.mxu0 0.0
  %3426 = vmatprep.subr.mxu0 0.0
  %3427 = vmatpush1.msra.mxu0 0.0
  %3428 = vmatprep.subr.mxu0 0.0
  %3429 = vmatpush1.msra.mxu0 0.0
  %3430 = vmatprep.subr.mxu0 0.0
  %3431 = vmatpush1.msra.mxu0 0.0
  %3432 = vmatprep.subr.mxu0 0.0
  %3433 = vmatpush1.msra.mxu0 0.0
  %3434 = vmatprep.subr.mxu0 0.0
  %3435 = vmatpush1.msra.mxu0 0.0
  %3436 = vmatprep.subr.mxu0 0.0
  %3437 = vmatpush1.msra.mxu0 0.0
  %3438 = vmatprep.subr.mxu0 0.0
  %3439 = vmatpush1.msra.mxu0 0.0
  %3440 = vmatprep.subr.mxu0 0.0
  %3441 = vmatpush1.msra.mxu0 0.0
  %3442 = vmatprep.subr.mxu0 0.0
  %3443 = vmatpush1.msra.mxu0 0.0
  %3444 = vmatprep.subr.mxu0 0.0
  %3445 = vmatpush1.msra.mxu0 0.0
  %3446 = vmatprep.subr.mxu0 0.0
  %3447 = vmatpush1.msra.mxu0 0.0
  %3448 = vmatprep.subr.mxu0 0.0
  %3449 = vmatpush1.msra.mxu0 0.0
  %3450 = vmatprep.subr.mxu0 0.0
  %3451 = vmatpush1.msra.mxu0 0.0
  %3452 = vmatprep.subr.mxu0 0.0
  %3453 = vmatpush1.msra.mxu0 0.0
  %3454 = vmatprep.subr.mxu0 0.0
  %3455 = vmatpush1.msra.mxu0 0.0
  %3456 = vmatprep.subr.mxu0 0.0
  %3457 = vmatpush1.msra.mxu0 0.0
  %3458 = vmatprep.subr.mxu0 0.0
  %3459 = vmatpush1.msra.mxu0 0.0
  %3460 = vmatprep.subr.mxu0 0.0
  %3461 = vmatpush1.msra.mxu0 0.0
  %3462 = vmatprep.subr.mxu0 0.0
  %3463 = vmatpush1.msra.mxu0 0.0
  %3464 = vmatprep.subr.mxu0 0.0
  %3465 = vmatpush1.msra.mxu0 0.0
  %3466 = vmatprep.subr.mxu0 0.0
  %3467 = vmatpush1.msra.mxu0 0.0
  %3468 = vmatprep.subr.mxu0 0.0
  %3469 = vmatpush1.msra.mxu0 0.0
  %3470 = vmatprep.subr.mxu0 0.0
  %3471 = vmatpush1.msra.mxu0 0.0
  %3472 = vmatprep.subr.mxu0 0.0
  %3473 = vmatpush1.msra.mxu0 0.0
  %3474 = vmatprep.subr.mxu0 0.0
  %3475 = vmatpush1.msra.mxu0 0.0
  %3476 = vmatprep.subr.mxu0 0.0
  %3477 = vmatpush1.msra.mxu0 0.0
  %3478 = vmatprep.subr.mxu0 0.0
  %3479 = vmatpush1.msra.mxu0 0.0
  %3480 = vmatprep.mubr.f32.mxu0 0.0
  %3481 = vmatmul.mubr.f32.gmra.mrb[0].mxu0 %v3414
  %v3482 = vpop.f32.mrb[0].mxu0
  %v3483 = vadd.f32 0.0, %v3482
  %v3484 = vpop.f32.mrb[0].mxu0
  %3485 = vdwg.mxu0
  %3487 = vrot.lane.b32.xlu0 %v3483, 16
  %v3488 = vpop.permute.xlu0 %3487
  %3490 = vst.msk [vmem:[#allocation2 + $0x8] sm:$0xff] %vm1462, %v3488
  %3491 = vrot.lane.b32.xlu0 %v416, 96
  %v3492 = vpop.permute.xlu0 %3491
  %v3493 = vsel %vm440, %v3492, 0
  %3495 = vmatprep.subr.mxu0 0.0
  %3496 = vmatpush1.xpose.msra.mxu0 %v1472
  %3497 = vmatprep.subr.mxu0 0.0
  %3498 = vmatpush1.xpose.msra.mxu0 %v1474
  %3499 = vmatprep.subr.mxu0 0.0
  %3500 = vmatpush1.xpose.msra.mxu0 0.0
  %3501 = vmatprep.subr.mxu0 0.0
  %3502 = vmatpush1.xpose.msra.mxu0 0.0
  %3503 = vmatprep.subr.mxu0 0.0
  %3504 = vmatpush1.xpose.msra.mxu0 0.0
  %3505 = vmatprep.subr.mxu0 0.0
  %3506 = vmatpush1.xpose.msra.mxu0 0.0
  %3507 = vmatprep.subr.mxu0 0.0
  %3508 = vmatpush1.xpose.msra.mxu0 0.0
  %3509 = vmatprep.subr.mxu0 0.0
  %3510 = vmatpush1.xpose.msra.mxu0 0.0
  %3511 = vmatprep.subr.mxu0 0.0
  %3512 = vmatpush1.xpose.msra.mxu0 0.0
  %3513 = vmatprep.subr.mxu0 0.0
  %3514 = vmatpush1.xpose.msra.mxu0 0.0
  %3515 = vmatprep.subr.mxu0 0.0
  %3516 = vmatpush1.xpose.msra.mxu0 0.0
  %3517 = vmatprep.subr.mxu0 0.0
  %3518 = vmatpush1.xpose.msra.mxu0 0.0
  %3519 = vmatprep.subr.mxu0 0.0
  %3520 = vmatpush1.xpose.msra.mxu0 0.0
  %3521 = vmatprep.subr.mxu0 0.0
  %3522 = vmatpush1.xpose.msra.mxu0 0.0
  %3523 = vmatprep.subr.mxu0 0.0
  %3524 = vmatpush1.xpose.msra.mxu0 0.0
  %3525 = vmatprep.subr.mxu0 0.0
  %3526 = vmatpush1.xpose.msra.mxu0 0.0
  %3527 = vmatprep.subr.mxu0 0.0
  %3528 = vmatpush1.xpose.msra.mxu0 0.0
  %3529 = vmatprep.subr.mxu0 0.0
  %3530 = vmatpush1.xpose.msra.mxu0 0.0
  %3531 = vmatprep.subr.mxu0 0.0
  %3532 = vmatpush1.xpose.msra.mxu0 0.0
  %3533 = vmatprep.subr.mxu0 0.0
  %3534 = vmatpush1.xpose.msra.mxu0 0.0
  %3535 = vmatprep.subr.mxu0 0.0
  %3536 = vmatpush1.xpose.msra.mxu0 0.0
  %3537 = vmatprep.subr.mxu0 0.0
  %3538 = vmatpush1.xpose.msra.mxu0 0.0
  %3539 = vmatprep.subr.mxu0 0.0
  %3540 = vmatpush1.xpose.msra.mxu0 0.0
  %3541 = vmatprep.subr.mxu0 0.0
  %3542 = vmatpush1.xpose.msra.mxu0 0.0
  %3543 = vmatprep.subr.mxu0 0.0
  %3544 = vmatpush1.xpose.msra.mxu0 0.0
  %3545 = vmatprep.subr.mxu0 0.0
  %3546 = vmatpush1.xpose.msra.mxu0 0.0
  %3547 = vmatprep.subr.mxu0 0.0
  %3548 = vmatpush1.xpose.msra.mxu0 0.0
  %3549 = vmatprep.subr.mxu0 0.0
  %3550 = vmatpush1.xpose.msra.mxu0 0.0
  %3551 = vmatprep.subr.mxu0 0.0
  %3552 = vmatpush1.xpose.msra.mxu0 0.0
  %3553 = vmatprep.subr.mxu0 0.0
  %3554 = vmatpush1.xpose.msra.mxu0 0.0
  %3555 = vmatprep.subr.mxu0 0.0
  %3556 = vmatpush1.xpose.msra.mxu0 0.0
  %3557 = vmatprep.subr.mxu0 0.0
  %3558 = vmatpush1.xpose.msra.mxu0 0.0
  %3559 = vmatprep.mubr.f32.mxu0 0.0
  %3560 = vmatmul.mubr.f32.gmra.mrb[0].mxu0 %v3493
  %v3561 = vpop.f32.mrb[0].mxu0
  %v3562 = vadd.f32 0.0, %v3561
  %v3563 = vpop.f32.mrb[0].mxu0
  %3564 = vdwg.mxu0
  %v3566 = vcombine.high %v3562, %v3562
  %v3568 = vunpack.c.l.s4 1966171168
  %v3569 = vunpack.c.0.s8 %v3568
  %v3570 = vlaneseq
  %v3571 = vshrl.u32 %v3570, 7
  %v3572 = vsub.s32 %v3569, %v3571
  %v3573 = vrot.slane %v3562, %v3572
  %v3575 = vunpack.c.l.s4 1966171168
  %v3576 = vunpack.c.0.s8 %v3575
  %v3577 = vlaneseq
  %v3578 = vshrl.u32 %v3577, 7
  %v3579 = vsub.s32 %v3576, %v3578
  %v3580 = vrot.slane %v3566, %v3579
  %v3581 = vcombine.high %v3573, %v3573
  %v3582 = vcombine.high %v3580, %v3580
  %v3584 = vunpack.c.l.s4 1966171168
  %v3585 = vunpack.c.0.s8 %v3584
  %v3586 = vlaneseq
  %v3587 = vshrl.u32 %v3586, 7
  %v3588 = vsub.s32 %v3585, %v3587
  %v3589 = vrot.slane %v3573, %v3588
  %v3591 = vunpack.c.l.s4 1966171168
  %v3592 = vunpack.c.0.s8 %v3591
  %v3593 = vlaneseq
  %v3594 = vshrl.u32 %v3593, 7
  %v3595 = vsub.s32 %v3592, %v3594
  %v3596 = vrot.slane %v3580, %v3595
  %v3598 = vunpack.c.l.s4 1966171168
  %v3599 = vunpack.c.0.s8 %v3598
  %v3600 = vlaneseq
  %v3601 = vshrl.u32 %v3600, 7
  %v3602 = vsub.s32 %v3599, %v3601
  %v3603 = vrot.slane %v3581, %v3602
  %v3605 = vunpack.c.l.s4 1966171168
  %v3606 = vunpack.c.0.s8 %v3605
  %v3607 = vlaneseq
  %v3608 = vshrl.u32 %v3607, 7
  %v3609 = vsub.s32 %v3606, %v3608
  %v3610 = vrot.slane %v3582, %v3609
  %v3611 = vcombine.high %v3589, %v3589
  %v3612 = vcombine.high %v3596, %v3596
  %v3613 = vcombine.high %v3603, %v3603
  %v3614 = vcombine.high %v3610, %v3610
  %v3615 = vlaneseq
  %v3616 = vshrl.u32 %v3615, 7
  %v3617 = vsub.s32 0, %v3616
  %v3618 = vrot.slane %v3589, %v3617
  %v3619 = vlaneseq
  %v3620 = vshrl.u32 %v3619, 7
  %v3621 = vsub.s32 0, %v3620
  %v3622 = vrot.slane %v3603, %v3621
  %v3623 = vlaneseq
  %v3624 = vshrl.u32 %v3623, 7
  %v3625 = vsub.s32 0, %v3624
  %v3626 = vrot.slane %v3611, %v3625
  %v3627 = vlaneseq
  %v3628 = vshrl.u32 %v3627, 7
  %v3629 = vsub.s32 0, %v3628
  %v3630 = vrot.slane %v3613, %v3629
  %v3631 = vlaneseq
  %v3632 = vshrl.u32 %v3631, 7
  %v3633 = vsub.s32 0, %v3632
  %v3634 = vrot.slane %v3596, %v3633
  %v3635 = vlaneseq
  %v3636 = vshrl.u32 %v3635, 7
  %v3637 = vsub.s32 0, %v3636
  %v3638 = vrot.slane %v3610, %v3637
  %v3639 = vlaneseq
  %v3640 = vshrl.u32 %v3639, 7
  %v3641 = vsub.s32 0, %v3640
  %v3642 = vrot.slane %v3612, %v3641
  %v3643 = vlaneseq
  %v3644 = vshrl.u32 %v3643, 7
  %v3645 = vsub.s32 0, %v3644
  %v3646 = vrot.slane %v3614, %v3645
  %v3655 = vmul.f32 %v3618, %v418
  %v3656 = vmul.f32 %v3618, %v419
  %v3657 = vmul.f32 %v3622, %v420
  %v3658 = vmul.f32 %v3622, %v421
  %v3659 = vmul.f32 %v3626, %v422
  %v3660 = vmul.f32 %v3626, %v423
  %v3661 = vmul.f32 %v3630, %v424
  %v3662 = vmul.f32 %v3630, %v425
  %v3663 = vmul.f32 %v3634, %v426
  %v3664 = vmul.f32 %v3634, %v427
  %v3665 = vmul.f32 %v3638, %v428
  %v3666 = vmul.f32 %v3638, %v429
  %v3667 = vmul.f32 %v3642, %v430
  %v3668 = vmul.f32 %v3642, %v431
  %v3669 = vmul.f32 %v3646, %v432
  %v3670 = vmul.f32 %v3646, %v433
  %v3671 = vsel %vm440, %v3655, 0.0
  %3672 = vadd.xlane.f32.xlu0 %v3671
  %v3673 = vpop.xlane.xlu0 %3672
  %v3674 = vsel %vm440, %v3656, 0.0
  %3675 = vadd.xlane.f32.xlu0 %v3674
  %v3676 = vpop.xlane.xlu0 %3675
  %v3677 = vsel %vm440, %v3657, 0.0
  %3678 = vadd.xlane.f32.xlu0 %v3677
  %v3679 = vpop.xlane.xlu0 %3678
  %v3680 = vsel %vm440, %v3658, 0.0
  %3681 = vadd.xlane.f32.xlu0 %v3680
  %v3682 = vpop.xlane.xlu0 %3681
  %v3683 = vsel %vm440, %v3659, 0.0
  %3684 = vadd.xlane.f32.xlu0 %v3683
  %v3685 = vpop.xlane.xlu0 %3684
  %v3686 = vsel %vm440, %v3660, 0.0
  %3687 = vadd.xlane.f32.xlu0 %v3686
  %v3688 = vpop.xlane.xlu0 %3687
  %v3689 = vsel %vm440, %v3661, 0.0
  %3690 = vadd.xlane.f32.xlu0 %v3689
  %v3691 = vpop.xlane.xlu0 %3690
  %v3692 = vsel %vm440, %v3662, 0.0
  %3693 = vadd.xlane.f32.xlu0 %v3692
  %v3694 = vpop.xlane.xlu0 %3693
  %v3695 = vsel %vm440, %v3663, 0.0
  %3696 = vadd.xlane.f32.xlu0 %v3695
  %v3697 = vpop.xlane.xlu0 %3696
  %v3698 = vsel %vm440, %v3664, 0.0
  %3699 = vadd.xlane.f32.xlu0 %v3698
  %v3700 = vpop.xlane.xlu0 %3699
  %v3701 = vsel %vm440, %v3665, 0.0
  %3702 = vadd.xlane.f32.xlu0 %v3701
  %v3703 = vpop.xlane.xlu0 %3702
  %v3704 = vsel %vm440, %v3666, 0.0
  %3705 = vadd.xlane.f32.xlu0 %v3704
  %v3706 = vpop.xlane.xlu0 %3705
  %v3707 = vsel %vm440, %v3667, 0.0
  %3708 = vadd.xlane.f32.xlu0 %v3707
  %v3709 = vpop.xlane.xlu0 %3708
  %v3710 = vsel %vm440, %v3668, 0.0
  %3711 = vadd.xlane.f32.xlu0 %v3710
  %v3712 = vpop.xlane.xlu0 %3711
  %v3713 = vsel %vm440, %v3669, 0.0
  %3714 = vadd.xlane.f32.xlu0 %v3713
  %v3715 = vpop.xlane.xlu0 %3714
  %v3716 = vsel %vm440, %v3670, 0.0
  %3717 = vadd.xlane.f32.xlu0 %v3716
  %v3718 = vpop.xlane.xlu0 %3717
  %3719 = vrot.lane.b32.xlu0 %v407, 96
  %v3720 = vpop.permute.xlu0 %3719
  %3721 = vrot.lane.b32.xlu0 %v309, 96
  %v3722 = vpop.permute.xlu0 %3721
  %3723 = vrot.lane.b32.xlu0 %v2490, 96
  %v3724 = vpop.permute.xlu0 %3723
  %v3741 = vlaneseq
  %v3742 = vshrl.u32 %v3741, 7
  %v3743 = vsub.s32 %v691, %v3742
  %v3744 = vrot.slane %v3673, %v3743
  %v3745 = vlaneseq
  %v3746 = vshrl.u32 %v3745, 7
  %v3747 = vsub.s32 %v696, %v3746
  %v3748 = vrot.slane %v3676, %v3747
  %v3749 = vsel %vm701, %v3748, %v3744
  %v3750 = vlaneseq
  %v3751 = vshrl.u32 %v3750, 7
  %v3752 = vsub.s32 %v691, %v3751
  %v3753 = vrot.slane %v3679, %v3752
  %v3754 = vlaneseq
  %v3755 = vshrl.u32 %v3754, 7
  %v3756 = vsub.s32 %v696, %v3755
  %v3757 = vrot.slane %v3682, %v3756
  %v3758 = vsel %vm701, %v3757, %v3753
  %v3759 = vlaneseq
  %v3760 = vshrl.u32 %v3759, 7
  %v3761 = vsub.s32 %v691, %v3760
  %v3762 = vrot.slane %v3685, %v3761
  %v3763 = vlaneseq
  %v3764 = vshrl.u32 %v3763, 7
  %v3765 = vsub.s32 %v696, %v3764
  %v3766 = vrot.slane %v3688, %v3765
  %v3767 = vsel %vm701, %v3766, %v3762
  %v3768 = vlaneseq
  %v3769 = vshrl.u32 %v3768, 7
  %v3770 = vsub.s32 %v691, %v3769
  %v3771 = vrot.slane %v3691, %v3770
  %v3772 = vlaneseq
  %v3773 = vshrl.u32 %v3772, 7
  %v3774 = vsub.s32 %v696, %v3773
  %v3775 = vrot.slane %v3694, %v3774
  %v3776 = vsel %vm701, %v3775, %v3771
  %v3777 = vlaneseq
  %v3778 = vshrl.u32 %v3777, 7
  %v3779 = vsub.s32 %v691, %v3778
  %v3780 = vrot.slane %v3697, %v3779
  %v3781 = vlaneseq
  %v3782 = vshrl.u32 %v3781, 7
  %v3783 = vsub.s32 %v696, %v3782
  %v3784 = vrot.slane %v3700, %v3783
  %v3785 = vsel %vm701, %v3784, %v3780
  %v3786 = vlaneseq
  %v3787 = vshrl.u32 %v3786, 7
  %v3788 = vsub.s32 %v691, %v3787
  %v3789 = vrot.slane %v3703, %v3788
  %v3790 = vlaneseq
  %v3791 = vshrl.u32 %v3790, 7
  %v3792 = vsub.s32 %v696, %v3791
  %v3793 = vrot.slane %v3706, %v3792
  %v3794 = vsel %vm701, %v3793, %v3789
  %v3795 = vlaneseq
  %v3796 = vshrl.u32 %v3795, 7
  %v3797 = vsub.s32 %v691, %v3796
  %v3798 = vrot.slane %v3709, %v3797
  %v3799 = vlaneseq
  %v3800 = vshrl.u32 %v3799, 7
  %v3801 = vsub.s32 %v696, %v3800
  %v3802 = vrot.slane %v3712, %v3801
  %v3803 = vsel %vm701, %v3802, %v3798
  %v3804 = vlaneseq
  %v3805 = vshrl.u32 %v3804, 7
  %v3806 = vsub.s32 %v691, %v3805
  %v3807 = vrot.slane %v3715, %v3806
  %v3808 = vlaneseq
  %v3809 = vshrl.u32 %v3808, 7
  %v3810 = vsub.s32 %v696, %v3809
  %v3811 = vrot.slane %v3718, %v3810
  %v3812 = vsel %vm701, %v3811, %v3807
  %v3813 = vsel %vm766, %v3758, %v3749
  %v3814 = vsel %vm768, %v3767, %v3813
  %v3815 = vsel %vm770, %v3776, %v3814
  %v3816 = vsel %vm772, %v3785, %v3815
  %v3817 = vsel %vm774, %v3794, %v3816
  %v3818 = vsel %vm776, %v3803, %v3817
  %v3819 = vsel %vm778, %v3812, %v3818
  %v3821 = vsel %vm440, %v3720, 0
  %v3823 = vsel %vm440, %v3722, 0
  %v3825 = vsel %vm440, %v3724, 0
  %3827 = vmatprep.subr.mxu0 0.0
  %3828 = vmatpush1.xpose.msra.mxu0 %v3823
  %3829 = vmatprep.subr.mxu0 0.0
  %3830 = vmatpush1.xpose.msra.mxu0 %v3825
  %3831 = vmatprep.subr.mxu0 0.0
  %3832 = vmatpush1.xpose.msra.mxu0 0.0
  %3833 = vmatprep.subr.mxu0 0.0
  %3834 = vmatpush1.xpose.msra.mxu0 0.0
  %3835 = vmatprep.subr.mxu0 0.0
  %3836 = vmatpush1.xpose.msra.mxu0 0.0
  %3837 = vmatprep.subr.mxu0 0.0
  %3838 = vmatpush1.xpose.msra.mxu0 0.0
  %3839 = vmatprep.subr.mxu0 0.0
  %3840 = vmatpush1.xpose.msra.mxu0 0.0
  %3841 = vmatprep.subr.mxu0 0.0
  %3842 = vmatpush1.xpose.msra.mxu0 0.0
  %3843 = vmatprep.subr.mxu0 0.0
  %3844 = vmatpush1.xpose.msra.mxu0 0.0
  %3845 = vmatprep.subr.mxu0 0.0
  %3846 = vmatpush1.xpose.msra.mxu0 0.0
  %3847 = vmatprep.subr.mxu0 0.0
  %3848 = vmatpush1.xpose.msra.mxu0 0.0
  %3849 = vmatprep.subr.mxu0 0.0
  %3850 = vmatpush1.xpose.msra.mxu0 0.0
  %3851 = vmatprep.subr.mxu0 0.0
  %3852 = vmatpush1.xpose.msra.mxu0 0.0
  %3853 = vmatprep.subr.mxu0 0.0
  %3854 = vmatpush1.xpose.msra.mxu0 0.0
  %3855 = vmatprep.subr.mxu0 0.0
  %3856 = vmatpush1.xpose.msra.mxu0 0.0
  %3857 = vmatprep.subr.mxu0 0.0
  %3858 = vmatpush1.xpose.msra.mxu0 0.0
  %3859 = vmatprep.subr.mxu0 0.0
  %3860 = vmatpush1.xpose.msra.mxu0 0.0
  %3861 = vmatprep.subr.mxu0 0.0
  %3862 = vmatpush1.xpose.msra.mxu0 0.0
  %3863 = vmatprep.subr.mxu0 0.0
  %3864 = vmatpush1.xpose.msra.mxu0 0.0
  %3865 = vmatprep.subr.mxu0 0.0
  %3866 = vmatpush1.xpose.msra.mxu0 0.0
  %3867 = vmatprep.subr.mxu0 0.0
  %3868 = vmatpush1.xpose.msra.mxu0 0.0
  %3869 = vmatprep.subr.mxu0 0.0
  %3870 = vmatpush1.xpose.msra.mxu0 0.0
  %3871 = vmatprep.subr.mxu0 0.0
  %3872 = vmatpush1.xpose.msra.mxu0 0.0
  %3873 = vmatprep.subr.mxu0 0.0
  %3874 = vmatpush1.xpose.msra.mxu0 0.0
  %3875 = vmatprep.subr.mxu0 0.0
  %3876 = vmatpush1.xpose.msra.mxu0 0.0
  %3877 = vmatprep.subr.mxu0 0.0
  %3878 = vmatpush1.xpose.msra.mxu0 0.0
  %3879 = vmatprep.subr.mxu0 0.0
  %3880 = vmatpush1.xpose.msra.mxu0 0.0
  %3881 = vmatprep.subr.mxu0 0.0
  %3882 = vmatpush1.xpose.msra.mxu0 0.0
  %3883 = vmatprep.subr.mxu0 0.0
  %3884 = vmatpush1.xpose.msra.mxu0 0.0
  %3885 = vmatprep.subr.mxu0 0.0
  %3886 = vmatpush1.xpose.msra.mxu0 0.0
  %3887 = vmatprep.subr.mxu0 0.0
  %3888 = vmatpush1.xpose.msra.mxu0 0.0
  %3889 = vmatprep.subr.mxu0 0.0
  %3890 = vmatpush1.xpose.msra.mxu0 0.0
  %3891 = vmatprep.mubr.f32.mxu0 0.0
  %3892 = vmatmul.mubr.f32.gmra.mrb[0].mxu0 %v3821
  %v3893 = vpop.f32.mrb[0].mxu0
  %v3894 = vadd.f32 %v3819, %v3893
  %v3895 = vpop.f32.mrb[0].mxu0
  %3896 = vdwg.mxu0
  %v3897 = vmul.f32 %v3894, 0.25
  %v3898 = vadd.f32 %v3897, %v417
  %v3899 = vsel %vm440, %v3898, -inf
  %3900 = vmax.xlane.f32.xlu0 %v3899
  %v3901 = vpop.xlane.xlu0 %3900
  %v3902 = vsub.f32 %v3898, %v3901
  %v3903 = vmul.f32 %v3902, 1.442695
  %v3904 = vpow.pop %v3903
  %v3905 = vsel %vm440, %v3904, 0.0
  %3906 = vadd.xlane.f32.xlu0 %v3905
  %v3907 = vpop.xlane.xlu0 %3906
  %v3908 = vrcp.pop %v3907
  %v3909 = vmul.f32 %v3904, %v3908
  %3910 = vrot.lane.b32.xlu0 %v309, 32
  %v3911 = vpop.permute.xlu0 %3910
  %3912 = vrot.lane.b32.xlu0 %v2493, 32
  %v3913 = vpop.permute.xlu0 %3912
  %v3917 = vsel %vm440, %v3909, 0
  %3919 = vmatprep.subr.mxu0 0.0
  %3920 = vmatpush1.msra.mxu0 %v3911
  %3921 = vmatprep.subr.mxu0 0.0
  %3922 = vmatpush1.msra.mxu0 %v3913
  %3923 = vmatprep.subr.mxu0 0.0
  %3924 = vmatpush1.msra.mxu0 0.0
  %3925 = vmatprep.subr.mxu0 0.0
  %3926 = vmatpush1.msra.mxu0 0.0
  %3927 = vmatprep.subr.mxu0 0.0
  %3928 = vmatpush1.msra.mxu0 0.0
  %3929 = vmatprep.subr.mxu0 0.0
  %3930 = vmatpush1.msra.mxu0 0.0
  %3931 = vmatprep.subr.mxu0 0.0
  %3932 = vmatpush1.msra.mxu0 0.0
  %3933 = vmatprep.subr.mxu0 0.0
  %3934 = vmatpush1.msra.mxu0 0.0
  %3935 = vmatprep.subr.mxu0 0.0
  %3936 = vmatpush1.msra.mxu0 0.0
  %3937 = vmatprep.subr.mxu0 0.0
  %3938 = vmatpush1.msra.mxu0 0.0
  %3939 = vmatprep.subr.mxu0 0.0
  %3940 = vmatpush1.msra.mxu0 0.0
  %3941 = vmatprep.subr.mxu0 0.0
  %3942 = vmatpush1.msra.mxu0 0.0
  %3943 = vmatprep.subr.mxu0 0.0
  %3944 = vmatpush1.msra.mxu0 0.0
  %3945 = vmatprep.subr.mxu0 0.0
  %3946 = vmatpush1.msra.mxu0 0.0
  %3947 = vmatprep.subr.mxu0 0.0
  %3948 = vmatpush1.msra.mxu0 0.0
  %3949 = vmatprep.subr.mxu0 0.0
  %3950 = vmatpush1.msra.mxu0 0.0
  %3951 = vmatprep.subr.mxu0 0.0
  %3952 = vmatpush1.msra.mxu0 0.0
  %3953 = vmatprep.subr.mxu0 0.0
  %3954 = vmatpush1.msra.mxu0 0.0
  %3955 = vmatprep.subr.mxu0 0.0
  %3956 = vmatpush1.msra.mxu0 0.0
  %3957 = vmatprep.subr.mxu0 0.0
  %3958 = vmatpush1.msra.mxu0 0.0
  %3959 = vmatprep.subr.mxu0 0.0
  %3960 = vmatpush1.msra.mxu0 0.0
  %3961 = vmatprep.subr.mxu0 0.0
  %3962 = vmatpush1.msra.mxu0 0.0
  %3963 = vmatprep.subr.mxu0 0.0
  %3964 = vmatpush1.msra.mxu0 0.0
  %3965 = vmatprep.subr.mxu0 0.0
  %3966 = vmatpush1.msra.mxu0 0.0
  %3967 = vmatprep.subr.mxu0 0.0
  %3968 = vmatpush1.msra.mxu0 0.0
  %3969 = vmatprep.subr.mxu0 0.0
  %3970 = vmatpush1.msra.mxu0 0.0
  %3971 = vmatprep.subr.mxu0 0.0
  %3972 = vmatpush1.msra.mxu0 0.0
  %3973 = vmatprep.subr.mxu0 0.0
  %3974 = vmatpush1.msra.mxu0 0.0
  %3975 = vmatprep.subr.mxu0 0.0
  %3976 = vmatpush1.msra.mxu0 0.0
  %3977 = vmatprep.subr.mxu0 0.0
  %3978 = vmatpush1.msra.mxu0 0.0
  %3979 = vmatprep.subr.mxu0 0.0
  %3980 = vmatpush1.msra.mxu0 0.0
  %3981 = vmatprep.subr.mxu0 0.0
  %3982 = vmatpush1.msra.mxu0 0.0
  %3983 = vmatprep.mubr.f32.mxu0 0.0
  %3984 = vmatmul.mubr.f32.gmra.mrb[0].mxu0 %v3917
  %v3985 = vpop.f32.mrb[0].mxu0
  %v3986 = vadd.f32 0.0, %v3985
  %v3987 = vpop.f32.mrb[0].mxu0
  %3988 = vdwg.mxu0
  %3990 = vrot.lane.b32.xlu0 %v3986, 32
  %v3991 = vpop.permute.xlu0 %3990
  %3993 = vst.msk [vmem:[#allocation2 + $0x8] sm:$0xff] %vm1974, %v3991
  %3994 = vrot.lane.b32.xlu0 %v416, 80
  %v3995 = vpop.permute.xlu0 %3994
  %v3996 = vsel %vm440, %v3995, 0
  %3998 = vmatprep.subr.mxu0 0.0
  %3999 = vmatpush1.xpose.msra.mxu0 %v1984
  %4000 = vmatprep.subr.mxu0 0.0
  %4001 = vmatpush1.xpose.msra.mxu0 %v1986
  %4002 = vmatprep.subr.mxu0 0.0
  %4003 = vmatpush1.xpose.msra.mxu0 0.0
  %4004 = vmatprep.subr.mxu0 0.0
  %4005 = vmatpush1.xpose.msra.mxu0 0.0
  %4006 = vmatprep.subr.mxu0 0.0
  %4007 = vmatpush1.xpose.msra.mxu0 0.0
  %4008 = vmatprep.subr.mxu0 0.0
  %4009 = vmatpush1.xpose.msra.mxu0 0.0
  %4010 = vmatprep.subr.mxu0 0.0
  %4011 = vmatpush1.xpose.msra.mxu0 0.0
  %4012 = vmatprep.subr.mxu0 0.0
  %4013 = vmatpush1.xpose.msra.mxu0 0.0
  %4014 = vmatprep.subr.mxu0 0.0
  %4015 = vmatpush1.xpose.msra.mxu0 0.0
  %4016 = vmatprep.subr.mxu0 0.0
  %4017 = vmatpush1.xpose.msra.mxu0 0.0
  %4018 = vmatprep.subr.mxu0 0.0
  %4019 = vmatpush1.xpose.msra.mxu0 0.0
  %4020 = vmatprep.subr.mxu0 0.0
  %4021 = vmatpush1.xpose.msra.mxu0 0.0
  %4022 = vmatprep.subr.mxu0 0.0
  %4023 = vmatpush1.xpose.msra.mxu0 0.0
  %4024 = vmatprep.subr.mxu0 0.0
  %4025 = vmatpush1.xpose.msra.mxu0 0.0
  %4026 = vmatprep.subr.mxu0 0.0
  %4027 = vmatpush1.xpose.msra.mxu0 0.0
  %4028 = vmatprep.subr.mxu0 0.0
  %4029 = vmatpush1.xpose.msra.mxu0 0.0
  %4030 = vmatprep.subr.mxu0 0.0
  %4031 = vmatpush1.xpose.msra.mxu0 0.0
  %4032 = vmatprep.subr.mxu0 0.0
  %4033 = vmatpush1.xpose.msra.mxu0 0.0
  %4034 = vmatprep.subr.mxu0 0.0
  %4035 = vmatpush1.xpose.msra.mxu0 0.0
  %4036 = vmatprep.subr.mxu0 0.0
  %4037 = vmatpush1.xpose.msra.mxu0 0.0
  %4038 = vmatprep.subr.mxu0 0.0
  %4039 = vmatpush1.xpose.msra.mxu0 0.0
  %4040 = vmatprep.subr.mxu0 0.0
  %4041 = vmatpush1.xpose.msra.mxu0 0.0
  %4042 = vmatprep.subr.mxu0 0.0
  %4043 = vmatpush1.xpose.msra.mxu0 0.0
  %4044 = vmatprep.subr.mxu0 0.0
  %4045 = vmatpush1.xpose.msra.mxu0 0.0
  %4046 = vmatprep.subr.mxu0 0.0
  %4047 = vmatpush1.xpose.msra.mxu0 0.0
  %4048 = vmatprep.subr.mxu0 0.0
  %4049 = vmatpush1.xpose.msra.mxu0 0.0
  %4050 = vmatprep.subr.mxu0 0.0
  %4051 = vmatpush1.xpose.msra.mxu0 0.0
  %4052 = vmatprep.subr.mxu0 0.0
  %4053 = vmatpush1.xpose.msra.mxu0 0.0
  %4054 = vmatprep.subr.mxu0 0.0
  %4055 = vmatpush1.xpose.msra.mxu0 0.0
  %4056 = vmatprep.subr.mxu0 0.0
  %4057 = vmatpush1.xpose.msra.mxu0 0.0
  %4058 = vmatprep.subr.mxu0 0.0
  %4059 = vmatpush1.xpose.msra.mxu0 0.0
  %4060 = vmatprep.subr.mxu0 0.0
  %4061 = vmatpush1.xpose.msra.mxu0 0.0
  %4062 = vmatprep.mubr.f32.mxu0 0.0
  %4063 = vmatmul.mubr.f32.gmra.mrb[0].mxu0 %v3996
  %v4064 = vpop.f32.mrb[0].mxu0
  %v4065 = vadd.f32 0.0, %v4064
  %v4066 = vpop.f32.mrb[0].mxu0
  %4067 = vdwg.mxu0
  %v4069 = vcombine.high %v4065, %v4065
  %v4071 = vunpack.c.l.s4 1966171168
  %v4072 = vunpack.c.0.s8 %v4071
  %v4073 = vlaneseq
  %v4074 = vshrl.u32 %v4073, 7
  %v4075 = vsub.s32 %v4072, %v4074
  %v4076 = vrot.slane %v4065, %v4075
  %v4078 = vunpack.c.l.s4 1966171168
  %v4079 = vunpack.c.0.s8 %v4078
  %v4080 = vlaneseq
  %v4081 = vshrl.u32 %v4080, 7
  %v4082 = vsub.s32 %v4079, %v4081
  %v4083 = vrot.slane %v4069, %v4082
  %v4084 = vcombine.high %v4076, %v4076
  %v4085 = vcombine.high %v4083, %v4083
  %v4087 = vunpack.c.l.s4 1966171168
  %v4088 = vunpack.c.0.s8 %v4087
  %v4089 = vlaneseq
  %v4090 = vshrl.u32 %v4089, 7
  %v4091 = vsub.s32 %v4088, %v4090
  %v4092 = vrot.slane %v4076, %v4091
  %v4094 = vunpack.c.l.s4 1966171168
  %v4095 = vunpack.c.0.s8 %v4094
  %v4096 = vlaneseq
  %v4097 = vshrl.u32 %v4096, 7
  %v4098 = vsub.s32 %v4095, %v4097
  %v4099 = vrot.slane %v4083, %v4098
  %v4101 = vunpack.c.l.s4 1966171168
  %v4102 = vunpack.c.0.s8 %v4101
  %v4103 = vlaneseq
  %v4104 = vshrl.u32 %v4103, 7
  %v4105 = vsub.s32 %v4102, %v4104
  %v4106 = vrot.slane %v4084, %v4105
  %v4108 = vunpack.c.l.s4 1966171168
  %v4109 = vunpack.c.0.s8 %v4108
  %v4110 = vlaneseq
  %v4111 = vshrl.u32 %v4110, 7
  %v4112 = vsub.s32 %v4109, %v4111
  %v4113 = vrot.slane %v4085, %v4112
  %v4114 = vcombine.high %v4092, %v4092
  %v4115 = vcombine.high %v4099, %v4099
  %v4116 = vcombine.high %v4106, %v4106
  %v4117 = vcombine.high %v4113, %v4113
  %v4118 = vlaneseq
  %v4119 = vshrl.u32 %v4118, 7
  %v4120 = vsub.s32 0, %v4119
  %v4121 = vrot.slane %v4092, %v4120
  %v4122 = vlaneseq
  %v4123 = vshrl.u32 %v4122, 7
  %v4124 = vsub.s32 0, %v4123
  %v4125 = vrot.slane %v4106, %v4124
  %v4126 = vlaneseq
  %v4127 = vshrl.u32 %v4126, 7
  %v4128 = vsub.s32 0, %v4127
  %v4129 = vrot.slane %v4114, %v4128
  %v4130 = vlaneseq
  %v4131 = vshrl.u32 %v4130, 7
  %v4132 = vsub.s32 0, %v4131
  %v4133 = vrot.slane %v4116, %v4132
  %v4134 = vlaneseq
  %v4135 = vshrl.u32 %v4134, 7
  %v4136 = vsub.s32 0, %v4135
  %v4137 = vrot.slane %v4099, %v4136
  %v4138 = vlaneseq
  %v4139 = vshrl.u32 %v4138, 7
  %v4140 = vsub.s32 0, %v4139
  %v4141 = vrot.slane %v4113, %v4140
  %v4142 = vlaneseq
  %v4143 = vshrl.u32 %v4142, 7
  %v4144 = vsub.s32 0, %v4143
  %v4145 = vrot.slane %v4115, %v4144
  %v4146 = vlaneseq
  %v4147 = vshrl.u32 %v4146, 7
  %v4148 = vsub.s32 0, %v4147
  %v4149 = vrot.slane %v4117, %v4148
  %v4158 = vmul.f32 %v4121, %v418
  %v4159 = vmul.f32 %v4121, %v419
  %v4160 = vmul.f32 %v4125, %v420
  %v4161 = vmul.f32 %v4125, %v421
  %v4162 = vmul.f32 %v4129, %v422
  %v4163 = vmul.f32 %v4129, %v423
  %v4164 = vmul.f32 %v4133, %v424
  %v4165 = vmul.f32 %v4133, %v425
  %v4166 = vmul.f32 %v4137, %v426
  %v4167 = vmul.f32 %v4137, %v427
  %v4168 = vmul.f32 %v4141, %v428
  %v4169 = vmul.f32 %v4141, %v429
  %v4170 = vmul.f32 %v4145, %v430
  %v4171 = vmul.f32 %v4145, %v431
  %v4172 = vmul.f32 %v4149, %v432
  %v4173 = vmul.f32 %v4149, %v433
  %v4174 = vsel %vm440, %v4158, 0.0
  %4175 = vadd.xlane.f32.xlu0 %v4174
  %v4176 = vpop.xlane.xlu0 %4175
  %v4177 = vsel %vm440, %v4159, 0.0
  %4178 = vadd.xlane.f32.xlu0 %v4177
  %v4179 = vpop.xlane.xlu0 %4178
  %v4180 = vsel %vm440, %v4160, 0.0
  %4181 = vadd.xlane.f32.xlu0 %v4180
  %v4182 = vpop.xlane.xlu0 %4181
  %v4183 = vsel %vm440, %v4161, 0.0
  %4184 = vadd.xlane.f32.xlu0 %v4183
  %v4185 = vpop.xlane.xlu0 %4184
  %v4186 = vsel %vm440, %v4162, 0.0
  %4187 = vadd.xlane.f32.xlu0 %v4186
  %v4188 = vpop.xlane.xlu0 %4187
  %v4189 = vsel %vm440, %v4163, 0.0
  %4190 = vadd.xlane.f32.xlu0 %v4189
  %v4191 = vpop.xlane.xlu0 %4190
  %v4192 = vsel %vm440, %v4164, 0.0
  %4193 = vadd.xlane.f32.xlu0 %v4192
  %v4194 = vpop.xlane.xlu0 %4193
  %v4195 = vsel %vm440, %v4165, 0.0
  %4196 = vadd.xlane.f32.xlu0 %v4195
  %v4197 = vpop.xlane.xlu0 %4196
  %v4198 = vsel %vm440, %v4166, 0.0
  %4199 = vadd.xlane.f32.xlu0 %v4198
  %v4200 = vpop.xlane.xlu0 %4199
  %v4201 = vsel %vm440, %v4167, 0.0
  %4202 = vadd.xlane.f32.xlu0 %v4201
  %v4203 = vpop.xlane.xlu0 %4202
  %v4204 = vsel %vm440, %v4168, 0.0
  %4205 = vadd.xlane.f32.xlu0 %v4204
  %v4206 = vpop.xlane.xlu0 %4205
  %v4207 = vsel %vm440, %v4169, 0.0
  %4208 = vadd.xlane.f32.xlu0 %v4207
  %v4209 = vpop.xlane.xlu0 %4208
  %v4210 = vsel %vm440, %v4170, 0.0
  %4211 = vadd.xlane.f32.xlu0 %v4210
  %v4212 = vpop.xlane.xlu0 %4211
  %v4213 = vsel %vm440, %v4171, 0.0
  %4214 = vadd.xlane.f32.xlu0 %v4213
  %v4215 = vpop.xlane.xlu0 %4214
  %v4216 = vsel %vm440, %v4172, 0.0
  %4217 = vadd.xlane.f32.xlu0 %v4216
  %v4218 = vpop.xlane.xlu0 %4217
  %v4219 = vsel %vm440, %v4173, 0.0
  %4220 = vadd.xlane.f32.xlu0 %v4219
  %v4221 = vpop.xlane.xlu0 %4220
  %4222 = vrot.lane.b32.xlu0 %v407, 80
  %v4223 = vpop.permute.xlu0 %4222
  %4224 = vrot.lane.b32.xlu0 %v309, 80
  %v4225 = vpop.permute.xlu0 %4224
  %4226 = vrot.lane.b32.xlu0 %v2490, 80
  %v4227 = vpop.permute.xlu0 %4226
  %v4244 = vlaneseq
  %v4245 = vshrl.u32 %v4244, 7
  %v4246 = vsub.s32 %v691, %v4245
  %v4247 = vrot.slane %v4176, %v4246
  %v4248 = vlaneseq
  %v4249 = vshrl.u32 %v4248, 7
  %v4250 = vsub.s32 %v696, %v4249
  %v4251 = vrot.slane %v4179, %v4250
  %v4252 = vsel %vm701, %v4251, %v4247
  %v4253 = vlaneseq
  %v4254 = vshrl.u32 %v4253, 7
  %v4255 = vsub.s32 %v691, %v4254
  %v4256 = vrot.slane %v4182, %v4255
  %v4257 = vlaneseq
  %v4258 = vshrl.u32 %v4257, 7
  %v4259 = vsub.s32 %v696, %v4258
  %v4260 = vrot.slane %v4185, %v4259
  %v4261 = vsel %vm701, %v4260, %v4256
  %v4262 = vlaneseq
  %v4263 = vshrl.u32 %v4262, 7
  %v4264 = vsub.s32 %v691, %v4263
  %v4265 = vrot.slane %v4188, %v4264
  %v4266 = vlaneseq
  %v4267 = vshrl.u32 %v4266, 7
  %v4268 = vsub.s32 %v696, %v4267
  %v4269 = vrot.slane %v4191, %v4268
  %v4270 = vsel %vm701, %v4269, %v4265
  %v4271 = vlaneseq
  %v4272 = vshrl.u32 %v4271, 7
  %v4273 = vsub.s32 %v691, %v4272
  %v4274 = vrot.slane %v4194, %v4273
  %v4275 = vlaneseq
  %v4276 = vshrl.u32 %v4275, 7
  %v4277 = vsub.s32 %v696, %v4276
  %v4278 = vrot.slane %v4197, %v4277
  %v4279 = vsel %vm701, %v4278, %v4274
  %v4280 = vlaneseq
  %v4281 = vshrl.u32 %v4280, 7
  %v4282 = vsub.s32 %v691, %v4281
  %v4283 = vrot.slane %v4200, %v4282
  %v4284 = vlaneseq
  %v4285 = vshrl.u32 %v4284, 7
  %v4286 = vsub.s32 %v696, %v4285
  %v4287 = vrot.slane %v4203, %v4286
  %v4288 = vsel %vm701, %v4287, %v4283
  %v4289 = vlaneseq
  %v4290 = vshrl.u32 %v4289, 7
  %v4291 = vsub.s32 %v691, %v4290
  %v4292 = vrot.slane %v4206, %v4291
  %v4293 = vlaneseq
  %v4294 = vshrl.u32 %v4293, 7
  %v4295 = vsub.s32 %v696, %v4294
  %v4296 = vrot.slane %v4209, %v4295
  %v4297 = vsel %vm701, %v4296, %v4292
  %v4298 = vlaneseq
  %v4299 = vshrl.u32 %v4298, 7
  %v4300 = vsub.s32 %v691, %v4299
  %v4301 = vrot.slane %v4212, %v4300
  %v4302 = vlaneseq
  %v4303 = vshrl.u32 %v4302, 7
  %v4304 = vsub.s32 %v696, %v4303
  %v4305 = vrot.slane %v4215, %v4304
  %v4306 = vsel %vm701, %v4305, %v4301
  %v4307 = vlaneseq
  %v4308 = vshrl.u32 %v4307, 7
  %v4309 = vsub.s32 %v691, %v4308
  %v4310 = vrot.slane %v4218, %v4309
  %v4311 = vlaneseq
  %v4312 = vshrl.u32 %v4311, 7
  %v4313 = vsub.s32 %v696, %v4312
  %v4314 = vrot.slane %v4221, %v4313
  %v4315 = vsel %vm701, %v4314, %v4310
  %v4316 = vsel %vm766, %v4261, %v4252
  %v4317 = vsel %vm768, %v4270, %v4316
  %v4318 = vsel %vm770, %v4279, %v4317
  %v4319 = vsel %vm772, %v4288, %v4318
  %v4320 = vsel %vm774, %v4297, %v4319
  %v4321 = vsel %vm776, %v4306, %v4320
  %v4322 = vsel %vm778, %v4315, %v4321
  %v4324 = vsel %vm440, %v4223, 0
  %v4326 = vsel %vm440, %v4225, 0
  %v4328 = vsel %vm440, %v4227, 0
  %4330 = vmatprep.subr.mxu0 0.0
  %4331 = vmatpush1.xpose.msra.mxu0 %v4326
  %4332 = vmatprep.subr.mxu0 0.0
  %4333 = vmatpush1.xpose.msra.mxu0 %v4328
  %4334 = vmatprep.subr.mxu0 0.0
  %4335 = vmatpush1.xpose.msra.mxu0 0.0
  %4336 = vmatprep.subr.mxu0 0.0
  %4337 = vmatpush1.xpose.msra.mxu0 0.0
  %4338 = vmatprep.subr.mxu0 0.0
  %4339 = vmatpush1.xpose.msra.mxu0 0.0
  %4340 = vmatprep.subr.mxu0 0.0
  %4341 = vmatpush1.xpose.msra.mxu0 0.0
  %4342 = vmatprep.subr.mxu0 0.0
  %4343 = vmatpush1.xpose.msra.mxu0 0.0
  %4344 = vmatprep.subr.mxu0 0.0
  %4345 = vmatpush1.xpose.msra.mxu0 0.0
  %4346 = vmatprep.subr.mxu0 0.0
  %4347 = vmatpush1.xpose.msra.mxu0 0.0
  %4348 = vmatprep.subr.mxu0 0.0
  %4349 = vmatpush1.xpose.msra.mxu0 0.0
  %4350 = vmatprep.subr.mxu0 0.0
  %4351 = vmatpush1.xpose.msra.mxu0 0.0
  %4352 = vmatprep.subr.mxu0 0.0
  %4353 = vmatpush1.xpose.msra.mxu0 0.0
  %4354 = vmatprep.subr.mxu0 0.0
  %4355 = vmatpush1.xpose.msra.mxu0 0.0
  %4356 = vmatprep.subr.mxu0 0.0
  %4357 = vmatpush1.xpose.msra.mxu0 0.0
  %4358 = vmatprep.subr.mxu0 0.0
  %4359 = vmatpush1.xpose.msra.mxu0 0.0
  %4360 = vmatprep.subr.mxu0 0.0
  %4361 = vmatpush1.xpose.msra.mxu0 0.0
  %4362 = vmatprep.subr.mxu0 0.0
  %4363 = vmatpush1.xpose.msra.mxu0 0.0
  %4364 = vmatprep.subr.mxu0 0.0
  %4365 = vmatpush1.xpose.msra.mxu0 0.0
  %4366 = vmatprep.subr.mxu0 0.0
  %4367 = vmatpush1.xpose.msra.mxu0 0.0
  %4368 = vmatprep.subr.mxu0 0.0
  %4369 = vmatpush1.xpose.msra.mxu0 0.0
  %4370 = vmatprep.subr.mxu0 0.0
  %4371 = vmatpush1.xpose.msra.mxu0 0.0
  %4372 = vmatprep.subr.mxu0 0.0
  %4373 = vmatpush1.xpose.msra.mxu0 0.0
  %4374 = vmatprep.subr.mxu0 0.0
  %4375 = vmatpush1.xpose.msra.mxu0 0.0
  %4376 = vmatprep.subr.mxu0 0.0
  %4377 = vmatpush1.xpose.msra.mxu0 0.0
  %4378 = vmatprep.subr.mxu0 0.0
  %4379 = vmatpush1.xpose.msra.mxu0 0.0
  %4380 = vmatprep.subr.mxu0 0.0
  %4381 = vmatpush1.xpose.msra.mxu0 0.0
  %4382 = vmatprep.subr.mxu0 0.0
  %4383 = vmatpush1.xpose.msra.mxu0 0.0
  %4384 = vmatprep.subr.mxu0 0.0
  %4385 = vmatpush1.xpose.msra.mxu0 0.0
  %4386 = vmatprep.subr.mxu0 0.0
  %4387 = vmatpush1.xpose.msra.mxu0 0.0
  %4388 = vmatprep.subr.mxu0 0.0
  %4389 = vmatpush1.xpose.msra.mxu0 0.0
  %4390 = vmatprep.subr.mxu0 0.0
  %4391 = vmatpush1.xpose.msra.mxu0 0.0
  %4392 = vmatprep.subr.mxu0 0.0
  %4393 = vmatpush1.xpose.msra.mxu0 0.0
  %4394 = vmatprep.mubr.f32.mxu0 0.0
  %4395 = vmatmul.mubr.f32.gmra.mrb[0].mxu0 %v4324
  %v4396 = vpop.f32.mrb[0].mxu0
  %v4397 = vadd.f32 %v4322, %v4396
  %v4398 = vpop.f32.mrb[0].mxu0
  %4399 = vdwg.mxu0
  %v4400 = vmul.f32 %v4397, 0.25
  %v4401 = vadd.f32 %v4400, %v417
  %v4402 = vsel %vm440, %v4401, -inf
  %4403 = vmax.xlane.f32.xlu0 %v4402
  %v4404 = vpop.xlane.xlu0 %4403
  %v4405 = vsub.f32 %v4401, %v4404
  %v4406 = vmul.f32 %v4405, 1.442695
  %v4407 = vpow.pop %v4406
  %v4408 = vsel %vm440, %v4407, 0.0
  %4409 = vadd.xlane.f32.xlu0 %v4408
  %v4410 = vpop.xlane.xlu0 %4409
  %v4411 = vrcp.pop %v4410
  %v4412 = vmul.f32 %v4407, %v4411
  %4413 = vrot.lane.b32.xlu0 %v309, 16
  %v4414 = vpop.permute.xlu0 %4413
  %4415 = vrot.lane.b32.xlu0 %v2493, 16
  %v4416 = vpop.permute.xlu0 %4415
  %v4420 = vsel %vm440, %v4412, 0
  %4422 = vmatprep.subr.mxu0 0.0
  %4423 = vmatpush1.msra.mxu0 %v4414
  %4424 = vmatprep.subr.mxu0 0.0
  %4425 = vmatpush1.msra.mxu0 %v4416
  %4426 = vmatprep.subr.mxu0 0.0
  %4427 = vmatpush1.msra.mxu0 0.0
  %4428 = vmatprep.subr.mxu0 0.0
  %4429 = vmatpush1.msra.mxu0 0.0
  %4430 = vmatprep.subr.mxu0 0.0
  %4431 = vmatpush1.msra.mxu0 0.0
  %4432 = vmatprep.subr.mxu0 0.0
  %4433 = vmatpush1.msra.mxu0 0.0
  %4434 = vmatprep.subr.mxu0 0.0
  %4435 = vmatpush1.msra.mxu0 0.0
  %4436 = vmatprep.subr.mxu0 0.0
  %4437 = vmatpush1.msra.mxu0 0.0
  %4438 = vmatprep.subr.mxu0 0.0
  %4439 = vmatpush1.msra.mxu0 0.0
  %4440 = vmatprep.subr.mxu0 0.0
  %4441 = vmatpush1.msra.mxu0 0.0
  %4442 = vmatprep.subr.mxu0 0.0
  %4443 = vmatpush1.msra.mxu0 0.0
  %4444 = vmatprep.subr.mxu0 0.0
  %4445 = vmatpush1.msra.mxu0 0.0
  %4446 = vmatprep.subr.mxu0 0.0
  %4447 = vmatpush1.msra.mxu0 0.0
  %4448 = vmatprep.subr.mxu0 0.0
  %4449 = vmatpush1.msra.mxu0 0.0
  %4450 = vmatprep.subr.mxu0 0.0
  %4451 = vmatpush1.msra.mxu0 0.0
  %4452 = vmatprep.subr.mxu0 0.0
  %4453 = vmatpush1.msra.mxu0 0.0
  %4454 = vmatprep.subr.mxu0 0.0
  %4455 = vmatpush1.msra.mxu0 0.0
  %4456 = vmatprep.subr.mxu0 0.0
  %4457 = vmatpush1.msra.mxu0 0.0
  %4458 = vmatprep.subr.mxu0 0.0
  %4459 = vmatpush1.msra.mxu0 0.0
  %4460 = vmatprep.subr.mxu0 0.0
  %4461 = vmatpush1.msra.mxu0 0.0
  %4462 = vmatprep.subr.mxu0 0.0
  %4463 = vmatpush1.msra.mxu0 0.0
  %4464 = vmatprep.subr.mxu0 0.0
  %4465 = vmatpush1.msra.mxu0 0.0
  %4466 = vmatprep.subr.mxu0 0.0
  %4467 = vmatpush1.msra.mxu0 0.0
  %4468 = vmatprep.subr.mxu0 0.0
  %4469 = vmatpush1.msra.mxu0 0.0
  %4470 = vmatprep.subr.mxu0 0.0
  %4471 = vmatpush1.msra.mxu0 0.0
  %4472 = vmatprep.subr.mxu0 0.0
  %4473 = vmatpush1.msra.mxu0 0.0
  %4474 = vmatprep.subr.mxu0 0.0
  %4475 = vmatpush1.msra.mxu0 0.0
  %4476 = vmatprep.subr.mxu0 0.0
  %4477 = vmatpush1.msra.mxu0 0.0
  %4478 = vmatprep.subr.mxu0 0.0
  %4479 = vmatpush1.msra.mxu0 0.0
  %4480 = vmatprep.subr.mxu0 0.0
  %4481 = vmatpush1.msra.mxu0 0.0
  %4482 = vmatprep.subr.mxu0 0.0
  %4483 = vmatpush1.msra.mxu0 0.0
  %4484 = vmatprep.subr.mxu0 0.0
  %4485 = vmatpush1.msra.mxu0 0.0
  %4486 = vmatprep.mubr.f32.mxu0 0.0
  %4487 = vmatmul.mubr.f32.gmra.mrb[0].mxu0 %v4420
  %v4488 = vpop.f32.mrb[0].mxu0
  %v4489 = vadd.f32 0.0, %v4488
  %v4490 = vpop.f32.mrb[0].mxu0
  %4491 = vdwg.mxu0
  %4493 = vrot.lane.b32.xlu0 %v4489, 48
  %v4494 = vpop.permute.xlu0 %4493
  %4496 = vst.msk [vmem:[#allocation2 + $0x8] sm:$0xff] %vm2486, %v4494
  %v4497 = vld [vmem:[#allocation2] sm:$0xff]
  %v4498 = vld [vmem:[#allocation2 + $0x8] sm:$0xff]
  %v4499 = vld [vmem:[%s12] sm:$0xff]
  %v4500 = vld [vmem:[%s12 + $0x8] sm:$0xff]
  %v4501 = vld [vmem:[%s12 + $0x10] sm:$0xff]
  %v4502 = vld [vmem:[%s12 + $0x18] sm:$0xff]
  %v4503 = vld [vmem:[%s12 + $0x20] sm:$0xff]
  %v4504 = vld [vmem:[%s12 + $0x28] sm:$0xff]
  %v4505 = vld [vmem:[%s12 + $0x30] sm:$0xff]
  %v4506 = vld [vmem:[%s12 + $0x38] sm:$0xff]
  %vm4507 = vcmask 523264
  %v4509 = vsel %vm4507, %v4497, 0
  %v4512 = vsel %vm4507, %v4498, 0
  %4514 = vmatprep.subr.mxu0 0.0
  %4515 = vmatpush1.msra.mxu0 %v4499
  %4516 = vmatprep.subr.mxu0 0.0
  %4517 = vmatpush1.msra.mxu0 %v4500
  %4518 = vmatprep.subr.mxu0 0.0
  %4519 = vmatpush1.msra.mxu0 %v4501
  %4520 = vmatprep.subr.mxu0 0.0
  %4521 = vmatpush1.msra.mxu0 %v4502
  %4522 = vmatprep.subr.mxu0 0.0
  %4523 = vmatpush1.msra.mxu0 %v4503
  %4524 = vmatprep.subr.mxu0 0.0
  %4525 = vmatpush1.msra.mxu0 %v4504
  %4526 = vmatprep.subr.mxu0 0.0
  %4527 = vmatpush1.msra.mxu0 %v4505
  %4528 = vmatprep.subr.mxu0 0.0
  %4529 = vmatpush1.msra.mxu0 %v4506
  %4530 = vmatprep.subr.mxu0 0.0
  %4531 = vmatpush1.msra.mxu0 0.0
  %4532 = vmatprep.subr.mxu0 0.0
  %4533 = vmatpush1.msra.mxu0 0.0
  %4534 = vmatprep.subr.mxu0 0.0
  %4535 = vmatpush1.msra.mxu0 0.0
  %4536 = vmatprep.subr.mxu0 0.0
  %4537 = vmatpush1.msra.mxu0 0.0
  %4538 = vmatprep.subr.mxu0 0.0
  %4539 = vmatpush1.msra.mxu0 0.0
  %4540 = vmatprep.subr.mxu0 0.0
  %4541 = vmatpush1.msra.mxu0 0.0
  %4542 = vmatprep.subr.mxu0 0.0
  %4543 = vmatpush1.msra.mxu0 0.0
  %4544 = vmatprep.subr.mxu0 0.0
  %4545 = vmatpush1.msra.mxu0 0.0
  %4546 = vmatprep.subr.mxu0 0.0
  %4547 = vmatpush1.msra.mxu0 0.0
  %4548 = vmatprep.subr.mxu0 0.0
  %4549 = vmatpush1.msra.mxu0 0.0
  %4550 = vmatprep.subr.mxu0 0.0
  %4551 = vmatpush1.msra.mxu0 0.0
  %4552 = vmatprep.subr.mxu0 0.0
  %4553 = vmatpush1.msra.mxu0 0.0
  %4554 = vmatprep.subr.mxu0 0.0
  %4555 = vmatpush1.msra.mxu0 0.0
  %4556 = vmatprep.subr.mxu0 0.0
  %4557 = vmatpush1.msra.mxu0 0.0
  %4558 = vmatprep.subr.mxu0 0.0
  %4559 = vmatpush1.msra.mxu0 0.0
  %4560 = vmatprep.subr.mxu0 0.0
  %4561 = vmatpush1.msra.mxu0 0.0
  %4562 = vmatprep.subr.mxu0 0.0
  %4563 = vmatpush1.msra.mxu0 0.0
  %4564 = vmatprep.subr.mxu0 0.0
  %4565 = vmatpush1.msra.mxu0 0.0
  %4566 = vmatprep.subr.mxu0 0.0
  %4567 = vmatpush1.msra.mxu0 0.0
  %4568 = vmatprep.subr.mxu0 0.0
  %4569 = vmatpush1.msra.mxu0 0.0
  %4570 = vmatprep.subr.mxu0 0.0
  %4571 = vmatpush1.msra.mxu0 0.0
  %4572 = vmatprep.subr.mxu0 0.0
  %4573 = vmatpush1.msra.mxu0 0.0
  %4574 = vmatprep.subr.mxu0 0.0
  %4575 = vmatpush1.msra.mxu0 0.0
  %4576 = vmatprep.subr.mxu0 0.0
  %4577 = vmatpush1.msra.mxu0 0.0
  %4578 = vmatprep.mubr.f32.mxu0 0.0
  %4579 = vmatmul.mubr.f32.gmra.mrb[0].mxu0 %v4509
  %v4580 = vpop.f32.mrb[0].mxu0
  %v4581 = vadd.f32 0.0, %v4580
  %v4582 = vpop.f32.mrb[0].mxu0
  %4583 = vmatprep.mubr.f32.mxu0 0.0
  %4584 = vmatmul.mubr.f32.gmra.mrb[0].mxu0 %v4512
  %v4585 = vpop.f32.mrb[0].mxu0
  %v4586 = vadd.f32 0.0, %v4585
  %v4587 = vpop.f32.mrb[0].mxu0
  %4588 = vdwg.mxu0
  %v4589 = vld [vmem:[%s13] sm:$0xff]
  %v4590 = vld [vmem:[%s13 + $0x8] sm:$0xff]
  %v4591 = vld [vmem:[%s13 + $0x10] sm:$0xff]
  %v4592 = vld [vmem:[%s13 + $0x18] sm:$0xff]
  %v4594 = vsel %vm90, %v4581, 0
  %v4597 = vsel %vm90, %v4586, 0
  %4599 = vmatprep.subr.mxu0 0.0
  %4600 = vmatpush1.msra.mxu0 %v4589
  %4601 = vmatprep.subr.mxu0 0.0
  %4602 = vmatpush1.msra.mxu0 %v4590
  %4603 = vmatprep.subr.mxu0 0.0
  %4604 = vmatpush1.msra.mxu0 %v4591
  %4605 = vmatprep.subr.mxu0 0.0
  %4606 = vmatpush1.msra.mxu0 %v4592
  %4607 = vmatprep.subr.mxu0 0.0
  %4608 = vmatpush1.msra.mxu0 0.0
  %4609 = vmatprep.subr.mxu0 0.0
  %4610 = vmatpush1.msra.mxu0 0.0
  %4611 = vmatprep.subr.mxu0 0.0
  %4612 = vmatpush1.msra.mxu0 0.0
  %4613 = vmatprep.subr.mxu0 0.0
  %4614 = vmatpush1.msra.mxu0 0.0
  %4615 = vmatprep.subr.mxu0 0.0
  %4616 = vmatpush1.msra.mxu0 0.0
  %4617 = vmatprep.subr.mxu0 0.0
  %4618 = vmatpush1.msra.mxu0 0.0
  %4619 = vmatprep.subr.mxu0 0.0
  %4620 = vmatpush1.msra.mxu0 0.0
  %4621 = vmatprep.subr.mxu0 0.0
  %4622 = vmatpush1.msra.mxu0 0.0
  %4623 = vmatprep.subr.mxu0 0.0
  %4624 = vmatpush1.msra.mxu0 0.0
  %4625 = vmatprep.subr.mxu0 0.0
  %4626 = vmatpush1.msra.mxu0 0.0
  %4627 = vmatprep.subr.mxu0 0.0
  %4628 = vmatpush1.msra.mxu0 0.0
  %4629 = vmatprep.subr.mxu0 0.0
  %4630 = vmatpush1.msra.mxu0 0.0
  %4631 = vmatprep.subr.mxu0 0.0
  %4632 = vmatpush1.msra.mxu0 0.0
  %4633 = vmatprep.subr.mxu0 0.0
  %4634 = vmatpush1.msra.mxu0 0.0
  %4635 = vmatprep.subr.mxu0 0.0
  %4636 = vmatpush1.msra.mxu0 0.0
  %4637 = vmatprep.subr.mxu0 0.0
  %4638 = vmatpush1.msra.mxu0 0.0
  %4639 = vmatprep.subr.mxu0 0.0
  %4640 = vmatpush1.msra.mxu0 0.0
  %4641 = vmatprep.subr.mxu0 0.0
  %4642 = vmatpush1.msra.mxu0 0.0
  %4643 = vmatprep.subr.mxu0 0.0
  %4644 = vmatpush1.msra.mxu0 0.0
  %4645 = vmatprep.subr.mxu0 0.0
  %4646 = vmatpush1.msra.mxu0 0.0
  %4647 = vmatprep.subr.mxu0 0.0
  %4648 = vmatpush1.msra.mxu0 0.0
  %4649 = vmatprep.subr.mxu0 0.0
  %4650 = vmatpush1.msra.mxu0 0.0
  %4651 = vmatprep.subr.mxu0 0.0
  %4652 = vmatpush1.msra.mxu0 0.0
  %4653 = vmatprep.subr.mxu0 0.0
  %4654 = vmatpush1.msra.mxu0 0.0
  %4655 = vmatprep.subr.mxu0 0.0
  %4656 = vmatpush1.msra.mxu0 0.0
  %4657 = vmatprep.subr.mxu0 0.0
  %4658 = vmatpush1.msra.mxu0 0.0
  %4659 = vmatprep.subr.mxu0 0.0
  %4660 = vmatpush1.msra.mxu0 0.0
  %4661 = vmatprep.subr.mxu0 0.0
  %4662 = vmatpush1.msra.mxu0 0.0
  %4663 = vmatprep.mubr.f32.mxu0 0.0
  %4664 = vmatmul.mubr.f32.gmra.mrb[0].mxu0 %v4594
  %v4665 = vpop.f32.mrb[0].mxu0
  %v4666 = vadd.f32 0.0, %v4665
  %v4667 = vpop.f32.mrb[0].mxu0
  %4668 = vmatprep.mubr.f32.mxu0 0.0
  %4669 = vmatmul.mubr.f32.gmra.mrb[0].mxu0 %v4597
  %v4670 = vpop.f32.mrb[0].mxu0
  %v4671 = vadd.f32 0.0, %v4670
  %v4672 = vpop.f32.mrb[0].mxu0
  %4673 = vdwg.mxu0
  %v4674 = vld [vmem:[%s14] sm:$0xff]
  %v4675 = vld [vmem:[%s14 + $0x8] sm:$0xff]
  %v4676 = vld [vmem:[%s14 + $0x10] sm:$0xff]
  %v4677 = vld [vmem:[%s14 + $0x18] sm:$0xff]
  %v4679 = vsel %vm90, %v86, 0
  %v4682 = vsel %vm90, %v87, 0
  %4684 = vmatprep.subr.mxu0 0.0
  %4685 = vmatpush1.msra.mxu0 %v4674
  %4686 = vmatprep.subr.mxu0 0.0
  %4687 = vmatpush1.msra.mxu0 %v4675
  %4688 = vmatprep.subr.mxu0 0.0
  %4689 = vmatpush1.msra.mxu0 %v4676
  %4690 = vmatprep.subr.mxu0 0.0
  %4691 = vmatpush1.msra.mxu0 %v4677
  %4692 = vmatprep.subr.mxu0 0.0
  %4693 = vmatpush1.msra.mxu0 0.0
  %4694 = vmatprep.subr.mxu0 0.0
  %4695 = vmatpush1.msra.mxu0 0.0
  %4696 = vmatprep.subr.mxu0 0.0
  %4697 = vmatpush1.msra.mxu0 0.0
  %4698 = vmatprep.subr.mxu0 0.0
  %4699 = vmatpush1.msra.mxu0 0.0
  %4700 = vmatprep.subr.mxu0 0.0
  %4701 = vmatpush1.msra.mxu0 0.0
  %4702 = vmatprep.subr.mxu0 0.0
  %4703 = vmatpush1.msra.mxu0 0.0
  %4704 = vmatprep.subr.mxu0 0.0
  %4705 = vmatpush1.msra.mxu0 0.0
  %4706 = vmatprep.subr.mxu0 0.0
  %4707 = vmatpush1.msra.mxu0 0.0
  %4708 = vmatprep.subr.mxu0 0.0
  %4709 = vmatpush1.msra.mxu0 0.0
  %4710 = vmatprep.subr.mxu0 0.0
  %4711 = vmatpush1.msra.mxu0 0.0
  %4712 = vmatprep.subr.mxu0 0.0
  %4713 = vmatpush1.msra.mxu0 0.0
  %4714 = vmatprep.subr.mxu0 0.0
  %4715 = vmatpush1.msra.mxu0 0.0
  %4716 = vmatprep.subr.mxu0 0.0
  %4717 = vmatpush1.msra.mxu0 0.0
  %4718 = vmatprep.subr.mxu0 0.0
  %4719 = vmatpush1.msra.mxu0 0.0
  %4720 = vmatprep.subr.mxu0 0.0
  %4721 = vmatpush1.msra.mxu0 0.0
  %4722 = vmatprep.subr.mxu0 0.0
  %4723 = vmatpush1.msra.mxu0 0.0
  %4724 = vmatprep.subr.mxu0 0.0
  %4725 = vmatpush1.msra.mxu0 0.0
  %4726 = vmatprep.subr.mxu0 0.0
  %4727 = vmatpush1.msra.mxu0 0.0
  %4728 = vmatprep.subr.mxu0 0.0
  %4729 = vmatpush1.msra.mxu0 0.0
  %4730 = vmatprep.subr.mxu0 0.0
  %4731 = vmatpush1.msra.mxu0 0.0
  %4732 = vmatprep.subr.mxu0 0.0
  %4733 = vmatpush1.msra.mxu0 0.0
  %4734 = vmatprep.subr.mxu0 0.0
  %4735 = vmatpush1.msra.mxu0 0.0
  %4736 = vmatprep.subr.mxu0 0.0
  %4737 = vmatpush1.msra.mxu0 0.0
  %4738 = vmatprep.subr.mxu0 0.0
  %4739 = vmatpush1.msra.mxu0 0.0
  %4740 = vmatprep.subr.mxu0 0.0
  %4741 = vmatpush1.msra.mxu0 0.0
  %4742 = vmatprep.subr.mxu0 0.0
  %4743 = vmatpush1.msra.mxu0 0.0
  %4744 = vmatprep.subr.mxu0 0.0
  %4745 = vmatpush1.msra.mxu0 0.0
  %4746 = vmatprep.subr.mxu0 0.0
  %4747 = vmatpush1.msra.mxu0 0.0
  %4748 = vmatprep.mubr.f32.mxu0 0.0
  %4749 = vmatmul.mubr.f32.gmra.mrb[0].mxu0 %v4679
  %v4750 = vpop.f32.mrb[0].mxu0
  %v4751 = vadd.f32 0.0, %v4750
  %v4752 = vpop.f32.mrb[0].mxu0
  %4753 = vmatprep.mubr.f32.mxu0 0.0
  %4754 = vmatmul.mubr.f32.gmra.mrb[0].mxu0 %v4682
  %v4755 = vpop.f32.mrb[0].mxu0
  %v4756 = vadd.f32 0.0, %v4755
  %v4757 = vpop.f32.mrb[0].mxu0
  %4758 = vdwg.mxu0
  %v4759 = vld [vmem:[%s16] sm:$0x1]
  %v4760 = vadd.f32 %v4666, %v4751
  %v4761 = vadd.f32 %v4671, %v4756
  %v4763 = vlaneseq
  %v4764 = vshrl.u32 %v4763, 7
  %v4765 = vsub.s32 0, %v4764
  %v4766 = vrot.slane %v4759, %v4765
  %v4768 = vadd.f32 %v4760, %v4766
  %v4769 = vadd.f32 %v4761, %v4766
  %v4770 = vxor.u32 %v4768, 2147483648
  %v4771 = vxor.u32 %v4769, 2147483648
  %v4772 = vmul.f32 %v4770, 1.442695
  %v4773 = vpow.pop %v4772
  %v4774 = vmul.f32 %v4771, 1.442695
  %v4775 = vpow.pop %v4774
  %v4776 = vadd.f32 %v4773, 1.0
  %v4777 = vadd.f32 %v4775, 1.0
  %v4778 = vrcp.pop %v4776
  %v4779 = vmul.f32 1.0, %v4778
  %v4780 = vrcp.pop %v4777
  %v4781 = vmul.f32 1.0, %v4780
  %v4782 = vmul.f32 %v4779, %v86
  %v4783 = vmul.f32 %v4781, %v87
  %v4784 = vld [vmem:[%s15] sm:$0xff]
  %v4785 = vld [vmem:[%s15 + $0x8] sm:$0xff]
  %v4786 = vld [vmem:[%s15 + $0x10] sm:$0xff]
  %v4787 = vld [vmem:[%s15 + $0x18] sm:$0xff]
  %v4789 = vsel %vm90, %v4782, 0
  %v4792 = vsel %vm90, %v4783, 0
  %4794 = vmatprep.subr.mxu0 0.0
  %4795 = vmatpush1.msra.mxu0 %v4784
  %4796 = vmatprep.subr.mxu0 0.0
  %4797 = vmatpush1.msra.mxu0 %v4785
  %4798 = vmatprep.subr.mxu0 0.0
  %4799 = vmatpush1.msra.mxu0 %v4786
  %4800 = vmatprep.subr.mxu0 0.0
  %4801 = vmatpush1.msra.mxu0 %v4787
  %4802 = vmatprep.subr.mxu0 0.0
  %4803 = vmatpush1.msra.mxu0 0.0
  %4804 = vmatprep.subr.mxu0 0.0
  %4805 = vmatpush1.msra.mxu0 0.0
  %4806 = vmatprep.subr.mxu0 0.0
  %4807 = vmatpush1.msra.mxu0 0.0
  %4808 = vmatprep.subr.mxu0 0.0
  %4809 = vmatpush1.msra.mxu0 0.0
  %4810 = vmatprep.subr.mxu0 0.0
  %4811 = vmatpush1.msra.mxu0 0.0
  %4812 = vmatprep.subr.mxu0 0.0
  %4813 = vmatpush1.msra.mxu0 0.0
  %4814 = vmatprep.subr.mxu0 0.0
  %4815 = vmatpush1.msra.mxu0 0.0
  %4816 = vmatprep.subr.mxu0 0.0
  %4817 = vmatpush1.msra.mxu0 0.0
  %4818 = vmatprep.subr.mxu0 0.0
  %4819 = vmatpush1.msra.mxu0 0.0
  %4820 = vmatprep.subr.mxu0 0.0
  %4821 = vmatpush1.msra.mxu0 0.0
  %4822 = vmatprep.subr.mxu0 0.0
  %4823 = vmatpush1.msra.mxu0 0.0
  %4824 = vmatprep.subr.mxu0 0.0
  %4825 = vmatpush1.msra.mxu0 0.0
  %4826 = vmatprep.subr.mxu0 0.0
  %4827 = vmatpush1.msra.mxu0 0.0
  %4828 = vmatprep.subr.mxu0 0.0
  %4829 = vmatpush1.msra.mxu0 0.0
  %4830 = vmatprep.subr.mxu0 0.0
  %4831 = vmatpush1.msra.mxu0 0.0
  %4832 = vmatprep.subr.mxu0 0.0
  %4833 = vmatpush1.msra.mxu0 0.0
  %4834 = vmatprep.subr.mxu0 0.0
  %4835 = vmatpush1.msra.mxu0 0.0
  %4836 = vmatprep.subr.mxu0 0.0
  %4837 = vmatpush1.msra.mxu0 0.0
  %4838 = vmatprep.subr.mxu0 0.0
  %4839 = vmatpush1.msra.mxu0 0.0
  %4840 = vmatprep.subr.mxu0 0.0
  %4841 = vmatpush1.msra.mxu0 0.0
  %4842 = vmatprep.subr.mxu0 0.0
  %4843 = vmatpush1.msra.mxu0 0.0
  %4844 = vmatprep.subr.mxu0 0.0
  %4845 = vmatpush1.msra.mxu0 0.0
  %4846 = vmatprep.subr.mxu0 0.0
  %4847 = vmatpush1.msra.mxu0 0.0
  %4848 = vmatprep.subr.mxu0 0.0
  %4849 = vmatpush1.msra.mxu0 0.0
  %4850 = vmatprep.subr.mxu0 0.0
  %4851 = vmatpush1.msra.mxu0 0.0
  %4852 = vmatprep.subr.mxu0 0.0
  %4853 = vmatpush1.msra.mxu0 0.0
  %4854 = vmatprep.subr.mxu0 0.0
  %4855 = vmatpush1.msra.mxu0 0.0
  %4856 = vmatprep.subr.mxu0 0.0
  %4857 = vmatpush1.msra.mxu0 0.0
  %4858 = vmatprep.mubr.f32.mxu0 0.0
  %4859 = vmatmul.mubr.f32.gmra.mrb[0].mxu0 %v4789
  %v4860 = vpop.f32.mrb[0].mxu0
  %v4861 = vadd.f32 0.0, %v4860
  %v4862 = vpop.f32.mrb[0].mxu0
  %4863 = vmatprep.mubr.f32.mxu0 0.0
  %4864 = vmatmul.mubr.f32.gmra.mrb[0].mxu0 %v4792
  %v4865 = vpop.f32.mrb[0].mxu0
  %v4866 = vadd.f32 0.0, %v4865
  %v4867 = vpop.f32.mrb[0].mxu0
  %4868 = vdwg.mxu0
  %4871 = vrot.lane.b32.xlu0 %v4861, 64
  %v4872 = vpop.permute.xlu0 %4871
  %4873 = vrot.lane.b32.xlu0 %v4866, 64
  %v4874 = vpop.permute.xlu0 %4873
  %v4877 = vadd.f32 %v4666, %v4872
  %v4878 = vadd.f32 %v4671, %v4874
  %v4879 = vadd.f32 %v4877, %v4766
  %v4880 = vadd.f32 %v4878, %v4766
  %v4881 = vtanh.pop %v4879
  %v4882 = vtanh.pop %v4880
  %v4883 = vsub.f32 1.0, %v4779
  %v4884 = vsub.f32 1.0, %v4781
  %4885 = vrot.lane.b32.xlu0 %v86, 32
  %v4886 = vpop.permute.xlu0 %4885
  %4887 = vrot.lane.b32.xlu0 %v87, 32
  %v4888 = vpop.permute.xlu0 %4887
  %v4891 = vmul.f32 %v4883, %v4886
  %v4892 = vmul.f32 %v4884, %v4888
  %4895 = vrot.lane.b32.xlu0 %v4881, 96
  %v4896 = vpop.permute.xlu0 %4895
  %4897 = vrot.lane.b32.xlu0 %v4882, 96
  %v4898 = vpop.permute.xlu0 %4897
  %v4901 = vmul.f32 %v4779, %v4896
  %v4902 = vmul.f32 %v4781, %v4898
  %v4903 = vadd.f32 %v4891, %v4901
  %v4904 = vadd.f32 %v4892, %v4902
  %4907 = vrot.lane.b32.xlu0 %v4903, 96
  %v4908 = vpop.permute.xlu0 %4907
  %4909 = vrot.lane.b32.xlu0 %v4904, 96
  %v4910 = vpop.permute.xlu0 %4909
  %v4913 = vsel %vm90, %v4908, 0.0
  %4914 = vadd.xlane.f32.xlu0 %v4913
  %v4915 = vpop.xlane.xlu0 %4914
  %v4916 = vsel %vm90, %v4910, 0.0
  %4917 = vadd.xlane.f32.xlu0 %v4916
  %v4918 = vpop.xlane.xlu0 %4917
  %v4919 = vmul.f32 %v4915, %v97
  %v4920 = vmul.f32 %v4918, %v97
  %v4921 = vsub.f32 %v4903, %v4919
  %v4922 = vsub.f32 %v4904, %v4920
  %v4923 = vmul.f32 %v4921, %v4921
  %v4924 = vmul.f32 %v4922, %v4922
  %4927 = vrot.lane.b32.xlu0 %v4923, 96
  %v4928 = vpop.permute.xlu0 %4927
  %4929 = vrot.lane.b32.xlu0 %v4924, 96
  %v4930 = vpop.permute.xlu0 %4929
  %v4933 = vsel %vm90, %v4928, 0.0
  %4934 = vadd.xlane.f32.xlu0 %v4933
  %v4935 = vpop.xlane.xlu0 %4934
  %v4936 = vsel %vm90, %v4930, 0.0
  %4937 = vadd.xlane.f32.xlu0 %v4936
  %v4938 = vpop.xlane.xlu0 %4937
  %v4939 = vmul.f32 %v4935, %v97
  %v4940 = vmul.f32 %v4938, %v97
  %v4941 = vadd.f32 %v4939, 1e-05
  %v4942 = vadd.f32 %v4940, 1e-05
  %v4943 = vrsqrt.pop %v4941
  %v4944 = vrsqrt.pop %v4942
  %v4945 = vmul.f32 %v4921, %v4943
  %v4946 = vmul.f32 %v4922, %v4944
  %v4947 = vld [vmem:[%s17] sm:$0x1]
  %v4949 = vlaneseq
  %v4950 = vshrl.u32 %v4949, 7
  %v4951 = vsub.s32 0, %v4950
  %v4952 = vrot.slane %v4947, %v4951
  %4953 = vrot.lane.b32.xlu0 %v4952, 32
  %v4954 = vpop.permute.xlu0 %4953
  %v4956 = vmul.f32 %v4945, %v4954
  %v4957 = vmul.f32 %v4946, %v4954
  %v4958 = vld [vmem:[%s18] sm:$0x1]
  %v4960 = vlaneseq
  %v4961 = vshrl.u32 %v4960, 7
  %v4962 = vsub.s32 0, %v4961
  %v4963 = vrot.slane %v4958, %v4962
  %4964 = vrot.lane.b32.xlu0 %v4963, 32
  %v4965 = vpop.permute.xlu0 %4964
  %v4967 = vadd.f32 %v4956, %v4965
  %v4968 = vadd.f32 %v4957, %v4965
  %v4969 = vld [vmem:[%s19] sm:$0xff]
  %v4970 = vld [vmem:[%s19 + $0x8] sm:$0xff]
  %v4971 = vld [vmem:[%s19 + $0x10] sm:$0xff]
  %v4972 = vld [vmem:[%s19 + $0x18] sm:$0xff]
  %v4973 = vld [vmem:[%s20] sm:$0x1]
  %v4975 = vlaneseq
  %v4976 = vshrl.u32 %v4975, 7
  %v4977 = vsub.s32 0, %v4976
  %v4978 = vrot.slane %v4973, %v4977
  %4982 = vrot.lane.b32.xlu0 %v4967, 96
  %v4983 = vpop.permute.xlu0 %4982
  %4984 = vrot.lane.b32.xlu0 %v4968, 96
  %v4985 = vpop.permute.xlu0 %4984
  %v4986 = vsel %vm90, %v4983, 0
  %v4988 = vsel %vm90, %v4985, 0
  %4990 = vmatprep.subr.mxu0 0.0
  %4991 = vmatpush1.msra.mxu0 %v4969
  %4992 = vmatprep.subr.mxu0 0.0
  %4993 = vmatpush1.msra.mxu0 %v4970
  %4994 = vmatprep.subr.mxu0 0.0
  %4995 = vmatpush1.msra.mxu0 %v4971
  %4996 = vmatprep.subr.mxu0 0.0
  %4997 = vmatpush1.msra.mxu0 %v4972
  %4998 = vmatprep.subr.mxu0 0.0
  %4999 = vmatpush1.msra.mxu0 0.0
  %5000 = vmatprep.subr.mxu0 0.0
  %5001 = vmatpush1.msra.mxu0 0.0
  %5002 = vmatprep.subr.mxu0 0.0
  %5003 = vmatpush1.msra.mxu0 0.0
  %5004 = vmatprep.subr.mxu0 0.0
  %5005 = vmatpush1.msra.mxu0 0.0
  %5006 = vmatprep.subr.mxu0 0.0
  %5007 = vmatpush1.msra.mxu0 0.0
  %5008 = vmatprep.subr.mxu0 0.0
  %5009 = vmatpush1.msra.mxu0 0.0
  %5010 = vmatprep.subr.mxu0 0.0
  %5011 = vmatpush1.msra.mxu0 0.0
  %5012 = vmatprep.subr.mxu0 0.0
  %5013 = vmatpush1.msra.mxu0 0.0
  %5014 = vmatprep.subr.mxu0 0.0
  %5015 = vmatpush1.msra.mxu0 0.0
  %5016 = vmatprep.subr.mxu0 0.0
  %5017 = vmatpush1.msra.mxu0 0.0
  %5018 = vmatprep.subr.mxu0 0.0
  %5019 = vmatpush1.msra.mxu0 0.0
  %5020 = vmatprep.subr.mxu0 0.0
  %5021 = vmatpush1.msra.mxu0 0.0
  %5022 = vmatprep.subr.mxu0 0.0
  %5023 = vmatpush1.msra.mxu0 0.0
  %5024 = vmatprep.subr.mxu0 0.0
  %5025 = vmatpush1.msra.mxu0 0.0
  %5026 = vmatprep.subr.mxu0 0.0
  %5027 = vmatpush1.msra.mxu0 0.0
  %5028 = vmatprep.subr.mxu0 0.0
  %5029 = vmatpush1.msra.mxu0 0.0
  %5030 = vmatprep.subr.mxu0 0.0
  %5031 = vmatpush1.msra.mxu0 0.0
  %5032 = vmatprep.subr.mxu0 0.0
  %5033 = vmatpush1.msra.mxu0 0.0
  %5034 = vmatprep.subr.mxu0 0.0
  %5035 = vmatpush1.msra.mxu0 0.0
  %5036 = vmatprep.subr.mxu0 0.0
  %5037 = vmatpush1.msra.mxu0 0.0
  %5038 = vmatprep.subr.mxu0 0.0
  %5039 = vmatpush1.msra.mxu0 0.0
  %5040 = vmatprep.subr.mxu0 0.0
  %5041 = vmatpush1.msra.mxu0 0.0
  %5042 = vmatprep.subr.mxu0 0.0
  %5043 = vmatpush1.msra.mxu0 0.0
  %5044 = vmatprep.subr.mxu0 0.0
  %5045 = vmatpush1.msra.mxu0 0.0
  %5046 = vmatprep.subr.mxu0 0.0
  %5047 = vmatpush1.msra.mxu0 0.0
  %5048 = vmatprep.subr.mxu0 0.0
  %5049 = vmatpush1.msra.mxu0 0.0
  %5050 = vmatprep.subr.mxu0 0.0
  %5051 = vmatpush1.msra.mxu0 0.0
  %5052 = vmatprep.subr.mxu0 0.0
  %5053 = vmatpush1.msra.mxu0 0.0
  %5054 = vmatprep.mubr.f32.mxu0 0.0
  %5055 = vmatmul.mubr.f32.gmra.mrb[0].mxu0 %v4986
  %v5056 = vpop.f32.mrb[0].mxu0
  %v5057 = vadd.f32 %v4978, %v5056
  %v5058 = vpop.f32.mrb[0].mxu0
  %5059 = vmatprep.mubr.f32.mxu0 0.0
  %5060 = vmatmul.mubr.f32.gmra.mrb[0].mxu0 %v4988
  %v5061 = vpop.f32.mrb[0].mxu0
  %v5062 = vadd.f32 %v4978, %v5061
  %v5063 = vpop.f32.mrb[0].mxu0
  %5064 = vdwg.mxu0
  %v5065 = vmax.f32 %v5057, 0.0
  %v5066 = vmax.f32 %v5062, 0.0
  %v5067 = vld [vmem:[%s21] sm:$0xff]
  %v5068 = vld [vmem:[%s21 + $0x8] sm:$0xff]
  %v5069 = vld [vmem:[%s21 + $0x10] sm:$0xff]
  %v5070 = vld [vmem:[%s21 + $0x18] sm:$0xff]
  %v5071 = vld [vmem:[%s21 + $0x20] sm:$0xff]
  %v5072 = vld [vmem:[%s21 + $0x28] sm:$0xff]
  %v5073 = vld [vmem:[%s21 + $0x30] sm:$0xff]
  %v5074 = vld [vmem:[%s21 + $0x38] sm:$0xff]
  %v5075 = vld [vmem:[%s22] sm:$0x1]
  %v5077 = vlaneseq
  %v5078 = vshrl.u32 %v5077, 7
  %v5079 = vsub.s32 0, %v5078
  %v5080 = vrot.slane %v5075, %v5079
  %v5083 = vsel %vm4507, %v5065, 0
  %v5086 = vsel %vm4507, %v5066, 0
  %5088 = vmatprep.subr.mxu0 0.0
  %5089 = vmatpush1.msra.mxu0 %v5067
  %5090 = vmatprep.subr.mxu0 0.0
  %5091 = vmatpush1.msra.mxu0 %v5068
  %5092 = vmatprep.subr.mxu0 0.0
  %5093 = vmatpush1.msra.mxu0 %v5069
  %5094 = vmatprep.subr.mxu0 0.0
  %5095 = vmatpush1.msra.mxu0 %v5070
  %5096 = vmatprep.subr.mxu0 0.0
  %5097 = vmatpush1.msra.mxu0 %v5071
  %5098 = vmatprep.subr.mxu0 0.0
  %5099 = vmatpush1.msra.mxu0 %v5072
  %5100 = vmatprep.subr.mxu0 0.0
  %5101 = vmatpush1.msra.mxu0 %v5073
  %5102 = vmatprep.subr.mxu0 0.0
  %5103 = vmatpush1.msra.mxu0 %v5074
  %5104 = vmatprep.subr.mxu0 0.0
  %5105 = vmatpush1.msra.mxu0 0.0
  %5106 = vmatprep.subr.mxu0 0.0
  %5107 = vmatpush1.msra.mxu0 0.0
  %5108 = vmatprep.subr.mxu0 0.0
  %5109 = vmatpush1.msra.mxu0 0.0
  %5110 = vmatprep.subr.mxu0 0.0
  %5111 = vmatpush1.msra.mxu0 0.0
  %5112 = vmatprep.subr.mxu0 0.0
  %5113 = vmatpush1.msra.mxu0 0.0
  %5114 = vmatprep.subr.mxu0 0.0
  %5115 = vmatpush1.msra.mxu0 0.0
  %5116 = vmatprep.subr.mxu0 0.0
  %5117 = vmatpush1.msra.mxu0 0.0
  %5118 = vmatprep.subr.mxu0 0.0
  %5119 = vmatpush1.msra.mxu0 0.0
  %5120 = vmatprep.subr.mxu0 0.0
  %5121 = vmatpush1.msra.mxu0 0.0
  %5122 = vmatprep.subr.mxu0 0.0
  %5123 = vmatpush1.msra.mxu0 0.0
  %5124 = vmatprep.subr.mxu0 0.0
  %5125 = vmatpush1.msra.mxu0 0.0
  %5126 = vmatprep.subr.mxu0 0.0
  %5127 = vmatpush1.msra.mxu0 0.0
  %5128 = vmatprep.subr.mxu0 0.0
  %5129 = vmatpush1.msra.mxu0 0.0
  %5130 = vmatprep.subr.mxu0 0.0
  %5131 = vmatpush1.msra.mxu0 0.0
  %5132 = vmatprep.subr.mxu0 0.0
  %5133 = vmatpush1.msra.mxu0 0.0
  %5134 = vmatprep.subr.mxu0 0.0
  %5135 = vmatpush1.msra.mxu0 0.0
  %5136 = vmatprep.subr.mxu0 0.0
  %5137 = vmatpush1.msra.mxu0 0.0
  %5138 = vmatprep.subr.mxu0 0.0
  %5139 = vmatpush1.msra.mxu0 0.0
  %5140 = vmatprep.subr.mxu0 0.0
  %5141 = vmatpush1.msra.mxu0 0.0
  %5142 = vmatprep.subr.mxu0 0.0
  %5143 = vmatpush1.msra.mxu0 0.0
  %5144 = vmatprep.subr.mxu0 0.0
  %5145 = vmatpush1.msra.mxu0 0.0
  %5146 = vmatprep.subr.mxu0 0.0
  %5147 = vmatpush1.msra.mxu0 0.0
  %5148 = vmatprep.subr.mxu0 0.0
  %5149 = vmatpush1.msra.mxu0 0.0
  %5150 = vmatprep.subr.mxu0 0.0
  %5151 = vmatpush1.msra.mxu0 0.0
  %5152 = vmatprep.mubr.f32.mxu0 0.0
  %5153 = vmatmul.mubr.f32.gmra.mrb[0].mxu0 %v5083
  %v5154 = vpop.f32.mrb[0].mxu0
  %v5155 = vadd.f32 %v5080, %v5154
  %v5156 = vpop.f32.mrb[0].mxu0
  %5157 = vmatprep.mubr.f32.mxu0 0.0
  %5158 = vmatmul.mubr.f32.gmra.mrb[0].mxu0 %v5086
  %v5159 = vpop.f32.mrb[0].mxu0
  %v5160 = vadd.f32 %v5080, %v5159
  %v5161 = vpop.f32.mrb[0].mxu0
  %5162 = vdwg.mxu0
  %v5163 = vld [vmem:[%s23] sm:$0xff]
  %v5164 = vld [vmem:[%s23 + $0x8] sm:$0xff]
  %v5165 = vld [vmem:[%s23 + $0x10] sm:$0xff]
  %v5166 = vld [vmem:[%s23 + $0x18] sm:$0xff]
  %v5168 = vsel %vm90, %v5155, 0
  %v5171 = vsel %vm90, %v5160, 0
  %5173 = vmatprep.subr.mxu0 0.0
  %5174 = vmatpush1.msra.mxu0 %v5163
  %5175 = vmatprep.subr.mxu0 0.0
  %5176 = vmatpush1.msra.mxu0 %v5164
  %5177 = vmatprep.subr.mxu0 0.0
  %5178 = vmatpush1.msra.mxu0 %v5165
  %5179 = vmatprep.subr.mxu0 0.0
  %5180 = vmatpush1.msra.mxu0 %v5166
  %5181 = vmatprep.subr.mxu0 0.0
  %5182 = vmatpush1.msra.mxu0 0.0
  %5183 = vmatprep.subr.mxu0 0.0
  %5184 = vmatpush1.msra.mxu0 0.0
  %5185 = vmatprep.subr.mxu0 0.0
  %5186 = vmatpush1.msra.mxu0 0.0
  %5187 = vmatprep.subr.mxu0 0.0
  %5188 = vmatpush1.msra.mxu0 0.0
  %5189 = vmatprep.subr.mxu0 0.0
  %5190 = vmatpush1.msra.mxu0 0.0
  %5191 = vmatprep.subr.mxu0 0.0
  %5192 = vmatpush1.msra.mxu0 0.0
  %5193 = vmatprep.subr.mxu0 0.0
  %5194 = vmatpush1.msra.mxu0 0.0
  %5195 = vmatprep.subr.mxu0 0.0
  %5196 = vmatpush1.msra.mxu0 0.0
  %5197 = vmatprep.subr.mxu0 0.0
  %5198 = vmatpush1.msra.mxu0 0.0
  %5199 = vmatprep.subr.mxu0 0.0
  %5200 = vmatpush1.msra.mxu0 0.0
  %5201 = vmatprep.subr.mxu0 0.0
  %5202 = vmatpush1.msra.mxu0 0.0
  %5203 = vmatprep.subr.mxu0 0.0
  %5204 = vmatpush1.msra.mxu0 0.0
  %5205 = vmatprep.subr.mxu0 0.0
  %5206 = vmatpush1.msra.mxu0 0.0
  %5207 = vmatprep.subr.mxu0 0.0
  %5208 = vmatpush1.msra.mxu0 0.0
  %5209 = vmatprep.subr.mxu0 0.0
  %5210 = vmatpush1.msra.mxu0 0.0
  %5211 = vmatprep.subr.mxu0 0.0
  %5212 = vmatpush1.msra.mxu0 0.0
  %5213 = vmatprep.subr.mxu0 0.0
  %5214 = vmatpush1.msra.mxu0 0.0
  %5215 = vmatprep.subr.mxu0 0.0
  %5216 = vmatpush1.msra.mxu0 0.0
  %5217 = vmatprep.subr.mxu0 0.0
  %5218 = vmatpush1.msra.mxu0 0.0
  %5219 = vmatprep.subr.mxu0 0.0
  %5220 = vmatpush1.msra.mxu0 0.0
  %5221 = vmatprep.subr.mxu0 0.0
  %5222 = vmatpush1.msra.mxu0 0.0
  %5223 = vmatprep.subr.mxu0 0.0
  %5224 = vmatpush1.msra.mxu0 0.0
  %5225 = vmatprep.subr.mxu0 0.0
  %5226 = vmatpush1.msra.mxu0 0.0
  %5227 = vmatprep.subr.mxu0 0.0
  %5228 = vmatpush1.msra.mxu0 0.0
  %5229 = vmatprep.subr.mxu0 0.0
  %5230 = vmatpush1.msra.mxu0 0.0
  %5231 = vmatprep.subr.mxu0 0.0
  %5232 = vmatpush1.msra.mxu0 0.0
  %5233 = vmatprep.subr.mxu0 0.0
  %5234 = vmatpush1.msra.mxu0 0.0
  %5235 = vmatprep.subr.mxu0 0.0
  %5236 = vmatpush1.msra.mxu0 0.0
  %5237 = vmatprep.mubr.f32.mxu0 0.0
  %5238 = vmatmul.mubr.f32.gmra.mrb[0].mxu0 %v5168
  %v5239 = vpop.f32.mrb[0].mxu0
  %v5240 = vadd.f32 0.0, %v5239
  %v5241 = vpop.f32.mrb[0].mxu0
  %5242 = vmatprep.mubr.f32.mxu0 0.0
  %5243 = vmatmul.mubr.f32.gmra.mrb[0].mxu0 %v5171
  %v5244 = vpop.f32.mrb[0].mxu0
  %v5245 = vadd.f32 0.0, %v5244
  %v5246 = vpop.f32.mrb[0].mxu0
  %5247 = vdwg.mxu0
  %v5248 = vld [vmem:[%s24] sm:$0xff]
  %v5249 = vld [vmem:[%s24 + $0x8] sm:$0xff]
  %v5250 = vld [vmem:[%s24 + $0x10] sm:$0xff]
  %v5251 = vld [vmem:[%s24 + $0x18] sm:$0xff]
  %v5252 = vsel %vm90, %v4908, 0
  %v5254 = vsel %vm90, %v4910, 0
  %5256 = vmatprep.subr.mxu0 0.0
  %5257 = vmatpush1.msra.mxu0 %v5248
  %5258 = vmatprep.subr.mxu0 0.0
  %5259 = vmatpush1.msra.mxu0 %v5249
  %5260 = vmatprep.subr.mxu0 0.0
  %5261 = vmatpush1.msra.mxu0 %v5250
  %5262 = vmatprep.subr.mxu0 0.0
  %5263 = vmatpush1.msra.mxu0 %v5251
  %5264 = vmatprep.subr.mxu0 0.0
  %5265 = vmatpush1.msra.mxu0 0.0
  %5266 = vmatprep.subr.mxu0 0.0
  %5267 = vmatpush1.msra.mxu0 0.0
  %5268 = vmatprep.subr.mxu0 0.0
  %5269 = vmatpush1.msra.mxu0 0.0
  %5270 = vmatprep.subr.mxu0 0.0
  %5271 = vmatpush1.msra.mxu0 0.0
  %5272 = vmatprep.subr.mxu0 0.0
  %5273 = vmatpush1.msra.mxu0 0.0
  %5274 = vmatprep.subr.mxu0 0.0
  %5275 = vmatpush1.msra.mxu0 0.0
  %5276 = vmatprep.subr.mxu0 0.0
  %5277 = vmatpush1.msra.mxu0 0.0
  %5278 = vmatprep.subr.mxu0 0.0
  %5279 = vmatpush1.msra.mxu0 0.0
  %5280 = vmatprep.subr.mxu0 0.0
  %5281 = vmatpush1.msra.mxu0 0.0
  %5282 = vmatprep.subr.mxu0 0.0
  %5283 = vmatpush1.msra.mxu0 0.0
  %5284 = vmatprep.subr.mxu0 0.0
  %5285 = vmatpush1.msra.mxu0 0.0
  %5286 = vmatprep.subr.mxu0 0.0
  %5287 = vmatpush1.msra.mxu0 0.0
  %5288 = vmatprep.subr.mxu0 0.0
  %5289 = vmatpush1.msra.mxu0 0.0
  %5290 = vmatprep.subr.mxu0 0.0
  %5291 = vmatpush1.msra.mxu0 0.0
  %5292 = vmatprep.subr.mxu0 0.0
  %5293 = vmatpush1.msra.mxu0 0.0
  %5294 = vmatprep.subr.mxu0 0.0
  %5295 = vmatpush1.msra.mxu0 0.0
  %5296 = vmatprep.subr.mxu0 0.0
  %5297 = vmatpush1.msra.mxu0 0.0
  %5298 = vmatprep.subr.mxu0 0.0
  %5299 = vmatpush1.msra.mxu0 0.0
  %5300 = vmatprep.subr.mxu0 0.0
  %5301 = vmatpush1.msra.mxu0 0.0
  %5302 = vmatprep.subr.mxu0 0.0
  %5303 = vmatpush1.msra.mxu0 0.0
  %5304 = vmatprep.subr.mxu0 0.0
  %5305 = vmatpush1.msra.mxu0 0.0
  %5306 = vmatprep.subr.mxu0 0.0
  %5307 = vmatpush1.msra.mxu0 0.0
  %5308 = vmatprep.subr.mxu0 0.0
  %5309 = vmatpush1.msra.mxu0 0.0
  %5310 = vmatprep.subr.mxu0 0.0
  %5311 = vmatpush1.msra.mxu0 0.0
  %5312 = vmatprep.subr.mxu0 0.0
  %5313 = vmatpush1.msra.mxu0 0.0
  %5314 = vmatprep.subr.mxu0 0.0
  %5315 = vmatpush1.msra.mxu0 0.0
  %5316 = vmatprep.subr.mxu0 0.0
  %5317 = vmatpush1.msra.mxu0 0.0
  %5318 = vmatprep.subr.mxu0 0.0
  %5319 = vmatpush1.msra.mxu0 0.0
  %5320 = vmatprep.mubr.f32.mxu0 0.0
  %5321 = vmatmul.mubr.f32.gmra.mrb[0].mxu0 %v5252
  %v5322 = vpop.f32.mrb[0].mxu0
  %v5323 = vadd.f32 0.0, %v5322
  %v5324 = vpop.f32.mrb[0].mxu0
  %5325 = vmatprep.mubr.f32.mxu0 0.0
  %5326 = vmatmul.mubr.f32.gmra.mrb[0].mxu0 %v5254
  %v5327 = vpop.f32.mrb[0].mxu0
  %v5328 = vadd.f32 0.0, %v5327
  %v5329 = vpop.f32.mrb[0].mxu0
  %5330 = vdwg.mxu0
  %v5331 = vld [vmem:[%s26] sm:$0x1]
  %v5332 = vadd.f32 %v5240, %v5323
  %v5333 = vadd.f32 %v5245, %v5328
  %v5335 = vlaneseq
  %v5336 = vshrl.u32 %v5335, 7
  %v5337 = vsub.s32 0, %v5336
  %v5338 = vrot.slane %v5331, %v5337
  %v5340 = vadd.f32 %v5332, %v5338
  %v5341 = vadd.f32 %v5333, %v5338
  %v5342 = vxor.u32 %v5340, 2147483648
  %v5343 = vxor.u32 %v5341, 2147483648
  %v5344 = vmul.f32 %v5342, 1.442695
  %v5345 = vpow.pop %v5344
  %v5346 = vmul.f32 %v5343, 1.442695
  %v5347 = vpow.pop %v5346
  %v5348 = vadd.f32 %v5345, 1.0
  %v5349 = vadd.f32 %v5347, 1.0
  %v5350 = vrcp.pop %v5348
  %v5351 = vmul.f32 1.0, %v5350
  %v5352 = vrcp.pop %v5349
  %v5353 = vmul.f32 1.0, %v5352
  %v5354 = vmul.f32 %v5351, %v4908
  %v5355 = vmul.f32 %v5353, %v4910
  %v5356 = vld [vmem:[%s25] sm:$0xff]
  %v5357 = vld [vmem:[%s25 + $0x8] sm:$0xff]
  %v5358 = vld [vmem:[%s25 + $0x10] sm:$0xff]
  %v5359 = vld [vmem:[%s25 + $0x18] sm:$0xff]
  %v5361 = vsel %vm90, %v5354, 0
  %v5364 = vsel %vm90, %v5355, 0
  %5366 = vmatprep.subr.mxu0 0.0
  %5367 = vmatpush1.msra.mxu0 %v5356
  %5368 = vmatprep.subr.mxu0 0.0
  %5369 = vmatpush1.msra.mxu0 %v5357
  %5370 = vmatprep.subr.mxu0 0.0
  %5371 = vmatpush1.msra.mxu0 %v5358
  %5372 = vmatprep.subr.mxu0 0.0
  %5373 = vmatpush1.msra.mxu0 %v5359
  %5374 = vmatprep.subr.mxu0 0.0
  %5375 = vmatpush1.msra.mxu0 0.0
  %5376 = vmatprep.subr.mxu0 0.0
  %5377 = vmatpush1.msra.mxu0 0.0
  %5378 = vmatprep.subr.mxu0 0.0
  %5379 = vmatpush1.msra.mxu0 0.0
  %5380 = vmatprep.subr.mxu0 0.0
  %5381 = vmatpush1.msra.mxu0 0.0
  %5382 = vmatprep.subr.mxu0 0.0
  %5383 = vmatpush1.msra.mxu0 0.0
  %5384 = vmatprep.subr.mxu0 0.0
  %5385 = vmatpush1.msra.mxu0 0.0
  %5386 = vmatprep.subr.mxu0 0.0
  %5387 = vmatpush1.msra.mxu0 0.0
  %5388 = vmatprep.subr.mxu0 0.0
  %5389 = vmatpush1.msra.mxu0 0.0
  %5390 = vmatprep.subr.mxu0 0.0
  %5391 = vmatpush1.msra.mxu0 0.0
  %5392 = vmatprep.subr.mxu0 0.0
  %5393 = vmatpush1.msra.mxu0 0.0
  %5394 = vmatprep.subr.mxu0 0.0
  %5395 = vmatpush1.msra.mxu0 0.0
  %5396 = vmatprep.subr.mxu0 0.0
  %5397 = vmatpush1.msra.mxu0 0.0
  %5398 = vmatprep.subr.mxu0 0.0
  %5399 = vmatpush1.msra.mxu0 0.0
  %5400 = vmatprep.subr.mxu0 0.0
  %5401 = vmatpush1.msra.mxu0 0.0
  %5402 = vmatprep.subr.mxu0 0.0
  %5403 = vmatpush1.msra.mxu0 0.0
  %5404 = vmatprep.subr.mxu0 0.0
  %5405 = vmatpush1.msra.mxu0 0.0
  %5406 = vmatprep.subr.mxu0 0.0
  %5407 = vmatpush1.msra.mxu0 0.0
  %5408 = vmatprep.subr.mxu0 0.0
  %5409 = vmatpush1.msra.mxu0 0.0
  %5410 = vmatprep.subr.mxu0 0.0
  %5411 = vmatpush1.msra.mxu0 0.0
  %5412 = vmatprep.subr.mxu0 0.0
  %5413 = vmatpush1.msra.mxu0 0.0
  %5414 = vmatprep.subr.mxu0 0.0
  %5415 = vmatpush1.msra.mxu0 0.0
  %5416 = vmatprep.subr.mxu0 0.0
  %5417 = vmatpush1.msra.mxu0 0.0
  %5418 = vmatprep.subr.mxu0 0.0
  %5419 = vmatpush1.msra.mxu0 0.0
  %5420 = vmatprep.subr.mxu0 0.0
  %5421 = vmatpush1.msra.mxu0 0.0
  %5422 = vmatprep.subr.mxu0 0.0
  %5423 = vmatpush1.msra.mxu0 0.0
  %5424 = vmatprep.subr.mxu0 0.0
  %5425 = vmatpush1.msra.mxu0 0.0
  %5426 = vmatprep.subr.mxu0 0.0
  %5427 = vmatpush1.msra.mxu0 0.0
  %5428 = vmatprep.subr.mxu0 0.0
  %5429 = vmatpush1.msra.mxu0 0.0
  %5430 = vmatprep.mubr.f32.mxu0 0.0
  %5431 = vmatmul.mubr.f32.gmra.mrb[0].mxu0 %v5361
  %v5432 = vpop.f32.mrb[0].mxu0
  %v5433 = vadd.f32 0.0, %v5432
  %v5434 = vpop.f32.mrb[0].mxu0
  %5435 = vmatprep.mubr.f32.mxu0 0.0
  %5436 = vmatmul.mubr.f32.gmra.mrb[0].mxu0 %v5364
  %v5437 = vpop.f32.mrb[0].mxu0
  %v5438 = vadd.f32 0.0, %v5437
  %v5439 = vpop.f32.mrb[0].mxu0
  %5440 = vdwg.mxu0
  %5443 = vrot.lane.b32.xlu0 %v5433, 64
  %v5444 = vpop.permute.xlu0 %5443
  %5445 = vrot.lane.b32.xlu0 %v5438, 64
  %v5446 = vpop.permute.xlu0 %5445
  %v5449 = vadd.f32 %v5240, %v5444
  %v5450 = vadd.f32 %v5245, %v5446
  %v5451 = vadd.f32 %v5449, %v5338
  %v5452 = vadd.f32 %v5450, %v5338
  %v5453 = vtanh.pop %v5451
  %v5454 = vtanh.pop %v5452
  %v5455 = vsub.f32 1.0, %v5351
  %v5456 = vsub.f32 1.0, %v5353
  %v5457 = vmul.f32 %v5455, %v4903
  %v5458 = vmul.f32 %v5456, %v4904
  %5461 = vrot.lane.b32.xlu0 %v5453, 96
  %v5462 = vpop.permute.xlu0 %5461
  %5463 = vrot.lane.b32.xlu0 %v5454, 96
  %v5464 = vpop.permute.xlu0 %5463
  %v5467 = vmul.f32 %v5351, %v5462
  %v5468 = vmul.f32 %v5353, %v5464
  %v5469 = vadd.f32 %v5457, %v5467
  %v5470 = vadd.f32 %v5458, %v5468
  %5473 = vrot.lane.b32.xlu0 %v5469, 96
  %v5474 = vpop.permute.xlu0 %5473
  %5475 = vrot.lane.b32.xlu0 %v5470, 96
  %v5476 = vpop.permute.xlu0 %5475
  %5479 = vst.msk [vmem:[%s27] sm:$0xff] %vm90, %v5474
  %5480 = vst.msk [vmem:[%s27 + $0x8] sm:$0xff] %vm90, %v5476
  // Predicated region
  $region110: #{transformer_agg_forward.3} parent=0 // pred_check
    _
  $region111: #{transformer_agg_forward.3} parent=0 // pred_check_branch
    %5482 = sbr.rel (0) target = $region113
  $region112: #{transformer_agg_forward.3} parent=0 // pred_region
    _
  $region113: #{transformer_agg_forward.3} parent=0 // pred_fallthru
    _
  // Predicated region
  $region114: #{transformer_agg_forward.3} parent=0 // pred_check
    _
  $region115: #{transformer_agg_forward.3} parent=0 // pred_check_branch
    %5484 = sbr.rel (0) target = $region117
  $region116: #{transformer_agg_forward.3} parent=0 // pred_region
    _
  $region117: #{transformer_agg_forward.3} parent=0 // pred_fallthru
    _

</llo_original>
